<compile_context>
chip_gen: v7x
topology: tpu7x:2x2x1
jax: 0.10.0
libtpu: 0.0.40
codegen_flags: <defaults>
</compile_context>

<pallas_src>
import numpy as np
import jax
import jax.numpy as jnp
from jax.experimental import pallas as pl
from jax.experimental.pallas import tpu as pltpu


# ---------------------------------------------------------------------------
# VGG-19 features[:21] conv parameters (indices in the torchvision Sequential).
# Only conv0/conv2/conv5/conv7 feed the returned (content, style) features; the
# rest are kept so the parameter set mirrors the frozen module.
# ---------------------------------------------------------------------------
VGG19_CONVS = [
    ("conv0", 3, 64), ("conv2", 64, 64),
    ("conv5", 64, 128), ("conv7", 128, 128),
    ("conv10", 128, 256), ("conv12", 256, 256),
    ("conv14", 256, 256), ("conv16", 256, 256),
    ("conv19", 256, 512),
]


def init_params(key):
    """Deterministic synthetic weights with the VGG-19 features[:21] shapes (HWIO)."""
    params = {}
    for name, cin, cout in VGG19_CONVS:
        key, kw, kb = jax.random.split(key, 3)
        scale = 1.0 / float((9 * cin) ** 0.5)
        w = jax.random.normal(kw, (3, 3, cin, cout), jnp.float32) * scale
        b = jax.random.normal(kb, (1, cout), jnp.float32) * 0.01
        params[name] = (w, b)
    return params


# ---------------------------------------------------------------------------
# In-kernel building blocks (traced inside the fused kernel body).
# ---------------------------------------------------------------------------
def _conv_taps(src_pad, w_taps_ref, b_ref, h, w):
    """3x3 SAME conv + ReLU as 9 whole-image MXU matmuls.

    src_pad:    (h+2, w+2, Cin) bf16 value (zero-padded activation)
    w_taps_ref: (9, Cin, Cout)  bf16 ref (tap index = dy*3 + dx)
    b_ref:      (1, Cout)       f32 ref
    returns     (h*w, Cout)     f32 (ReLU applied), rows ordered y*w + x
    """
    cin = src_pad.shape[-1]
    cout = w_taps_ref.shape[-1]
    acc = jnp.zeros((h * w, cout), jnp.float32)
    for dy in range(3):
        for dx in range(3):
            patch = src_pad[dy:dy + h, dx:dx + w, :].reshape(h * w, cin)
            acc = acc + jnp.dot(patch, w_taps_ref[dy * 3 + dx],
                                preferred_element_type=jnp.float32)
    return jnp.maximum(acc + b_ref[...], 0.0)


def _maxpool_gather(act, p_ref):
    """2x2 / stride-2 max pool on a spatially-flattened activation.

    act:   (h*w, C) f32
    p_ref: (4, (h//2)*(w//2), h*w) f32 one-hot row-selection matrices
    returns ((h//2)*(w//2), C) f32
    MXU one-hot gathers are exact (1.0 * x + 0.0), so this equals a true max-pool.
    """
    out = None
    for t in range(4):
        g = jnp.dot(p_ref[t], act, preferred_element_type=jnp.float32)
        out = g if out is None else jnp.maximum(out, g)
    return out


def _make_fused_kernel(h, w):
    """Fused VGG-19 features[:10] kernel for one batch element (H=h, W=w)."""
    h1, w1 = h // 2, w // 2

    def kernel(xcol_ref, w0c_ref, b0_ref, w2_ref, b2_ref, w5_ref, b5_ref,
               w7_ref, b7_ref, p1_ref, p2_ref,
               content_ref, style_ref, a1p_ref, a3p_ref, a4p_ref):
        # ---- conv0 + ReLU (im2col, single K=27 matmul) --------------------
        a0 = jnp.dot(xcol_ref[0], w0c_ref[...],
                     preferred_element_type=jnp.float32)        # (h*w, 64)
        a0 = jnp.maximum(a0 + b0_ref[...], 0.0)

        # stage into zero-padded VMEM scratch for the next conv (bf16)
        a1p_ref[...] = jnp.zeros(a1p_ref.shape, a1p_ref.dtype)
        a1p_ref[pl.ds(1, h), pl.ds(1, w), :] = (
            a0.reshape(h, w, 64).astype(jnp.bfloat16))

        # ---- conv2 + ReLU --------------------------------------------------
        a2 = _conv_taps(a1p_ref[...], w2_ref, b2_ref, h, w)      # (h*w, 64) f32

        # ---- maxpool (layer 4) -> content feature --------------------------
        c = _maxpool_gather(a2, p1_ref)                          # (h1*w1, 64)
        content_ref[0] = c

        a3p_ref[...] = jnp.zeros(a3p_ref.shape, a3p_ref.dtype)
        a3p_ref[pl.ds(1, h1), pl.ds(1, w1), :] = (
            c.reshape(h1, w1, 64).astype(jnp.bfloat16))

        # ---- conv5 + ReLU --------------------------------------------------
        a4 = _conv_taps(a3p_ref[...], w5_ref, b5_ref, h1, w1)    # (h1*w1, 128)

        a4p_ref[...] = jnp.zeros(a4p_ref.shape, a4p_ref.dtype)
        a4p_ref[pl.ds(1, h1), pl.ds(1, w1), :] = (
            a4.reshape(h1, w1, 128).astype(jnp.bfloat16))

        # ---- conv7 + ReLU --------------------------------------------------
        a5 = _conv_taps(a4p_ref[...], w7_ref, b7_ref, h1, w1)    # (h1*w1, 128)

        # ---- maxpool (layer 9) -> style feature ----------------------------
        style_ref[0] = _maxpool_gather(a5, p2_ref)               # (h2*w2, 128)

    return kernel


# ---------------------------------------------------------------------------
# Host-side helpers (trace-time constants / layout glue).
# ---------------------------------------------------------------------------
def _pool_select_matrices(h, w):
    """4 one-hot matrices: row i*wo+j of matrix (dy,dx) selects input row
    (2i+dy)*w + (2j+dx).  Max over the 4 gathers == 2x2/stride-2 max pool."""
    ho, wo = h // 2, w // 2
    mats = np.zeros((4, ho * wo, h * w), np.float32)
    t = 0
    for dy in range(2):
        for dx in range(2):
            for i in range(ho):
                for j in range(wo):
                    mats[t, i * wo + j, (2 * i + dy) * w + (2 * j + dx)] = 1.0
            t += 1
    return jnp.asarray(mats)


def style_transfer_forward(x_nchw, params):
    """Mirror of StyleTransferModel.forward: returns (content_feature, style_feature) in NCHW."""
    n, cin, h, w = x_nchw.shape
    # PyTorch MaxPool2d(2,2) floor-drops odd rows/cols; we require even sizes here.
    assert cin == 3 and h % 4 == 0 and w % 4 == 0, (cin, h, w)
    h1, w1 = h // 2, w // 2
    h2, w2 = h1 // 2, w1 // 2

    # ---- one-time input prep (tiny, pure XLA glue) -------------------------
    x = jnp.transpose(x_nchw, (0, 2, 3, 1)).astype(jnp.float32)          # NHWC
    xp = jnp.pad(x, ((0, 0), (1, 1), (1, 1), (0, 0)))                    # pad once
    xcol = jnp.concatenate(
        [xp[:, dy:dy + h, dx:dx + w, :] for dy in range(3) for dx in range(3)],
        axis=-1).reshape(n, h * w, 27).astype(jnp.bfloat16)              # im2col, K=27

    def taps(wgt):  # (3,3,Cin,Cout) -> (9,Cin,Cout) bf16, tap index = dy*3+dx
        return wgt.reshape(9, wgt.shape[2], wgt.shape[3]).astype(jnp.bfloat16)

    w0c = params["conv0"][0].reshape(27, 64).astype(jnp.bfloat16)
    b0 = params["conv0"][1]
    w2t, b2 = taps(params["conv2"][0]), params["conv2"][1]
    w5t, b5 = taps(params["conv5"][0]), params["conv5"][1]
    w7t, b7 = taps(params["conv7"][0]), params["conv7"][1]
    p1 = _pool_select_matrices(h, w)                                     # (4, h1*w1, h*w)
    p2 = _pool_select_matrices(h1, w1)                                   # (4, h2*w2, h1*w1)

    kernel = _make_fused_kernel(h, w)

    content_flat, style_flat = pl.pallas_call(
        kernel,
        out_shape=(
            jax.ShapeDtypeStruct((n, h1 * w1, 64), jnp.float32),
            jax.ShapeDtypeStruct((n, h2 * w2, 128), jnp.float32),
        ),
        grid=(n,),
        in_specs=[
            pl.BlockSpec((1, h * w, 27), lambda i: (i, 0, 0)),
            pl.BlockSpec((27, 64), lambda i: (0, 0)),
            pl.BlockSpec((1, 64), lambda i: (0, 0)),
            pl.BlockSpec((9, 64, 64), lambda i: (0, 0, 0)),
            pl.BlockSpec((1, 64), lambda i: (0, 0)),
            pl.BlockSpec((9, 64, 128), lambda i: (0, 0, 0)),
            pl.BlockSpec((1, 128), lambda i: (0, 0)),
            pl.BlockSpec((9, 128, 128), lambda i: (0, 0, 0)),
            pl.BlockSpec((1, 128), lambda i: (0, 0)),
            pl.BlockSpec((4, h1 * w1, h * w), lambda i: (0, 0, 0)),
            pl.BlockSpec((4, h2 * w2, h1 * w1), lambda i: (0, 0, 0)),
        ],
        out_specs=[
            pl.BlockSpec((1, h1 * w1, 64), lambda i: (i, 0, 0)),
            pl.BlockSpec((1, h2 * w2, 128), lambda i: (i, 0, 0)),
        ],
        scratch_shapes=[
            pltpu.VMEM((h + 2, w + 2, 64), jnp.bfloat16),     # padded conv0 out
            pltpu.VMEM((h1 + 2, w1 + 2, 64), jnp.bfloat16),   # padded pool4 out
            pltpu.VMEM((h1 + 2, w1 + 2, 128), jnp.bfloat16),  # padded conv5 out
        ],
        compiler_params=pltpu.CompilerParams(
            dimension_semantics=("parallel",)),
    )(xcol, w0c, b0, w2t, b2, w5t, b5, w7t, b7, p1, p2)

    # NOTE: layers 10..20 of features[:21] are computed-then-discarded in the
    # PyTorch reference; they do not affect the returned features and are skipped.
    content = content_flat.reshape(n, h1, w1, 64).transpose(0, 3, 1, 2)   # NCHW
    style = style_flat.reshape(n, h2, w2, 128).transpose(0, 3, 1, 2)      # NCHW
    return content, style


# ---------------------------------------------------------------------------
# Pure-JAX reference (same bf16 operand discipline) for a correctness check.
# ---------------------------------------------------------------------------
def _reference_forward(x_nchw, params):
    x = jnp.transpose(x_nchw, (0, 2, 3, 1)).astype(jnp.float32)

    def conv(z, wgt, b):
        y = jax.lax.conv_general_dilated(
            z.astype(jnp.bfloat16), wgt.astype(jnp.bfloat16),
            window_strides=(1, 1), padding="SAME",
            dimension_numbers=("NHWC", "HWIO", "NHWC"),
            preferred_element_type=jnp.float32)
        return jnp.maximum(y + b.reshape(1, 1, 1, -1), 0.0)

    def pool(z):
        return jax.lax.reduce_window(z, -jnp.inf, jax.lax.max,
                                     (1, 2, 2, 1), (1, 2, 2, 1), "VALID")

    z = conv(x, *params["conv0"])
    z = conv(z, *params["conv2"])
    content = pool(z)
    z = conv(content, *params["conv5"])
    z = conv(z, *params["conv7"])
    style = pool(z)
    return (jnp.transpose(content, (0, 3, 1, 2)),
            jnp.transpose(style, (0, 3, 1, 2)))


if __name__ == "__main__":
    key = jax.random.PRNGKey(0)
    k_x, k_p = jax.random.split(key)
    x = jax.random.normal(k_x, (2, 3, 16, 16), jnp.float32)   # NCHW, like PyTorch
    params = init_params(k_p)

    fwd = jax.jit(style_transfer_forward)
    content, style = fwd(x, params)
    jax.block_until_ready((content, style))

    assert content.shape == (2, 64, 8, 8), content.shape
    assert style.shape == (2, 128, 4, 4), style.shape
    assert content.dtype == jnp.float32 and style.dtype == jnp.float32

    # bf16-operand / f32-accumulation reference check (documented tolerance).
    ref_c, ref_s = jax.jit(_reference_forward)(x, params)
    err_c = float(jnp.max(jnp.abs(content - ref_c)))
    err_s = float(jnp.max(jnp.abs(style - ref_s)))
    assert err_c < 2e-2 and err_s < 2e-2, (err_c, err_s)

    print("KERNEL_OK")
</pallas_src>

<mosaic_0001>
module attributes {stable_mosaic.version = 11 : i64} {
  func.func @kernel(%arg0: i32, %arg1: memref<1x256x27xbf16, #tpu.memory_space<vmem>>, %arg2: memref<27x64xbf16, #tpu.memory_space<vmem>>, %arg3: memref<1x64xf32, #tpu.memory_space<vmem>>, %arg4: memref<9x64x64xbf16, #tpu.memory_space<vmem>>, %arg5: memref<1x64xf32, #tpu.memory_space<vmem>>, %arg6: memref<9x64x128xbf16, #tpu.memory_space<vmem>>, %arg7: memref<1x128xf32, #tpu.memory_space<vmem>>, %arg8: memref<9x128x128xbf16, #tpu.memory_space<vmem>>, %arg9: memref<1x128xf32, #tpu.memory_space<vmem>>, %arg10: memref<4x64x256xf32, #tpu.memory_space<vmem>>, %arg11: memref<4x16x64xf32, #tpu.memory_space<vmem>>, %arg12: memref<1x64x64xf32, #tpu.memory_space<vmem>>, %arg13: memref<1x16x128xf32, #tpu.memory_space<vmem>>, %arg14: memref<18x18x64xbf16, #tpu.memory_space<vmem>>, %arg15: memref<10x10x64xbf16, #tpu.memory_space<vmem>>, %arg16: memref<10x10x128xbf16, #tpu.memory_space<vmem>>) attributes {dimension_semantics = [#tpu.dimension_semantics<parallel>], iteration_bounds = array<i64: 2>, scalar_prefetch = 0 : i64, scratch_operands = 3 : i64, tpu.core_type = #tpu.core_type<tc>, window_params = [{transform_indices = @transform_0, window_bounds = array<i64: 1, 256, 27>}, {pipeline_mode = #tpu.pipeline_mode<synchronous>, transform_indices = @transform_1, window_bounds = array<i64: 27, 64>}, {pipeline_mode = #tpu.pipeline_mode<synchronous>, transform_indices = @transform_2, window_bounds = array<i64: 1, 64>}, {pipeline_mode = #tpu.pipeline_mode<synchronous>, transform_indices = @transform_3, window_bounds = array<i64: 9, 64, 64>}, {pipeline_mode = #tpu.pipeline_mode<synchronous>, transform_indices = @transform_4, window_bounds = array<i64: 1, 64>}, {pipeline_mode = #tpu.pipeline_mode<synchronous>, transform_indices = @transform_5, window_bounds = array<i64: 9, 64, 128>}, {pipeline_mode = #tpu.pipeline_mode<synchronous>, transform_indices = @transform_6, window_bounds = array<i64: 1, 128>}, {pipeline_mode = #tpu.pipeline_mode<synchronous>, transform_indices = @transform_7, window_bounds = array<i64: 9, 128, 128>}, {pipeline_mode = #tpu.pipeline_mode<synchronous>, transform_indices = @transform_8, window_bounds = array<i64: 1, 128>}, {pipeline_mode = #tpu.pipeline_mode<synchronous>, transform_indices = @transform_9, window_bounds = array<i64: 4, 64, 256>}, {pipeline_mode = #tpu.pipeline_mode<synchronous>, transform_indices = @transform_10, window_bounds = array<i64: 4, 16, 64>}, {transform_indices = @transform_11, window_bounds = array<i64: 1, 64, 64>}, {transform_indices = @transform_12, window_bounds = array<i64: 1, 16, 128>}]} {
    %c0 = arith.constant 0 : index
    %c0_0 = arith.constant 0 : index
    %c0_1 = arith.constant 0 : index
    %0 = vector.load %arg1[%c0, %c0_0, %c0_1] : memref<1x256x27xbf16, #tpu.memory_space<vmem>>, vector<1x256x27xbf16>
    %1 = vector.shape_cast %0 : vector<1x256x27xbf16> to vector<256x27xbf16>
    %c0_2 = arith.constant 0 : index
    %c0_3 = arith.constant 0 : index
    %2 = vector.load %arg2[%c0_2, %c0_3] : memref<27x64xbf16, #tpu.memory_space<vmem>>, vector<27x64xbf16>
    %cst = arith.constant dense<0.000000e+00> : vector<256x64xf32>
    %3 = tpu.matmul %1, %2, %cst {dimension_numbers = #tpu.dot_dimension_numbers<[1], [0], [0], [1], [0, 0, 1, 1], [], []>} : vector<256x27xbf16>, vector<27x64xbf16>, vector<256x64xf32> -> vector<256x64xf32>
    %c0_4 = arith.constant 0 : index
    %c0_5 = arith.constant 0 : index
    %4 = vector.load %arg3[%c0_4, %c0_5] : memref<1x64xf32, #tpu.memory_space<vmem>>, vector<1x64xf32>
    %5 = vector.broadcast %4 : vector<1x64xf32> to vector<256x64xf32>
    %6 = arith.addf %3, %5 : vector<256x64xf32>
    %cst_6 = arith.constant 0.000000e+00 : f32
    %7 = vector.broadcast %cst_6 : f32 to vector<256x64xf32>
    %8 = arith.maximumf %6, %7 : vector<256x64xf32>
    %cst_7 = arith.constant 0.000000e+00 : bf16
    %9 = vector.broadcast %cst_7 : bf16 to vector<18x18x64xbf16>
    %c0_8 = arith.constant 0 : index
    %c0_9 = arith.constant 0 : index
    %c0_10 = arith.constant 0 : index
    %10 = vector.load %arg14[%c0_8, %c0_9, %c0_10] : memref<18x18x64xbf16, #tpu.memory_space<vmem>>, vector<18x18x64xbf16>
    tpu.vector_store %arg14[%c0_8, %c0_9, %c0_10], %9 {strides = array<i32>} : memref<18x18x64xbf16, #tpu.memory_space<vmem>>, vector<18x18x64xbf16>,
    %11 = vector.shape_cast %8 : vector<256x64xf32> to vector<16x16x64xf32>
    %12 = arith.truncf %11 : vector<16x16x64xf32> to vector<16x16x64xbf16>
    %c1 = arith.constant 1 : index
    %c1_11 = arith.constant 1 : index
    %c0_12 = arith.constant 0 : index
    %13 = vector.load %arg14[%c1, %c1_11, %c0_12] : memref<18x18x64xbf16, #tpu.memory_space<vmem>>, vector<16x16x64xbf16>
    tpu.vector_store %arg14[%c1, %c1_11, %c0_12], %12 {strides = array<i32>} : memref<18x18x64xbf16, #tpu.memory_space<vmem>>, vector<16x16x64xbf16>,
    %c0_13 = arith.constant 0 : index
    %c0_14 = arith.constant 0 : index
    %c0_15 = arith.constant 0 : index
    %14 = vector.load %arg14[%c0_13, %c0_14, %c0_15] : memref<18x18x64xbf16, #tpu.memory_space<vmem>>, vector<18x18x64xbf16>
    %cst_16 = arith.constant 0.000000e+00 : f32
    %15 = vector.broadcast %cst_16 : f32 to vector<256x64xf32>
    %16 = vector.extract_strided_slice %14 {offsets = [0, 0, 0], sizes = [16, 16, 64], strides = [1, 1, 1]} : vector<18x18x64xbf16> to vector<16x16x64xbf16>
    %17 = vector.shape_cast %16 : vector<16x16x64xbf16> to vector<256x64xbf16>
    %c0_17 = arith.constant 0 : index
    %c0_18 = arith.constant 0 : index
    %c0_19 = arith.constant 0 : index
    %18 = vector.load %arg4[%c0_17, %c0_18, %c0_19] : memref<9x64x64xbf16, #tpu.memory_space<vmem>>, vector<1x64x64xbf16>
    %19 = vector.shape_cast %18 : vector<1x64x64xbf16> to vector<64x64xbf16>
    %cst_20 = arith.constant dense<0.000000e+00> : vector<256x64xf32>
    %20 = tpu.matmul %17, %19, %cst_20 {dimension_numbers = #tpu.dot_dimension_numbers<[1], [0], [0], [1], [0, 0, 1, 1], [], []>} : vector<256x64xbf16>, vector<64x64xbf16>, vector<256x64xf32> -> vector<256x64xf32>
    %21 = arith.addf %15, %20 : vector<256x64xf32>
    %22 = vector.extract_strided_slice %14 {offsets = [0, 1, 0], sizes = [16, 16, 64], strides = [1, 1, 1]} : vector<18x18x64xbf16> to vector<16x16x64xbf16>
    %23 = vector.shape_cast %22 : vector<16x16x64xbf16> to vector<256x64xbf16>
    %c1_21 = arith.constant 1 : index
    %c0_22 = arith.constant 0 : index
    %c0_23 = arith.constant 0 : index
    %24 = vector.load %arg4[%c1_21, %c0_22, %c0_23] : memref<9x64x64xbf16, #tpu.memory_space<vmem>>, vector<1x64x64xbf16>
    %25 = vector.shape_cast %24 : vector<1x64x64xbf16> to vector<64x64xbf16>
    %cst_24 = arith.constant dense<0.000000e+00> : vector<256x64xf32>
    %26 = tpu.matmul %23, %25, %cst_24 {dimension_numbers = #tpu.dot_dimension_numbers<[1], [0], [0], [1], [0, 0, 1, 1], [], []>} : vector<256x64xbf16>, vector<64x64xbf16>, vector<256x64xf32> -> vector<256x64xf32>
    %27 = arith.addf %21, %26 : vector<256x64xf32>
    %28 = vector.extract_strided_slice %14 {offsets = [0, 2, 0], sizes = [16, 16, 64], strides = [1, 1, 1]} : vector<18x18x64xbf16> to vector<16x16x64xbf16>
    %29 = vector.shape_cast %28 : vector<16x16x64xbf16> to vector<256x64xbf16>
    %c2 = arith.constant 2 : index
    %c0_25 = arith.constant 0 : index
    %c0_26 = arith.constant 0 : index
    %30 = vector.load %arg4[%c2, %c0_25, %c0_26] : memref<9x64x64xbf16, #tpu.memory_space<vmem>>, vector<1x64x64xbf16>
    %31 = vector.shape_cast %30 : vector<1x64x64xbf16> to vector<64x64xbf16>
    %cst_27 = arith.constant dense<0.000000e+00> : vector<256x64xf32>
    %32 = tpu.matmul %29, %31, %cst_27 {dimension_numbers = #tpu.dot_dimension_numbers<[1], [0], [0], [1], [0, 0, 1, 1], [], []>} : vector<256x64xbf16>, vector<64x64xbf16>, vector<256x64xf32> -> vector<256x64xf32>
    %33 = arith.addf %27, %32 : vector<256x64xf32>
    %34 = vector.extract_strided_slice %14 {offsets = [1, 0, 0], sizes = [16, 16, 64], strides = [1, 1, 1]} : vector<18x18x64xbf16> to vector<16x16x64xbf16>
    %35 = vector.shape_cast %34 : vector<16x16x64xbf16> to vector<256x64xbf16>
    %c3 = arith.constant 3 : index
    %c0_28 = arith.constant 0 : index
    %c0_29 = arith.constant 0 : index
    %36 = vector.load %arg4[%c3, %c0_28, %c0_29] : memref<9x64x64xbf16, #tpu.memory_space<vmem>>, vector<1x64x64xbf16>
    %37 = vector.shape_cast %36 : vector<1x64x64xbf16> to vector<64x64xbf16>
    %cst_30 = arith.constant dense<0.000000e+00> : vector<256x64xf32>
    %38 = tpu.matmul %35, %37, %cst_30 {dimension_numbers = #tpu.dot_dimension_numbers<[1], [0], [0], [1], [0, 0, 1, 1], [], []>} : vector<256x64xbf16>, vector<64x64xbf16>, vector<256x64xf32> -> vector<256x64xf32>
    %39 = arith.addf %33, %38 : vector<256x64xf32>
    %40 = vector.extract_strided_slice %14 {offsets = [1, 1, 0], sizes = [16, 16, 64], strides = [1, 1, 1]} : vector<18x18x64xbf16> to vector<16x16x64xbf16>
    %41 = vector.shape_cast %40 : vector<16x16x64xbf16> to vector<256x64xbf16>
    %c4 = arith.constant 4 : index
    %c0_31 = arith.constant 0 : index
    %c0_32 = arith.constant 0 : index
    %42 = vector.load %arg4[%c4, %c0_31, %c0_32] : memref<9x64x64xbf16, #tpu.memory_space<vmem>>, vector<1x64x64xbf16>
    %43 = vector.shape_cast %42 : vector<1x64x64xbf16> to vector<64x64xbf16>
    %cst_33 = arith.constant dense<0.000000e+00> : vector<256x64xf32>
    %44 = tpu.matmul %41, %43, %cst_33 {dimension_numbers = #tpu.dot_dimension_numbers<[1], [0], [0], [1], [0, 0, 1, 1], [], []>} : vector<256x64xbf16>, vector<64x64xbf16>, vector<256x64xf32> -> vector<256x64xf32>
    %45 = arith.addf %39, %44 : vector<256x64xf32>
    %46 = vector.extract_strided_slice %14 {offsets = [1, 2, 0], sizes = [16, 16, 64], strides = [1, 1, 1]} : vector<18x18x64xbf16> to vector<16x16x64xbf16>
    %47 = vector.shape_cast %46 : vector<16x16x64xbf16> to vector<256x64xbf16>
    %c5 = arith.constant 5 : index
    %c0_34 = arith.constant 0 : index
    %c0_35 = arith.constant 0 : index
    %48 = vector.load %arg4[%c5, %c0_34, %c0_35] : memref<9x64x64xbf16, #tpu.memory_space<vmem>>, vector<1x64x64xbf16>
    %49 = vector.shape_cast %48 : vector<1x64x64xbf16> to vector<64x64xbf16>
    %cst_36 = arith.constant dense<0.000000e+00> : vector<256x64xf32>
    %50 = tpu.matmul %47, %49, %cst_36 {dimension_numbers = #tpu.dot_dimension_numbers<[1], [0], [0], [1], [0, 0, 1, 1], [], []>} : vector<256x64xbf16>, vector<64x64xbf16>, vector<256x64xf32> -> vector<256x64xf32>
    %51 = arith.addf %45, %50 : vector<256x64xf32>
    %52 = vector.extract_strided_slice %14 {offsets = [2, 0, 0], sizes = [16, 16, 64], strides = [1, 1, 1]} : vector<18x18x64xbf16> to vector<16x16x64xbf16>
    %53 = vector.shape_cast %52 : vector<16x16x64xbf16> to vector<256x64xbf16>
    %c6 = arith.constant 6 : index
    %c0_37 = arith.constant 0 : index
    %c0_38 = arith.constant 0 : index
    %54 = vector.load %arg4[%c6, %c0_37, %c0_38] : memref<9x64x64xbf16, #tpu.memory_space<vmem>>, vector<1x64x64xbf16>
    %55 = vector.shape_cast %54 : vector<1x64x64xbf16> to vector<64x64xbf16>
    %cst_39 = arith.constant dense<0.000000e+00> : vector<256x64xf32>
    %56 = tpu.matmul %53, %55, %cst_39 {dimension_numbers = #tpu.dot_dimension_numbers<[1], [0], [0], [1], [0, 0, 1, 1], [], []>} : vector<256x64xbf16>, vector<64x64xbf16>, vector<256x64xf32> -> vector<256x64xf32>
    %57 = arith.addf %51, %56 : vector<256x64xf32>
    %58 = vector.extract_strided_slice %14 {offsets = [2, 1, 0], sizes = [16, 16, 64], strides = [1, 1, 1]} : vector<18x18x64xbf16> to vector<16x16x64xbf16>
    %59 = vector.shape_cast %58 : vector<16x16x64xbf16> to vector<256x64xbf16>
    %c7 = arith.constant 7 : index
    %c0_40 = arith.constant 0 : index
    %c0_41 = arith.constant 0 : index
    %60 = vector.load %arg4[%c7, %c0_40, %c0_41] : memref<9x64x64xbf16, #tpu.memory_space<vmem>>, vector<1x64x64xbf16>
    %61 = vector.shape_cast %60 : vector<1x64x64xbf16> to vector<64x64xbf16>
    %cst_42 = arith.constant dense<0.000000e+00> : vector<256x64xf32>
    %62 = tpu.matmul %59, %61, %cst_42 {dimension_numbers = #tpu.dot_dimension_numbers<[1], [0], [0], [1], [0, 0, 1, 1], [], []>} : vector<256x64xbf16>, vector<64x64xbf16>, vector<256x64xf32> -> vector<256x64xf32>
    %63 = arith.addf %57, %62 : vector<256x64xf32>
    %64 = vector.extract_strided_slice %14 {offsets = [2, 2, 0], sizes = [16, 16, 64], strides = [1, 1, 1]} : vector<18x18x64xbf16> to vector<16x16x64xbf16>
    %65 = vector.shape_cast %64 : vector<16x16x64xbf16> to vector<256x64xbf16>
    %c8 = arith.constant 8 : index
    %c0_43 = arith.constant 0 : index
    %c0_44 = arith.constant 0 : index
    %66 = vector.load %arg4[%c8, %c0_43, %c0_44] : memref<9x64x64xbf16, #tpu.memory_space<vmem>>, vector<1x64x64xbf16>
    %67 = vector.shape_cast %66 : vector<1x64x64xbf16> to vector<64x64xbf16>
    %cst_45 = arith.constant dense<0.000000e+00> : vector<256x64xf32>
    %68 = tpu.matmul %65, %67, %cst_45 {dimension_numbers = #tpu.dot_dimension_numbers<[1], [0], [0], [1], [0, 0, 1, 1], [], []>} : vector<256x64xbf16>, vector<64x64xbf16>, vector<256x64xf32> -> vector<256x64xf32>
    %69 = arith.addf %63, %68 : vector<256x64xf32>
    %c0_46 = arith.constant 0 : index
    %c0_47 = arith.constant 0 : index
    %70 = vector.load %arg5[%c0_46, %c0_47] : memref<1x64xf32, #tpu.memory_space<vmem>>, vector<1x64xf32>
    %71 = vector.broadcast %70 : vector<1x64xf32> to vector<256x64xf32>
    %72 = arith.addf %69, %71 : vector<256x64xf32>
    %cst_48 = arith.constant 0.000000e+00 : f32
    %73 = vector.broadcast %cst_48 : f32 to vector<256x64xf32>
    %74 = arith.maximumf %72, %73 : vector<256x64xf32>
    %c0_49 = arith.constant 0 : index
    %c0_50 = arith.constant 0 : index
    %c0_51 = arith.constant 0 : index
    %75 = vector.load %arg10[%c0_49, %c0_50, %c0_51] : memref<4x64x256xf32, #tpu.memory_space<vmem>>, vector<1x64x256xf32>
    %76 = vector.shape_cast %75 : vector<1x64x256xf32> to vector<64x256xf32>
    %cst_52 = arith.constant dense<0.000000e+00> : vector<64x64xf32>
    %77 = tpu.matmul %76, %74, %cst_52 {dimension_numbers = #tpu.dot_dimension_numbers<[1], [0], [0], [1], [0, 0, 1, 1], [], []>} : vector<64x256xf32>, vector<256x64xf32>, vector<64x64xf32> -> vector<64x64xf32>
    %c1_53 = arith.constant 1 : index
    %c0_54 = arith.constant 0 : index
    %c0_55 = arith.constant 0 : index
    %78 = vector.load %arg10[%c1_53, %c0_54, %c0_55] : memref<4x64x256xf32, #tpu.memory_space<vmem>>, vector<1x64x256xf32>
    %79 = vector.shape_cast %78 : vector<1x64x256xf32> to vector<64x256xf32>
    %cst_56 = arith.constant dense<0.000000e+00> : vector<64x64xf32>
    %80 = tpu.matmul %79, %74, %cst_56 {dimension_numbers = #tpu.dot_dimension_numbers<[1], [0], [0], [1], [0, 0, 1, 1], [], []>} : vector<64x256xf32>, vector<256x64xf32>, vector<64x64xf32> -> vector<64x64xf32>
    %81 = arith.maximumf %77, %80 : vector<64x64xf32>
    %c2_57 = arith.constant 2 : index
    %c0_58 = arith.constant 0 : index
    %c0_59 = arith.constant 0 : index
    %82 = vector.load %arg10[%c2_57, %c0_58, %c0_59] : memref<4x64x256xf32, #tpu.memory_space<vmem>>, vector<1x64x256xf32>
    %83 = vector.shape_cast %82 : vector<1x64x256xf32> to vector<64x256xf32>
    %cst_60 = arith.constant dense<0.000000e+00> : vector<64x64xf32>
    %84 = tpu.matmul %83, %74, %cst_60 {dimension_numbers = #tpu.dot_dimension_numbers<[1], [0], [0], [1], [0, 0, 1, 1], [], []>} : vector<64x256xf32>, vector<256x64xf32>, vector<64x64xf32> -> vector<64x64xf32>
    %85 = arith.maximumf %81, %84 : vector<64x64xf32>
    %c3_61 = arith.constant 3 : index
    %c0_62 = arith.constant 0 : index
    %c0_63 = arith.constant 0 : index
    %86 = vector.load %arg10[%c3_61, %c0_62, %c0_63] : memref<4x64x256xf32, #tpu.memory_space<vmem>>, vector<1x64x256xf32>
    %87 = vector.shape_cast %86 : vector<1x64x256xf32> to vector<64x256xf32>
    %cst_64 = arith.constant dense<0.000000e+00> : vector<64x64xf32>
    %88 = tpu.matmul %87, %74, %cst_64 {dimension_numbers = #tpu.dot_dimension_numbers<[1], [0], [0], [1], [0, 0, 1, 1], [], []>} : vector<64x256xf32>, vector<256x64xf32>, vector<64x64xf32> -> vector<64x64xf32>
    %89 = arith.maximumf %85, %88 : vector<64x64xf32>
    %c0_65 = arith.constant 0 : index
    %c0_66 = arith.constant 0 : index
    %c0_67 = arith.constant 0 : index
    %90 = vector.load %arg12[%c0_65, %c0_66, %c0_67] : memref<1x64x64xf32, #tpu.memory_space<vmem>>, vector<1x64x64xf32>
    %91 = vector.shape_cast %90 : vector<1x64x64xf32> to vector<64x64xf32>
    %92 = vector.shape_cast %89 : vector<64x64xf32> to vector<1x64x64xf32>
    tpu.vector_store %arg12[%c0_65, %c0_66, %c0_67], %92 {strides = array<i32>} : memref<1x64x64xf32, #tpu.memory_space<vmem>>, vector<1x64x64xf32>,
    %cst_68 = arith.constant 0.000000e+00 : bf16
    %93 = vector.broadcast %cst_68 : bf16 to vector<10x10x64xbf16>
    %c0_69 = arith.constant 0 : index
    %c0_70 = arith.constant 0 : index
    %c0_71 = arith.constant 0 : index
    %94 = vector.load %arg15[%c0_69, %c0_70, %c0_71] : memref<10x10x64xbf16, #tpu.memory_space<vmem>>, vector<10x10x64xbf16>
    tpu.vector_store %arg15[%c0_69, %c0_70, %c0_71], %93 {strides = array<i32>} : memref<10x10x64xbf16, #tpu.memory_space<vmem>>, vector<10x10x64xbf16>,
    %95 = vector.shape_cast %89 : vector<64x64xf32> to vector<8x8x64xf32>
    %96 = arith.truncf %95 : vector<8x8x64xf32> to vector<8x8x64xbf16>
    %c1_72 = arith.constant 1 : index
    %c1_73 = arith.constant 1 : index
    %c0_74 = arith.constant 0 : index
    %97 = vector.load %arg15[%c1_72, %c1_73, %c0_74] : memref<10x10x64xbf16, #tpu.memory_space<vmem>>, vector<8x8x64xbf16>
    tpu.vector_store %arg15[%c1_72, %c1_73, %c0_74], %96 {strides = array<i32>} : memref<10x10x64xbf16, #tpu.memory_space<vmem>>, vector<8x8x64xbf16>,
    %c0_75 = arith.constant 0 : index
    %c0_76 = arith.constant 0 : index
    %c0_77 = arith.constant 0 : index
    %98 = vector.load %arg15[%c0_75, %c0_76, %c0_77] : memref<10x10x64xbf16, #tpu.memory_space<vmem>>, vector<10x10x64xbf16>
    %cst_78 = arith.constant 0.000000e+00 : f32
    %99 = vector.broadcast %cst_78 : f32 to vector<64x128xf32>
    %100 = vector.extract_strided_slice %98 {offsets = [0, 0, 0], sizes = [8, 8, 64], strides = [1, 1, 1]} : vector<10x10x64xbf16> to vector<8x8x64xbf16>
    %101 = vector.shape_cast %100 : vector<8x8x64xbf16> to vector<64x64xbf16>
    %c0_79 = arith.constant 0 : index
    %c0_80 = arith.constant 0 : index
    %c0_81 = arith.constant 0 : index
    %102 = vector.load %arg6[%c0_79, %c0_80, %c0_81] : memref<9x64x128xbf16, #tpu.memory_space<vmem>>, vector<1x64x128xbf16>
    %103 = vector.shape_cast %102 : vector<1x64x128xbf16> to vector<64x128xbf16>
    %cst_82 = arith.constant dense<0.000000e+00> : vector<64x128xf32>
    %104 = tpu.matmul %101, %103, %cst_82 {dimension_numbers = #tpu.dot_dimension_numbers<[1], [0], [0], [1], [0, 0, 1, 1], [], []>} : vector<64x64xbf16>, vector<64x128xbf16>, vector<64x128xf32> -> vector<64x128xf32>
    %105 = arith.addf %99, %104 : vector<64x128xf32>
    %106 = vector.extract_strided_slice %98 {offsets = [0, 1, 0], sizes = [8, 8, 64], strides = [1, 1, 1]} : vector<10x10x64xbf16> to vector<8x8x64xbf16>
    %107 = vector.shape_cast %106 : vector<8x8x64xbf16> to vector<64x64xbf16>
    %c1_83 = arith.constant 1 : index
    %c0_84 = arith.constant 0 : index
    %c0_85 = arith.constant 0 : index
    %108 = vector.load %arg6[%c1_83, %c0_84, %c0_85] : memref<9x64x128xbf16, #tpu.memory_space<vmem>>, vector<1x64x128xbf16>
    %109 = vector.shape_cast %108 : vector<1x64x128xbf16> to vector<64x128xbf16>
    %cst_86 = arith.constant dense<0.000000e+00> : vector<64x128xf32>
    %110 = tpu.matmul %107, %109, %cst_86 {dimension_numbers = #tpu.dot_dimension_numbers<[1], [0], [0], [1], [0, 0, 1, 1], [], []>} : vector<64x64xbf16>, vector<64x128xbf16>, vector<64x128xf32> -> vector<64x128xf32>
    %111 = arith.addf %105, %110 : vector<64x128xf32>
    %112 = vector.extract_strided_slice %98 {offsets = [0, 2, 0], sizes = [8, 8, 64], strides = [1, 1, 1]} : vector<10x10x64xbf16> to vector<8x8x64xbf16>
    %113 = vector.shape_cast %112 : vector<8x8x64xbf16> to vector<64x64xbf16>
    %c2_87 = arith.constant 2 : index
    %c0_88 = arith.constant 0 : index
    %c0_89 = arith.constant 0 : index
    %114 = vector.load %arg6[%c2_87, %c0_88, %c0_89] : memref<9x64x128xbf16, #tpu.memory_space<vmem>>, vector<1x64x128xbf16>
    %115 = vector.shape_cast %114 : vector<1x64x128xbf16> to vector<64x128xbf16>
    %cst_90 = arith.constant dense<0.000000e+00> : vector<64x128xf32>
    %116 = tpu.matmul %113, %115, %cst_90 {dimension_numbers = #tpu.dot_dimension_numbers<[1], [0], [0], [1], [0, 0, 1, 1], [], []>} : vector<64x64xbf16>, vector<64x128xbf16>, vector<64x128xf32> -> vector<64x128xf32>
    %117 = arith.addf %111, %116 : vector<64x128xf32>
    %118 = vector.extract_strided_slice %98 {offsets = [1, 0, 0], sizes = [8, 8, 64], strides = [1, 1, 1]} : vector<10x10x64xbf16> to vector<8x8x64xbf16>
    %119 = vector.shape_cast %118 : vector<8x8x64xbf16> to vector<64x64xbf16>
    %c3_91 = arith.constant 3 : index
    %c0_92 = arith.constant 0 : index
    %c0_93 = arith.constant 0 : index
    %120 = vector.load %arg6[%c3_91, %c0_92, %c0_93] : memref<9x64x128xbf16, #tpu.memory_space<vmem>>, vector<1x64x128xbf16>
    %121 = vector.shape_cast %120 : vector<1x64x128xbf16> to vector<64x128xbf16>
    %cst_94 = arith.constant dense<0.000000e+00> : vector<64x128xf32>
    %122 = tpu.matmul %119, %121, %cst_94 {dimension_numbers = #tpu.dot_dimension_numbers<[1], [0], [0], [1], [0, 0, 1, 1], [], []>} : vector<64x64xbf16>, vector<64x128xbf16>, vector<64x128xf32> -> vector<64x128xf32>
    %123 = arith.addf %117, %122 : vector<64x128xf32>
    %124 = vector.extract_strided_slice %98 {offsets = [1, 1, 0], sizes = [8, 8, 64], strides = [1, 1, 1]} : vector<10x10x64xbf16> to vector<8x8x64xbf16>
    %125 = vector.shape_cast %124 : vector<8x8x64xbf16> to vector<64x64xbf16>
    %c4_95 = arith.constant 4 : index
    %c0_96 = arith.constant 0 : index
    %c0_97 = arith.constant 0 : index
    %126 = vector.load %arg6[%c4_95, %c0_96, %c0_97] : memref<9x64x128xbf16, #tpu.memory_space<vmem>>, vector<1x64x128xbf16>
    %127 = vector.shape_cast %126 : vector<1x64x128xbf16> to vector<64x128xbf16>
    %cst_98 = arith.constant dense<0.000000e+00> : vector<64x128xf32>
    %128 = tpu.matmul %125, %127, %cst_98 {dimension_numbers = #tpu.dot_dimension_numbers<[1], [0], [0], [1], [0, 0, 1, 1], [], []>} : vector<64x64xbf16>, vector<64x128xbf16>, vector<64x128xf32> -> vector<64x128xf32>
    %129 = arith.addf %123, %128 : vector<64x128xf32>
    %130 = vector.extract_strided_slice %98 {offsets = [1, 2, 0], sizes = [8, 8, 64], strides = [1, 1, 1]} : vector<10x10x64xbf16> to vector<8x8x64xbf16>
    %131 = vector.shape_cast %130 : vector<8x8x64xbf16> to vector<64x64xbf16>
    %c5_99 = arith.constant 5 : index
    %c0_100 = arith.constant 0 : index
    %c0_101 = arith.constant 0 : index
    %132 = vector.load %arg6[%c5_99, %c0_100, %c0_101] : memref<9x64x128xbf16, #tpu.memory_space<vmem>>, vector<1x64x128xbf16>
    %133 = vector.shape_cast %132 : vector<1x64x128xbf16> to vector<64x128xbf16>
    %cst_102 = arith.constant dense<0.000000e+00> : vector<64x128xf32>
    %134 = tpu.matmul %131, %133, %cst_102 {dimension_numbers = #tpu.dot_dimension_numbers<[1], [0], [0], [1], [0, 0, 1, 1], [], []>} : vector<64x64xbf16>, vector<64x128xbf16>, vector<64x128xf32> -> vector<64x128xf32>
    %135 = arith.addf %129, %134 : vector<64x128xf32>
    %136 = vector.extract_strided_slice %98 {offsets = [2, 0, 0], sizes = [8, 8, 64], strides = [1, 1, 1]} : vector<10x10x64xbf16> to vector<8x8x64xbf16>
    %137 = vector.shape_cast %136 : vector<8x8x64xbf16> to vector<64x64xbf16>
    %c6_103 = arith.constant 6 : index
    %c0_104 = arith.constant 0 : index
    %c0_105 = arith.constant 0 : index
    %138 = vector.load %arg6[%c6_103, %c0_104, %c0_105] : memref<9x64x128xbf16, #tpu.memory_space<vmem>>, vector<1x64x128xbf16>
    %139 = vector.shape_cast %138 : vector<1x64x128xbf16> to vector<64x128xbf16>
    %cst_106 = arith.constant dense<0.000000e+00> : vector<64x128xf32>
    %140 = tpu.matmul %137, %139, %cst_106 {dimension_numbers = #tpu.dot_dimension_numbers<[1], [0], [0], [1], [0, 0, 1, 1], [], []>} : vector<64x64xbf16>, vector<64x128xbf16>, vector<64x128xf32> -> vector<64x128xf32>
    %141 = arith.addf %135, %140 : vector<64x128xf32>
    %142 = vector.extract_strided_slice %98 {offsets = [2, 1, 0], sizes = [8, 8, 64], strides = [1, 1, 1]} : vector<10x10x64xbf16> to vector<8x8x64xbf16>
    %143 = vector.shape_cast %142 : vector<8x8x64xbf16> to vector<64x64xbf16>
    %c7_107 = arith.constant 7 : index
    %c0_108 = arith.constant 0 : index
    %c0_109 = arith.constant 0 : index
    %144 = vector.load %arg6[%c7_107, %c0_108, %c0_109] : memref<9x64x128xbf16, #tpu.memory_space<vmem>>, vector<1x64x128xbf16>
    %145 = vector.shape_cast %144 : vector<1x64x128xbf16> to vector<64x128xbf16>
    %cst_110 = arith.constant dense<0.000000e+00> : vector<64x128xf32>
    %146 = tpu.matmul %143, %145, %cst_110 {dimension_numbers = #tpu.dot_dimension_numbers<[1], [0], [0], [1], [0, 0, 1, 1], [], []>} : vector<64x64xbf16>, vector<64x128xbf16>, vector<64x128xf32> -> vector<64x128xf32>
    %147 = arith.addf %141, %146 : vector<64x128xf32>
    %148 = vector.extract_strided_slice %98 {offsets = [2, 2, 0], sizes = [8, 8, 64], strides = [1, 1, 1]} : vector<10x10x64xbf16> to vector<8x8x64xbf16>
    %149 = vector.shape_cast %148 : vector<8x8x64xbf16> to vector<64x64xbf16>
    %c8_111 = arith.constant 8 : index
    %c0_112 = arith.constant 0 : index
    %c0_113 = arith.constant 0 : index
    %150 = vector.load %arg6[%c8_111, %c0_112, %c0_113] : memref<9x64x128xbf16, #tpu.memory_space<vmem>>, vector<1x64x128xbf16>
    %151 = vector.shape_cast %150 : vector<1x64x128xbf16> to vector<64x128xbf16>
    %cst_114 = arith.constant dense<0.000000e+00> : vector<64x128xf32>
    %152 = tpu.matmul %149, %151, %cst_114 {dimension_numbers = #tpu.dot_dimension_numbers<[1], [0], [0], [1], [0, 0, 1, 1], [], []>} : vector<64x64xbf16>, vector<64x128xbf16>, vector<64x128xf32> -> vector<64x128xf32>
    %153 = arith.addf %147, %152 : vector<64x128xf32>
    %c0_115 = arith.constant 0 : index
    %c0_116 = arith.constant 0 : index
    %154 = vector.load %arg7[%c0_115, %c0_116] : memref<1x128xf32, #tpu.memory_space<vmem>>, vector<1x128xf32>
    %155 = vector.broadcast %154 : vector<1x128xf32> to vector<64x128xf32>
    %156 = arith.addf %153, %155 : vector<64x128xf32>
    %cst_117 = arith.constant 0.000000e+00 : f32
    %157 = vector.broadcast %cst_117 : f32 to vector<64x128xf32>
    %158 = arith.maximumf %156, %157 : vector<64x128xf32>
    %cst_118 = arith.constant 0.000000e+00 : bf16
    %159 = vector.broadcast %cst_118 : bf16 to vector<10x10x128xbf16>
    %c0_119 = arith.constant 0 : index
    %c0_120 = arith.constant 0 : index
    %c0_121 = arith.constant 0 : index
    %160 = vector.load %arg16[%c0_119, %c0_120, %c0_121] : memref<10x10x128xbf16, #tpu.memory_space<vmem>>, vector<10x10x128xbf16>
    tpu.vector_store %arg16[%c0_119, %c0_120, %c0_121], %159 {strides = array<i32>} : memref<10x10x128xbf16, #tpu.memory_space<vmem>>, vector<10x10x128xbf16>,
    %161 = vector.shape_cast %158 : vector<64x128xf32> to vector<8x8x128xf32>
    %162 = arith.truncf %161 : vector<8x8x128xf32> to vector<8x8x128xbf16>
    %c1_122 = arith.constant 1 : index
    %c1_123 = arith.constant 1 : index
    %c0_124 = arith.constant 0 : index
    %163 = vector.load %arg16[%c1_122, %c1_123, %c0_124] : memref<10x10x128xbf16, #tpu.memory_space<vmem>>, vector<8x8x128xbf16>
    tpu.vector_store %arg16[%c1_122, %c1_123, %c0_124], %162 {strides = array<i32>} : memref<10x10x128xbf16, #tpu.memory_space<vmem>>, vector<8x8x128xbf16>,
    %c0_125 = arith.constant 0 : index
    %c0_126 = arith.constant 0 : index
    %c0_127 = arith.constant 0 : index
    %164 = vector.load %arg16[%c0_125, %c0_126, %c0_127] : memref<10x10x128xbf16, #tpu.memory_space<vmem>>, vector<10x10x128xbf16>
    %cst_128 = arith.constant 0.000000e+00 : f32
    %165 = vector.broadcast %cst_128 : f32 to vector<64x128xf32>
    %166 = vector.extract_strided_slice %164 {offsets = [0, 0, 0], sizes = [8, 8, 128], strides = [1, 1, 1]} : vector<10x10x128xbf16> to vector<8x8x128xbf16>
    %167 = vector.shape_cast %166 : vector<8x8x128xbf16> to vector<64x128xbf16>
    %c0_129 = arith.constant 0 : index
    %c0_130 = arith.constant 0 : index
    %c0_131 = arith.constant 0 : index
    %168 = vector.load %arg8[%c0_129, %c0_130, %c0_131] : memref<9x128x128xbf16, #tpu.memory_space<vmem>>, vector<1x128x128xbf16>
    %169 = vector.shape_cast %168 : vector<1x128x128xbf16> to vector<128x128xbf16>
    %cst_132 = arith.constant dense<0.000000e+00> : vector<64x128xf32>
    %170 = tpu.matmul %167, %169, %cst_132 {dimension_numbers = #tpu.dot_dimension_numbers<[1], [0], [0], [1], [0, 0, 1, 1], [], []>} : vector<64x128xbf16>, vector<128x128xbf16>, vector<64x128xf32> -> vector<64x128xf32>
    %171 = arith.addf %165, %170 : vector<64x128xf32>
    %172 = vector.extract_strided_slice %164 {offsets = [0, 1, 0], sizes = [8, 8, 128], strides = [1, 1, 1]} : vector<10x10x128xbf16> to vector<8x8x128xbf16>
    %173 = vector.shape_cast %172 : vector<8x8x128xbf16> to vector<64x128xbf16>
    %c1_133 = arith.constant 1 : index
    %c0_134 = arith.constant 0 : index
    %c0_135 = arith.constant 0 : index
    %174 = vector.load %arg8[%c1_133, %c0_134, %c0_135] : memref<9x128x128xbf16, #tpu.memory_space<vmem>>, vector<1x128x128xbf16>
    %175 = vector.shape_cast %174 : vector<1x128x128xbf16> to vector<128x128xbf16>
    %cst_136 = arith.constant dense<0.000000e+00> : vector<64x128xf32>
    %176 = tpu.matmul %173, %175, %cst_136 {dimension_numbers = #tpu.dot_dimension_numbers<[1], [0], [0], [1], [0, 0, 1, 1], [], []>} : vector<64x128xbf16>, vector<128x128xbf16>, vector<64x128xf32> -> vector<64x128xf32>
    %177 = arith.addf %171, %176 : vector<64x128xf32>
    %178 = vector.extract_strided_slice %164 {offsets = [0, 2, 0], sizes = [8, 8, 128], strides = [1, 1, 1]} : vector<10x10x128xbf16> to vector<8x8x128xbf16>
    %179 = vector.shape_cast %178 : vector<8x8x128xbf16> to vector<64x128xbf16>
    %c2_137 = arith.constant 2 : index
    %c0_138 = arith.constant 0 : index
    %c0_139 = arith.constant 0 : index
    %180 = vector.load %arg8[%c2_137, %c0_138, %c0_139] : memref<9x128x128xbf16, #tpu.memory_space<vmem>>, vector<1x128x128xbf16>
    %181 = vector.shape_cast %180 : vector<1x128x128xbf16> to vector<128x128xbf16>
    %cst_140 = arith.constant dense<0.000000e+00> : vector<64x128xf32>
    %182 = tpu.matmul %179, %181, %cst_140 {dimension_numbers = #tpu.dot_dimension_numbers<[1], [0], [0], [1], [0, 0, 1, 1], [], []>} : vector<64x128xbf16>, vector<128x128xbf16>, vector<64x128xf32> -> vector<64x128xf32>
    %183 = arith.addf %177, %182 : vector<64x128xf32>
    %184 = vector.extract_strided_slice %164 {offsets = [1, 0, 0], sizes = [8, 8, 128], strides = [1, 1, 1]} : vector<10x10x128xbf16> to vector<8x8x128xbf16>
    %185 = vector.shape_cast %184 : vector<8x8x128xbf16> to vector<64x128xbf16>
    %c3_141 = arith.constant 3 : index
    %c0_142 = arith.constant 0 : index
    %c0_143 = arith.constant 0 : index
    %186 = vector.load %arg8[%c3_141, %c0_142, %c0_143] : memref<9x128x128xbf16, #tpu.memory_space<vmem>>, vector<1x128x128xbf16>
    %187 = vector.shape_cast %186 : vector<1x128x128xbf16> to vector<128x128xbf16>
    %cst_144 = arith.constant dense<0.000000e+00> : vector<64x128xf32>
    %188 = tpu.matmul %185, %187, %cst_144 {dimension_numbers = #tpu.dot_dimension_numbers<[1], [0], [0], [1], [0, 0, 1, 1], [], []>} : vector<64x128xbf16>, vector<128x128xbf16>, vector<64x128xf32> -> vector<64x128xf32>
    %189 = arith.addf %183, %188 : vector<64x128xf32>
    %190 = vector.extract_strided_slice %164 {offsets = [1, 1, 0], sizes = [8, 8, 128], strides = [1, 1, 1]} : vector<10x10x128xbf16> to vector<8x8x128xbf16>
    %191 = vector.shape_cast %190 : vector<8x8x128xbf16> to vector<64x128xbf16>
    %c4_145 = arith.constant 4 : index
    %c0_146 = arith.constant 0 : index
    %c0_147 = arith.constant 0 : index
    %192 = vector.load %arg8[%c4_145, %c0_146, %c0_147] : memref<9x128x128xbf16, #tpu.memory_space<vmem>>, vector<1x128x128xbf16>
    %193 = vector.shape_cast %192 : vector<1x128x128xbf16> to vector<128x128xbf16>
    %cst_148 = arith.constant dense<0.000000e+00> : vector<64x128xf32>
    %194 = tpu.matmul %191, %193, %cst_148 {dimension_numbers = #tpu.dot_dimension_numbers<[1], [0], [0], [1], [0, 0, 1, 1], [], []>} : vector<64x128xbf16>, vector<128x128xbf16>, vector<64x128xf32> -> vector<64x128xf32>
    %195 = arith.addf %189, %194 : vector<64x128xf32>
    %196 = vector.extract_strided_slice %164 {offsets = [1, 2, 0], sizes = [8, 8, 128], strides = [1, 1, 1]} : vector<10x10x128xbf16> to vector<8x8x128xbf16>
    %197 = vector.shape_cast %196 : vector<8x8x128xbf16> to vector<64x128xbf16>
    %c5_149 = arith.constant 5 : index
    %c0_150 = arith.constant 0 : index
    %c0_151 = arith.constant 0 : index
    %198 = vector.load %arg8[%c5_149, %c0_150, %c0_151] : memref<9x128x128xbf16, #tpu.memory_space<vmem>>, vector<1x128x128xbf16>
    %199 = vector.shape_cast %198 : vector<1x128x128xbf16> to vector<128x128xbf16>
    %cst_152 = arith.constant dense<0.000000e+00> : vector<64x128xf32>
    %200 = tpu.matmul %197, %199, %cst_152 {dimension_numbers = #tpu.dot_dimension_numbers<[1], [0], [0], [1], [0, 0, 1, 1], [], []>} : vector<64x128xbf16>, vector<128x128xbf16>, vector<64x128xf32> -> vector<64x128xf32>
    %201 = arith.addf %195, %200 : vector<64x128xf32>
    %202 = vector.extract_strided_slice %164 {offsets = [2, 0, 0], sizes = [8, 8, 128], strides = [1, 1, 1]} : vector<10x10x128xbf16> to vector<8x8x128xbf16>
    %203 = vector.shape_cast %202 : vector<8x8x128xbf16> to vector<64x128xbf16>
    %c6_153 = arith.constant 6 : index
    %c0_154 = arith.constant 0 : index
    %c0_155 = arith.constant 0 : index
    %204 = vector.load %arg8[%c6_153, %c0_154, %c0_155] : memref<9x128x128xbf16, #tpu.memory_space<vmem>>, vector<1x128x128xbf16>
    %205 = vector.shape_cast %204 : vector<1x128x128xbf16> to vector<128x128xbf16>
    %cst_156 = arith.constant dense<0.000000e+00> : vector<64x128xf32>
    %206 = tpu.matmul %203, %205, %cst_156 {dimension_numbers = #tpu.dot_dimension_numbers<[1], [0], [0], [1], [0, 0, 1, 1], [], []>} : vector<64x128xbf16>, vector<128x128xbf16>, vector<64x128xf32> -> vector<64x128xf32>
    %207 = arith.addf %201, %206 : vector<64x128xf32>
    %208 = vector.extract_strided_slice %164 {offsets = [2, 1, 0], sizes = [8, 8, 128], strides = [1, 1, 1]} : vector<10x10x128xbf16> to vector<8x8x128xbf16>
    %209 = vector.shape_cast %208 : vector<8x8x128xbf16> to vector<64x128xbf16>
    %c7_157 = arith.constant 7 : index
    %c0_158 = arith.constant 0 : index
    %c0_159 = arith.constant 0 : index
    %210 = vector.load %arg8[%c7_157, %c0_158, %c0_159] : memref<9x128x128xbf16, #tpu.memory_space<vmem>>, vector<1x128x128xbf16>
    %211 = vector.shape_cast %210 : vector<1x128x128xbf16> to vector<128x128xbf16>
    %cst_160 = arith.constant dense<0.000000e+00> : vector<64x128xf32>
    %212 = tpu.matmul %209, %211, %cst_160 {dimension_numbers = #tpu.dot_dimension_numbers<[1], [0], [0], [1], [0, 0, 1, 1], [], []>} : vector<64x128xbf16>, vector<128x128xbf16>, vector<64x128xf32> -> vector<64x128xf32>
    %213 = arith.addf %207, %212 : vector<64x128xf32>
    %214 = vector.extract_strided_slice %164 {offsets = [2, 2, 0], sizes = [8, 8, 128], strides = [1, 1, 1]} : vector<10x10x128xbf16> to vector<8x8x128xbf16>
    %215 = vector.shape_cast %214 : vector<8x8x128xbf16> to vector<64x128xbf16>
    %c8_161 = arith.constant 8 : index
    %c0_162 = arith.constant 0 : index
    %c0_163 = arith.constant 0 : index
    %216 = vector.load %arg8[%c8_161, %c0_162, %c0_163] : memref<9x128x128xbf16, #tpu.memory_space<vmem>>, vector<1x128x128xbf16>
    %217 = vector.shape_cast %216 : vector<1x128x128xbf16> to vector<128x128xbf16>
    %cst_164 = arith.constant dense<0.000000e+00> : vector<64x128xf32>
    %218 = tpu.matmul %215, %217, %cst_164 {dimension_numbers = #tpu.dot_dimension_numbers<[1], [0], [0], [1], [0, 0, 1, 1], [], []>} : vector<64x128xbf16>, vector<128x128xbf16>, vector<64x128xf32> -> vector<64x128xf32>
    %219 = arith.addf %213, %218 : vector<64x128xf32>
    %c0_165 = arith.constant 0 : index
    %c0_166 = arith.constant 0 : index
    %220 = vector.load %arg9[%c0_165, %c0_166] : memref<1x128xf32, #tpu.memory_space<vmem>>, vector<1x128xf32>
    %221 = vector.broadcast %220 : vector<1x128xf32> to vector<64x128xf32>
    %222 = arith.addf %219, %221 : vector<64x128xf32>
    %cst_167 = arith.constant 0.000000e+00 : f32
    %223 = vector.broadcast %cst_167 : f32 to vector<64x128xf32>
    %224 = arith.maximumf %222, %223 : vector<64x128xf32>
    %c0_168 = arith.constant 0 : index
    %c0_169 = arith.constant 0 : index
    %c0_170 = arith.constant 0 : index
    %225 = vector.load %arg11[%c0_168, %c0_169, %c0_170] : memref<4x16x64xf32, #tpu.memory_space<vmem>>, vector<1x16x64xf32>
    %226 = vector.shape_cast %225 : vector<1x16x64xf32> to vector<16x64xf32>
    %cst_171 = arith.constant dense<0.000000e+00> : vector<16x128xf32>
    %227 = tpu.matmul %226, %224, %cst_171 {dimension_numbers = #tpu.dot_dimension_numbers<[1], [0], [0], [1], [0, 0, 1, 1], [], []>} : vector<16x64xf32>, vector<64x128xf32>, vector<16x128xf32> -> vector<16x128xf32>
    %c1_172 = arith.constant 1 : index
    %c0_173 = arith.constant 0 : index
    %c0_174 = arith.constant 0 : index
    %228 = vector.load %arg11[%c1_172, %c0_173, %c0_174] : memref<4x16x64xf32, #tpu.memory_space<vmem>>, vector<1x16x64xf32>
    %229 = vector.shape_cast %228 : vector<1x16x64xf32> to vector<16x64xf32>
    %cst_175 = arith.constant dense<0.000000e+00> : vector<16x128xf32>
    %230 = tpu.matmul %229, %224, %cst_175 {dimension_numbers = #tpu.dot_dimension_numbers<[1], [0], [0], [1], [0, 0, 1, 1], [], []>} : vector<16x64xf32>, vector<64x128xf32>, vector<16x128xf32> -> vector<16x128xf32>
    %231 = arith.maximumf %227, %230 : vector<16x128xf32>
    %c2_176 = arith.constant 2 : index
    %c0_177 = arith.constant 0 : index
    %c0_178 = arith.constant 0 : index
    %232 = vector.load %arg11[%c2_176, %c0_177, %c0_178] : memref<4x16x64xf32, #tpu.memory_space<vmem>>, vector<1x16x64xf32>
    %233 = vector.shape_cast %232 : vector<1x16x64xf32> to vector<16x64xf32>
    %cst_179 = arith.constant dense<0.000000e+00> : vector<16x128xf32>
    %234 = tpu.matmul %233, %224, %cst_179 {dimension_numbers = #tpu.dot_dimension_numbers<[1], [0], [0], [1], [0, 0, 1, 1], [], []>} : vector<16x64xf32>, vector<64x128xf32>, vector<16x128xf32> -> vector<16x128xf32>
    %235 = arith.maximumf %231, %234 : vector<16x128xf32>
    %c3_180 = arith.constant 3 : index
    %c0_181 = arith.constant 0 : index
    %c0_182 = arith.constant 0 : index
    %236 = vector.load %arg11[%c3_180, %c0_181, %c0_182] : memref<4x16x64xf32, #tpu.memory_space<vmem>>, vector<1x16x64xf32>
    %237 = vector.shape_cast %236 : vector<1x16x64xf32> to vector<16x64xf32>
    %cst_183 = arith.constant dense<0.000000e+00> : vector<16x128xf32>
    %238 = tpu.matmul %237, %224, %cst_183 {dimension_numbers = #tpu.dot_dimension_numbers<[1], [0], [0], [1], [0, 0, 1, 1], [], []>} : vector<16x64xf32>, vector<64x128xf32>, vector<16x128xf32> -> vector<16x128xf32>
    %239 = arith.maximumf %235, %238 : vector<16x128xf32>
    %c0_184 = arith.constant 0 : index
    %c0_185 = arith.constant 0 : index
    %c0_186 = arith.constant 0 : index
    %240 = vector.load %arg13[%c0_184, %c0_185, %c0_186] : memref<1x16x128xf32, #tpu.memory_space<vmem>>, vector<1x16x128xf32>
    %241 = vector.shape_cast %240 : vector<1x16x128xf32> to vector<16x128xf32>
    %242 = vector.shape_cast %239 : vector<16x128xf32> to vector<1x16x128xf32>
    tpu.vector_store %arg13[%c0_184, %c0_185, %c0_186], %242 {strides = array<i32>} : memref<1x16x128xf32, #tpu.memory_space<vmem>>, vector<1x16x128xf32>,
    return
  }
  func.func @transform_0(%arg0: i32) -> (i32, i32, i32) {
    %c0_i32 = arith.constant 0 : i32
    %c0_i32_0 = arith.constant 0 : i32
    %c0_i32_1 = arith.constant 0 : i32
    return %arg0, %c0_i32, %c0_i32_0 : i32, i32, i32
  }
  func.func @transform_1(%arg0: i32) -> (i32, i32) {
    %c0_i32 = arith.constant 0 : i32
    %c0_i32_0 = arith.constant 0 : i32
    %c0_i32_1 = arith.constant 0 : i32
    return %c0_i32, %c0_i32_0 : i32, i32
  }
  func.func @transform_2(%arg0: i32) -> (i32, i32) {
    %c0_i32 = arith.constant 0 : i32
    %c0_i32_0 = arith.constant 0 : i32
    %c0_i32_1 = arith.constant 0 : i32
    return %c0_i32, %c0_i32_0 : i32, i32
  }
  func.func @transform_3(%arg0: i32) -> (i32, i32, i32) {
    %c0_i32 = arith.constant 0 : i32
    %c0_i32_0 = arith.constant 0 : i32
    %c0_i32_1 = arith.constant 0 : i32
    %c0_i32_2 = arith.constant 0 : i32
    return %c0_i32, %c0_i32_0, %c0_i32_1 : i32, i32, i32
  }
  func.func @transform_4(%arg0: i32) -> (i32, i32) {
    %c0_i32 = arith.constant 0 : i32
    %c0_i32_0 = arith.constant 0 : i32
    %c0_i32_1 = arith.constant 0 : i32
    return %c0_i32, %c0_i32_0 : i32, i32
  }
  func.func @transform_5(%arg0: i32) -> (i32, i32, i32) {
    %c0_i32 = arith.constant 0 : i32
    %c0_i32_0 = arith.constant 0 : i32
    %c0_i32_1 = arith.constant 0 : i32
    %c0_i32_2 = arith.constant 0 : i32
    return %c0_i32, %c0_i32_0, %c0_i32_1 : i32, i32, i32
  }
  func.func @transform_6(%arg0: i32) -> (i32, i32) {
    %c0_i32 = arith.constant 0 : i32
    %c0_i32_0 = arith.constant 0 : i32
    %c0_i32_1 = arith.constant 0 : i32
    return %c0_i32, %c0_i32_0 : i32, i32
  }
  func.func @transform_7(%arg0: i32) -> (i32, i32, i32) {
    %c0_i32 = arith.constant 0 : i32
    %c0_i32_0 = arith.constant 0 : i32
    %c0_i32_1 = arith.constant 0 : i32
    %c0_i32_2 = arith.constant 0 : i32
    return %c0_i32, %c0_i32_0, %c0_i32_1 : i32, i32, i32
  }
  func.func @transform_8(%arg0: i32) -> (i32, i32) {
    %c0_i32 = arith.constant 0 : i32
    %c0_i32_0 = arith.constant 0 : i32
    %c0_i32_1 = arith.constant 0 : i32
    return %c0_i32, %c0_i32_0 : i32, i32
  }
  func.func @transform_9(%arg0: i32) -> (i32, i32, i32) {
    %c0_i32 = arith.constant 0 : i32
    %c0_i32_0 = arith.constant 0 : i32
    %c0_i32_1 = arith.constant 0 : i32
    %c0_i32_2 = arith.constant 0 : i32
    return %c0_i32, %c0_i32_0, %c0_i32_1 : i32, i32, i32
  }
  func.func @transform_10(%arg0: i32) -> (i32, i32, i32) {
    %c0_i32 = arith.constant 0 : i32
    %c0_i32_0 = arith.constant 0 : i32
    %c0_i32_1 = arith.constant 0 : i32
    %c0_i32_2 = arith.constant 0 : i32
    return %c0_i32, %c0_i32_0, %c0_i32_1 : i32, i32, i32
  }
  func.func @transform_11(%arg0: i32) -> (i32, i32, i32) {
    %c0_i32 = arith.constant 0 : i32
    %c0_i32_0 = arith.constant 0 : i32
    %c0_i32_1 = arith.constant 0 : i32
    return %arg0, %c0_i32, %c0_i32_0 : i32, i32, i32
  }
  func.func @transform_12(%arg0: i32) -> (i32, i32, i32) {
    %c0_i32 = arith.constant 0 : i32
    %c0_i32_0 = arith.constant 0 : i32
    %c0_i32_1 = arith.constant 0 : i32
    return %arg0, %c0_i32, %c0_i32_0 : i32, i32, i32
  }
}

</mosaic_0001>

<llo_original>
// kernel: style_transfer_forward.1
$region0: #{style_transfer_forward.1}
  #allocation0 [shape = 'u32[]', space=smem, size = 0x4, offset = 0x4, fixed_abs, tag = 'smem constant byte address 0x4 - core index']
  #allocation1 [shape = 'u32[144,128]{1,0:T(1,128)}', space=vmem, size = 0x12000, scoped, tag = 'internal scratch']
  #allocation2 [shape = 'bf16[18,18,64]{2,1,0:T(8,128)(2,1)}', space=vmem, size = 0x1b000, scoped, tag = 'scratch operand']
  #allocation3 [shape = 'bf16[10,10,64]{2,1,0:T(8,128)(2,1)}', space=vmem, size = 0xa000, scoped, tag = 'scratch operand']
  #allocation4 [shape = 'bf16[10,10,128]{2,1,0:T(8,128)(2,1)}', space=vmem, size = 0xa000, scoped, tag = 'scratch operand']
  %s0 = inlined_call_operand.vmem [shape: bf16[2,256,27], index: 0, kind: input, shape index: {}]
  %s1 = inlined_call_operand.vmem [shape: bf16[27,64], index: 1, kind: input, shape index: {}]
  %s2 = inlined_call_operand.vmem [shape: f32[1,64], index: 2, kind: input, shape index: {}]
  %s3 = inlined_call_operand.vmem [shape: bf16[9,64,64], index: 3, kind: input, shape index: {}]
  %s4 = inlined_call_operand.vmem [shape: f32[1,64], index: 4, kind: input, shape index: {}]
  %s5 = inlined_call_operand.vmem [shape: bf16[9,64,128], index: 5, kind: input, shape index: {}]
  %s6 = inlined_call_operand.vmem [shape: f32[1,128], index: 6, kind: input, shape index: {}]
  %s7 = inlined_call_operand.vmem [shape: bf16[9,128,128], index: 7, kind: input, shape index: {}]
  %s8 = inlined_call_operand.vmem [shape: f32[1,128], index: 8, kind: input, shape index: {}]
  %s9 = inlined_call_operand.vmem [shape: f32[4,64,256], index: 9, kind: input, shape index: {}]
  %s10 = inlined_call_operand.vmem [shape: f32[4,16,64], index: 10, kind: input, shape index: {}]
  %s11 = inlined_call_operand.hbm [shape: f32[2,64,64], index: 11, kind: output, shape index: {0}]
  %s12 = inlined_call_operand.hbm [shape: f32[2,16,128], index: 12, kind: output, shape index: {1}]
  %13 = xla_tuple %s11, %s12
  %s14 = sld [smem:[#allocation0]]
  $region85: #{style_transfer_forward.1} parent=0
    _
  %s16 = ssub.s32 1, %s14
  %s17 = scalar_select 0, %s16, %s14
  $region1: #{style_transfer_forward.1} parent=0
    #allocation5 [shape = 'u8[65536]{0}', space=vmem, size = 0x10000, scoped, tag = 'output window, operand 0']
    #allocation6 [shape = 's32[2]{0}', space=sflag, size = 0x8, scoped, tag = 'scoped memory for style_transfer_forward.1']
    #allocation7 [shape = 'u8[16384]{0}', space=vmem, size = 0x4000, scoped, tag = 'output window, operand 1']
    #allocation8 [shape = 's32[2]{0}', space=sflag, size = 0x8, scoped, tag = 'scoped memory for style_transfer_forward.1']
    %18 = vsyncpa [#allocation6], 0
    %s19 = scalar_lea.sflag [#allocation6], 1
    %20 = vsyncpa %s19, 0
    %21 = vsyncpa [#allocation8], 0
    %s22 = scalar_lea.sflag [#allocation8], 1
    %23 = vsyncpa %s22, 0
    loop: start=0, step=1, limit=4
    $region2: #{style_transfer_forward.1} parent=1 // loop_pre_header
      _
    $region3: #{style_transfer_forward.1} parent=1 // loop_header
      %s25 = sphi 0, %s29
      %p26 = scmp.ge.s32.totalorder %s25, 4
      %s35 = sphi 0, %s37
      %s38 = sphi 0, %s35
      %s39 = sphi 0, %s38
      %s55 = sphi 0, %s39
      %s59 = sphi 0, %s59
      %s61 = sphi 0, %s59
      %s62 = sphi 0, %s61
      %s76 = sphi 0, %s62
      %s80 = sphi 0, %s80
      %s82 = sphi 0, %s80
      %s83 = sphi 0, %s82
      %s97 = sphi 0, %s83
      %s101 = sphi 0, %s101
      %s103 = sphi 0, %s101
      %s104 = sphi 0, %s103
      %s118 = sphi 0, %s104
      %s122 = sphi 0, %s122
      %s124 = sphi 0, %s122
      %s125 = sphi 0, %s124
      %s139 = sphi 0, %s125
      %s143 = sphi 0, %s143
      %s145 = sphi 0, %s143
      %s146 = sphi 0, %s145
      %s160 = sphi 0, %s146
      %s164 = sphi 0, %s164
      %s166 = sphi 0, %s164
      %s167 = sphi 0, %s166
      %s181 = sphi 0, %s167
      %s185 = sphi 0, %s185
      %s187 = sphi 0, %s185
      %s188 = sphi 0, %s187
      %s202 = sphi 0, %s188
      %s206 = sphi 0, %s206
      %s208 = sphi 0, %s206
      %s209 = sphi 0, %s208
      %s223 = sphi 0, %s209
      %s227 = sphi 0, %s227
      %s229 = sphi 0, %s227
      %s230 = sphi 0, %s229
      %s244 = sphi 0, %s230
      %s248 = sphi 0, %s248
      %s250 = sphi 0, %s248
      %s251 = sphi 0, %s250
      %s265 = sphi 0, %s251
      %s271 = sphi 0, %s273
      %s274 = sphi 0, %s271
      %s275 = sphi 0, %s274
      %s291 = sphi 0, %s275
      %s297 = sphi 0, %s299
      %s300 = sphi 0, %s297
      %s301 = sphi 0, %s300
      %s317 = sphi 0, %s301
    $region4: #{style_transfer_forward.1} parent=1 // loop_header_branch
      %28 = sbr.rel (%p26) target = $region8
    $region5: #{style_transfer_forward.1} parent=1 // loop_body
      %s30 = ssub.s32 %s25, 1
      %s31 = ssub.s32 %s25, 2
      %s32 = sadd.s32 %s25, 1
      %s33 = ssub.s32 %s25, %s32
      %p34 = scmp.eq.s32.totalorder %s33, 0
      %s36 = sadd.s32 %s35, 1
      %s37 = scalar_select %p34, %s35, %s36
      %p40 = pneg %p34
      %p41 = scmp.eq.s32.totalorder %s25, 1
      %p42 = por %p40, %p41
      %p43 = scmp.ne.s32.totalorder %s35, %s38
      %p44 = scmp.eq.s32.totalorder %s25, 0
      %p45 = por %p43, %p44
      %p46 = scmp.ne.s32.totalorder %s35, %s38
      %p47 = scmp.eq.s32.totalorder %s30, 1
      %p48 = por %p46, %p47
      %p49 = scmp.ne.s32.totalorder %s38, %s39
      %p50 = scmp.eq.s32.totalorder %s30, 0
      %p51 = por %p49, %p50
      %p52 = scmp.ne.s32.totalorder %s38, %s39
      %p53 = scmp.eq.s32.totalorder %s31, 1
      %p54 = por %p52, %p53
      %p56 = scmp.ne.s32.totalorder %s39, %s55
      %p57 = scmp.eq.s32.totalorder %s31, 0
      %p58 = por %p56, %p57
      %s60 = sadd.s32 %s59, 1
      %p63 = scmp.eq.s32.totalorder %s25, 1
      %p64 = scmp.ne.s32.totalorder %s59, %s61
      %p65 = scmp.eq.s32.totalorder %s25, 0
      %p66 = por %p64, %p65
      %p67 = scmp.ne.s32.totalorder %s59, %s61
      %p68 = scmp.eq.s32.totalorder %s30, 1
      %p69 = por %p67, %p68
      %p70 = scmp.ne.s32.totalorder %s61, %s62
      %p71 = scmp.eq.s32.totalorder %s30, 0
      %p72 = por %p70, %p71
      %p73 = scmp.ne.s32.totalorder %s61, %s62
      %p74 = scmp.eq.s32.totalorder %s31, 1
      %p75 = por %p73, %p74
      %p77 = scmp.ne.s32.totalorder %s62, %s76
      %p78 = scmp.eq.s32.totalorder %s31, 0
      %p79 = por %p77, %p78
      %s81 = sadd.s32 %s80, 1
      %p84 = scmp.eq.s32.totalorder %s25, 1
      %p85 = scmp.ne.s32.totalorder %s80, %s82
      %p86 = scmp.eq.s32.totalorder %s25, 0
      %p87 = por %p85, %p86
      %p88 = scmp.ne.s32.totalorder %s80, %s82
      %p89 = scmp.eq.s32.totalorder %s30, 1
      %p90 = por %p88, %p89
      %p91 = scmp.ne.s32.totalorder %s82, %s83
      %p92 = scmp.eq.s32.totalorder %s30, 0
      %p93 = por %p91, %p92
      %p94 = scmp.ne.s32.totalorder %s82, %s83
      %p95 = scmp.eq.s32.totalorder %s31, 1
      %p96 = por %p94, %p95
      %p98 = scmp.ne.s32.totalorder %s83, %s97
      %p99 = scmp.eq.s32.totalorder %s31, 0
      %p100 = por %p98, %p99
      %s102 = sadd.s32 %s101, 1
      %p105 = scmp.eq.s32.totalorder %s25, 1
      %p106 = scmp.ne.s32.totalorder %s101, %s103
      %p107 = scmp.eq.s32.totalorder %s25, 0
      %p108 = por %p106, %p107
      %p109 = scmp.ne.s32.totalorder %s101, %s103
      %p110 = scmp.eq.s32.totalorder %s30, 1
      %p111 = por %p109, %p110
      %p112 = scmp.ne.s32.totalorder %s103, %s104
      %p113 = scmp.eq.s32.totalorder %s30, 0
      %p114 = por %p112, %p113
      %p115 = scmp.ne.s32.totalorder %s103, %s104
      %p116 = scmp.eq.s32.totalorder %s31, 1
      %p117 = por %p115, %p116
      %p119 = scmp.ne.s32.totalorder %s104, %s118
      %p120 = scmp.eq.s32.totalorder %s31, 0
      %p121 = por %p119, %p120
      %s123 = sadd.s32 %s122, 1
      %p126 = scmp.eq.s32.totalorder %s25, 1
      %p127 = scmp.ne.s32.totalorder %s122, %s124
      %p128 = scmp.eq.s32.totalorder %s25, 0
      %p129 = por %p127, %p128
      %p130 = scmp.ne.s32.totalorder %s122, %s124
      %p131 = scmp.eq.s32.totalorder %s30, 1
      %p132 = por %p130, %p131
      %p133 = scmp.ne.s32.totalorder %s124, %s125
      %p134 = scmp.eq.s32.totalorder %s30, 0
      %p135 = por %p133, %p134
      %p136 = scmp.ne.s32.totalorder %s124, %s125
      %p137 = scmp.eq.s32.totalorder %s31, 1
      %p138 = por %p136, %p137
      %p140 = scmp.ne.s32.totalorder %s125, %s139
      %p141 = scmp.eq.s32.totalorder %s31, 0
      %p142 = por %p140, %p141
      %s144 = sadd.s32 %s143, 1
      %p147 = scmp.eq.s32.totalorder %s25, 1
      %p148 = scmp.ne.s32.totalorder %s143, %s145
      %p149 = scmp.eq.s32.totalorder %s25, 0
      %p150 = por %p148, %p149
      %p151 = scmp.ne.s32.totalorder %s143, %s145
      %p152 = scmp.eq.s32.totalorder %s30, 1
      %p153 = por %p151, %p152
      %p154 = scmp.ne.s32.totalorder %s145, %s146
      %p155 = scmp.eq.s32.totalorder %s30, 0
      %p156 = por %p154, %p155
      %p157 = scmp.ne.s32.totalorder %s145, %s146
      %p158 = scmp.eq.s32.totalorder %s31, 1
      %p159 = por %p157, %p158
      %p161 = scmp.ne.s32.totalorder %s146, %s160
      %p162 = scmp.eq.s32.totalorder %s31, 0
      %p163 = por %p161, %p162
      %s165 = sadd.s32 %s164, 1
      %p168 = scmp.eq.s32.totalorder %s25, 1
      %p169 = scmp.ne.s32.totalorder %s164, %s166
      %p170 = scmp.eq.s32.totalorder %s25, 0
      %p171 = por %p169, %p170
      %p172 = scmp.ne.s32.totalorder %s164, %s166
      %p173 = scmp.eq.s32.totalorder %s30, 1
      %p174 = por %p172, %p173
      %p175 = scmp.ne.s32.totalorder %s166, %s167
      %p176 = scmp.eq.s32.totalorder %s30, 0
      %p177 = por %p175, %p176
      %p178 = scmp.ne.s32.totalorder %s166, %s167
      %p179 = scmp.eq.s32.totalorder %s31, 1
      %p180 = por %p178, %p179
      %p182 = scmp.ne.s32.totalorder %s167, %s181
      %p183 = scmp.eq.s32.totalorder %s31, 0
      %p184 = por %p182, %p183
      %s186 = sadd.s32 %s185, 1
      %p189 = scmp.eq.s32.totalorder %s25, 1
      %p190 = scmp.ne.s32.totalorder %s185, %s187
      %p191 = scmp.eq.s32.totalorder %s25, 0
      %p192 = por %p190, %p191
      %p193 = scmp.ne.s32.totalorder %s185, %s187
      %p194 = scmp.eq.s32.totalorder %s30, 1
      %p195 = por %p193, %p194
      %p196 = scmp.ne.s32.totalorder %s187, %s188
      %p197 = scmp.eq.s32.totalorder %s30, 0
      %p198 = por %p196, %p197
      %p199 = scmp.ne.s32.totalorder %s187, %s188
      %p200 = scmp.eq.s32.totalorder %s31, 1
      %p201 = por %p199, %p200
      %p203 = scmp.ne.s32.totalorder %s188, %s202
      %p204 = scmp.eq.s32.totalorder %s31, 0
      %p205 = por %p203, %p204
      %s207 = sadd.s32 %s206, 1
      %p210 = scmp.eq.s32.totalorder %s25, 1
      %p211 = scmp.ne.s32.totalorder %s206, %s208
      %p212 = scmp.eq.s32.totalorder %s25, 0
      %p213 = por %p211, %p212
      %p214 = scmp.ne.s32.totalorder %s206, %s208
      %p215 = scmp.eq.s32.totalorder %s30, 1
      %p216 = por %p214, %p215
      %p217 = scmp.ne.s32.totalorder %s208, %s209
      %p218 = scmp.eq.s32.totalorder %s30, 0
      %p219 = por %p217, %p218
      %p220 = scmp.ne.s32.totalorder %s208, %s209
      %p221 = scmp.eq.s32.totalorder %s31, 1
      %p222 = por %p220, %p221
      %p224 = scmp.ne.s32.totalorder %s209, %s223
      %p225 = scmp.eq.s32.totalorder %s31, 0
      %p226 = por %p224, %p225
      %s228 = sadd.s32 %s227, 1
      %p231 = scmp.eq.s32.totalorder %s25, 1
      %p232 = scmp.ne.s32.totalorder %s227, %s229
      %p233 = scmp.eq.s32.totalorder %s25, 0
      %p234 = por %p232, %p233
      %p235 = scmp.ne.s32.totalorder %s227, %s229
      %p236 = scmp.eq.s32.totalorder %s30, 1
      %p237 = por %p235, %p236
      %p238 = scmp.ne.s32.totalorder %s229, %s230
      %p239 = scmp.eq.s32.totalorder %s30, 0
      %p240 = por %p238, %p239
      %p241 = scmp.ne.s32.totalorder %s229, %s230
      %p242 = scmp.eq.s32.totalorder %s31, 1
      %p243 = por %p241, %p242
      %p245 = scmp.ne.s32.totalorder %s230, %s244
      %p246 = scmp.eq.s32.totalorder %s31, 0
      %p247 = por %p245, %p246
      %s249 = sadd.s32 %s248, 1
      %p252 = scmp.eq.s32.totalorder %s25, 1
      %p253 = scmp.ne.s32.totalorder %s248, %s250
      %p254 = scmp.eq.s32.totalorder %s25, 0
      %p255 = por %p253, %p254
      %p256 = scmp.ne.s32.totalorder %s248, %s250
      %p257 = scmp.eq.s32.totalorder %s30, 1
      %p258 = por %p256, %p257
      %p259 = scmp.ne.s32.totalorder %s250, %s251
      %p260 = scmp.eq.s32.totalorder %s30, 0
      %p261 = por %p259, %p260
      %p262 = scmp.ne.s32.totalorder %s250, %s251
      %p263 = scmp.eq.s32.totalorder %s31, 1
      %p264 = por %p262, %p263
      %p266 = scmp.ne.s32.totalorder %s251, %s265
      %p267 = scmp.eq.s32.totalorder %s31, 0
      %p268 = por %p266, %p267
      %s269 = ssub.s32 %s25, %s32
      %p270 = scmp.eq.s32.totalorder %s269, 0
      %s272 = sadd.s32 %s271, 1
      %s273 = scalar_select %p270, %s271, %s272
      %p276 = pneg %p270
      %p277 = scmp.eq.s32.totalorder %s25, 1
      %p278 = por %p276, %p277
      %p279 = scmp.ne.s32.totalorder %s271, %s274
      %p280 = scmp.eq.s32.totalorder %s25, 0
      %p281 = por %p279, %p280
      %p282 = scmp.ne.s32.totalorder %s271, %s274
      %p283 = scmp.eq.s32.totalorder %s30, 1
      %p284 = por %p282, %p283
      %p285 = scmp.ne.s32.totalorder %s274, %s275
      %p286 = scmp.eq.s32.totalorder %s30, 0
      %p287 = por %p285, %p286
      %p288 = scmp.ne.s32.totalorder %s274, %s275
      %p289 = scmp.eq.s32.totalorder %s31, 1
      %p290 = por %p288, %p289
      %p292 = scmp.ne.s32.totalorder %s275, %s291
      %p293 = scmp.eq.s32.totalorder %s31, 0
      %p294 = por %p292, %p293
      %s295 = ssub.s32 %s25, %s32
      %p296 = scmp.eq.s32.totalorder %s295, 0
      %s298 = sadd.s32 %s297, 1
      %s299 = scalar_select %p296, %s297, %s298
      %p302 = pneg %p296
      %p303 = scmp.eq.s32.totalorder %s25, 1
      %p304 = por %p302, %p303
      %p305 = scmp.ne.s32.totalorder %s297, %s300
      %p306 = scmp.eq.s32.totalorder %s25, 0
      %p307 = por %p305, %p306
      %p308 = scmp.ne.s32.totalorder %s297, %s300
      %p309 = scmp.eq.s32.totalorder %s30, 1
      %p310 = por %p308, %p309
      %p311 = scmp.ne.s32.totalorder %s300, %s301
      %p312 = scmp.eq.s32.totalorder %s30, 0
      %p313 = por %p311, %p312
      %p314 = scmp.ne.s32.totalorder %s300, %s301
      %p315 = scmp.eq.s32.totalorder %s31, 1
      %p316 = por %p314, %p315
      %p318 = scmp.ne.s32.totalorder %s301, %s317
      %p319 = scmp.eq.s32.totalorder %s31, 0
      %p320 = por %p318, %p319
      %p321 = scmp.le.s32.totalorder 1, %s25
      %p322 = scmp.lt.s32.totalorder %s25, 3
      %p323 = pnand %p321, %p322
      %p324 = pneg %p323
      // Predicated region
      $region9: #{style_transfer_forward.1} parent=5 // pred_check
        _
      $region10: #{style_transfer_forward.1} parent=5 // pred_check_branch
        %326 = sbr.rel (%p323) target = $region12
      $region11: #{style_transfer_forward.1} parent=5 // pred_region
        %s327 = ssub.s32 %s25, 1
        // Predicated region
        $region13: #{style_transfer_forward.1} parent=11 // pred_check
          %p328 = pneg %p72
        $region14: #{style_transfer_forward.1} parent=11 // pred_check_branch
          %330 = sbr.rel (%p328) target = $region16
        $region15: #{style_transfer_forward.1} parent=11 // pred_region
          _
        $region16: #{style_transfer_forward.1} parent=11 // pred_fallthru
          _
        // Predicated region
        $region17: #{style_transfer_forward.1} parent=11 // pred_check
          %p331 = pneg %p93
        $region18: #{style_transfer_forward.1} parent=11 // pred_check_branch
          %333 = sbr.rel (%p331) target = $region20
        $region19: #{style_transfer_forward.1} parent=11 // pred_region
          _
        $region20: #{style_transfer_forward.1} parent=11 // pred_fallthru
          _
        // Predicated region
        $region21: #{style_transfer_forward.1} parent=11 // pred_check
          %p334 = pneg %p114
        $region22: #{style_transfer_forward.1} parent=11 // pred_check_branch
          %336 = sbr.rel (%p334) target = $region24
        $region23: #{style_transfer_forward.1} parent=11 // pred_region
          _
        $region24: #{style_transfer_forward.1} parent=11 // pred_fallthru
          _
        // Predicated region
        $region25: #{style_transfer_forward.1} parent=11 // pred_check
          %p337 = pneg %p135
        $region26: #{style_transfer_forward.1} parent=11 // pred_check_branch
          %339 = sbr.rel (%p337) target = $region28
        $region27: #{style_transfer_forward.1} parent=11 // pred_region
          _
        $region28: #{style_transfer_forward.1} parent=11 // pred_fallthru
          _
        // Predicated region
        $region29: #{style_transfer_forward.1} parent=11 // pred_check
          %p340 = pneg %p156
        $region30: #{style_transfer_forward.1} parent=11 // pred_check_branch
          %342 = sbr.rel (%p340) target = $region32
        $region31: #{style_transfer_forward.1} parent=11 // pred_region
          _
        $region32: #{style_transfer_forward.1} parent=11 // pred_fallthru
          _
        // Predicated region
        $region33: #{style_transfer_forward.1} parent=11 // pred_check
          %p343 = pneg %p177
        $region34: #{style_transfer_forward.1} parent=11 // pred_check_branch
          %345 = sbr.rel (%p343) target = $region36
        $region35: #{style_transfer_forward.1} parent=11 // pred_region
          _
        $region36: #{style_transfer_forward.1} parent=11 // pred_fallthru
          _
        // Predicated region
        $region37: #{style_transfer_forward.1} parent=11 // pred_check
          %p346 = pneg %p198
        $region38: #{style_transfer_forward.1} parent=11 // pred_check_branch
          %348 = sbr.rel (%p346) target = $region40
        $region39: #{style_transfer_forward.1} parent=11 // pred_region
          _
        $region40: #{style_transfer_forward.1} parent=11 // pred_fallthru
          _
        // Predicated region
        $region41: #{style_transfer_forward.1} parent=11 // pred_check
          %p349 = pneg %p219
        $region42: #{style_transfer_forward.1} parent=11 // pred_check_branch
          %351 = sbr.rel (%p349) target = $region44
        $region43: #{style_transfer_forward.1} parent=11 // pred_region
          _
        $region44: #{style_transfer_forward.1} parent=11 // pred_fallthru
          _
        // Predicated region
        $region45: #{style_transfer_forward.1} parent=11 // pred_check
          %p352 = pneg %p240
        $region46: #{style_transfer_forward.1} parent=11 // pred_check_branch
          %354 = sbr.rel (%p352) target = $region48
        $region47: #{style_transfer_forward.1} parent=11 // pred_region
          _
        $region48: #{style_transfer_forward.1} parent=11 // pred_fallthru
          _
        // Predicated region
        $region49: #{style_transfer_forward.1} parent=11 // pred_check
          %p355 = pneg %p261
        $region50: #{style_transfer_forward.1} parent=11 // pred_check_branch
          %357 = sbr.rel (%p355) target = $region52
        $region51: #{style_transfer_forward.1} parent=11 // pred_region
          _
        $region52: #{style_transfer_forward.1} parent=11 // pred_fallthru
          _
      $region12: #{style_transfer_forward.1} parent=5 // pred_fallthru
        _
      %p358 = scmp.lt.s32.totalorder %s25, 2
      // Predicated region
      $region53: #{style_transfer_forward.1} parent=5 // pred_check
        %p359 = pneg %p358
      $region54: #{style_transfer_forward.1} parent=5 // pred_check_branch
        %361 = sbr.rel (%p359) target = $region56
      $region55: #{style_transfer_forward.1} parent=5 // pred_region
        // Predicated region
        $region57: #{style_transfer_forward.1} parent=55 // pred_check
          %p362 = pneg %p45
        $region58: #{style_transfer_forward.1} parent=55 // pred_check_branch
          %364 = sbr.rel (%p362) target = $region60
        $region59: #{style_transfer_forward.1} parent=55 // pred_region
          %p365 = scmp.lt.s32.totalorder %s25, 1
          %s366 = scalar_select %p365, %s25, 1
          %s367 = smul.addr %s366, 32
          %s368 = smul.addr %s367, 4
          %s369 = scalar_lea.vmem %s0, %s368
        $region60: #{style_transfer_forward.1} parent=55 // pred_fallthru
          _
      $region56: #{style_transfer_forward.1} parent=5 // pred_fallthru
        _
      %p370 = scmp.le.s32.totalorder 1, %s25
      %p371 = scmp.lt.s32.totalorder %s25, 3
      %p372 = pnand %p370, %p371
      %p373 = pneg %p372
      // Predicated region
      $region61: #{style_transfer_forward.1} parent=5 // pred_check
        _
      $region62: #{style_transfer_forward.1} parent=5 // pred_check_branch
        %375 = sbr.rel (%p372) target = $region64
      $region63: #{style_transfer_forward.1} parent=5 // pred_region
        %s376 = ssub.s32 %s25, 1
        %p377 = scmp.lt.s32.totalorder %s30, 1
        %s378 = scalar_select %p377, %s30, 1
        %s379 = smul.addr %s378, 32
        %s380 = smul.addr %s379, 4
        %s381 = scalar_lea.vmem %s0, %s380
        %p382 = pneg %p51
        %p383 = pneg %p48
        %p384 = pneg %p72
        %p385 = pneg %p69
        %p386 = pneg %p93
        %p387 = pneg %p90
        %p388 = pneg %p114
        %p389 = pneg %p111
        %p390 = pneg %p135
        %p391 = pneg %p132
        %p392 = pneg %p156
        %p393 = pneg %p153
        %p394 = pneg %p177
        %p395 = pneg %p174
        %p396 = pneg %p198
        %p397 = pneg %p195
        %p398 = pneg %p219
        %p399 = pneg %p216
        %p400 = pneg %p240
        %p401 = pneg %p237
        %p402 = pneg %p261
        %p403 = pneg %p258
        %p404 = pneg %p287
        %p405 = pneg %p284
        %s406 = sand.u32 %s274, 1
        %s407 = scalar_lea.sflag [#allocation6], %s406
        %s408 = sand.u32 %s274, 1
        %s409 = smul.addr %s408, 64
        %s410 = scalar_lea.vmem [#allocation5], %s409
        %p411 = pneg %p313
        %p412 = pneg %p310
        %s413 = sand.u32 %s300, 1
        %s414 = scalar_lea.sflag [#allocation8], %s413
        %s415 = sand.u32 %s300, 1
        %s416 = smul.addr %s415, 16
        %s417 = scalar_lea.vmem [#allocation7], %s416
        %p418 = scmp.lt.s32.totalorder %s30, 1
        %s419 = scalar_select %p418, %s30, 1
        %s420 = smul.addr %s419, 32
        %s421 = smul.addr %s420, 4
        %s422 = scalar_lea.vmem %s0, %s421
        %v424 = vld [vmem:[%s422] sm:$0xf]
        %v425 = vld [vmem:[%s422 + $0x4] sm:$0xf]
        %v426 = vld [vmem:[%s422 + $0x8] sm:$0xf]
        %v427 = vld [vmem:[%s422 + $0xc] sm:$0xf]
        %v428 = vld [vmem:[%s422 + $0x10] sm:$0xf]
        %v429 = vld [vmem:[%s422 + $0x14] sm:$0xf]
        %v430 = vld [vmem:[%s422 + $0x18] sm:$0xf]
        %v431 = vld [vmem:[%s422 + $0x1c] sm:$0xf]
        %v432 = vld [vmem:[%s422 + $0x20] sm:$0xf]
        %v433 = vld [vmem:[%s422 + $0x24] sm:$0xf]
        %v434 = vld [vmem:[%s422 + $0x28] sm:$0xf]
        %v435 = vld [vmem:[%s422 + $0x2c] sm:$0xf]
        %v436 = vld [vmem:[%s422 + $0x30] sm:$0xf]
        %v437 = vld [vmem:[%s422 + $0x34] sm:$0xf]
        %v438 = vld [vmem:[%s422 + $0x38] sm:$0xf]
        %v439 = vld [vmem:[%s422 + $0x3c] sm:$0xf]
        %v440 = vld [vmem:[%s422 + $0x40] sm:$0xf]
        %v441 = vld [vmem:[%s422 + $0x44] sm:$0xf]
        %v442 = vld [vmem:[%s422 + $0x48] sm:$0xf]
        %v443 = vld [vmem:[%s422 + $0x4c] sm:$0xf]
        %v444 = vld [vmem:[%s422 + $0x50] sm:$0xf]
        %v445 = vld [vmem:[%s422 + $0x54] sm:$0xf]
        %v446 = vld [vmem:[%s422 + $0x58] sm:$0xf]
        %v447 = vld [vmem:[%s422 + $0x5c] sm:$0xf]
        %v448 = vld [vmem:[%s422 + $0x60] sm:$0xf]
        %v449 = vld [vmem:[%s422 + $0x64] sm:$0xf]
        %v450 = vld [vmem:[%s422 + $0x68] sm:$0xf]
        %v451 = vld [vmem:[%s422 + $0x6c] sm:$0xf]
        %v452 = vld [vmem:[%s422 + $0x70] sm:$0xf]
        %v453 = vld [vmem:[%s422 + $0x74] sm:$0xf]
        %v454 = vld [vmem:[%s422 + $0x78] sm:$0xf]
        %v455 = vld [vmem:[%s422 + $0x7c] sm:$0xf]
        %v456 = vld [vmem:[%s1] sm:$0xf]
        %v457 = vld [vmem:[%s1 + $0x4] sm:$0xf]
        %v458 = vld [vmem:[%s1 + $0x8] sm:$0xf]
        %v459 = vld [vmem:[%s1 + $0xc] sm:$0x3]
        %v460 = vld [vmem:[%s2] sm:$0x1]
        %v462 = vlaneseq
        %v463 = vshrl.u32 %v462, 7
        %v464 = vsub.s32 0, %v463
        %v465 = vrot.slane %v460, %v464
        %v499 = vunpack.c.l.b16 %v424
        %v500 = vunpack.c.l.b16 %v425
        %v501 = vunpack.c.l.b16 %v426
        %v502 = vunpack.c.l.b16 %v427
        %v503 = vunpack.c.l.b16 %v428
        %v504 = vunpack.c.l.b16 %v429
        %v505 = vunpack.c.l.b16 %v430
        %v506 = vunpack.c.l.b16 %v431
        %v507 = vunpack.c.l.b16 %v432
        %v508 = vunpack.c.l.b16 %v433
        %v509 = vunpack.c.l.b16 %v434
        %v510 = vunpack.c.l.b16 %v435
        %v511 = vunpack.c.l.b16 %v436
        %v512 = vunpack.c.l.b16 %v437
        %v513 = vunpack.c.l.b16 %v438
        %v514 = vunpack.c.l.b16 %v439
        %v515 = vunpack.c.l.b16 %v440
        %v516 = vunpack.c.l.b16 %v441
        %v517 = vunpack.c.l.b16 %v442
        %v518 = vunpack.c.l.b16 %v443
        %v519 = vunpack.c.l.b16 %v444
        %v520 = vunpack.c.l.b16 %v445
        %v521 = vunpack.c.l.b16 %v446
        %v522 = vunpack.c.l.b16 %v447
        %v523 = vunpack.c.l.b16 %v448
        %v524 = vunpack.c.l.b16 %v449
        %v525 = vunpack.c.l.b16 %v450
        %v526 = vunpack.c.l.b16 %v451
        %v527 = vunpack.c.l.b16 %v452
        %v528 = vunpack.c.l.b16 %v453
        %v529 = vunpack.c.l.b16 %v454
        %v530 = vunpack.c.l.b16 %v455
        %v531 = vpack.c.b16 %v500, %v499
        %v532 = vpack.c.b16 %v502, %v501
        %v533 = vpack.c.b16 %v504, %v503
        %v534 = vpack.c.b16 %v506, %v505
        %v535 = vpack.c.b16 %v508, %v507
        %v536 = vpack.c.b16 %v510, %v509
        %v537 = vpack.c.b16 %v512, %v511
        %v538 = vpack.c.b16 %v514, %v513
        %v539 = vpack.c.b16 %v516, %v515
        %v540 = vpack.c.b16 %v518, %v517
        %v541 = vpack.c.b16 %v520, %v519
        %v542 = vpack.c.b16 %v522, %v521
        %v543 = vpack.c.b16 %v524, %v523
        %v544 = vpack.c.b16 %v526, %v525
        %v545 = vpack.c.b16 %v528, %v527
        %v546 = vpack.c.b16 %v530, %v529
        %v551 = vunpack.c.l.b16 %v456
        %v552 = vunpack.c.l.b16 %v457
        %v553 = vunpack.c.l.b16 %v458
        %v554 = vunpack.c.l.b16 %v459
        %v555 = vpack.c.b16 %v552, %v551
        %v556 = vpack.c.b16 %v554, %v553
        %vm558 = vcmask 220160
        %v560 = vsel %vm558, %v531, 0
        %v563 = vsel %vm558, %v532, 0
        %v566 = vsel %vm558, %v533, 0
        %v569 = vsel %vm558, %v534, 0
        %v572 = vsel %vm558, %v535, 0
        %v575 = vsel %vm558, %v536, 0
        %v578 = vsel %vm558, %v537, 0
        %v581 = vsel %vm558, %v538, 0
        %v584 = vsel %vm558, %v539, 0
        %v587 = vsel %vm558, %v540, 0
        %v590 = vsel %vm558, %v541, 0
        %v593 = vsel %vm558, %v542, 0
        %v596 = vsel %vm558, %v543, 0
        %v599 = vsel %vm558, %v544, 0
        %v602 = vsel %vm558, %v545, 0
        %v605 = vsel %vm558, %v546, 0
        %vm607 = vcmask 1044480
        %vm608 = vcmask 1045504
        %v609 = vsel %vm607, 4294967295, 65535
        %v610 = vsel %vm608, %v609, 0
        %v612 = vand.u32 %v556, %v610
        %614 = vmatprep.subr.bf16.mxu0 0
        %615 = vmatpush1.bf16.msra.mxu0 %v555
        %616 = vmatprep.subr.bf16.mxu0 0
        %617 = vmatpush1.bf16.msra.mxu0 %v612
        %618 = vmatprep.subr.bf16.mxu0 0
        %619 = vmatpush1.bf16.msra.mxu0 0
        %620 = vmatprep.subr.bf16.mxu0 0
        %621 = vmatpush1.bf16.msra.mxu0 0
        %622 = vmatprep.subr.bf16.mxu0 0
        %623 = vmatpush1.bf16.msra.mxu0 0
        %624 = vmatprep.subr.bf16.mxu0 0
        %625 = vmatpush1.bf16.msra.mxu0 0
        %626 = vmatprep.subr.bf16.mxu0 0
        %627 = vmatpush1.bf16.msra.mxu0 0
        %628 = vmatprep.subr.bf16.mxu0 0
        %629 = vmatpush1.bf16.msra.mxu0 0
        %630 = vmatprep.subr.bf16.mxu0 0
        %631 = vmatpush1.bf16.msra.mxu0 0
        %632 = vmatprep.subr.bf16.mxu0 0
        %633 = vmatpush1.bf16.msra.mxu0 0
        %634 = vmatprep.subr.bf16.mxu0 0
        %635 = vmatpush1.bf16.msra.mxu0 0
        %636 = vmatprep.subr.bf16.mxu0 0
        %637 = vmatpush1.bf16.msra.mxu0 0
        %638 = vmatprep.subr.bf16.mxu0 0
        %639 = vmatpush1.bf16.msra.mxu0 0
        %640 = vmatprep.subr.bf16.mxu0 0
        %641 = vmatpush1.bf16.msra.mxu0 0
        %642 = vmatprep.subr.bf16.mxu0 0
        %643 = vmatpush1.bf16.msra.mxu0 0
        %644 = vmatprep.subr.bf16.mxu0 0
        %645 = vmatpush1.bf16.msra.mxu0 0
        %646 = vmatprep.mubr.bf16.mxu0 0
        %647 = vmatmul.mubr.bf16.gmra.mrb[0].mxu0 %v560
        %v648 = vpop.f32.mrb[0].mxu0
        %v649 = vadd.f32 %v465, %v648
        %v650 = vpop.f32.mrb[0].mxu0
        %v651 = vpop.f32.mrb[0].mxu0
        %v652 = vadd.f32 %v465, %v651
        %v653 = vpop.f32.mrb[0].mxu0
        %654 = vmatprep.mubr.bf16.mxu0 0
        %655 = vmatmul.mubr.bf16.gmra.mrb[0].mxu0 %v563
        %v656 = vpop.f32.mrb[0].mxu0
        %v657 = vadd.f32 %v465, %v656
        %v658 = vpop.f32.mrb[0].mxu0
        %v659 = vpop.f32.mrb[0].mxu0
        %v660 = vadd.f32 %v465, %v659
        %v661 = vpop.f32.mrb[0].mxu0
        %662 = vmatprep.mubr.bf16.mxu0 0
        %663 = vmatmul.mubr.bf16.gmra.mrb[0].mxu0 %v566
        %v664 = vpop.f32.mrb[0].mxu0
        %v665 = vadd.f32 %v465, %v664
        %v666 = vpop.f32.mrb[0].mxu0
        %v667 = vpop.f32.mrb[0].mxu0
        %v668 = vadd.f32 %v465, %v667
        %v669 = vpop.f32.mrb[0].mxu0
        %670 = vmatprep.mubr.bf16.mxu0 0
        %671 = vmatmul.mubr.bf16.gmra.mrb[0].mxu0 %v569
        %v672 = vpop.f32.mrb[0].mxu0
        %v673 = vadd.f32 %v465, %v672
        %v674 = vpop.f32.mrb[0].mxu0
        %v675 = vpop.f32.mrb[0].mxu0
        %v676 = vadd.f32 %v465, %v675
        %v677 = vpop.f32.mrb[0].mxu0
        %678 = vmatprep.mubr.bf16.mxu0 0
        %679 = vmatmul.mubr.bf16.gmra.mrb[0].mxu0 %v572
        %v680 = vpop.f32.mrb[0].mxu0
        %v681 = vadd.f32 %v465, %v680
        %v682 = vpop.f32.mrb[0].mxu0
        %v683 = vpop.f32.mrb[0].mxu0
        %v684 = vadd.f32 %v465, %v683
        %v685 = vpop.f32.mrb[0].mxu0
        %686 = vmatprep.mubr.bf16.mxu0 0
        %687 = vmatmul.mubr.bf16.gmra.mrb[0].mxu0 %v575
        %v688 = vpop.f32.mrb[0].mxu0
        %v689 = vadd.f32 %v465, %v688
        %v690 = vpop.f32.mrb[0].mxu0
        %v691 = vpop.f32.mrb[0].mxu0
        %v692 = vadd.f32 %v465, %v691
        %v693 = vpop.f32.mrb[0].mxu0
        %694 = vmatprep.mubr.bf16.mxu0 0
        %695 = vmatmul.mubr.bf16.gmra.mrb[0].mxu0 %v578
        %v696 = vpop.f32.mrb[0].mxu0
        %v697 = vadd.f32 %v465, %v696
        %v698 = vpop.f32.mrb[0].mxu0
        %v699 = vpop.f32.mrb[0].mxu0
        %v700 = vadd.f32 %v465, %v699
        %v701 = vpop.f32.mrb[0].mxu0
        %702 = vmatprep.mubr.bf16.mxu0 0
        %703 = vmatmul.mubr.bf16.gmra.mrb[0].mxu0 %v581
        %v704 = vpop.f32.mrb[0].mxu0
        %v705 = vadd.f32 %v465, %v704
        %v706 = vpop.f32.mrb[0].mxu0
        %v707 = vpop.f32.mrb[0].mxu0
        %v708 = vadd.f32 %v465, %v707
        %v709 = vpop.f32.mrb[0].mxu0
        %710 = vmatprep.mubr.bf16.mxu0 0
        %711 = vmatmul.mubr.bf16.gmra.mrb[0].mxu0 %v584
        %v712 = vpop.f32.mrb[0].mxu0
        %v713 = vadd.f32 %v465, %v712
        %v714 = vpop.f32.mrb[0].mxu0
        %v715 = vpop.f32.mrb[0].mxu0
        %v716 = vadd.f32 %v465, %v715
        %v717 = vpop.f32.mrb[0].mxu0
        %718 = vmatprep.mubr.bf16.mxu0 0
        %719 = vmatmul.mubr.bf16.gmra.mrb[0].mxu0 %v587
        %v720 = vpop.f32.mrb[0].mxu0
        %v721 = vadd.f32 %v465, %v720
        %v722 = vpop.f32.mrb[0].mxu0
        %v723 = vpop.f32.mrb[0].mxu0
        %v724 = vadd.f32 %v465, %v723
        %v725 = vpop.f32.mrb[0].mxu0
        %726 = vmatprep.mubr.bf16.mxu0 0
        %727 = vmatmul.mubr.bf16.gmra.mrb[0].mxu0 %v590
        %v728 = vpop.f32.mrb[0].mxu0
        %v729 = vadd.f32 %v465, %v728
        %v730 = vpop.f32.mrb[0].mxu0
        %v731 = vpop.f32.mrb[0].mxu0
        %v732 = vadd.f32 %v465, %v731
        %v733 = vpop.f32.mrb[0].mxu0
        %734 = vmatprep.mubr.bf16.mxu0 0
        %735 = vmatmul.mubr.bf16.gmra.mrb[0].mxu0 %v593
        %v736 = vpop.f32.mrb[0].mxu0
        %v737 = vadd.f32 %v465, %v736
        %v738 = vpop.f32.mrb[0].mxu0
        %v739 = vpop.f32.mrb[0].mxu0
        %v740 = vadd.f32 %v465, %v739
        %v741 = vpop.f32.mrb[0].mxu0
        %742 = vmatprep.mubr.bf16.mxu0 0
        %743 = vmatmul.mubr.bf16.gmra.mrb[0].mxu0 %v596
        %v744 = vpop.f32.mrb[0].mxu0
        %v745 = vadd.f32 %v465, %v744
        %v746 = vpop.f32.mrb[0].mxu0
        %v747 = vpop.f32.mrb[0].mxu0
        %v748 = vadd.f32 %v465, %v747
        %v749 = vpop.f32.mrb[0].mxu0
        %750 = vmatprep.mubr.bf16.mxu0 0
        %751 = vmatmul.mubr.bf16.gmra.mrb[0].mxu0 %v599
        %v752 = vpop.f32.mrb[0].mxu0
        %v753 = vadd.f32 %v465, %v752
        %v754 = vpop.f32.mrb[0].mxu0
        %v755 = vpop.f32.mrb[0].mxu0
        %v756 = vadd.f32 %v465, %v755
        %v757 = vpop.f32.mrb[0].mxu0
        %758 = vmatprep.mubr.bf16.mxu0 0
        %759 = vmatmul.mubr.bf16.gmra.mrb[0].mxu0 %v602
        %v760 = vpop.f32.mrb[0].mxu0
        %v761 = vadd.f32 %v465, %v760
        %v762 = vpop.f32.mrb[0].mxu0
        %v763 = vpop.f32.mrb[0].mxu0
        %v764 = vadd.f32 %v465, %v763
        %v765 = vpop.f32.mrb[0].mxu0
        %766 = vmatprep.mubr.bf16.mxu0 0
        %767 = vmatmul.mubr.bf16.gmra.mrb[0].mxu0 %v605
        %v768 = vpop.f32.mrb[0].mxu0
        %v769 = vadd.f32 %v465, %v768
        %v770 = vpop.f32.mrb[0].mxu0
        %v771 = vpop.f32.mrb[0].mxu0
        %v772 = vadd.f32 %v465, %v771
        %v773 = vpop.f32.mrb[0].mxu0
        %774 = vdwg.mxu0
        %v775 = vmax.f32 %v649, 0.0
        %v776 = vmax.f32 %v652, 0.0
        %v777 = vmax.f32 %v657, 0.0
        %v778 = vmax.f32 %v660, 0.0
        %v779 = vmax.f32 %v665, 0.0
        %v780 = vmax.f32 %v668, 0.0
        %v781 = vmax.f32 %v673, 0.0
        %v782 = vmax.f32 %v676, 0.0
        %v783 = vmax.f32 %v681, 0.0
        %v784 = vmax.f32 %v684, 0.0
        %v785 = vmax.f32 %v689, 0.0
        %v786 = vmax.f32 %v692, 0.0
        %v787 = vmax.f32 %v697, 0.0
        %v788 = vmax.f32 %v700, 0.0
        %v789 = vmax.f32 %v705, 0.0
        %v790 = vmax.f32 %v708, 0.0
        %v791 = vmax.f32 %v713, 0.0
        %v792 = vmax.f32 %v716, 0.0
        %v793 = vmax.f32 %v721, 0.0
        %v794 = vmax.f32 %v724, 0.0
        %v795 = vmax.f32 %v729, 0.0
        %v796 = vmax.f32 %v732, 0.0
        %v797 = vmax.f32 %v737, 0.0
        %v798 = vmax.f32 %v740, 0.0
        %v799 = vmax.f32 %v745, 0.0
        %v800 = vmax.f32 %v748, 0.0
        %v801 = vmax.f32 %v753, 0.0
        %v802 = vmax.f32 %v756, 0.0
        %v803 = vmax.f32 %v761, 0.0
        %v804 = vmax.f32 %v764, 0.0
        %v805 = vmax.f32 %v769, 0.0
        %v806 = vmax.f32 %v772, 0.0
        %vm807 = vcmask 519168
        %808 = vst.msk [vmem:[#allocation2] sm:$0xf] %vm807, 0
        %809 = vst.msk [vmem:[#allocation2 + $0x4] sm:$0xf] %vm807, 0
        %vm810 = vcmask 516096
        %811 = vst.msk [vmem:[#allocation2 + $0x8] sm:$0x1] %vm810, 0
        %812 = vst.msk [vmem:[#allocation2 + $0xc] sm:$0xf] %vm807, 0
        %813 = vst.msk [vmem:[#allocation2 + $0x10] sm:$0xf] %vm807, 0
        %814 = vst.msk [vmem:[#allocation2 + $0x14] sm:$0x1] %vm810, 0
        %815 = vst.msk [vmem:[#allocation2 + $0x18] sm:$0xf] %vm807, 0
        %816 = vst.msk [vmem:[#allocation2 + $0x1c] sm:$0xf] %vm807, 0
        %817 = vst.msk [vmem:[#allocation2 + $0x20] sm:$0x1] %vm810, 0
        %818 = vst.msk [vmem:[#allocation2 + $0x24] sm:$0xf] %vm807, 0
        %819 = vst.msk [vmem:[#allocation2 + $0x28] sm:$0xf] %vm807, 0
        %820 = vst.msk [vmem:[#allocation2 + $0x2c] sm:$0x1] %vm810, 0
        %821 = vst.msk [vmem:[#allocation2 + $0x30] sm:$0xf] %vm807, 0
        %822 = vst.msk [vmem:[#allocation2 + $0x34] sm:$0xf] %vm807, 0
        %823 = vst.msk [vmem:[#allocation2 + $0x38] sm:$0x1] %vm810, 0
        %824 = vst.msk [vmem:[#allocation2 + $0x3c] sm:$0xf] %vm807, 0
        %825 = vst.msk [vmem:[#allocation2 + $0x40] sm:$0xf] %vm807, 0
        %826 = vst.msk [vmem:[#allocation2 + $0x44] sm:$0x1] %vm810, 0
        %827 = vst.msk [vmem:[#allocation2 + $0x48] sm:$0xf] %vm807, 0
        %828 = vst.msk [vmem:[#allocation2 + $0x4c] sm:$0xf] %vm807, 0
        %829 = vst.msk [vmem:[#allocation2 + $0x50] sm:$0x1] %vm810, 0
        %830 = vst.msk [vmem:[#allocation2 + $0x54] sm:$0xf] %vm807, 0
        %831 = vst.msk [vmem:[#allocation2 + $0x58] sm:$0xf] %vm807, 0
        %832 = vst.msk [vmem:[#allocation2 + $0x5c] sm:$0x1] %vm810, 0
        %833 = vst.msk [vmem:[#allocation2 + $0x60] sm:$0xf] %vm807, 0
        %834 = vst.msk [vmem:[#allocation2 + $0x64] sm:$0xf] %vm807, 0
        %835 = vst.msk [vmem:[#allocation2 + $0x68] sm:$0x1] %vm810, 0
        %836 = vst.msk [vmem:[#allocation2 + $0x6c] sm:$0xf] %vm807, 0
        %837 = vst.msk [vmem:[#allocation2 + $0x70] sm:$0xf] %vm807, 0
        %838 = vst.msk [vmem:[#allocation2 + $0x74] sm:$0x1] %vm810, 0
        %839 = vst.msk [vmem:[#allocation2 + $0x78] sm:$0xf] %vm807, 0
        %840 = vst.msk [vmem:[#allocation2 + $0x7c] sm:$0xf] %vm807, 0
        %841 = vst.msk [vmem:[#allocation2 + $0x80] sm:$0x1] %vm810, 0
        %842 = vst.msk [vmem:[#allocation2 + $0x84] sm:$0xf] %vm807, 0
        %843 = vst.msk [vmem:[#allocation2 + $0x88] sm:$0xf] %vm807, 0
        %844 = vst.msk [vmem:[#allocation2 + $0x8c] sm:$0x1] %vm810, 0
        %845 = vst.msk [vmem:[#allocation2 + $0x90] sm:$0xf] %vm807, 0
        %846 = vst.msk [vmem:[#allocation2 + $0x94] sm:$0xf] %vm807, 0
        %847 = vst.msk [vmem:[#allocation2 + $0x98] sm:$0x1] %vm810, 0
        %848 = vst.msk [vmem:[#allocation2 + $0x9c] sm:$0xf] %vm807, 0
        %849 = vst.msk [vmem:[#allocation2 + $0xa0] sm:$0xf] %vm807, 0
        %850 = vst.msk [vmem:[#allocation2 + $0xa4] sm:$0x1] %vm810, 0
        %851 = vst.msk [vmem:[#allocation2 + $0xa8] sm:$0xf] %vm807, 0
        %852 = vst.msk [vmem:[#allocation2 + $0xac] sm:$0xf] %vm807, 0
        %853 = vst.msk [vmem:[#allocation2 + $0xb0] sm:$0x1] %vm810, 0
        %854 = vst.msk [vmem:[#allocation2 + $0xb4] sm:$0xf] %vm807, 0
        %855 = vst.msk [vmem:[#allocation2 + $0xb8] sm:$0xf] %vm807, 0
        %856 = vst.msk [vmem:[#allocation2 + $0xbc] sm:$0x1] %vm810, 0
        %857 = vst.msk [vmem:[#allocation2 + $0xc0] sm:$0xf] %vm807, 0
        %858 = vst.msk [vmem:[#allocation2 + $0xc4] sm:$0xf] %vm807, 0
        %859 = vst.msk [vmem:[#allocation2 + $0xc8] sm:$0x1] %vm810, 0
        %860 = vst.msk [vmem:[#allocation2 + $0xcc] sm:$0xf] %vm807, 0
        %861 = vst.msk [vmem:[#allocation2 + $0xd0] sm:$0xf] %vm807, 0
        %862 = vst.msk [vmem:[#allocation2 + $0xd4] sm:$0x1] %vm810, 0
        %v863 = vpack.c.bf16 %v776, %v775
        %v864 = vpack.c.bf16 %v778, %v777
        %v865 = vpack.c.bf16 %v780, %v779
        %v866 = vpack.c.bf16 %v782, %v781
        %v867 = vpack.c.bf16 %v784, %v783
        %v868 = vpack.c.bf16 %v786, %v785
        %v869 = vpack.c.bf16 %v788, %v787
        %v870 = vpack.c.bf16 %v790, %v789
        %v871 = vpack.c.bf16 %v792, %v791
        %v872 = vpack.c.bf16 %v794, %v793
        %v873 = vpack.c.bf16 %v796, %v795
        %v874 = vpack.c.bf16 %v798, %v797
        %v875 = vpack.c.bf16 %v800, %v799
        %v876 = vpack.c.bf16 %v802, %v801
        %v877 = vpack.c.bf16 %v804, %v803
        %v878 = vpack.c.bf16 %v806, %v805
        %v895 = vunpack.c.l.b16 %v863
        %v896 = vunpack.c.h.b16 %v863
        %v897 = vunpack.c.l.b16 %v864
        %v898 = vunpack.c.h.b16 %v864
        %v899 = vunpack.c.l.b16 %v865
        %v900 = vunpack.c.h.b16 %v865
        %v901 = vunpack.c.l.b16 %v866
        %v902 = vunpack.c.h.b16 %v866
        %v903 = vunpack.c.l.b16 %v867
        %v904 = vunpack.c.h.b16 %v867
        %v905 = vunpack.c.l.b16 %v868
        %v906 = vunpack.c.h.b16 %v868
        %v907 = vunpack.c.l.b16 %v869
        %v908 = vunpack.c.h.b16 %v869
        %v909 = vunpack.c.l.b16 %v870
        %v910 = vunpack.c.h.b16 %v870
        %v911 = vunpack.c.l.b16 %v871
        %v912 = vunpack.c.h.b16 %v871
        %v913 = vunpack.c.l.b16 %v872
        %v914 = vunpack.c.h.b16 %v872
        %v915 = vunpack.c.l.b16 %v873
        %v916 = vunpack.c.h.b16 %v873
        %v917 = vunpack.c.l.b16 %v874
        %v918 = vunpack.c.h.b16 %v874
        %v919 = vunpack.c.l.b16 %v875
        %v920 = vunpack.c.h.b16 %v875
        %v921 = vunpack.c.l.b16 %v876
        %v922 = vunpack.c.h.b16 %v876
        %v923 = vunpack.c.l.b16 %v877
        %v924 = vunpack.c.h.b16 %v877
        %v925 = vunpack.c.l.b16 %v878
        %v926 = vunpack.c.h.b16 %v878
        %v927 = vpack.c.b16 %v895, %v895
        %v928 = vpack.c.b16 %v896, %v896
        %v929 = vpack.c.b16 %v897, %v897
        %v930 = vpack.c.b16 %v898, %v898
        %v931 = vpack.c.b16 %v899, %v899
        %v932 = vpack.c.b16 %v900, %v900
        %v933 = vpack.c.b16 %v901, %v901
        %v934 = vpack.c.b16 %v902, %v902
        %v935 = vpack.c.b16 %v903, %v903
        %v936 = vpack.c.b16 %v904, %v904
        %v937 = vpack.c.b16 %v905, %v905
        %v938 = vpack.c.b16 %v906, %v906
        %v939 = vpack.c.b16 %v907, %v907
        %v940 = vpack.c.b16 %v908, %v908
        %v941 = vpack.c.b16 %v909, %v909
        %v942 = vpack.c.b16 %v910, %v910
        %v943 = vpack.c.b16 %v911, %v911
        %v944 = vpack.c.b16 %v912, %v912
        %v945 = vpack.c.b16 %v913, %v913
        %v946 = vpack.c.b16 %v914, %v914
        %v947 = vpack.c.b16 %v915, %v915
        %v948 = vpack.c.b16 %v916, %v916
        %v949 = vpack.c.b16 %v917, %v917
        %v950 = vpack.c.b16 %v918, %v918
        %v951 = vpack.c.b16 %v919, %v919
        %v952 = vpack.c.b16 %v920, %v920
        %v953 = vpack.c.b16 %v921, %v921
        %v954 = vpack.c.b16 %v922, %v922
        %v955 = vpack.c.b16 %v923, %v923
        %v956 = vpack.c.b16 %v924, %v924
        %v957 = vpack.c.b16 %v925, %v925
        %v958 = vpack.c.b16 %v926, %v926
        %vm959 = vsmask.f32 256
        %vm960 = vsmask.f32 4368
        %vm961 = vmor %vm959, %vm960
        %v963 = vshrl.u32 %v927, 16
        %v965 = vrot.slane %v963, 7
        %v966 = vshll.u32 %v927, 16
        %v968 = vor.u32 %v965, %v966
        %v969 = vrot.slane %v965, 4
        %v971 = vshrl.u32 %v928, 16
        %v973 = vrot.slane %v971, 7
        %v974 = vshll.u32 %v928, 16
        %v976 = vor.u32 %v973, %v974
        %v977 = vsel %vm961, %v969, %v976
        %v978 = vrot.slane %v973, 4
        %v980 = vshrl.u32 %v929, 16
        %v982 = vrot.slane %v980, 7
        %v983 = vshll.u32 %v929, 16
        %v985 = vor.u32 %v982, %v983
        %v986 = vrot.slane %v982, 4
        %v988 = vshrl.u32 %v930, 16
        %v990 = vrot.slane %v988, 7
        %v991 = vshll.u32 %v930, 16
        %v993 = vor.u32 %v990, %v991
        %v994 = vsel %vm961, %v986, %v993
        %v995 = vrot.slane %v990, 4
        %v997 = vshrl.u32 %v931, 16
        %v999 = vrot.slane %v997, 7
        %v1000 = vshll.u32 %v931, 16
        %v1002 = vor.u32 %v999, %v1000
        %v1003 = vrot.slane %v999, 4
        %v1005 = vshrl.u32 %v932, 16
        %v1007 = vrot.slane %v1005, 7
        %v1008 = vshll.u32 %v932, 16
        %v1010 = vor.u32 %v1007, %v1008
        %v1011 = vsel %vm961, %v1003, %v1010
        %v1012 = vrot.slane %v1007, 4
        %v1014 = vshrl.u32 %v933, 16
        %v1016 = vrot.slane %v1014, 7
        %v1017 = vshll.u32 %v933, 16
        %v1019 = vor.u32 %v1016, %v1017
        %v1020 = vrot.slane %v1016, 4
        %v1022 = vshrl.u32 %v934, 16
        %v1024 = vrot.slane %v1022, 7
        %v1025 = vshll.u32 %v934, 16
        %v1027 = vor.u32 %v1024, %v1025
        %v1028 = vsel %vm961, %v1020, %v1027
        %v1029 = vrot.slane %v1024, 4
        %v1031 = vshrl.u32 %v935, 16
        %v1033 = vrot.slane %v1031, 7
        %v1034 = vshll.u32 %v935, 16
        %v1036 = vor.u32 %v1033, %v1034
        %v1037 = vrot.slane %v1033, 4
        %v1039 = vshrl.u32 %v936, 16
        %v1041 = vrot.slane %v1039, 7
        %v1042 = vshll.u32 %v936, 16
        %v1044 = vor.u32 %v1041, %v1042
        %v1045 = vsel %vm961, %v1037, %v1044
        %v1046 = vrot.slane %v1041, 4
        %v1048 = vshrl.u32 %v937, 16
        %v1050 = vrot.slane %v1048, 7
        %v1051 = vshll.u32 %v937, 16
        %v1053 = vor.u32 %v1050, %v1051
        %v1054 = vrot.slane %v1050, 4
        %v1056 = vshrl.u32 %v938, 16
        %v1058 = vrot.slane %v1056, 7
        %v1059 = vshll.u32 %v938, 16
        %v1061 = vor.u32 %v1058, %v1059
        %v1062 = vsel %vm961, %v1054, %v1061
        %v1063 = vrot.slane %v1058, 4
        %v1065 = vshrl.u32 %v939, 16
        %v1067 = vrot.slane %v1065, 7
        %v1068 = vshll.u32 %v939, 16
        %v1070 = vor.u32 %v1067, %v1068
        %v1071 = vrot.slane %v1067, 4
        %v1073 = vshrl.u32 %v940, 16
        %v1075 = vrot.slane %v1073, 7
        %v1076 = vshll.u32 %v940, 16
        %v1078 = vor.u32 %v1075, %v1076
        %v1079 = vsel %vm961, %v1071, %v1078
        %v1080 = vrot.slane %v1075, 4
        %v1082 = vshrl.u32 %v941, 16
        %v1084 = vrot.slane %v1082, 7
        %v1085 = vshll.u32 %v941, 16
        %v1087 = vor.u32 %v1084, %v1085
        %v1088 = vrot.slane %v1084, 4
        %v1090 = vshrl.u32 %v942, 16
        %v1092 = vrot.slane %v1090, 7
        %v1093 = vshll.u32 %v942, 16
        %v1095 = vor.u32 %v1092, %v1093
        %v1096 = vsel %vm961, %v1088, %v1095
        %v1097 = vrot.slane %v1092, 4
        %v1099 = vshrl.u32 %v943, 16
        %v1101 = vrot.slane %v1099, 7
        %v1102 = vshll.u32 %v943, 16
        %v1104 = vor.u32 %v1101, %v1102
        %v1105 = vrot.slane %v1101, 4
        %v1107 = vshrl.u32 %v944, 16
        %v1109 = vrot.slane %v1107, 7
        %v1110 = vshll.u32 %v944, 16
        %v1112 = vor.u32 %v1109, %v1110
        %v1113 = vsel %vm961, %v1105, %v1112
        %v1114 = vrot.slane %v1109, 4
        %v1116 = vshrl.u32 %v945, 16
        %v1118 = vrot.slane %v1116, 7
        %v1119 = vshll.u32 %v945, 16
        %v1121 = vor.u32 %v1118, %v1119
        %v1122 = vrot.slane %v1118, 4
        %v1124 = vshrl.u32 %v946, 16
        %v1126 = vrot.slane %v1124, 7
        %v1127 = vshll.u32 %v946, 16
        %v1129 = vor.u32 %v1126, %v1127
        %v1130 = vsel %vm961, %v1122, %v1129
        %v1131 = vrot.slane %v1126, 4
        %v1133 = vshrl.u32 %v947, 16
        %v1135 = vrot.slane %v1133, 7
        %v1136 = vshll.u32 %v947, 16
        %v1138 = vor.u32 %v1135, %v1136
        %v1139 = vrot.slane %v1135, 4
        %v1141 = vshrl.u32 %v948, 16
        %v1143 = vrot.slane %v1141, 7
        %v1144 = vshll.u32 %v948, 16
        %v1146 = vor.u32 %v1143, %v1144
        %v1147 = vsel %vm961, %v1139, %v1146
        %v1148 = vrot.slane %v1143, 4
        %v1150 = vshrl.u32 %v949, 16
        %v1152 = vrot.slane %v1150, 7
        %v1153 = vshll.u32 %v949, 16
        %v1155 = vor.u32 %v1152, %v1153
        %v1156 = vrot.slane %v1152, 4
        %v1158 = vshrl.u32 %v950, 16
        %v1160 = vrot.slane %v1158, 7
        %v1161 = vshll.u32 %v950, 16
        %v1163 = vor.u32 %v1160, %v1161
        %v1164 = vsel %vm961, %v1156, %v1163
        %v1165 = vrot.slane %v1160, 4
        %v1167 = vshrl.u32 %v951, 16
        %v1169 = vrot.slane %v1167, 7
        %v1170 = vshll.u32 %v951, 16
        %v1172 = vor.u32 %v1169, %v1170
        %v1173 = vrot.slane %v1169, 4
        %v1175 = vshrl.u32 %v952, 16
        %v1177 = vrot.slane %v1175, 7
        %v1178 = vshll.u32 %v952, 16
        %v1180 = vor.u32 %v1177, %v1178
        %v1181 = vsel %vm961, %v1173, %v1180
        %v1182 = vrot.slane %v1177, 4
        %v1184 = vshrl.u32 %v953, 16
        %v1186 = vrot.slane %v1184, 7
        %v1187 = vshll.u32 %v953, 16
        %v1189 = vor.u32 %v1186, %v1187
        %v1190 = vrot.slane %v1186, 4
        %v1192 = vshrl.u32 %v954, 16
        %v1194 = vrot.slane %v1192, 7
        %v1195 = vshll.u32 %v954, 16
        %v1197 = vor.u32 %v1194, %v1195
        %v1198 = vsel %vm961, %v1190, %v1197
        %v1199 = vrot.slane %v1194, 4
        %v1201 = vshrl.u32 %v955, 16
        %v1203 = vrot.slane %v1201, 7
        %v1204 = vshll.u32 %v955, 16
        %v1206 = vor.u32 %v1203, %v1204
        %v1207 = vrot.slane %v1203, 4
        %v1209 = vshrl.u32 %v956, 16
        %v1211 = vrot.slane %v1209, 7
        %v1212 = vshll.u32 %v956, 16
        %v1214 = vor.u32 %v1211, %v1212
        %v1215 = vsel %vm961, %v1207, %v1214
        %v1216 = vrot.slane %v1211, 4
        %v1218 = vshrl.u32 %v957, 16
        %v1220 = vrot.slane %v1218, 7
        %v1221 = vshll.u32 %v957, 16
        %v1223 = vor.u32 %v1220, %v1221
        %v1224 = vrot.slane %v1220, 4
        %v1226 = vshrl.u32 %v958, 16
        %v1228 = vrot.slane %v1226, 7
        %v1229 = vshll.u32 %v958, 16
        %v1231 = vor.u32 %v1228, %v1229
        %v1232 = vsel %vm961, %v1224, %v1231
        %v1233 = vrot.slane %v1228, 4
        %s1282 = scalar_lea.vmem [#allocation2], 12
        %vm1283 = vcmask 519168
        %vm1284 = vsmask.f32 7938
        %vm1285 = vmand %vm1283, %vm1284
        %v1286 = vld [vmem:[%s1282] sm:$0xf]
        %v1287 = vsel %vm1285, %v968, %v1286
        %1288 = vst [vmem:[%s1282] sm:$0xf] %v1287
        %1289 = vst.msk [vmem:[%s1282 + $0x4] sm:$0xf] %vm807, %v977
        %vm1290 = vcmask 516096
        %vm1291 = vmand %vm1290, %vm959
        %v1292 = vld [vmem:[%s1282 + $0x8] sm:$0x1]
        %v1293 = vsel %vm1291, %v978, %v1292
        %1294 = vst [vmem:[%s1282 + $0x8] sm:$0x1] %v1293
        %v1295 = vld [vmem:[%s1282 + $0xc] sm:$0xf]
        %v1296 = vsel %vm1285, %v985, %v1295
        %1297 = vst [vmem:[%s1282 + $0xc] sm:$0xf] %v1296
        %1298 = vst.msk [vmem:[%s1282 + $0x10] sm:$0xf] %vm807, %v994
        %v1299 = vld [vmem:[%s1282 + $0x14] sm:$0x1]
        %v1300 = vsel %vm1291, %v995, %v1299
        %1301 = vst [vmem:[%s1282 + $0x14] sm:$0x1] %v1300
        %v1302 = vld [vmem:[%s1282 + $0x18] sm:$0xf]
        %v1303 = vsel %vm1285, %v1002, %v1302
        %1304 = vst [vmem:[%s1282 + $0x18] sm:$0xf] %v1303
        %1305 = vst.msk [vmem:[%s1282 + $0x1c] sm:$0xf] %vm807, %v1011
        %v1306 = vld [vmem:[%s1282 + $0x20] sm:$0x1]
        %v1307 = vsel %vm1291, %v1012, %v1306
        %1308 = vst [vmem:[%s1282 + $0x20] sm:$0x1] %v1307
        %v1309 = vld [vmem:[%s1282 + $0x24] sm:$0xf]
        %v1310 = vsel %vm1285, %v1019, %v1309
        %1311 = vst [vmem:[%s1282 + $0x24] sm:$0xf] %v1310
        %1312 = vst.msk [vmem:[%s1282 + $0x28] sm:$0xf] %vm807, %v1028
        %v1313 = vld [vmem:[%s1282 + $0x2c] sm:$0x1]
        %v1314 = vsel %vm1291, %v1029, %v1313
        %1315 = vst [vmem:[%s1282 + $0x2c] sm:$0x1] %v1314
        %v1316 = vld [vmem:[%s1282 + $0x30] sm:$0xf]
        %v1317 = vsel %vm1285, %v1036, %v1316
        %1318 = vst [vmem:[%s1282 + $0x30] sm:$0xf] %v1317
        %1319 = vst.msk [vmem:[%s1282 + $0x34] sm:$0xf] %vm807, %v1045
        %v1320 = vld [vmem:[%s1282 + $0x38] sm:$0x1]
        %v1321 = vsel %vm1291, %v1046, %v1320
        %1322 = vst [vmem:[%s1282 + $0x38] sm:$0x1] %v1321
        %v1323 = vld [vmem:[%s1282 + $0x3c] sm:$0xf]
        %v1324 = vsel %vm1285, %v1053, %v1323
        %1325 = vst [vmem:[%s1282 + $0x3c] sm:$0xf] %v1324
        %1326 = vst.msk [vmem:[%s1282 + $0x40] sm:$0xf] %vm807, %v1062
        %v1327 = vld [vmem:[%s1282 + $0x44] sm:$0x1]
        %v1328 = vsel %vm1291, %v1063, %v1327
        %1329 = vst [vmem:[%s1282 + $0x44] sm:$0x1] %v1328
        %v1330 = vld [vmem:[%s1282 + $0x48] sm:$0xf]
        %v1331 = vsel %vm1285, %v1070, %v1330
        %1332 = vst [vmem:[%s1282 + $0x48] sm:$0xf] %v1331
        %1333 = vst.msk [vmem:[%s1282 + $0x4c] sm:$0xf] %vm807, %v1079
        %v1334 = vld [vmem:[%s1282 + $0x50] sm:$0x1]
        %v1335 = vsel %vm1291, %v1080, %v1334
        %1336 = vst [vmem:[%s1282 + $0x50] sm:$0x1] %v1335
        %v1337 = vld [vmem:[%s1282 + $0x54] sm:$0xf]
        %v1338 = vsel %vm1285, %v1087, %v1337
        %1339 = vst [vmem:[%s1282 + $0x54] sm:$0xf] %v1338
        %1340 = vst.msk [vmem:[%s1282 + $0x58] sm:$0xf] %vm807, %v1096
        %v1341 = vld [vmem:[%s1282 + $0x5c] sm:$0x1]
        %v1342 = vsel %vm1291, %v1097, %v1341
        %1343 = vst [vmem:[%s1282 + $0x5c] sm:$0x1] %v1342
        %v1344 = vld [vmem:[%s1282 + $0x60] sm:$0xf]
        %v1345 = vsel %vm1285, %v1104, %v1344
        %1346 = vst [vmem:[%s1282 + $0x60] sm:$0xf] %v1345
        %1347 = vst.msk [vmem:[%s1282 + $0x64] sm:$0xf] %vm807, %v1113
        %v1348 = vld [vmem:[%s1282 + $0x68] sm:$0x1]
        %v1349 = vsel %vm1291, %v1114, %v1348
        %1350 = vst [vmem:[%s1282 + $0x68] sm:$0x1] %v1349
        %v1351 = vld [vmem:[%s1282 + $0x6c] sm:$0xf]
        %v1352 = vsel %vm1285, %v1121, %v1351
        %1353 = vst [vmem:[%s1282 + $0x6c] sm:$0xf] %v1352
        %1354 = vst.msk [vmem:[%s1282 + $0x70] sm:$0xf] %vm807, %v1130
        %v1355 = vld [vmem:[%s1282 + $0x74] sm:$0x1]
        %v1356 = vsel %vm1291, %v1131, %v1355
        %1357 = vst [vmem:[%s1282 + $0x74] sm:$0x1] %v1356
        %v1358 = vld [vmem:[%s1282 + $0x78] sm:$0xf]
        %v1359 = vsel %vm1285, %v1138, %v1358
        %1360 = vst [vmem:[%s1282 + $0x78] sm:$0xf] %v1359
        %1361 = vst.msk [vmem:[%s1282 + $0x7c] sm:$0xf] %vm807, %v1147
        %v1362 = vld [vmem:[%s1282 + $0x80] sm:$0x1]
        %v1363 = vsel %vm1291, %v1148, %v1362
        %1364 = vst [vmem:[%s1282 + $0x80] sm:$0x1] %v1363
        %v1365 = vld [vmem:[%s1282 + $0x84] sm:$0xf]
        %v1366 = vsel %vm1285, %v1155, %v1365
        %1367 = vst [vmem:[%s1282 + $0x84] sm:$0xf] %v1366
        %1368 = vst.msk [vmem:[%s1282 + $0x88] sm:$0xf] %vm807, %v1164
        %v1369 = vld [vmem:[%s1282 + $0x8c] sm:$0x1]
        %v1370 = vsel %vm1291, %v1165, %v1369
        %1371 = vst [vmem:[%s1282 + $0x8c] sm:$0x1] %v1370
        %v1372 = vld [vmem:[%s1282 + $0x90] sm:$0xf]
        %v1373 = vsel %vm1285, %v1172, %v1372
        %1374 = vst [vmem:[%s1282 + $0x90] sm:$0xf] %v1373
        %1375 = vst.msk [vmem:[%s1282 + $0x94] sm:$0xf] %vm807, %v1181
        %v1376 = vld [vmem:[%s1282 + $0x98] sm:$0x1]
        %v1377 = vsel %vm1291, %v1182, %v1376
        %1378 = vst [vmem:[%s1282 + $0x98] sm:$0x1] %v1377
        %v1379 = vld [vmem:[%s1282 + $0x9c] sm:$0xf]
        %v1380 = vsel %vm1285, %v1189, %v1379
        %1381 = vst [vmem:[%s1282 + $0x9c] sm:$0xf] %v1380
        %1382 = vst.msk [vmem:[%s1282 + $0xa0] sm:$0xf] %vm807, %v1198
        %v1383 = vld [vmem:[%s1282 + $0xa4] sm:$0x1]
        %v1384 = vsel %vm1291, %v1199, %v1383
        %1385 = vst [vmem:[%s1282 + $0xa4] sm:$0x1] %v1384
        %v1386 = vld [vmem:[%s1282 + $0xa8] sm:$0xf]
        %v1387 = vsel %vm1285, %v1206, %v1386
        %1388 = vst [vmem:[%s1282 + $0xa8] sm:$0xf] %v1387
        %1389 = vst.msk [vmem:[%s1282 + $0xac] sm:$0xf] %vm807, %v1215
        %v1390 = vld [vmem:[%s1282 + $0xb0] sm:$0x1]
        %v1391 = vsel %vm1291, %v1216, %v1390
        %1392 = vst [vmem:[%s1282 + $0xb0] sm:$0x1] %v1391
        %v1393 = vld [vmem:[%s1282 + $0xb4] sm:$0xf]
        %v1394 = vsel %vm1285, %v1223, %v1393
        %1395 = vst [vmem:[%s1282 + $0xb4] sm:$0xf] %v1394
        %1396 = vst.msk [vmem:[%s1282 + $0xb8] sm:$0xf] %vm807, %v1232
        %v1397 = vld [vmem:[%s1282 + $0xbc] sm:$0x1]
        %v1398 = vsel %vm1291, %v1233, %v1397
        %1399 = vst [vmem:[%s1282 + $0xbc] sm:$0x1] %v1398
        %v1400 = vld [vmem:[#allocation2] sm:$0xf]
        %v1401 = vld [vmem:[#allocation2 + $0x4] sm:$0xf]
        %v1402 = vld [vmem:[#allocation2 + $0x8] sm:$0x1]
        %v1403 = vld [vmem:[#allocation2 + $0xc] sm:$0xf]
        %v1404 = vld [vmem:[#allocation2 + $0x10] sm:$0xf]
        %v1405 = vld [vmem:[#allocation2 + $0x14] sm:$0x1]
        %v1406 = vld [vmem:[#allocation2 + $0x18] sm:$0xf]
        %v1407 = vld [vmem:[#allocation2 + $0x1c] sm:$0xf]
        %v1408 = vld [vmem:[#allocation2 + $0x20] sm:$0x1]
        %v1409 = vld [vmem:[#allocation2 + $0x24] sm:$0xf]
        %v1410 = vld [vmem:[#allocation2 + $0x28] sm:$0xf]
        %v1411 = vld [vmem:[#allocation2 + $0x2c] sm:$0x1]
        %v1412 = vld [vmem:[#allocation2 + $0x30] sm:$0xf]
        %v1413 = vld [vmem:[#allocation2 + $0x34] sm:$0xf]
        %v1414 = vld [vmem:[#allocation2 + $0x38] sm:$0x1]
        %v1415 = vld [vmem:[#allocation2 + $0x3c] sm:$0xf]
        %v1416 = vld [vmem:[#allocation2 + $0x40] sm:$0xf]
        %v1417 = vld [vmem:[#allocation2 + $0x44] sm:$0x1]
        %v1418 = vld [vmem:[#allocation2 + $0x48] sm:$0xf]
        %v1419 = vld [vmem:[#allocation2 + $0x4c] sm:$0xf]
        %v1420 = vld [vmem:[#allocation2 + $0x50] sm:$0x1]
        %v1421 = vld [vmem:[#allocation2 + $0x54] sm:$0xf]
        %v1422 = vld [vmem:[#allocation2 + $0x58] sm:$0xf]
        %v1423 = vld [vmem:[#allocation2 + $0x5c] sm:$0x1]
        %v1424 = vld [vmem:[#allocation2 + $0x60] sm:$0xf]
        %v1425 = vld [vmem:[#allocation2 + $0x64] sm:$0xf]
        %v1426 = vld [vmem:[#allocation2 + $0x68] sm:$0x1]
        %v1427 = vld [vmem:[#allocation2 + $0x6c] sm:$0xf]
        %v1428 = vld [vmem:[#allocation2 + $0x70] sm:$0xf]
        %v1429 = vld [vmem:[#allocation2 + $0x74] sm:$0x1]
        %v1430 = vld [vmem:[#allocation2 + $0x78] sm:$0xf]
        %v1431 = vld [vmem:[#allocation2 + $0x7c] sm:$0xf]
        %v1432 = vld [vmem:[#allocation2 + $0x80] sm:$0x1]
        %v1433 = vld [vmem:[#allocation2 + $0x84] sm:$0xf]
        %v1434 = vld [vmem:[#allocation2 + $0x88] sm:$0xf]
        %v1435 = vld [vmem:[#allocation2 + $0x8c] sm:$0x1]
        %v1436 = vld [vmem:[#allocation2 + $0x90] sm:$0xf]
        %v1437 = vld [vmem:[#allocation2 + $0x94] sm:$0xf]
        %v1438 = vld [vmem:[#allocation2 + $0x98] sm:$0x1]
        %v1439 = vld [vmem:[#allocation2 + $0x9c] sm:$0xf]
        %v1440 = vld [vmem:[#allocation2 + $0xa0] sm:$0xf]
        %v1441 = vld [vmem:[#allocation2 + $0xa4] sm:$0x1]
        %v1442 = vld [vmem:[#allocation2 + $0xa8] sm:$0xf]
        %v1443 = vld [vmem:[#allocation2 + $0xac] sm:$0xf]
        %v1444 = vld [vmem:[#allocation2 + $0xb0] sm:$0x1]
        %v1445 = vld [vmem:[#allocation2 + $0xb4] sm:$0xf]
        %v1446 = vld [vmem:[#allocation2 + $0xb8] sm:$0xf]
        %v1447 = vld [vmem:[#allocation2 + $0xbc] sm:$0x1]
        %v1448 = vld [vmem:[#allocation2 + $0xc0] sm:$0xf]
        %v1449 = vld [vmem:[#allocation2 + $0xc4] sm:$0xf]
        %v1450 = vld [vmem:[#allocation2 + $0xc8] sm:$0x1]
        %v1451 = vld [vmem:[#allocation2 + $0xcc] sm:$0xf]
        %v1452 = vld [vmem:[#allocation2 + $0xd0] sm:$0xf]
        %v1453 = vld [vmem:[#allocation2 + $0xd4] sm:$0x1]
        %v1454 = vld [vmem:[%s3] sm:$0xf]
        %v1455 = vld [vmem:[%s3 + $0x4] sm:$0xf]
        %v1456 = vld [vmem:[%s3 + $0x8] sm:$0xf]
        %v1457 = vld [vmem:[%s3 + $0xc] sm:$0xf]
        %v1458 = vld [vmem:[%s3 + $0x10] sm:$0xf]
        %v1459 = vld [vmem:[%s3 + $0x14] sm:$0xf]
        %v1460 = vld [vmem:[%s3 + $0x18] sm:$0xf]
        %v1461 = vld [vmem:[%s3 + $0x1c] sm:$0xf]
        %vm1462 = vsmask.f32 3328
        %vm1463 = vsmask.f32 7440
        %vm1464 = vmor %vm1462, %vm1463
        %v1466 = vshrl.u32 %v1400, 16
        %v1468 = vrot.slane %v1466, 4
        %v1469 = vshll.u32 %v1400, 16
        %v1471 = vrot.slane %v1469, 5
        %v1472 = vor.u32 %v1468, %v1471
        %v1473 = vrot.slane %v1472, 4
        %v1475 = vshll.u32 %v1401, 16
        %v1477 = vrot.slane %v1475, 5
        %v1478 = vsel %vm1464, %v1473, %v1477
        %v1479 = vshrl.u32 %v1401, 16
        %v1481 = vrot.slane %v1479, 4
        %v1482 = vor.u32 %v1481, %v1477
        %v1483 = vrot.slane %v1482, 4
        %v1485 = vshll.u32 %v1402, 16
        %v1487 = vrot.slane %v1485, 5
        %v1488 = vsel %vm1464, %v1483, %v1487
        %v1490 = vshrl.u32 %v1403, 16
        %v1492 = vrot.slane %v1490, 4
        %v1493 = vshll.u32 %v1403, 16
        %v1495 = vrot.slane %v1493, 5
        %v1496 = vor.u32 %v1492, %v1495
        %v1497 = vrot.slane %v1496, 4
        %v1499 = vshll.u32 %v1404, 16
        %v1501 = vrot.slane %v1499, 5
        %v1502 = vsel %vm1464, %v1497, %v1501
        %v1503 = vshrl.u32 %v1404, 16
        %v1505 = vrot.slane %v1503, 4
        %v1506 = vor.u32 %v1505, %v1501
        %v1507 = vrot.slane %v1506, 4
        %v1509 = vshll.u32 %v1405, 16
        %v1511 = vrot.slane %v1509, 5
        %v1512 = vsel %vm1464, %v1507, %v1511
        %v1514 = vshrl.u32 %v1406, 16
        %v1516 = vrot.slane %v1514, 4
        %v1517 = vshll.u32 %v1406, 16
        %v1519 = vrot.slane %v1517, 5
        %v1520 = vor.u32 %v1516, %v1519
        %v1521 = vrot.slane %v1520, 4
        %v1523 = vshll.u32 %v1407, 16
        %v1525 = vrot.slane %v1523, 5
        %v1526 = vsel %vm1464, %v1521, %v1525
        %v1527 = vshrl.u32 %v1407, 16
        %v1529 = vrot.slane %v1527, 4
        %v1530 = vor.u32 %v1529, %v1525
        %v1531 = vrot.slane %v1530, 4
        %v1533 = vshll.u32 %v1408, 16
        %v1535 = vrot.slane %v1533, 5
        %v1536 = vsel %vm1464, %v1531, %v1535
        %v1538 = vshrl.u32 %v1409, 16
        %v1540 = vrot.slane %v1538, 4
        %v1541 = vshll.u32 %v1409, 16
        %v1543 = vrot.slane %v1541, 5
        %v1544 = vor.u32 %v1540, %v1543
        %v1545 = vrot.slane %v1544, 4
        %v1547 = vshll.u32 %v1410, 16
        %v1549 = vrot.slane %v1547, 5
        %v1550 = vsel %vm1464, %v1545, %v1549
        %v1551 = vshrl.u32 %v1410, 16
        %v1553 = vrot.slane %v1551, 4
        %v1554 = vor.u32 %v1553, %v1549
        %v1555 = vrot.slane %v1554, 4
        %v1557 = vshll.u32 %v1411, 16
        %v1559 = vrot.slane %v1557, 5
        %v1560 = vsel %vm1464, %v1555, %v1559
        %v1562 = vshrl.u32 %v1412, 16
        %v1564 = vrot.slane %v1562, 4
        %v1565 = vshll.u32 %v1412, 16
        %v1567 = vrot.slane %v1565, 5
        %v1568 = vor.u32 %v1564, %v1567
        %v1569 = vrot.slane %v1568, 4
        %v1571 = vshll.u32 %v1413, 16
        %v1573 = vrot.slane %v1571, 5
        %v1574 = vsel %vm1464, %v1569, %v1573
        %v1575 = vshrl.u32 %v1413, 16
        %v1577 = vrot.slane %v1575, 4
        %v1578 = vor.u32 %v1577, %v1573
        %v1579 = vrot.slane %v1578, 4
        %v1581 = vshll.u32 %v1414, 16
        %v1583 = vrot.slane %v1581, 5
        %v1584 = vsel %vm1464, %v1579, %v1583
        %v1586 = vshrl.u32 %v1415, 16
        %v1588 = vrot.slane %v1586, 4
        %v1589 = vshll.u32 %v1415, 16
        %v1591 = vrot.slane %v1589, 5
        %v1592 = vor.u32 %v1588, %v1591
        %v1593 = vrot.slane %v1592, 4
        %v1595 = vshll.u32 %v1416, 16
        %v1597 = vrot.slane %v1595, 5
        %v1598 = vsel %vm1464, %v1593, %v1597
        %v1599 = vshrl.u32 %v1416, 16
        %v1601 = vrot.slane %v1599, 4
        %v1602 = vor.u32 %v1601, %v1597
        %v1603 = vrot.slane %v1602, 4
        %v1605 = vshll.u32 %v1417, 16
        %v1607 = vrot.slane %v1605, 5
        %v1608 = vsel %vm1464, %v1603, %v1607
        %v1610 = vshrl.u32 %v1418, 16
        %v1612 = vrot.slane %v1610, 4
        %v1613 = vshll.u32 %v1418, 16
        %v1615 = vrot.slane %v1613, 5
        %v1616 = vor.u32 %v1612, %v1615
        %v1617 = vrot.slane %v1616, 4
        %v1619 = vshll.u32 %v1419, 16
        %v1621 = vrot.slane %v1619, 5
        %v1622 = vsel %vm1464, %v1617, %v1621
        %v1623 = vshrl.u32 %v1419, 16
        %v1625 = vrot.slane %v1623, 4
        %v1626 = vor.u32 %v1625, %v1621
        %v1627 = vrot.slane %v1626, 4
        %v1629 = vshll.u32 %v1420, 16
        %v1631 = vrot.slane %v1629, 5
        %v1632 = vsel %vm1464, %v1627, %v1631
        %v1634 = vshrl.u32 %v1421, 16
        %v1636 = vrot.slane %v1634, 4
        %v1637 = vshll.u32 %v1421, 16
        %v1639 = vrot.slane %v1637, 5
        %v1640 = vor.u32 %v1636, %v1639
        %v1641 = vrot.slane %v1640, 4
        %v1643 = vshll.u32 %v1422, 16
        %v1645 = vrot.slane %v1643, 5
        %v1646 = vsel %vm1464, %v1641, %v1645
        %v1647 = vshrl.u32 %v1422, 16
        %v1649 = vrot.slane %v1647, 4
        %v1650 = vor.u32 %v1649, %v1645
        %v1651 = vrot.slane %v1650, 4
        %v1653 = vshll.u32 %v1423, 16
        %v1655 = vrot.slane %v1653, 5
        %v1656 = vsel %vm1464, %v1651, %v1655
        %v1658 = vshrl.u32 %v1424, 16
        %v1660 = vrot.slane %v1658, 4
        %v1661 = vshll.u32 %v1424, 16
        %v1663 = vrot.slane %v1661, 5
        %v1664 = vor.u32 %v1660, %v1663
        %v1665 = vrot.slane %v1664, 4
        %v1667 = vshll.u32 %v1425, 16
        %v1669 = vrot.slane %v1667, 5
        %v1670 = vsel %vm1464, %v1665, %v1669
        %v1671 = vshrl.u32 %v1425, 16
        %v1673 = vrot.slane %v1671, 4
        %v1674 = vor.u32 %v1673, %v1669
        %v1675 = vrot.slane %v1674, 4
        %v1677 = vshll.u32 %v1426, 16
        %v1679 = vrot.slane %v1677, 5
        %v1680 = vsel %vm1464, %v1675, %v1679
        %v1682 = vshrl.u32 %v1427, 16
        %v1684 = vrot.slane %v1682, 4
        %v1685 = vshll.u32 %v1427, 16
        %v1687 = vrot.slane %v1685, 5
        %v1688 = vor.u32 %v1684, %v1687
        %v1689 = vrot.slane %v1688, 4
        %v1691 = vshll.u32 %v1428, 16
        %v1693 = vrot.slane %v1691, 5
        %v1694 = vsel %vm1464, %v1689, %v1693
        %v1695 = vshrl.u32 %v1428, 16
        %v1697 = vrot.slane %v1695, 4
        %v1698 = vor.u32 %v1697, %v1693
        %v1699 = vrot.slane %v1698, 4
        %v1701 = vshll.u32 %v1429, 16
        %v1703 = vrot.slane %v1701, 5
        %v1704 = vsel %vm1464, %v1699, %v1703
        %v1706 = vshrl.u32 %v1430, 16
        %v1708 = vrot.slane %v1706, 4
        %v1709 = vshll.u32 %v1430, 16
        %v1711 = vrot.slane %v1709, 5
        %v1712 = vor.u32 %v1708, %v1711
        %v1713 = vrot.slane %v1712, 4
        %v1715 = vshll.u32 %v1431, 16
        %v1717 = vrot.slane %v1715, 5
        %v1718 = vsel %vm1464, %v1713, %v1717
        %v1719 = vshrl.u32 %v1431, 16
        %v1721 = vrot.slane %v1719, 4
        %v1722 = vor.u32 %v1721, %v1717
        %v1723 = vrot.slane %v1722, 4
        %v1725 = vshll.u32 %v1432, 16
        %v1727 = vrot.slane %v1725, 5
        %v1728 = vsel %vm1464, %v1723, %v1727
        %v1730 = vshrl.u32 %v1433, 16
        %v1732 = vrot.slane %v1730, 4
        %v1733 = vshll.u32 %v1433, 16
        %v1735 = vrot.slane %v1733, 5
        %v1736 = vor.u32 %v1732, %v1735
        %v1737 = vrot.slane %v1736, 4
        %v1739 = vshll.u32 %v1434, 16
        %v1741 = vrot.slane %v1739, 5
        %v1742 = vsel %vm1464, %v1737, %v1741
        %v1743 = vshrl.u32 %v1434, 16
        %v1745 = vrot.slane %v1743, 4
        %v1746 = vor.u32 %v1745, %v1741
        %v1747 = vrot.slane %v1746, 4
        %v1749 = vshll.u32 %v1435, 16
        %v1751 = vrot.slane %v1749, 5
        %v1752 = vsel %vm1464, %v1747, %v1751
        %v1754 = vshrl.u32 %v1436, 16
        %v1756 = vrot.slane %v1754, 4
        %v1757 = vshll.u32 %v1436, 16
        %v1759 = vrot.slane %v1757, 5
        %v1760 = vor.u32 %v1756, %v1759
        %v1761 = vrot.slane %v1760, 4
        %v1763 = vshll.u32 %v1437, 16
        %v1765 = vrot.slane %v1763, 5
        %v1766 = vsel %vm1464, %v1761, %v1765
        %v1767 = vshrl.u32 %v1437, 16
        %v1769 = vrot.slane %v1767, 4
        %v1770 = vor.u32 %v1769, %v1765
        %v1771 = vrot.slane %v1770, 4
        %v1773 = vshll.u32 %v1438, 16
        %v1775 = vrot.slane %v1773, 5
        %v1776 = vsel %vm1464, %v1771, %v1775
        %v1778 = vshrl.u32 %v1439, 16
        %v1780 = vrot.slane %v1778, 4
        %v1781 = vshll.u32 %v1439, 16
        %v1783 = vrot.slane %v1781, 5
        %v1784 = vor.u32 %v1780, %v1783
        %v1785 = vrot.slane %v1784, 4
        %v1787 = vshll.u32 %v1440, 16
        %v1789 = vrot.slane %v1787, 5
        %v1790 = vsel %vm1464, %v1785, %v1789
        %v1791 = vshrl.u32 %v1440, 16
        %v1793 = vrot.slane %v1791, 4
        %v1794 = vor.u32 %v1793, %v1789
        %v1795 = vrot.slane %v1794, 4
        %v1797 = vshll.u32 %v1441, 16
        %v1799 = vrot.slane %v1797, 5
        %v1800 = vsel %vm1464, %v1795, %v1799
        %v1802 = vshrl.u32 %v1442, 16
        %v1804 = vrot.slane %v1802, 4
        %v1805 = vshll.u32 %v1442, 16
        %v1807 = vrot.slane %v1805, 5
        %v1808 = vor.u32 %v1804, %v1807
        %v1809 = vrot.slane %v1808, 4
        %v1811 = vshll.u32 %v1443, 16
        %v1813 = vrot.slane %v1811, 5
        %v1814 = vsel %vm1464, %v1809, %v1813
        %v1815 = vshrl.u32 %v1443, 16
        %v1817 = vrot.slane %v1815, 4
        %v1818 = vor.u32 %v1817, %v1813
        %v1819 = vrot.slane %v1818, 4
        %v1821 = vshll.u32 %v1444, 16
        %v1823 = vrot.slane %v1821, 5
        %v1824 = vsel %vm1464, %v1819, %v1823
        %v1826 = vshrl.u32 %v1445, 16
        %v1828 = vrot.slane %v1826, 4
        %v1829 = vshll.u32 %v1445, 16
        %v1831 = vrot.slane %v1829, 5
        %v1832 = vor.u32 %v1828, %v1831
        %v1833 = vrot.slane %v1832, 4
        %v1835 = vshll.u32 %v1446, 16
        %v1837 = vrot.slane %v1835, 5
        %v1838 = vsel %vm1464, %v1833, %v1837
        %v1839 = vshrl.u32 %v1446, 16
        %v1841 = vrot.slane %v1839, 4
        %v1842 = vor.u32 %v1841, %v1837
        %v1843 = vrot.slane %v1842, 4
        %v1845 = vshll.u32 %v1447, 16
        %v1847 = vrot.slane %v1845, 5
        %v1848 = vsel %vm1464, %v1843, %v1847
        %s1849 = scalar_lea.vmem %s3, 32
        %v1850 = vld [vmem:[%s1849] sm:$0xf]
        %v1851 = vld [vmem:[%s1849 + $0x4] sm:$0xf]
        %v1852 = vld [vmem:[%s1849 + $0x8] sm:$0xf]
        %v1853 = vld [vmem:[%s1849 + $0xc] sm:$0xf]
        %v1854 = vld [vmem:[%s1849 + $0x10] sm:$0xf]
        %v1855 = vld [vmem:[%s1849 + $0x14] sm:$0xf]
        %v1856 = vld [vmem:[%s1849 + $0x18] sm:$0xf]
        %v1857 = vld [vmem:[%s1849 + $0x1c] sm:$0xf]
        %v1858 = vunpack.c.l.b16 %v1478
        %v1859 = vunpack.c.l.b16 %v1488
        %v1860 = vunpack.c.l.b16 %v1502
        %v1861 = vunpack.c.l.b16 %v1512
        %v1862 = vunpack.c.l.b16 %v1526
        %v1863 = vunpack.c.l.b16 %v1536
        %v1864 = vunpack.c.l.b16 %v1550
        %v1865 = vunpack.c.l.b16 %v1560
        %v1866 = vunpack.c.l.b16 %v1574
        %v1867 = vunpack.c.l.b16 %v1584
        %v1868 = vunpack.c.l.b16 %v1598
        %v1869 = vunpack.c.l.b16 %v1608
        %v1870 = vunpack.c.l.b16 %v1622
        %v1871 = vunpack.c.l.b16 %v1632
        %v1872 = vunpack.c.l.b16 %v1646
        %v1873 = vunpack.c.l.b16 %v1656
        %v1874 = vunpack.c.l.b16 %v1670
        %v1875 = vunpack.c.l.b16 %v1680
        %v1876 = vunpack.c.l.b16 %v1694
        %v1877 = vunpack.c.l.b16 %v1704
        %v1878 = vunpack.c.l.b16 %v1718
        %v1879 = vunpack.c.l.b16 %v1728
        %v1880 = vunpack.c.l.b16 %v1742
        %v1881 = vunpack.c.l.b16 %v1752
        %v1882 = vunpack.c.l.b16 %v1766
        %v1883 = vunpack.c.l.b16 %v1776
        %v1884 = vunpack.c.l.b16 %v1790
        %v1885 = vunpack.c.l.b16 %v1800
        %v1886 = vunpack.c.l.b16 %v1814
        %v1887 = vunpack.c.l.b16 %v1824
        %v1888 = vunpack.c.l.b16 %v1838
        %v1889 = vunpack.c.l.b16 %v1848
        %v1890 = vpack.c.b16 %v1859, %v1858
        %v1891 = vpack.c.b16 %v1861, %v1860
        %v1892 = vpack.c.b16 %v1863, %v1862
        %v1893 = vpack.c.b16 %v1865, %v1864
        %v1894 = vpack.c.b16 %v1867, %v1866
        %v1895 = vpack.c.b16 %v1869, %v1868
        %v1896 = vpack.c.b16 %v1871, %v1870
        %v1897 = vpack.c.b16 %v1873, %v1872
        %v1898 = vpack.c.b16 %v1875, %v1874
        %v1899 = vpack.c.b16 %v1877, %v1876
        %v1900 = vpack.c.b16 %v1879, %v1878
        %v1901 = vpack.c.b16 %v1881, %v1880
        %v1902 = vpack.c.b16 %v1883, %v1882
        %v1903 = vpack.c.b16 %v1885, %v1884
        %v1904 = vpack.c.b16 %v1887, %v1886
        %v1905 = vpack.c.b16 %v1889, %v1888
        %v1914 = vunpack.c.l.b16 %v1850
        %v1915 = vunpack.c.l.b16 %v1851
        %v1916 = vunpack.c.l.b16 %v1852
        %v1917 = vunpack.c.l.b16 %v1853
        %v1918 = vunpack.c.l.b16 %v1854
        %v1919 = vunpack.c.l.b16 %v1855
        %v1920 = vunpack.c.l.b16 %v1856
        %v1921 = vunpack.c.l.b16 %v1857
        %v1922 = vpack.c.b16 %v1915, %v1914
        %v1923 = vpack.c.b16 %v1917, %v1916
        %v1924 = vpack.c.b16 %v1919, %v1918
        %v1925 = vpack.c.b16 %v1921, %v1920
        %vm1930 = vcmask 523264
        %v1932 = vsel %vm1930, %v1890, 0
        %v1935 = vsel %vm1930, %v1891, 0
        %v1938 = vsel %vm1930, %v1892, 0
        %v1941 = vsel %vm1930, %v1893, 0
        %v1944 = vsel %vm1930, %v1894, 0
        %v1947 = vsel %vm1930, %v1895, 0
        %v1950 = vsel %vm1930, %v1896, 0
        %v1953 = vsel %vm1930, %v1897, 0
        %v1956 = vsel %vm1930, %v1898, 0
        %v1959 = vsel %vm1930, %v1899, 0
        %v1962 = vsel %vm1930, %v1900, 0
        %v1965 = vsel %vm1930, %v1901, 0
        %v1968 = vsel %vm1930, %v1902, 0
        %v1971 = vsel %vm1930, %v1903, 0
        %v1974 = vsel %vm1930, %v1904, 0
        %v1977 = vsel %vm1930, %v1905, 0
        %1979 = vmatprep.subr.bf16.mxu0 0
        %1980 = vmatpush1.bf16.msra.mxu0 %v1922
        %1981 = vmatprep.subr.bf16.mxu0 0
        %1982 = vmatpush1.bf16.msra.mxu0 %v1923
        %1983 = vmatprep.subr.bf16.mxu0 0
        %1984 = vmatpush1.bf16.msra.mxu0 %v1924
        %1985 = vmatprep.subr.bf16.mxu0 0
        %1986 = vmatpush1.bf16.msra.mxu0 %v1925
        %1987 = vmatprep.subr.bf16.mxu0 0
        %1988 = vmatpush1.bf16.msra.mxu0 0
        %1989 = vmatprep.subr.bf16.mxu0 0
        %1990 = vmatpush1.bf16.msra.mxu0 0
        %1991 = vmatprep.subr.bf16.mxu0 0
        %1992 = vmatpush1.bf16.msra.mxu0 0
        %1993 = vmatprep.subr.bf16.mxu0 0
        %1994 = vmatpush1.bf16.msra.mxu0 0
        %1995 = vmatprep.subr.bf16.mxu0 0
        %1996 = vmatpush1.bf16.msra.mxu0 0
        %1997 = vmatprep.subr.bf16.mxu0 0
        %1998 = vmatpush1.bf16.msra.mxu0 0
        %1999 = vmatprep.subr.bf16.mxu0 0
        %2000 = vmatpush1.bf16.msra.mxu0 0
        %2001 = vmatprep.subr.bf16.mxu0 0
        %2002 = vmatpush1.bf16.msra.mxu0 0
        %2003 = vmatprep.subr.bf16.mxu0 0
        %2004 = vmatpush1.bf16.msra.mxu0 0
        %2005 = vmatprep.subr.bf16.mxu0 0
        %2006 = vmatpush1.bf16.msra.mxu0 0
        %2007 = vmatprep.subr.bf16.mxu0 0
        %2008 = vmatpush1.bf16.msra.mxu0 0
        %2009 = vmatprep.subr.bf16.mxu0 0
        %2010 = vmatpush1.bf16.msra.mxu0 0
        %2011 = vmatprep.mubr.bf16.mxu0 0
        %2012 = vmatmul.mubr.bf16.gmra.mrb[0].mxu0 %v1932
        %v2013 = vpop.f32.mrb[0].mxu0
        %v2014 = vadd.f32 0.0, %v2013
        %v2015 = vpop.f32.mrb[0].mxu0
        %v2016 = vpop.f32.mrb[0].mxu0
        %v2017 = vadd.f32 0.0, %v2016
        %v2018 = vpop.f32.mrb[0].mxu0
        %2019 = vmatprep.mubr.bf16.mxu0 0
        %2020 = vmatmul.mubr.bf16.gmra.mrb[0].mxu0 %v1935
        %v2021 = vpop.f32.mrb[0].mxu0
        %v2022 = vadd.f32 0.0, %v2021
        %v2023 = vpop.f32.mrb[0].mxu0
        %v2024 = vpop.f32.mrb[0].mxu0
        %v2025 = vadd.f32 0.0, %v2024
        %v2026 = vpop.f32.mrb[0].mxu0
        %2027 = vmatprep.mubr.bf16.mxu0 0
        %2028 = vmatmul.mubr.bf16.gmra.mrb[0].mxu0 %v1938
        %v2029 = vpop.f32.mrb[0].mxu0
        %v2030 = vadd.f32 0.0, %v2029
        %v2031 = vpop.f32.mrb[0].mxu0
        %v2032 = vpop.f32.mrb[0].mxu0
        %v2033 = vadd.f32 0.0, %v2032
        %v2034 = vpop.f32.mrb[0].mxu0
        %2035 = vmatprep.mubr.bf16.mxu0 0
        %2036 = vmatmul.mubr.bf16.gmra.mrb[0].mxu0 %v1941
        %v2037 = vpop.f32.mrb[0].mxu0
        %v2038 = vadd.f32 0.0, %v2037
        %v2039 = vpop.f32.mrb[0].mxu0
        %v2040 = vpop.f32.mrb[0].mxu0
        %v2041 = vadd.f32 0.0, %v2040
        %v2042 = vpop.f32.mrb[0].mxu0
        %2043 = vmatprep.mubr.bf16.mxu0 0
        %2044 = vmatmul.mubr.bf16.gmra.mrb[0].mxu0 %v1944
        %v2045 = vpop.f32.mrb[0].mxu0
        %v2046 = vadd.f32 0.0, %v2045
        %v2047 = vpop.f32.mrb[0].mxu0
        %v2048 = vpop.f32.mrb[0].mxu0
        %v2049 = vadd.f32 0.0, %v2048
        %v2050 = vpop.f32.mrb[0].mxu0
        %2051 = vmatprep.mubr.bf16.mxu0 0
        %2052 = vmatmul.mubr.bf16.gmra.mrb[0].mxu0 %v1947
        %v2053 = vpop.f32.mrb[0].mxu0
        %v2054 = vadd.f32 0.0, %v2053
        %v2055 = vpop.f32.mrb[0].mxu0
        %v2056 = vpop.f32.mrb[0].mxu0
        %v2057 = vadd.f32 0.0, %v2056
        %v2058 = vpop.f32.mrb[0].mxu0
        %2059 = vmatprep.mubr.bf16.mxu0 0
        %2060 = vmatmul.mubr.bf16.gmra.mrb[0].mxu0 %v1950
        %v2061 = vpop.f32.mrb[0].mxu0
        %v2062 = vadd.f32 0.0, %v2061
        %v2063 = vpop.f32.mrb[0].mxu0
        %v2064 = vpop.f32.mrb[0].mxu0
        %v2065 = vadd.f32 0.0, %v2064
        %v2066 = vpop.f32.mrb[0].mxu0
        %2067 = vmatprep.mubr.bf16.mxu0 0
        %2068 = vmatmul.mubr.bf16.gmra.mrb[0].mxu0 %v1953
        %v2069 = vpop.f32.mrb[0].mxu0
        %v2070 = vadd.f32 0.0, %v2069
        %v2071 = vpop.f32.mrb[0].mxu0
        %v2072 = vpop.f32.mrb[0].mxu0
        %v2073 = vadd.f32 0.0, %v2072
        %v2074 = vpop.f32.mrb[0].mxu0
        %2075 = vmatprep.mubr.bf16.mxu0 0
        %2076 = vmatmul.mubr.bf16.gmra.mrb[0].mxu0 %v1956
        %v2077 = vpop.f32.mrb[0].mxu0
        %v2078 = vadd.f32 0.0, %v2077
        %v2079 = vpop.f32.mrb[0].mxu0
        %v2080 = vpop.f32.mrb[0].mxu0
        %v2081 = vadd.f32 0.0, %v2080
        %v2082 = vpop.f32.mrb[0].mxu0
        %2083 = vmatprep.mubr.bf16.mxu0 0
        %2084 = vmatmul.mubr.bf16.gmra.mrb[0].mxu0 %v1959
        %v2085 = vpop.f32.mrb[0].mxu0
        %v2086 = vadd.f32 0.0, %v2085
        %v2087 = vpop.f32.mrb[0].mxu0
        %v2088 = vpop.f32.mrb[0].mxu0
        %v2089 = vadd.f32 0.0, %v2088
        %v2090 = vpop.f32.mrb[0].mxu0
        %2091 = vmatprep.mubr.bf16.mxu0 0
        %2092 = vmatmul.mubr.bf16.gmra.mrb[0].mxu0 %v1962
        %v2093 = vpop.f32.mrb[0].mxu0
        %v2094 = vadd.f32 0.0, %v2093
        %v2095 = vpop.f32.mrb[0].mxu0
        %v2096 = vpop.f32.mrb[0].mxu0
        %v2097 = vadd.f32 0.0, %v2096
        %v2098 = vpop.f32.mrb[0].mxu0
        %2099 = vmatprep.mubr.bf16.mxu0 0
        %2100 = vmatmul.mubr.bf16.gmra.mrb[0].mxu0 %v1965
        %v2101 = vpop.f32.mrb[0].mxu0
        %v2102 = vadd.f32 0.0, %v2101
        %v2103 = vpop.f32.mrb[0].mxu0
        %v2104 = vpop.f32.mrb[0].mxu0
        %v2105 = vadd.f32 0.0, %v2104
        %v2106 = vpop.f32.mrb[0].mxu0
        %2107 = vmatprep.mubr.bf16.mxu0 0
        %2108 = vmatmul.mubr.bf16.gmra.mrb[0].mxu0 %v1968
        %v2109 = vpop.f32.mrb[0].mxu0
        %v2110 = vadd.f32 0.0, %v2109
        %v2111 = vpop.f32.mrb[0].mxu0
        %v2112 = vpop.f32.mrb[0].mxu0
        %v2113 = vadd.f32 0.0, %v2112
        %v2114 = vpop.f32.mrb[0].mxu0
        %2115 = vmatprep.mubr.bf16.mxu0 0
        %2116 = vmatmul.mubr.bf16.gmra.mrb[0].mxu0 %v1971
        %v2117 = vpop.f32.mrb[0].mxu0
        %v2118 = vadd.f32 0.0, %v2117
        %v2119 = vpop.f32.mrb[0].mxu0
        %v2120 = vpop.f32.mrb[0].mxu0
        %v2121 = vadd.f32 0.0, %v2120
        %v2122 = vpop.f32.mrb[0].mxu0
        %2123 = vmatprep.mubr.bf16.mxu0 0
        %2124 = vmatmul.mubr.bf16.gmra.mrb[0].mxu0 %v1974
        %v2125 = vpop.f32.mrb[0].mxu0
        %v2126 = vadd.f32 0.0, %v2125
        %v2127 = vpop.f32.mrb[0].mxu0
        %v2128 = vpop.f32.mrb[0].mxu0
        %v2129 = vadd.f32 0.0, %v2128
        %v2130 = vpop.f32.mrb[0].mxu0
        %2131 = vmatprep.mubr.bf16.mxu0 0
        %2132 = vmatmul.mubr.bf16.gmra.mrb[0].mxu0 %v1977
        %v2133 = vpop.f32.mrb[0].mxu0
        %v2134 = vadd.f32 0.0, %v2133
        %v2135 = vpop.f32.mrb[0].mxu0
        %v2136 = vpop.f32.mrb[0].mxu0
        %v2137 = vadd.f32 0.0, %v2136
        %v2138 = vpop.f32.mrb[0].mxu0
        %2139 = vdwg.mxu0
        %v2172 = vunpack.c.l.b16 %v1400
        %v2173 = vunpack.c.l.b16 %v1401
        %v2174 = vunpack.c.l.b16 %v1403
        %v2175 = vunpack.c.l.b16 %v1404
        %v2176 = vunpack.c.l.b16 %v1406
        %v2177 = vunpack.c.l.b16 %v1407
        %v2178 = vunpack.c.l.b16 %v1409
        %v2179 = vunpack.c.l.b16 %v1410
        %v2180 = vunpack.c.l.b16 %v1412
        %v2181 = vunpack.c.l.b16 %v1413
        %v2182 = vunpack.c.l.b16 %v1415
        %v2183 = vunpack.c.l.b16 %v1416
        %v2184 = vunpack.c.l.b16 %v1418
        %v2185 = vunpack.c.l.b16 %v1419
        %v2186 = vunpack.c.l.b16 %v1421
        %v2187 = vunpack.c.l.b16 %v1422
        %v2188 = vunpack.c.l.b16 %v1424
        %v2189 = vunpack.c.l.b16 %v1425
        %v2190 = vunpack.c.l.b16 %v1427
        %v2191 = vunpack.c.l.b16 %v1428
        %v2192 = vunpack.c.l.b16 %v1430
        %v2193 = vunpack.c.l.b16 %v1431
        %v2194 = vunpack.c.l.b16 %v1433
        %v2195 = vunpack.c.l.b16 %v1434
        %v2196 = vunpack.c.l.b16 %v1436
        %v2197 = vunpack.c.l.b16 %v1437
        %v2198 = vunpack.c.l.b16 %v1439
        %v2199 = vunpack.c.l.b16 %v1440
        %v2200 = vunpack.c.l.b16 %v1442
        %v2201 = vunpack.c.l.b16 %v1443
        %v2202 = vunpack.c.l.b16 %v1445
        %v2203 = vunpack.c.l.b16 %v1446
        %v2204 = vpack.c.b16 %v2173, %v2172
        %v2205 = vpack.c.b16 %v2175, %v2174
        %v2206 = vpack.c.b16 %v2177, %v2176
        %v2207 = vpack.c.b16 %v2179, %v2178
        %v2208 = vpack.c.b16 %v2181, %v2180
        %v2209 = vpack.c.b16 %v2183, %v2182
        %v2210 = vpack.c.b16 %v2185, %v2184
        %v2211 = vpack.c.b16 %v2187, %v2186
        %v2212 = vpack.c.b16 %v2189, %v2188
        %v2213 = vpack.c.b16 %v2191, %v2190
        %v2214 = vpack.c.b16 %v2193, %v2192
        %v2215 = vpack.c.b16 %v2195, %v2194
        %v2216 = vpack.c.b16 %v2197, %v2196
        %v2217 = vpack.c.b16 %v2199, %v2198
        %v2218 = vpack.c.b16 %v2201, %v2200
        %v2219 = vpack.c.b16 %v2203, %v2202
        %v2228 = vunpack.c.l.b16 %v1454
        %v2229 = vunpack.c.l.b16 %v1455
        %v2230 = vunpack.c.l.b16 %v1456
        %v2231 = vunpack.c.l.b16 %v1457
        %v2232 = vunpack.c.l.b16 %v1458
        %v2233 = vunpack.c.l.b16 %v1459
        %v2234 = vunpack.c.l.b16 %v1460
        %v2235 = vunpack.c.l.b16 %v1461
        %v2236 = vpack.c.b16 %v2229, %v2228
        %v2237 = vpack.c.b16 %v2231, %v2230
        %v2238 = vpack.c.b16 %v2233, %v2232
        %v2239 = vpack.c.b16 %v2235, %v2234
        %v2245 = vsel %vm1930, %v2204, 0
        %v2248 = vsel %vm1930, %v2205, 0
        %v2251 = vsel %vm1930, %v2206, 0
        %v2254 = vsel %vm1930, %v2207, 0
        %v2257 = vsel %vm1930, %v2208, 0
        %v2260 = vsel %vm1930, %v2209, 0
        %v2263 = vsel %vm1930, %v2210, 0
        %v2266 = vsel %vm1930, %v2211, 0
        %v2269 = vsel %vm1930, %v2212, 0
        %v2272 = vsel %vm1930, %v2213, 0
        %v2275 = vsel %vm1930, %v2214, 0
        %v2278 = vsel %vm1930, %v2215, 0
        %v2281 = vsel %vm1930, %v2216, 0
        %v2284 = vsel %vm1930, %v2217, 0
        %v2287 = vsel %vm1930, %v2218, 0
        %v2290 = vsel %vm1930, %v2219, 0
        %2292 = vmatprep.subr.bf16.mxu0 0
        %2293 = vmatpush1.bf16.msra.mxu0 %v2236
        %2294 = vmatprep.subr.bf16.mxu0 0
        %2295 = vmatpush1.bf16.msra.mxu0 %v2237
        %2296 = vmatprep.subr.bf16.mxu0 0
        %2297 = vmatpush1.bf16.msra.mxu0 %v2238
        %2298 = vmatprep.subr.bf16.mxu0 0
        %2299 = vmatpush1.bf16.msra.mxu0 %v2239
        %2300 = vmatprep.subr.bf16.mxu0 0
        %2301 = vmatpush1.bf16.msra.mxu0 0
        %2302 = vmatprep.subr.bf16.mxu0 0
        %2303 = vmatpush1.bf16.msra.mxu0 0
        %2304 = vmatprep.subr.bf16.mxu0 0
        %2305 = vmatpush1.bf16.msra.mxu0 0
        %2306 = vmatprep.subr.bf16.mxu0 0
        %2307 = vmatpush1.bf16.msra.mxu0 0
        %2308 = vmatprep.subr.bf16.mxu0 0
        %2309 = vmatpush1.bf16.msra.mxu0 0
        %2310 = vmatprep.subr.bf16.mxu0 0
        %2311 = vmatpush1.bf16.msra.mxu0 0
        %2312 = vmatprep.subr.bf16.mxu0 0
        %2313 = vmatpush1.bf16.msra.mxu0 0
        %2314 = vmatprep.subr.bf16.mxu0 0
        %2315 = vmatpush1.bf16.msra.mxu0 0
        %2316 = vmatprep.subr.bf16.mxu0 0
        %2317 = vmatpush1.bf16.msra.mxu0 0
        %2318 = vmatprep.subr.bf16.mxu0 0
        %2319 = vmatpush1.bf16.msra.mxu0 0
        %2320 = vmatprep.subr.bf16.mxu0 0
        %2321 = vmatpush1.bf16.msra.mxu0 0
        %2322 = vmatprep.subr.bf16.mxu0 0
        %2323 = vmatpush1.bf16.msra.mxu0 0
        %2324 = vmatprep.mubr.bf16.mxu0 0
        %2325 = vmatmul.mubr.bf16.gmra.mrb[0].mxu0 %v2245
        %v2326 = vpop.f32.mrb[0].mxu0
        %v2327 = vadd.f32 %v2014, %v2326
        %v2328 = vpop.f32.mrb[0].mxu0
        %v2329 = vpop.f32.mrb[0].mxu0
        %v2330 = vadd.f32 %v2017, %v2329
        %v2331 = vpop.f32.mrb[0].mxu0
        %2332 = vmatprep.mubr.bf16.mxu0 0
        %2333 = vmatmul.mubr.bf16.gmra.mrb[0].mxu0 %v2248
        %v2334 = vpop.f32.mrb[0].mxu0
        %v2335 = vadd.f32 %v2022, %v2334
        %v2336 = vpop.f32.mrb[0].mxu0
        %v2337 = vpop.f32.mrb[0].mxu0
        %v2338 = vadd.f32 %v2025, %v2337
        %v2339 = vpop.f32.mrb[0].mxu0
        %2340 = vmatprep.mubr.bf16.mxu0 0
        %2341 = vmatmul.mubr.bf16.gmra.mrb[0].mxu0 %v2251
        %v2342 = vpop.f32.mrb[0].mxu0
        %v2343 = vadd.f32 %v2030, %v2342
        %v2344 = vpop.f32.mrb[0].mxu0
        %v2345 = vpop.f32.mrb[0].mxu0
        %v2346 = vadd.f32 %v2033, %v2345
        %v2347 = vpop.f32.mrb[0].mxu0
        %2348 = vmatprep.mubr.bf16.mxu0 0
        %2349 = vmatmul.mubr.bf16.gmra.mrb[0].mxu0 %v2254
        %v2350 = vpop.f32.mrb[0].mxu0
        %v2351 = vadd.f32 %v2038, %v2350
        %v2352 = vpop.f32.mrb[0].mxu0
        %v2353 = vpop.f32.mrb[0].mxu0
        %v2354 = vadd.f32 %v2041, %v2353
        %v2355 = vpop.f32.mrb[0].mxu0
        %2356 = vmatprep.mubr.bf16.mxu0 0
        %2357 = vmatmul.mubr.bf16.gmra.mrb[0].mxu0 %v2257
        %v2358 = vpop.f32.mrb[0].mxu0
        %v2359 = vadd.f32 %v2046, %v2358
        %v2360 = vpop.f32.mrb[0].mxu0
        %v2361 = vpop.f32.mrb[0].mxu0
        %v2362 = vadd.f32 %v2049, %v2361
        %v2363 = vpop.f32.mrb[0].mxu0
        %2364 = vmatprep.mubr.bf16.mxu0 0
        %2365 = vmatmul.mubr.bf16.gmra.mrb[0].mxu0 %v2260
        %v2366 = vpop.f32.mrb[0].mxu0
        %v2367 = vadd.f32 %v2054, %v2366
        %v2368 = vpop.f32.mrb[0].mxu0
        %v2369 = vpop.f32.mrb[0].mxu0
        %v2370 = vadd.f32 %v2057, %v2369
        %v2371 = vpop.f32.mrb[0].mxu0
        %2372 = vmatprep.mubr.bf16.mxu0 0
        %2373 = vmatmul.mubr.bf16.gmra.mrb[0].mxu0 %v2263
        %v2374 = vpop.f32.mrb[0].mxu0
        %v2375 = vadd.f32 %v2062, %v2374
        %v2376 = vpop.f32.mrb[0].mxu0
        %v2377 = vpop.f32.mrb[0].mxu0
        %v2378 = vadd.f32 %v2065, %v2377
        %v2379 = vpop.f32.mrb[0].mxu0
        %2380 = vmatprep.mubr.bf16.mxu0 0
        %2381 = vmatmul.mubr.bf16.gmra.mrb[0].mxu0 %v2266
        %v2382 = vpop.f32.mrb[0].mxu0
        %v2383 = vadd.f32 %v2070, %v2382
        %v2384 = vpop.f32.mrb[0].mxu0
        %v2385 = vpop.f32.mrb[0].mxu0
        %v2386 = vadd.f32 %v2073, %v2385
        %v2387 = vpop.f32.mrb[0].mxu0
        %2388 = vmatprep.mubr.bf16.mxu0 0
        %2389 = vmatmul.mubr.bf16.gmra.mrb[0].mxu0 %v2269
        %v2390 = vpop.f32.mrb[0].mxu0
        %v2391 = vadd.f32 %v2078, %v2390
        %v2392 = vpop.f32.mrb[0].mxu0
        %v2393 = vpop.f32.mrb[0].mxu0
        %v2394 = vadd.f32 %v2081, %v2393
        %v2395 = vpop.f32.mrb[0].mxu0
        %2396 = vmatprep.mubr.bf16.mxu0 0
        %2397 = vmatmul.mubr.bf16.gmra.mrb[0].mxu0 %v2272
        %v2398 = vpop.f32.mrb[0].mxu0
        %v2399 = vadd.f32 %v2086, %v2398
        %v2400 = vpop.f32.mrb[0].mxu0
        %v2401 = vpop.f32.mrb[0].mxu0
        %v2402 = vadd.f32 %v2089, %v2401
        %v2403 = vpop.f32.mrb[0].mxu0
        %2404 = vmatprep.mubr.bf16.mxu0 0
        %2405 = vmatmul.mubr.bf16.gmra.mrb[0].mxu0 %v2275
        %v2406 = vpop.f32.mrb[0].mxu0
        %v2407 = vadd.f32 %v2094, %v2406
        %v2408 = vpop.f32.mrb[0].mxu0
        %v2409 = vpop.f32.mrb[0].mxu0
        %v2410 = vadd.f32 %v2097, %v2409
        %v2411 = vpop.f32.mrb[0].mxu0
        %2412 = vmatprep.mubr.bf16.mxu0 0
        %2413 = vmatmul.mubr.bf16.gmra.mrb[0].mxu0 %v2278
        %v2414 = vpop.f32.mrb[0].mxu0
        %v2415 = vadd.f32 %v2102, %v2414
        %v2416 = vpop.f32.mrb[0].mxu0
        %v2417 = vpop.f32.mrb[0].mxu0
        %v2418 = vadd.f32 %v2105, %v2417
        %v2419 = vpop.f32.mrb[0].mxu0
        %2420 = vmatprep.mubr.bf16.mxu0 0
        %2421 = vmatmul.mubr.bf16.gmra.mrb[0].mxu0 %v2281
        %v2422 = vpop.f32.mrb[0].mxu0
        %v2423 = vadd.f32 %v2110, %v2422
        %v2424 = vpop.f32.mrb[0].mxu0
        %v2425 = vpop.f32.mrb[0].mxu0
        %v2426 = vadd.f32 %v2113, %v2425
        %v2427 = vpop.f32.mrb[0].mxu0
        %2428 = vmatprep.mubr.bf16.mxu0 0
        %2429 = vmatmul.mubr.bf16.gmra.mrb[0].mxu0 %v2284
        %v2430 = vpop.f32.mrb[0].mxu0
        %v2431 = vadd.f32 %v2118, %v2430
        %v2432 = vpop.f32.mrb[0].mxu0
        %v2433 = vpop.f32.mrb[0].mxu0
        %v2434 = vadd.f32 %v2121, %v2433
        %v2435 = vpop.f32.mrb[0].mxu0
        %2436 = vmatprep.mubr.bf16.mxu0 0
        %2437 = vmatmul.mubr.bf16.gmra.mrb[0].mxu0 %v2287
        %v2438 = vpop.f32.mrb[0].mxu0
        %v2439 = vadd.f32 %v2126, %v2438
        %v2440 = vpop.f32.mrb[0].mxu0
        %v2441 = vpop.f32.mrb[0].mxu0
        %v2442 = vadd.f32 %v2129, %v2441
        %v2443 = vpop.f32.mrb[0].mxu0
        %2444 = vmatprep.mubr.bf16.mxu0 0
        %2445 = vmatmul.mubr.bf16.gmra.mrb[0].mxu0 %v2290
        %v2446 = vpop.f32.mrb[0].mxu0
        %v2447 = vadd.f32 %v2134, %v2446
        %v2448 = vpop.f32.mrb[0].mxu0
        %v2449 = vpop.f32.mrb[0].mxu0
        %v2450 = vadd.f32 %v2137, %v2449
        %v2451 = vpop.f32.mrb[0].mxu0
        %2452 = vdwg.mxu0
        %vm2469 = vcmask 1042432
        %vm2470 = vcmask 1046532
        %vm2471 = vmor %vm2469, %vm2470
        %v2472 = vrot.slane %v1400, 5
        %v2473 = vrot.slane %v2472, 4
        %v2474 = vrot.slane %v1401, 5
        %v2475 = vsel %vm2471, %v2473, %v2474
        %v2476 = vrot.slane %v2474, 4
        %v2477 = vrot.slane %v1402, 5
        %v2478 = vsel %vm2471, %v2476, %v2477
        %v2479 = vrot.slane %v1403, 5
        %v2480 = vrot.slane %v2479, 4
        %v2481 = vrot.slane %v1404, 5
        %v2482 = vsel %vm2471, %v2480, %v2481
        %v2483 = vrot.slane %v2481, 4
        %v2484 = vrot.slane %v1405, 5
        %v2485 = vsel %vm2471, %v2483, %v2484
        %v2486 = vrot.slane %v1406, 5
        %v2487 = vrot.slane %v2486, 4
        %v2488 = vrot.slane %v1407, 5
        %v2489 = vsel %vm2471, %v2487, %v2488
        %v2490 = vrot.slane %v2488, 4
        %v2491 = vrot.slane %v1408, 5
        %v2492 = vsel %vm2471, %v2490, %v2491
        %v2493 = vrot.slane %v1409, 5
        %v2494 = vrot.slane %v2493, 4
        %v2495 = vrot.slane %v1410, 5
        %v2496 = vsel %vm2471, %v2494, %v2495
        %v2497 = vrot.slane %v2495, 4
        %v2498 = vrot.slane %v1411, 5
        %v2499 = vsel %vm2471, %v2497, %v2498
        %v2500 = vrot.slane %v1412, 5
        %v2501 = vrot.slane %v2500, 4
        %v2502 = vrot.slane %v1413, 5
        %v2503 = vsel %vm2471, %v2501, %v2502
        %v2504 = vrot.slane %v2502, 4
        %v2505 = vrot.slane %v1414, 5
        %v2506 = vsel %vm2471, %v2504, %v2505
        %v2507 = vrot.slane %v1415, 5
        %v2508 = vrot.slane %v2507, 4
        %v2509 = vrot.slane %v1416, 5
        %v2510 = vsel %vm2471, %v2508, %v2509
        %v2511 = vrot.slane %v2509, 4
        %v2512 = vrot.slane %v1417, 5
        %v2513 = vsel %vm2471, %v2511, %v2512
        %v2514 = vrot.slane %v1418, 5
        %v2515 = vrot.slane %v2514, 4
        %v2516 = vrot.slane %v1419, 5
        %v2517 = vsel %vm2471, %v2515, %v2516
        %v2518 = vrot.slane %v2516, 4
        %v2519 = vrot.slane %v1420, 5
        %v2520 = vsel %vm2471, %v2518, %v2519
        %v2521 = vrot.slane %v1421, 5
        %v2522 = vrot.slane %v2521, 4
        %v2523 = vrot.slane %v1422, 5
        %v2524 = vsel %vm2471, %v2522, %v2523
        %v2525 = vrot.slane %v2523, 4
        %v2526 = vrot.slane %v1423, 5
        %v2527 = vsel %vm2471, %v2525, %v2526
        %v2528 = vrot.slane %v1424, 5
        %v2529 = vrot.slane %v2528, 4
        %v2530 = vrot.slane %v1425, 5
        %v2531 = vsel %vm2471, %v2529, %v2530
        %v2532 = vrot.slane %v2530, 4
        %v2533 = vrot.slane %v1426, 5
        %v2534 = vsel %vm2471, %v2532, %v2533
        %v2535 = vrot.slane %v1427, 5
        %v2536 = vrot.slane %v2535, 4
        %v2537 = vrot.slane %v1428, 5
        %v2538 = vsel %vm2471, %v2536, %v2537
        %v2539 = vrot.slane %v2537, 4
        %v2540 = vrot.slane %v1429, 5
        %v2541 = vsel %vm2471, %v2539, %v2540
        %v2542 = vrot.slane %v1430, 5
        %v2543 = vrot.slane %v2542, 4
        %v2544 = vrot.slane %v1431, 5
        %v2545 = vsel %vm2471, %v2543, %v2544
        %v2546 = vrot.slane %v2544, 4
        %v2547 = vrot.slane %v1432, 5
        %v2548 = vsel %vm2471, %v2546, %v2547
        %v2549 = vrot.slane %v1433, 5
        %v2550 = vrot.slane %v2549, 4
        %v2551 = vrot.slane %v1434, 5
        %v2552 = vsel %vm2471, %v2550, %v2551
        %v2553 = vrot.slane %v2551, 4
        %v2554 = vrot.slane %v1435, 5
        %v2555 = vsel %vm2471, %v2553, %v2554
        %v2556 = vrot.slane %v1436, 5
        %v2557 = vrot.slane %v2556, 4
        %v2558 = vrot.slane %v1437, 5
        %v2559 = vsel %vm2471, %v2557, %v2558
        %v2560 = vrot.slane %v2558, 4
        %v2561 = vrot.slane %v1438, 5
        %v2562 = vsel %vm2471, %v2560, %v2561
        %v2563 = vrot.slane %v1439, 5
        %v2564 = vrot.slane %v2563, 4
        %v2565 = vrot.slane %v1440, 5
        %v2566 = vsel %vm2471, %v2564, %v2565
        %v2567 = vrot.slane %v2565, 4
        %v2568 = vrot.slane %v1441, 5
        %v2569 = vsel %vm2471, %v2567, %v2568
        %v2570 = vrot.slane %v1442, 5
        %v2571 = vrot.slane %v2570, 4
        %v2572 = vrot.slane %v1443, 5
        %v2573 = vsel %vm2471, %v2571, %v2572
        %v2574 = vrot.slane %v2572, 4
        %v2575 = vrot.slane %v1444, 5
        %v2576 = vsel %vm2471, %v2574, %v2575
        %v2577 = vrot.slane %v1445, 5
        %v2578 = vrot.slane %v2577, 4
        %v2579 = vrot.slane %v1446, 5
        %v2580 = vsel %vm2471, %v2578, %v2579
        %v2581 = vrot.slane %v2579, 4
        %v2582 = vrot.slane %v1447, 5
        %v2583 = vsel %vm2471, %v2581, %v2582
        %s2584 = scalar_lea.vmem %s3, 64
        %v2585 = vld [vmem:[%s2584] sm:$0xf]
        %v2586 = vld [vmem:[%s2584 + $0x4] sm:$0xf]
        %v2587 = vld [vmem:[%s2584 + $0x8] sm:$0xf]
        %v2588 = vld [vmem:[%s2584 + $0xc] sm:$0xf]
        %v2589 = vld [vmem:[%s2584 + $0x10] sm:$0xf]
        %v2590 = vld [vmem:[%s2584 + $0x14] sm:$0xf]
        %v2591 = vld [vmem:[%s2584 + $0x18] sm:$0xf]
        %v2592 = vld [vmem:[%s2584 + $0x1c] sm:$0xf]
        %v2593 = vunpack.c.l.b16 %v2475
        %v2594 = vunpack.c.l.b16 %v2478
        %v2595 = vunpack.c.l.b16 %v2482
        %v2596 = vunpack.c.l.b16 %v2485
        %v2597 = vunpack.c.l.b16 %v2489
        %v2598 = vunpack.c.l.b16 %v2492
        %v2599 = vunpack.c.l.b16 %v2496
        %v2600 = vunpack.c.l.b16 %v2499
        %v2601 = vunpack.c.l.b16 %v2503
        %v2602 = vunpack.c.l.b16 %v2506
        %v2603 = vunpack.c.l.b16 %v2510
        %v2604 = vunpack.c.l.b16 %v2513
        %v2605 = vunpack.c.l.b16 %v2517
        %v2606 = vunpack.c.l.b16 %v2520
        %v2607 = vunpack.c.l.b16 %v2524
        %v2608 = vunpack.c.l.b16 %v2527
        %v2609 = vunpack.c.l.b16 %v2531
        %v2610 = vunpack.c.l.b16 %v2534
        %v2611 = vunpack.c.l.b16 %v2538
        %v2612 = vunpack.c.l.b16 %v2541
        %v2613 = vunpack.c.l.b16 %v2545
        %v2614 = vunpack.c.l.b16 %v2548
        %v2615 = vunpack.c.l.b16 %v2552
        %v2616 = vunpack.c.l.b16 %v2555
        %v2617 = vunpack.c.l.b16 %v2559
        %v2618 = vunpack.c.l.b16 %v2562
        %v2619 = vunpack.c.l.b16 %v2566
        %v2620 = vunpack.c.l.b16 %v2569
        %v2621 = vunpack.c.l.b16 %v2573
        %v2622 = vunpack.c.l.b16 %v2576
        %v2623 = vunpack.c.l.b16 %v2580
        %v2624 = vunpack.c.l.b16 %v2583
        %v2625 = vpack.c.b16 %v2594, %v2593
        %v2626 = vpack.c.b16 %v2596, %v2595
        %v2627 = vpack.c.b16 %v2598, %v2597
        %v2628 = vpack.c.b16 %v2600, %v2599
        %v2629 = vpack.c.b16 %v2602, %v2601
        %v2630 = vpack.c.b16 %v2604, %v2603
        %v2631 = vpack.c.b16 %v2606, %v2605
        %v2632 = vpack.c.b16 %v2608, %v2607
        %v2633 = vpack.c.b16 %v2610, %v2609
        %v2634 = vpack.c.b16 %v2612, %v2611
        %v2635 = vpack.c.b16 %v2614, %v2613
        %v2636 = vpack.c.b16 %v2616, %v2615
        %v2637 = vpack.c.b16 %v2618, %v2617
        %v2638 = vpack.c.b16 %v2620, %v2619
        %v2639 = vpack.c.b16 %v2622, %v2621
        %v2640 = vpack.c.b16 %v2624, %v2623
        %v2649 = vunpack.c.l.b16 %v2585
        %v2650 = vunpack.c.l.b16 %v2586
        %v2651 = vunpack.c.l.b16 %v2587
        %v2652 = vunpack.c.l.b16 %v2588
        %v2653 = vunpack.c.l.b16 %v2589
        %v2654 = vunpack.c.l.b16 %v2590
        %v2655 = vunpack.c.l.b16 %v2591
        %v2656 = vunpack.c.l.b16 %v2592
        %v2657 = vpack.c.b16 %v2650, %v2649
        %v2658 = vpack.c.b16 %v2652, %v2651
        %v2659 = vpack.c.b16 %v2654, %v2653
        %v2660 = vpack.c.b16 %v2656, %v2655
        %v2666 = vsel %vm1930, %v2625, 0
        %v2669 = vsel %vm1930, %v2626, 0
        %v2672 = vsel %vm1930, %v2627, 0
        %v2675 = vsel %vm1930, %v2628, 0
        %v2678 = vsel %vm1930, %v2629, 0
        %v2681 = vsel %vm1930, %v2630, 0
        %v2684 = vsel %vm1930, %v2631, 0
        %v2687 = vsel %vm1930, %v2632, 0
        %v2690 = vsel %vm1930, %v2633, 0
        %v2693 = vsel %vm1930, %v2634, 0
        %v2696 = vsel %vm1930, %v2635, 0
        %v2699 = vsel %vm1930, %v2636, 0
        %v2702 = vsel %vm1930, %v2637, 0
        %v2705 = vsel %vm1930, %v2638, 0
        %v2708 = vsel %vm1930, %v2639, 0
        %v2711 = vsel %vm1930, %v2640, 0
        %2713 = vmatprep.subr.bf16.mxu0 0
        %2714 = vmatpush1.bf16.msra.mxu0 %v2657
        %2715 = vmatprep.subr.bf16.mxu0 0
        %2716 = vmatpush1.bf16.msra.mxu0 %v2658
        %2717 = vmatprep.subr.bf16.mxu0 0
        %2718 = vmatpush1.bf16.msra.mxu0 %v2659
        %2719 = vmatprep.subr.bf16.mxu0 0
        %2720 = vmatpush1.bf16.msra.mxu0 %v2660
        %2721 = vmatprep.subr.bf16.mxu0 0
        %2722 = vmatpush1.bf16.msra.mxu0 0
        %2723 = vmatprep.subr.bf16.mxu0 0
        %2724 = vmatpush1.bf16.msra.mxu0 0
        %2725 = vmatprep.subr.bf16.mxu0 0
        %2726 = vmatpush1.bf16.msra.mxu0 0
        %2727 = vmatprep.subr.bf16.mxu0 0
        %2728 = vmatpush1.bf16.msra.mxu0 0
        %2729 = vmatprep.subr.bf16.mxu0 0
        %2730 = vmatpush1.bf16.msra.mxu0 0
        %2731 = vmatprep.subr.bf16.mxu0 0
        %2732 = vmatpush1.bf16.msra.mxu0 0
        %2733 = vmatprep.subr.bf16.mxu0 0
        %2734 = vmatpush1.bf16.msra.mxu0 0
        %2735 = vmatprep.subr.bf16.mxu0 0
        %2736 = vmatpush1.bf16.msra.mxu0 0
        %2737 = vmatprep.subr.bf16.mxu0 0
        %2738 = vmatpush1.bf16.msra.mxu0 0
        %2739 = vmatprep.subr.bf16.mxu0 0
        %2740 = vmatpush1.bf16.msra.mxu0 0
        %2741 = vmatprep.subr.bf16.mxu0 0
        %2742 = vmatpush1.bf16.msra.mxu0 0
        %2743 = vmatprep.subr.bf16.mxu0 0
        %2744 = vmatpush1.bf16.msra.mxu0 0
        %2745 = vmatprep.mubr.bf16.mxu0 0
        %2746 = vmatmul.mubr.bf16.gmra.mrb[0].mxu0 %v2666
        %v2747 = vpop.f32.mrb[0].mxu0
        %v2748 = vadd.f32 0.0, %v2747
        %v2749 = vpop.f32.mrb[0].mxu0
        %v2750 = vpop.f32.mrb[0].mxu0
        %v2751 = vadd.f32 0.0, %v2750
        %v2752 = vpop.f32.mrb[0].mxu0
        %2753 = vmatprep.mubr.bf16.mxu0 0
        %2754 = vmatmul.mubr.bf16.gmra.mrb[0].mxu0 %v2669
        %v2755 = vpop.f32.mrb[0].mxu0
        %v2756 = vadd.f32 0.0, %v2755
        %v2757 = vpop.f32.mrb[0].mxu0
        %v2758 = vpop.f32.mrb[0].mxu0
        %v2759 = vadd.f32 0.0, %v2758
        %v2760 = vpop.f32.mrb[0].mxu0
        %2761 = vmatprep.mubr.bf16.mxu0 0
        %2762 = vmatmul.mubr.bf16.gmra.mrb[0].mxu0 %v2672
        %v2763 = vpop.f32.mrb[0].mxu0
        %v2764 = vadd.f32 0.0, %v2763
        %v2765 = vpop.f32.mrb[0].mxu0
        %v2766 = vpop.f32.mrb[0].mxu0
        %v2767 = vadd.f32 0.0, %v2766
        %v2768 = vpop.f32.mrb[0].mxu0
        %2769 = vmatprep.mubr.bf16.mxu0 0
        %2770 = vmatmul.mubr.bf16.gmra.mrb[0].mxu0 %v2675
        %v2771 = vpop.f32.mrb[0].mxu0
        %v2772 = vadd.f32 0.0, %v2771
        %v2773 = vpop.f32.mrb[0].mxu0
        %v2774 = vpop.f32.mrb[0].mxu0
        %v2775 = vadd.f32 0.0, %v2774
        %v2776 = vpop.f32.mrb[0].mxu0
        %2777 = vmatprep.mubr.bf16.mxu0 0
        %2778 = vmatmul.mubr.bf16.gmra.mrb[0].mxu0 %v2678
        %v2779 = vpop.f32.mrb[0].mxu0
        %v2780 = vadd.f32 0.0, %v2779
        %v2781 = vpop.f32.mrb[0].mxu0
        %v2782 = vpop.f32.mrb[0].mxu0
        %v2783 = vadd.f32 0.0, %v2782
        %v2784 = vpop.f32.mrb[0].mxu0
        %2785 = vmatprep.mubr.bf16.mxu0 0
        %2786 = vmatmul.mubr.bf16.gmra.mrb[0].mxu0 %v2681
        %v2787 = vpop.f32.mrb[0].mxu0
        %v2788 = vadd.f32 0.0, %v2787
        %v2789 = vpop.f32.mrb[0].mxu0
        %v2790 = vpop.f32.mrb[0].mxu0
        %v2791 = vadd.f32 0.0, %v2790
        %v2792 = vpop.f32.mrb[0].mxu0
        %2793 = vmatprep.mubr.bf16.mxu0 0
        %2794 = vmatmul.mubr.bf16.gmra.mrb[0].mxu0 %v2684
        %v2795 = vpop.f32.mrb[0].mxu0
        %v2796 = vadd.f32 0.0, %v2795
        %v2797 = vpop.f32.mrb[0].mxu0
        %v2798 = vpop.f32.mrb[0].mxu0
        %v2799 = vadd.f32 0.0, %v2798
        %v2800 = vpop.f32.mrb[0].mxu0
        %2801 = vmatprep.mubr.bf16.mxu0 0
        %2802 = vmatmul.mubr.bf16.gmra.mrb[0].mxu0 %v2687
        %v2803 = vpop.f32.mrb[0].mxu0
        %v2804 = vadd.f32 0.0, %v2803
        %v2805 = vpop.f32.mrb[0].mxu0
        %v2806 = vpop.f32.mrb[0].mxu0
        %v2807 = vadd.f32 0.0, %v2806
        %v2808 = vpop.f32.mrb[0].mxu0
        %2809 = vmatprep.mubr.bf16.mxu0 0
        %2810 = vmatmul.mubr.bf16.gmra.mrb[0].mxu0 %v2690
        %v2811 = vpop.f32.mrb[0].mxu0
        %v2812 = vadd.f32 0.0, %v2811
        %v2813 = vpop.f32.mrb[0].mxu0
        %v2814 = vpop.f32.mrb[0].mxu0
        %v2815 = vadd.f32 0.0, %v2814
        %v2816 = vpop.f32.mrb[0].mxu0
        %2817 = vmatprep.mubr.bf16.mxu0 0
        %2818 = vmatmul.mubr.bf16.gmra.mrb[0].mxu0 %v2693
        %v2819 = vpop.f32.mrb[0].mxu0
        %v2820 = vadd.f32 0.0, %v2819
        %v2821 = vpop.f32.mrb[0].mxu0
        %v2822 = vpop.f32.mrb[0].mxu0
        %v2823 = vadd.f32 0.0, %v2822
        %v2824 = vpop.f32.mrb[0].mxu0
        %2825 = vmatprep.mubr.bf16.mxu0 0
        %2826 = vmatmul.mubr.bf16.gmra.mrb[0].mxu0 %v2696
        %v2827 = vpop.f32.mrb[0].mxu0
        %v2828 = vadd.f32 0.0, %v2827
        %v2829 = vpop.f32.mrb[0].mxu0
        %v2830 = vpop.f32.mrb[0].mxu0
        %v2831 = vadd.f32 0.0, %v2830
        %v2832 = vpop.f32.mrb[0].mxu0
        %2833 = vmatprep.mubr.bf16.mxu0 0
        %2834 = vmatmul.mubr.bf16.gmra.mrb[0].mxu0 %v2699
        %v2835 = vpop.f32.mrb[0].mxu0
        %v2836 = vadd.f32 0.0, %v2835
        %v2837 = vpop.f32.mrb[0].mxu0
        %v2838 = vpop.f32.mrb[0].mxu0
        %v2839 = vadd.f32 0.0, %v2838
        %v2840 = vpop.f32.mrb[0].mxu0
        %2841 = vmatprep.mubr.bf16.mxu0 0
        %2842 = vmatmul.mubr.bf16.gmra.mrb[0].mxu0 %v2702
        %v2843 = vpop.f32.mrb[0].mxu0
        %v2844 = vadd.f32 0.0, %v2843
        %v2845 = vpop.f32.mrb[0].mxu0
        %v2846 = vpop.f32.mrb[0].mxu0
        %v2847 = vadd.f32 0.0, %v2846
        %v2848 = vpop.f32.mrb[0].mxu0
        %2849 = vmatprep.mubr.bf16.mxu0 0
        %2850 = vmatmul.mubr.bf16.gmra.mrb[0].mxu0 %v2705
        %v2851 = vpop.f32.mrb[0].mxu0
        %v2852 = vadd.f32 0.0, %v2851
        %v2853 = vpop.f32.mrb[0].mxu0
        %v2854 = vpop.f32.mrb[0].mxu0
        %v2855 = vadd.f32 0.0, %v2854
        %v2856 = vpop.f32.mrb[0].mxu0
        %2857 = vmatprep.mubr.bf16.mxu0 0
        %2858 = vmatmul.mubr.bf16.gmra.mrb[0].mxu0 %v2708
        %v2859 = vpop.f32.mrb[0].mxu0
        %v2860 = vadd.f32 0.0, %v2859
        %v2861 = vpop.f32.mrb[0].mxu0
        %v2862 = vpop.f32.mrb[0].mxu0
        %v2863 = vadd.f32 0.0, %v2862
        %v2864 = vpop.f32.mrb[0].mxu0
        %2865 = vmatprep.mubr.bf16.mxu0 0
        %2866 = vmatmul.mubr.bf16.gmra.mrb[0].mxu0 %v2711
        %v2867 = vpop.f32.mrb[0].mxu0
        %v2868 = vadd.f32 0.0, %v2867
        %v2869 = vpop.f32.mrb[0].mxu0
        %v2870 = vpop.f32.mrb[0].mxu0
        %v2871 = vadd.f32 0.0, %v2870
        %v2872 = vpop.f32.mrb[0].mxu0
        %2873 = vdwg.mxu0
        %v2874 = vadd.f32 %v2327, %v2748
        %v2875 = vadd.f32 %v2330, %v2751
        %v2876 = vadd.f32 %v2335, %v2756
        %v2877 = vadd.f32 %v2338, %v2759
        %v2878 = vadd.f32 %v2343, %v2764
        %v2879 = vadd.f32 %v2346, %v2767
        %v2880 = vadd.f32 %v2351, %v2772
        %v2881 = vadd.f32 %v2354, %v2775
        %v2882 = vadd.f32 %v2359, %v2780
        %v2883 = vadd.f32 %v2362, %v2783
        %v2884 = vadd.f32 %v2367, %v2788
        %v2885 = vadd.f32 %v2370, %v2791
        %v2886 = vadd.f32 %v2375, %v2796
        %v2887 = vadd.f32 %v2378, %v2799
        %v2888 = vadd.f32 %v2383, %v2804
        %v2889 = vadd.f32 %v2386, %v2807
        %v2890 = vadd.f32 %v2391, %v2812
        %v2891 = vadd.f32 %v2394, %v2815
        %v2892 = vadd.f32 %v2399, %v2820
        %v2893 = vadd.f32 %v2402, %v2823
        %v2894 = vadd.f32 %v2407, %v2828
        %v2895 = vadd.f32 %v2410, %v2831
        %v2896 = vadd.f32 %v2415, %v2836
        %v2897 = vadd.f32 %v2418, %v2839
        %v2898 = vadd.f32 %v2423, %v2844
        %v2899 = vadd.f32 %v2426, %v2847
        %v2900 = vadd.f32 %v2431, %v2852
        %v2901 = vadd.f32 %v2434, %v2855
        %v2902 = vadd.f32 %v2439, %v2860
        %v2903 = vadd.f32 %v2442, %v2863
        %v2904 = vadd.f32 %v2447, %v2868
        %v2905 = vadd.f32 %v2450, %v2871
        %s2906 = scalar_lea.vmem %s3, 96
        %v2907 = vld [vmem:[%s2906] sm:$0xf]
        %v2908 = vld [vmem:[%s2906 + $0x4] sm:$0xf]
        %v2909 = vld [vmem:[%s2906 + $0x8] sm:$0xf]
        %v2910 = vld [vmem:[%s2906 + $0xc] sm:$0xf]
        %v2911 = vld [vmem:[%s2906 + $0x10] sm:$0xf]
        %v2912 = vld [vmem:[%s2906 + $0x14] sm:$0xf]
        %v2913 = vld [vmem:[%s2906 + $0x18] sm:$0xf]
        %v2914 = vld [vmem:[%s2906 + $0x1c] sm:$0xf]
        %v2917 = vunpack.c.l.b16 %v1448
        %v2918 = vunpack.c.l.b16 %v1449
        %v2919 = vpack.c.b16 %v2918, %v2917
        %v2928 = vunpack.c.l.b16 %v2907
        %v2929 = vunpack.c.l.b16 %v2908
        %v2930 = vunpack.c.l.b16 %v2909
        %v2931 = vunpack.c.l.b16 %v2910
        %v2932 = vunpack.c.l.b16 %v2911
        %v2933 = vunpack.c.l.b16 %v2912
        %v2934 = vunpack.c.l.b16 %v2913
        %v2935 = vunpack.c.l.b16 %v2914
        %v2936 = vpack.c.b16 %v2929, %v2928
        %v2937 = vpack.c.b16 %v2931, %v2930
        %v2938 = vpack.c.b16 %v2933, %v2932
        %v2939 = vpack.c.b16 %v2935, %v2934
        %v2945 = vsel %vm1930, %v2919, 0
        %2947 = vmatprep.subr.bf16.mxu0 0
        %2948 = vmatpush1.bf16.msra.mxu0 %v2936
        %2949 = vmatprep.subr.bf16.mxu0 0
        %2950 = vmatpush1.bf16.msra.mxu0 %v2937
        %2951 = vmatprep.subr.bf16.mxu0 0
        %2952 = vmatpush1.bf16.msra.mxu0 %v2938
        %2953 = vmatprep.subr.bf16.mxu0 0
        %2954 = vmatpush1.bf16.msra.mxu0 %v2939
        %2955 = vmatprep.subr.bf16.mxu0 0
        %2956 = vmatpush1.bf16.msra.mxu0 0
        %2957 = vmatprep.subr.bf16.mxu0 0
        %2958 = vmatpush1.bf16.msra.mxu0 0
        %2959 = vmatprep.subr.bf16.mxu0 0
        %2960 = vmatpush1.bf16.msra.mxu0 0
        %2961 = vmatprep.subr.bf16.mxu0 0
        %2962 = vmatpush1.bf16.msra.mxu0 0
        %2963 = vmatprep.subr.bf16.mxu0 0
        %2964 = vmatpush1.bf16.msra.mxu0 0
        %2965 = vmatprep.subr.bf16.mxu0 0
        %2966 = vmatpush1.bf16.msra.mxu0 0
        %2967 = vmatprep.subr.bf16.mxu0 0
        %2968 = vmatpush1.bf16.msra.mxu0 0
        %2969 = vmatprep.subr.bf16.mxu0 0
        %2970 = vmatpush1.bf16.msra.mxu0 0
        %2971 = vmatprep.subr.bf16.mxu0 0
        %2972 = vmatpush1.bf16.msra.mxu0 0
        %2973 = vmatprep.subr.bf16.mxu0 0
        %2974 = vmatpush1.bf16.msra.mxu0 0
        %2975 = vmatprep.subr.bf16.mxu0 0
        %2976 = vmatpush1.bf16.msra.mxu0 0
        %2977 = vmatprep.subr.bf16.mxu0 0
        %2978 = vmatpush1.bf16.msra.mxu0 0
        %2979 = vmatprep.mubr.bf16.mxu0 0
        %2980 = vmatmul.mubr.bf16.gmra.mrb[0].mxu0 %v2248
        %v2981 = vpop.f32.mrb[0].mxu0
        %v2982 = vadd.f32 0.0, %v2981
        %v2983 = vpop.f32.mrb[0].mxu0
        %v2984 = vpop.f32.mrb[0].mxu0
        %v2985 = vadd.f32 0.0, %v2984
        %v2986 = vpop.f32.mrb[0].mxu0
        %2987 = vmatprep.mubr.bf16.mxu0 0
        %2988 = vmatmul.mubr.bf16.gmra.mrb[0].mxu0 %v2251
        %v2989 = vpop.f32.mrb[0].mxu0
        %v2990 = vadd.f32 0.0, %v2989
        %v2991 = vpop.f32.mrb[0].mxu0
        %v2992 = vpop.f32.mrb[0].mxu0
        %v2993 = vadd.f32 0.0, %v2992
        %v2994 = vpop.f32.mrb[0].mxu0
        %2995 = vmatprep.mubr.bf16.mxu0 0
        %2996 = vmatmul.mubr.bf16.gmra.mrb[0].mxu0 %v2254
        %v2997 = vpop.f32.mrb[0].mxu0
        %v2998 = vadd.f32 0.0, %v2997
        %v2999 = vpop.f32.mrb[0].mxu0
        %v3000 = vpop.f32.mrb[0].mxu0
        %v3001 = vadd.f32 0.0, %v3000
        %v3002 = vpop.f32.mrb[0].mxu0
        %3003 = vmatprep.mubr.bf16.mxu0 0
        %3004 = vmatmul.mubr.bf16.gmra.mrb[0].mxu0 %v2257
        %v3005 = vpop.f32.mrb[0].mxu0
        %v3006 = vadd.f32 0.0, %v3005
        %v3007 = vpop.f32.mrb[0].mxu0
        %v3008 = vpop.f32.mrb[0].mxu0
        %v3009 = vadd.f32 0.0, %v3008
        %v3010 = vpop.f32.mrb[0].mxu0
        %3011 = vmatprep.mubr.bf16.mxu0 0
        %3012 = vmatmul.mubr.bf16.gmra.mrb[0].mxu0 %v2260
        %v3013 = vpop.f32.mrb[0].mxu0
        %v3014 = vadd.f32 0.0, %v3013
        %v3015 = vpop.f32.mrb[0].mxu0
        %v3016 = vpop.f32.mrb[0].mxu0
        %v3017 = vadd.f32 0.0, %v3016
        %v3018 = vpop.f32.mrb[0].mxu0
        %3019 = vmatprep.mubr.bf16.mxu0 0
        %3020 = vmatmul.mubr.bf16.gmra.mrb[0].mxu0 %v2263
        %v3021 = vpop.f32.mrb[0].mxu0
        %v3022 = vadd.f32 0.0, %v3021
        %v3023 = vpop.f32.mrb[0].mxu0
        %v3024 = vpop.f32.mrb[0].mxu0
        %v3025 = vadd.f32 0.0, %v3024
        %v3026 = vpop.f32.mrb[0].mxu0
        %3027 = vmatprep.mubr.bf16.mxu0 0
        %3028 = vmatmul.mubr.bf16.gmra.mrb[0].mxu0 %v2266
        %v3029 = vpop.f32.mrb[0].mxu0
        %v3030 = vadd.f32 0.0, %v3029
        %v3031 = vpop.f32.mrb[0].mxu0
        %v3032 = vpop.f32.mrb[0].mxu0
        %v3033 = vadd.f32 0.0, %v3032
        %v3034 = vpop.f32.mrb[0].mxu0
        %3035 = vmatprep.mubr.bf16.mxu0 0
        %3036 = vmatmul.mubr.bf16.gmra.mrb[0].mxu0 %v2269
        %v3037 = vpop.f32.mrb[0].mxu0
        %v3038 = vadd.f32 0.0, %v3037
        %v3039 = vpop.f32.mrb[0].mxu0
        %v3040 = vpop.f32.mrb[0].mxu0
        %v3041 = vadd.f32 0.0, %v3040
        %v3042 = vpop.f32.mrb[0].mxu0
        %3043 = vmatprep.mubr.bf16.mxu0 0
        %3044 = vmatmul.mubr.bf16.gmra.mrb[0].mxu0 %v2272
        %v3045 = vpop.f32.mrb[0].mxu0
        %v3046 = vadd.f32 0.0, %v3045
        %v3047 = vpop.f32.mrb[0].mxu0
        %v3048 = vpop.f32.mrb[0].mxu0
        %v3049 = vadd.f32 0.0, %v3048
        %v3050 = vpop.f32.mrb[0].mxu0
        %3051 = vmatprep.mubr.bf16.mxu0 0
        %3052 = vmatmul.mubr.bf16.gmra.mrb[0].mxu0 %v2275
        %v3053 = vpop.f32.mrb[0].mxu0
        %v3054 = vadd.f32 0.0, %v3053
        %v3055 = vpop.f32.mrb[0].mxu0
        %v3056 = vpop.f32.mrb[0].mxu0
        %v3057 = vadd.f32 0.0, %v3056
        %v3058 = vpop.f32.mrb[0].mxu0
        %3059 = vmatprep.mubr.bf16.mxu0 0
        %3060 = vmatmul.mubr.bf16.gmra.mrb[0].mxu0 %v2278
        %v3061 = vpop.f32.mrb[0].mxu0
        %v3062 = vadd.f32 0.0, %v3061
        %v3063 = vpop.f32.mrb[0].mxu0
        %v3064 = vpop.f32.mrb[0].mxu0
        %v3065 = vadd.f32 0.0, %v3064
        %v3066 = vpop.f32.mrb[0].mxu0
        %3067 = vmatprep.mubr.bf16.mxu0 0
        %3068 = vmatmul.mubr.bf16.gmra.mrb[0].mxu0 %v2281
        %v3069 = vpop.f32.mrb[0].mxu0
        %v3070 = vadd.f32 0.0, %v3069
        %v3071 = vpop.f32.mrb[0].mxu0
        %v3072 = vpop.f32.mrb[0].mxu0
        %v3073 = vadd.f32 0.0, %v3072
        %v3074 = vpop.f32.mrb[0].mxu0
        %3075 = vmatprep.mubr.bf16.mxu0 0
        %3076 = vmatmul.mubr.bf16.gmra.mrb[0].mxu0 %v2284
        %v3077 = vpop.f32.mrb[0].mxu0
        %v3078 = vadd.f32 0.0, %v3077
        %v3079 = vpop.f32.mrb[0].mxu0
        %v3080 = vpop.f32.mrb[0].mxu0
        %v3081 = vadd.f32 0.0, %v3080
        %v3082 = vpop.f32.mrb[0].mxu0
        %3083 = vmatprep.mubr.bf16.mxu0 0
        %3084 = vmatmul.mubr.bf16.gmra.mrb[0].mxu0 %v2287
        %v3085 = vpop.f32.mrb[0].mxu0
        %v3086 = vadd.f32 0.0, %v3085
        %v3087 = vpop.f32.mrb[0].mxu0
        %v3088 = vpop.f32.mrb[0].mxu0
        %v3089 = vadd.f32 0.0, %v3088
        %v3090 = vpop.f32.mrb[0].mxu0
        %3091 = vmatprep.mubr.bf16.mxu0 0
        %3092 = vmatmul.mubr.bf16.gmra.mrb[0].mxu0 %v2290
        %v3093 = vpop.f32.mrb[0].mxu0
        %v3094 = vadd.f32 0.0, %v3093
        %v3095 = vpop.f32.mrb[0].mxu0
        %v3096 = vpop.f32.mrb[0].mxu0
        %v3097 = vadd.f32 0.0, %v3096
        %v3098 = vpop.f32.mrb[0].mxu0
        %3099 = vmatprep.mubr.bf16.mxu0 0
        %3100 = vmatmul.mubr.bf16.gmra.mrb[0].mxu0 %v2945
        %v3101 = vpop.f32.mrb[0].mxu0
        %v3102 = vadd.f32 0.0, %v3101
        %v3103 = vpop.f32.mrb[0].mxu0
        %v3104 = vpop.f32.mrb[0].mxu0
        %v3105 = vadd.f32 0.0, %v3104
        %v3106 = vpop.f32.mrb[0].mxu0
        %3107 = vdwg.mxu0
        %v3108 = vadd.f32 %v2874, %v2982
        %v3109 = vadd.f32 %v2875, %v2985
        %v3110 = vadd.f32 %v2876, %v2990
        %v3111 = vadd.f32 %v2877, %v2993
        %v3112 = vadd.f32 %v2878, %v2998
        %v3113 = vadd.f32 %v2879, %v3001
        %v3114 = vadd.f32 %v2880, %v3006
        %v3115 = vadd.f32 %v2881, %v3009
        %v3116 = vadd.f32 %v2882, %v3014
        %v3117 = vadd.f32 %v2883, %v3017
        %v3118 = vadd.f32 %v2884, %v3022
        %v3119 = vadd.f32 %v2885, %v3025
        %v3120 = vadd.f32 %v2886, %v3030
        %v3121 = vadd.f32 %v2887, %v3033
        %v3122 = vadd.f32 %v2888, %v3038
        %v3123 = vadd.f32 %v2889, %v3041
        %v3124 = vadd.f32 %v2890, %v3046
        %v3125 = vadd.f32 %v2891, %v3049
        %v3126 = vadd.f32 %v2892, %v3054
        %v3127 = vadd.f32 %v2893, %v3057
        %v3128 = vadd.f32 %v2894, %v3062
        %v3129 = vadd.f32 %v2895, %v3065
        %v3130 = vadd.f32 %v2896, %v3070
        %v3131 = vadd.f32 %v2897, %v3073
        %v3132 = vadd.f32 %v2898, %v3078
        %v3133 = vadd.f32 %v2899, %v3081
        %v3134 = vadd.f32 %v2900, %v3086
        %v3135 = vadd.f32 %v2901, %v3089
        %v3136 = vadd.f32 %v2902, %v3094
        %v3137 = vadd.f32 %v2903, %v3097
        %v3138 = vadd.f32 %v2904, %v3102
        %v3139 = vadd.f32 %v2905, %v3105
        %v3141 = vshrl.u32 %v1448, 16
        %v3143 = vrot.slane %v3141, 4
        %v3144 = vshll.u32 %v1448, 16
        %v3146 = vrot.slane %v3144, 5
        %v3147 = vor.u32 %v3143, %v3146
        %v3148 = vrot.slane %v3147, 4
        %v3150 = vshll.u32 %v1449, 16
        %v3152 = vrot.slane %v3150, 5
        %v3153 = vsel %vm1464, %v3148, %v3152
        %v3154 = vshrl.u32 %v1449, 16
        %v3156 = vrot.slane %v3154, 4
        %v3157 = vor.u32 %v3156, %v3152
        %v3158 = vrot.slane %v3157, 4
        %v3160 = vshll.u32 %v1450, 16
        %v3162 = vrot.slane %v3160, 5
        %v3163 = vsel %vm1464, %v3158, %v3162
        %s3164 = scalar_lea.vmem %s3, 128
        %v3165 = vld [vmem:[%s3164] sm:$0xf]
        %v3166 = vld [vmem:[%s3164 + $0x4] sm:$0xf]
        %v3167 = vld [vmem:[%s3164 + $0x8] sm:$0xf]
        %v3168 = vld [vmem:[%s3164 + $0xc] sm:$0xf]
        %v3169 = vld [vmem:[%s3164 + $0x10] sm:$0xf]
        %v3170 = vld [vmem:[%s3164 + $0x14] sm:$0xf]
        %v3171 = vld [vmem:[%s3164 + $0x18] sm:$0xf]
        %v3172 = vld [vmem:[%s3164 + $0x1c] sm:$0xf]
        %v3173 = vunpack.c.l.b16 %v3153
        %v3174 = vunpack.c.l.b16 %v3163
        %v3175 = vpack.c.b16 %v3174, %v3173
        %v3184 = vunpack.c.l.b16 %v3165
        %v3185 = vunpack.c.l.b16 %v3166
        %v3186 = vunpack.c.l.b16 %v3167
        %v3187 = vunpack.c.l.b16 %v3168
        %v3188 = vunpack.c.l.b16 %v3169
        %v3189 = vunpack.c.l.b16 %v3170
        %v3190 = vunpack.c.l.b16 %v3171
        %v3191 = vunpack.c.l.b16 %v3172
        %v3192 = vpack.c.b16 %v3185, %v3184
        %v3193 = vpack.c.b16 %v3187, %v3186
        %v3194 = vpack.c.b16 %v3189, %v3188
        %v3195 = vpack.c.b16 %v3191, %v3190
        %v3201 = vsel %vm1930, %v3175, 0
        %3203 = vmatprep.subr.bf16.mxu0 0
        %3204 = vmatpush1.bf16.msra.mxu0 %v3192
        %3205 = vmatprep.subr.bf16.mxu0 0
        %3206 = vmatpush1.bf16.msra.mxu0 %v3193
        %3207 = vmatprep.subr.bf16.mxu0 0
        %3208 = vmatpush1.bf16.msra.mxu0 %v3194
        %3209 = vmatprep.subr.bf16.mxu0 0
        %3210 = vmatpush1.bf16.msra.mxu0 %v3195
        %3211 = vmatprep.subr.bf16.mxu0 0
        %3212 = vmatpush1.bf16.msra.mxu0 0
        %3213 = vmatprep.subr.bf16.mxu0 0
        %3214 = vmatpush1.bf16.msra.mxu0 0
        %3215 = vmatprep.subr.bf16.mxu0 0
        %3216 = vmatpush1.bf16.msra.mxu0 0
        %3217 = vmatprep.subr.bf16.mxu0 0
        %3218 = vmatpush1.bf16.msra.mxu0 0
        %3219 = vmatprep.subr.bf16.mxu0 0
        %3220 = vmatpush1.bf16.msra.mxu0 0
        %3221 = vmatprep.subr.bf16.mxu0 0
        %3222 = vmatpush1.bf16.msra.mxu0 0
        %3223 = vmatprep.subr.bf16.mxu0 0
        %3224 = vmatpush1.bf16.msra.mxu0 0
        %3225 = vmatprep.subr.bf16.mxu0 0
        %3226 = vmatpush1.bf16.msra.mxu0 0
        %3227 = vmatprep.subr.bf16.mxu0 0
        %3228 = vmatpush1.bf16.msra.mxu0 0
        %3229 = vmatprep.subr.bf16.mxu0 0
        %3230 = vmatpush1.bf16.msra.mxu0 0
        %3231 = vmatprep.subr.bf16.mxu0 0
        %3232 = vmatpush1.bf16.msra.mxu0 0
        %3233 = vmatprep.subr.bf16.mxu0 0
        %3234 = vmatpush1.bf16.msra.mxu0 0
        %3235 = vmatprep.mubr.bf16.mxu0 0
        %3236 = vmatmul.mubr.bf16.gmra.mrb[0].mxu0 %v1935
        %v3237 = vpop.f32.mrb[0].mxu0
        %v3238 = vadd.f32 0.0, %v3237
        %v3239 = vpop.f32.mrb[0].mxu0
        %v3240 = vpop.f32.mrb[0].mxu0
        %v3241 = vadd.f32 0.0, %v3240
        %v3242 = vpop.f32.mrb[0].mxu0
        %3243 = vmatprep.mubr.bf16.mxu0 0
        %3244 = vmatmul.mubr.bf16.gmra.mrb[0].mxu0 %v1938
        %v3245 = vpop.f32.mrb[0].mxu0
        %v3246 = vadd.f32 0.0, %v3245
        %v3247 = vpop.f32.mrb[0].mxu0
        %v3248 = vpop.f32.mrb[0].mxu0
        %v3249 = vadd.f32 0.0, %v3248
        %v3250 = vpop.f32.mrb[0].mxu0
        %3251 = vmatprep.mubr.bf16.mxu0 0
        %3252 = vmatmul.mubr.bf16.gmra.mrb[0].mxu0 %v1941
        %v3253 = vpop.f32.mrb[0].mxu0
        %v3254 = vadd.f32 0.0, %v3253
        %v3255 = vpop.f32.mrb[0].mxu0
        %v3256 = vpop.f32.mrb[0].mxu0
        %v3257 = vadd.f32 0.0, %v3256
        %v3258 = vpop.f32.mrb[0].mxu0
        %3259 = vmatprep.mubr.bf16.mxu0 0
        %3260 = vmatmul.mubr.bf16.gmra.mrb[0].mxu0 %v1944
        %v3261 = vpop.f32.mrb[0].mxu0
        %v3262 = vadd.f32 0.0, %v3261
        %v3263 = vpop.f32.mrb[0].mxu0
        %v3264 = vpop.f32.mrb[0].mxu0
        %v3265 = vadd.f32 0.0, %v3264
        %v3266 = vpop.f32.mrb[0].mxu0
        %3267 = vmatprep.mubr.bf16.mxu0 0
        %3268 = vmatmul.mubr.bf16.gmra.mrb[0].mxu0 %v1947
        %v3269 = vpop.f32.mrb[0].mxu0
        %v3270 = vadd.f32 0.0, %v3269
        %v3271 = vpop.f32.mrb[0].mxu0
        %v3272 = vpop.f32.mrb[0].mxu0
        %v3273 = vadd.f32 0.0, %v3272
        %v3274 = vpop.f32.mrb[0].mxu0
        %3275 = vmatprep.mubr.bf16.mxu0 0
        %3276 = vmatmul.mubr.bf16.gmra.mrb[0].mxu0 %v1950
        %v3277 = vpop.f32.mrb[0].mxu0
        %v3278 = vadd.f32 0.0, %v3277
        %v3279 = vpop.f32.mrb[0].mxu0
        %v3280 = vpop.f32.mrb[0].mxu0
        %v3281 = vadd.f32 0.0, %v3280
        %v3282 = vpop.f32.mrb[0].mxu0
        %3283 = vmatprep.mubr.bf16.mxu0 0
        %3284 = vmatmul.mubr.bf16.gmra.mrb[0].mxu0 %v1953
        %v3285 = vpop.f32.mrb[0].mxu0
        %v3286 = vadd.f32 0.0, %v3285
        %v3287 = vpop.f32.mrb[0].mxu0
        %v3288 = vpop.f32.mrb[0].mxu0
        %v3289 = vadd.f32 0.0, %v3288
        %v3290 = vpop.f32.mrb[0].mxu0
        %3291 = vmatprep.mubr.bf16.mxu0 0
        %3292 = vmatmul.mubr.bf16.gmra.mrb[0].mxu0 %v1956
        %v3293 = vpop.f32.mrb[0].mxu0
        %v3294 = vadd.f32 0.0, %v3293
        %v3295 = vpop.f32.mrb[0].mxu0
        %v3296 = vpop.f32.mrb[0].mxu0
        %v3297 = vadd.f32 0.0, %v3296
        %v3298 = vpop.f32.mrb[0].mxu0
        %3299 = vmatprep.mubr.bf16.mxu0 0
        %3300 = vmatmul.mubr.bf16.gmra.mrb[0].mxu0 %v1959
        %v3301 = vpop.f32.mrb[0].mxu0
        %v3302 = vadd.f32 0.0, %v3301
        %v3303 = vpop.f32.mrb[0].mxu0
        %v3304 = vpop.f32.mrb[0].mxu0
        %v3305 = vadd.f32 0.0, %v3304
        %v3306 = vpop.f32.mrb[0].mxu0
        %3307 = vmatprep.mubr.bf16.mxu0 0
        %3308 = vmatmul.mubr.bf16.gmra.mrb[0].mxu0 %v1962
        %v3309 = vpop.f32.mrb[0].mxu0
        %v3310 = vadd.f32 0.0, %v3309
        %v3311 = vpop.f32.mrb[0].mxu0
        %v3312 = vpop.f32.mrb[0].mxu0
        %v3313 = vadd.f32 0.0, %v3312
        %v3314 = vpop.f32.mrb[0].mxu0
        %3315 = vmatprep.mubr.bf16.mxu0 0
        %3316 = vmatmul.mubr.bf16.gmra.mrb[0].mxu0 %v1965
        %v3317 = vpop.f32.mrb[0].mxu0
        %v3318 = vadd.f32 0.0, %v3317
        %v3319 = vpop.f32.mrb[0].mxu0
        %v3320 = vpop.f32.mrb[0].mxu0
        %v3321 = vadd.f32 0.0, %v3320
        %v3322 = vpop.f32.mrb[0].mxu0
        %3323 = vmatprep.mubr.bf16.mxu0 0
        %3324 = vmatmul.mubr.bf16.gmra.mrb[0].mxu0 %v1968
        %v3325 = vpop.f32.mrb[0].mxu0
        %v3326 = vadd.f32 0.0, %v3325
        %v3327 = vpop.f32.mrb[0].mxu0
        %v3328 = vpop.f32.mrb[0].mxu0
        %v3329 = vadd.f32 0.0, %v3328
        %v3330 = vpop.f32.mrb[0].mxu0
        %3331 = vmatprep.mubr.bf16.mxu0 0
        %3332 = vmatmul.mubr.bf16.gmra.mrb[0].mxu0 %v1971
        %v3333 = vpop.f32.mrb[0].mxu0
        %v3334 = vadd.f32 0.0, %v3333
        %v3335 = vpop.f32.mrb[0].mxu0
        %v3336 = vpop.f32.mrb[0].mxu0
        %v3337 = vadd.f32 0.0, %v3336
        %v3338 = vpop.f32.mrb[0].mxu0
        %3339 = vmatprep.mubr.bf16.mxu0 0
        %3340 = vmatmul.mubr.bf16.gmra.mrb[0].mxu0 %v1974
        %v3341 = vpop.f32.mrb[0].mxu0
        %v3342 = vadd.f32 0.0, %v3341
        %v3343 = vpop.f32.mrb[0].mxu0
        %v3344 = vpop.f32.mrb[0].mxu0
        %v3345 = vadd.f32 0.0, %v3344
        %v3346 = vpop.f32.mrb[0].mxu0
        %3347 = vmatprep.mubr.bf16.mxu0 0
        %3348 = vmatmul.mubr.bf16.gmra.mrb[0].mxu0 %v1977
        %v3349 = vpop.f32.mrb[0].mxu0
        %v3350 = vadd.f32 0.0, %v3349
        %v3351 = vpop.f32.mrb[0].mxu0
        %v3352 = vpop.f32.mrb[0].mxu0
        %v3353 = vadd.f32 0.0, %v3352
        %v3354 = vpop.f32.mrb[0].mxu0
        %3355 = vmatprep.mubr.bf16.mxu0 0
        %3356 = vmatmul.mubr.bf16.gmra.mrb[0].mxu0 %v3201
        %v3357 = vpop.f32.mrb[0].mxu0
        %v3358 = vadd.f32 0.0, %v3357
        %v3359 = vpop.f32.mrb[0].mxu0
        %v3360 = vpop.f32.mrb[0].mxu0
        %v3361 = vadd.f32 0.0, %v3360
        %v3362 = vpop.f32.mrb[0].mxu0
        %3363 = vdwg.mxu0
        %v3364 = vadd.f32 %v3108, %v3238
        %v3365 = vadd.f32 %v3109, %v3241
        %v3366 = vadd.f32 %v3110, %v3246
        %v3367 = vadd.f32 %v3111, %v3249
        %v3368 = vadd.f32 %v3112, %v3254
        %v3369 = vadd.f32 %v3113, %v3257
        %v3370 = vadd.f32 %v3114, %v3262
        %v3371 = vadd.f32 %v3115, %v3265
        %v3372 = vadd.f32 %v3116, %v3270
        %v3373 = vadd.f32 %v3117, %v3273
        %v3374 = vadd.f32 %v3118, %v3278
        %v3375 = vadd.f32 %v3119, %v3281
        %v3376 = vadd.f32 %v3120, %v3286
        %v3377 = vadd.f32 %v3121, %v3289
        %v3378 = vadd.f32 %v3122, %v3294
        %v3379 = vadd.f32 %v3123, %v3297
        %v3380 = vadd.f32 %v3124, %v3302
        %v3381 = vadd.f32 %v3125, %v3305
        %v3382 = vadd.f32 %v3126, %v3310
        %v3383 = vadd.f32 %v3127, %v3313
        %v3384 = vadd.f32 %v3128, %v3318
        %v3385 = vadd.f32 %v3129, %v3321
        %v3386 = vadd.f32 %v3130, %v3326
        %v3387 = vadd.f32 %v3131, %v3329
        %v3388 = vadd.f32 %v3132, %v3334
        %v3389 = vadd.f32 %v3133, %v3337
        %v3390 = vadd.f32 %v3134, %v3342
        %v3391 = vadd.f32 %v3135, %v3345
        %v3392 = vadd.f32 %v3136, %v3350
        %v3393 = vadd.f32 %v3137, %v3353
        %v3394 = vadd.f32 %v3138, %v3358
        %v3395 = vadd.f32 %v3139, %v3361
        %v3397 = vrot.slane %v1448, 5
        %v3398 = vrot.slane %v3397, 4
        %v3399 = vrot.slane %v1449, 5
        %v3400 = vsel %vm2471, %v3398, %v3399
        %v3401 = vrot.slane %v3399, 4
        %v3402 = vrot.slane %v1450, 5
        %v3403 = vsel %vm2471, %v3401, %v3402
        %s3404 = scalar_lea.vmem %s3, 160
        %v3405 = vld [vmem:[%s3404] sm:$0xf]
        %v3406 = vld [vmem:[%s3404 + $0x4] sm:$0xf]
        %v3407 = vld [vmem:[%s3404 + $0x8] sm:$0xf]
        %v3408 = vld [vmem:[%s3404 + $0xc] sm:$0xf]
        %v3409 = vld [vmem:[%s3404 + $0x10] sm:$0xf]
        %v3410 = vld [vmem:[%s3404 + $0x14] sm:$0xf]
        %v3411 = vld [vmem:[%s3404 + $0x18] sm:$0xf]
        %v3412 = vld [vmem:[%s3404 + $0x1c] sm:$0xf]
        %v3413 = vunpack.c.l.b16 %v3400
        %v3414 = vunpack.c.l.b16 %v3403
        %v3415 = vpack.c.b16 %v3414, %v3413
        %v3424 = vunpack.c.l.b16 %v3405
        %v3425 = vunpack.c.l.b16 %v3406
        %v3426 = vunpack.c.l.b16 %v3407
        %v3427 = vunpack.c.l.b16 %v3408
        %v3428 = vunpack.c.l.b16 %v3409
        %v3429 = vunpack.c.l.b16 %v3410
        %v3430 = vunpack.c.l.b16 %v3411
        %v3431 = vunpack.c.l.b16 %v3412
        %v3432 = vpack.c.b16 %v3425, %v3424
        %v3433 = vpack.c.b16 %v3427, %v3426
        %v3434 = vpack.c.b16 %v3429, %v3428
        %v3435 = vpack.c.b16 %v3431, %v3430
        %v3441 = vsel %vm1930, %v3415, 0
        %3443 = vmatprep.subr.bf16.mxu0 0
        %3444 = vmatpush1.bf16.msra.mxu0 %v3432
        %3445 = vmatprep.subr.bf16.mxu0 0
        %3446 = vmatpush1.bf16.msra.mxu0 %v3433
        %3447 = vmatprep.subr.bf16.mxu0 0
        %3448 = vmatpush1.bf16.msra.mxu0 %v3434
        %3449 = vmatprep.subr.bf16.mxu0 0
        %3450 = vmatpush1.bf16.msra.mxu0 %v3435
        %3451 = vmatprep.subr.bf16.mxu0 0
        %3452 = vmatpush1.bf16.msra.mxu0 0
        %3453 = vmatprep.subr.bf16.mxu0 0
        %3454 = vmatpush1.bf16.msra.mxu0 0
        %3455 = vmatprep.subr.bf16.mxu0 0
        %3456 = vmatpush1.bf16.msra.mxu0 0
        %3457 = vmatprep.subr.bf16.mxu0 0
        %3458 = vmatpush1.bf16.msra.mxu0 0
        %3459 = vmatprep.subr.bf16.mxu0 0
        %3460 = vmatpush1.bf16.msra.mxu0 0
        %3461 = vmatprep.subr.bf16.mxu0 0
        %3462 = vmatpush1.bf16.msra.mxu0 0
        %3463 = vmatprep.subr.bf16.mxu0 0
        %3464 = vmatpush1.bf16.msra.mxu0 0
        %3465 = vmatprep.subr.bf16.mxu0 0
        %3466 = vmatpush1.bf16.msra.mxu0 0
        %3467 = vmatprep.subr.bf16.mxu0 0
        %3468 = vmatpush1.bf16.msra.mxu0 0
        %3469 = vmatprep.subr.bf16.mxu0 0
        %3470 = vmatpush1.bf16.msra.mxu0 0
        %3471 = vmatprep.subr.bf16.mxu0 0
        %3472 = vmatpush1.bf16.msra.mxu0 0
        %3473 = vmatprep.subr.bf16.mxu0 0
        %3474 = vmatpush1.bf16.msra.mxu0 0
        %3475 = vmatprep.mubr.bf16.mxu0 0
        %3476 = vmatmul.mubr.bf16.gmra.mrb[0].mxu0 %v2669
        %v3477 = vpop.f32.mrb[0].mxu0
        %v3478 = vadd.f32 0.0, %v3477
        %v3479 = vpop.f32.mrb[0].mxu0
        %v3480 = vpop.f32.mrb[0].mxu0
        %v3481 = vadd.f32 0.0, %v3480
        %v3482 = vpop.f32.mrb[0].mxu0
        %3483 = vmatprep.mubr.bf16.mxu0 0
        %3484 = vmatmul.mubr.bf16.gmra.mrb[0].mxu0 %v2672
        %v3485 = vpop.f32.mrb[0].mxu0
        %v3486 = vadd.f32 0.0, %v3485
        %v3487 = vpop.f32.mrb[0].mxu0
        %v3488 = vpop.f32.mrb[0].mxu0
        %v3489 = vadd.f32 0.0, %v3488
        %v3490 = vpop.f32.mrb[0].mxu0
        %3491 = vmatprep.mubr.bf16.mxu0 0
        %3492 = vmatmul.mubr.bf16.gmra.mrb[0].mxu0 %v2675
        %v3493 = vpop.f32.mrb[0].mxu0
        %v3494 = vadd.f32 0.0, %v3493
        %v3495 = vpop.f32.mrb[0].mxu0
        %v3496 = vpop.f32.mrb[0].mxu0
        %v3497 = vadd.f32 0.0, %v3496
        %v3498 = vpop.f32.mrb[0].mxu0
        %3499 = vmatprep.mubr.bf16.mxu0 0
        %3500 = vmatmul.mubr.bf16.gmra.mrb[0].mxu0 %v2678
        %v3501 = vpop.f32.mrb[0].mxu0
        %v3502 = vadd.f32 0.0, %v3501
        %v3503 = vpop.f32.mrb[0].mxu0
        %v3504 = vpop.f32.mrb[0].mxu0
        %v3505 = vadd.f32 0.0, %v3504
        %v3506 = vpop.f32.mrb[0].mxu0
        %3507 = vmatprep.mubr.bf16.mxu0 0
        %3508 = vmatmul.mubr.bf16.gmra.mrb[0].mxu0 %v2681
        %v3509 = vpop.f32.mrb[0].mxu0
        %v3510 = vadd.f32 0.0, %v3509
        %v3511 = vpop.f32.mrb[0].mxu0
        %v3512 = vpop.f32.mrb[0].mxu0
        %v3513 = vadd.f32 0.0, %v3512
        %v3514 = vpop.f32.mrb[0].mxu0
        %3515 = vmatprep.mubr.bf16.mxu0 0
        %3516 = vmatmul.mubr.bf16.gmra.mrb[0].mxu0 %v2684
        %v3517 = vpop.f32.mrb[0].mxu0
        %v3518 = vadd.f32 0.0, %v3517
        %v3519 = vpop.f32.mrb[0].mxu0
        %v3520 = vpop.f32.mrb[0].mxu0
        %v3521 = vadd.f32 0.0, %v3520
        %v3522 = vpop.f32.mrb[0].mxu0
        %3523 = vmatprep.mubr.bf16.mxu0 0
        %3524 = vmatmul.mubr.bf16.gmra.mrb[0].mxu0 %v2687
        %v3525 = vpop.f32.mrb[0].mxu0
        %v3526 = vadd.f32 0.0, %v3525
        %v3527 = vpop.f32.mrb[0].mxu0
        %v3528 = vpop.f32.mrb[0].mxu0
        %v3529 = vadd.f32 0.0, %v3528
        %v3530 = vpop.f32.mrb[0].mxu0
        %3531 = vmatprep.mubr.bf16.mxu0 0
        %3532 = vmatmul.mubr.bf16.gmra.mrb[0].mxu0 %v2690
        %v3533 = vpop.f32.mrb[0].mxu0
        %v3534 = vadd.f32 0.0, %v3533
        %v3535 = vpop.f32.mrb[0].mxu0
        %v3536 = vpop.f32.mrb[0].mxu0
        %v3537 = vadd.f32 0.0, %v3536
        %v3538 = vpop.f32.mrb[0].mxu0
        %3539 = vmatprep.mubr.bf16.mxu0 0
        %3540 = vmatmul.mubr.bf16.gmra.mrb[0].mxu0 %v2693
        %v3541 = vpop.f32.mrb[0].mxu0
        %v3542 = vadd.f32 0.0, %v3541
        %v3543 = vpop.f32.mrb[0].mxu0
        %v3544 = vpop.f32.mrb[0].mxu0
        %v3545 = vadd.f32 0.0, %v3544
        %v3546 = vpop.f32.mrb[0].mxu0
        %3547 = vmatprep.mubr.bf16.mxu0 0
        %3548 = vmatmul.mubr.bf16.gmra.mrb[0].mxu0 %v2696
        %v3549 = vpop.f32.mrb[0].mxu0
        %v3550 = vadd.f32 0.0, %v3549
        %v3551 = vpop.f32.mrb[0].mxu0
        %v3552 = vpop.f32.mrb[0].mxu0
        %v3553 = vadd.f32 0.0, %v3552
        %v3554 = vpop.f32.mrb[0].mxu0
        %3555 = vmatprep.mubr.bf16.mxu0 0
        %3556 = vmatmul.mubr.bf16.gmra.mrb[0].mxu0 %v2699
        %v3557 = vpop.f32.mrb[0].mxu0
        %v3558 = vadd.f32 0.0, %v3557
        %v3559 = vpop.f32.mrb[0].mxu0
        %v3560 = vpop.f32.mrb[0].mxu0
        %v3561 = vadd.f32 0.0, %v3560
        %v3562 = vpop.f32.mrb[0].mxu0
        %3563 = vmatprep.mubr.bf16.mxu0 0
        %3564 = vmatmul.mubr.bf16.gmra.mrb[0].mxu0 %v2702
        %v3565 = vpop.f32.mrb[0].mxu0
        %v3566 = vadd.f32 0.0, %v3565
        %v3567 = vpop.f32.mrb[0].mxu0
        %v3568 = vpop.f32.mrb[0].mxu0
        %v3569 = vadd.f32 0.0, %v3568
        %v3570 = vpop.f32.mrb[0].mxu0
        %3571 = vmatprep.mubr.bf16.mxu0 0
        %3572 = vmatmul.mubr.bf16.gmra.mrb[0].mxu0 %v2705
        %v3573 = vpop.f32.mrb[0].mxu0
        %v3574 = vadd.f32 0.0, %v3573
        %v3575 = vpop.f32.mrb[0].mxu0
        %v3576 = vpop.f32.mrb[0].mxu0
        %v3577 = vadd.f32 0.0, %v3576
        %v3578 = vpop.f32.mrb[0].mxu0
        %3579 = vmatprep.mubr.bf16.mxu0 0
        %3580 = vmatmul.mubr.bf16.gmra.mrb[0].mxu0 %v2708
        %v3581 = vpop.f32.mrb[0].mxu0
        %v3582 = vadd.f32 0.0, %v3581
        %v3583 = vpop.f32.mrb[0].mxu0
        %v3584 = vpop.f32.mrb[0].mxu0
        %v3585 = vadd.f32 0.0, %v3584
        %v3586 = vpop.f32.mrb[0].mxu0
        %3587 = vmatprep.mubr.bf16.mxu0 0
        %3588 = vmatmul.mubr.bf16.gmra.mrb[0].mxu0 %v2711
        %v3589 = vpop.f32.mrb[0].mxu0
        %v3590 = vadd.f32 0.0, %v3589
        %v3591 = vpop.f32.mrb[0].mxu0
        %v3592 = vpop.f32.mrb[0].mxu0
        %v3593 = vadd.f32 0.0, %v3592
        %v3594 = vpop.f32.mrb[0].mxu0
        %3595 = vmatprep.mubr.bf16.mxu0 0
        %3596 = vmatmul.mubr.bf16.gmra.mrb[0].mxu0 %v3441
        %v3597 = vpop.f32.mrb[0].mxu0
        %v3598 = vadd.f32 0.0, %v3597
        %v3599 = vpop.f32.mrb[0].mxu0
        %v3600 = vpop.f32.mrb[0].mxu0
        %v3601 = vadd.f32 0.0, %v3600
        %v3602 = vpop.f32.mrb[0].mxu0
        %3603 = vdwg.mxu0
        %v3604 = vadd.f32 %v3364, %v3478
        %v3605 = vadd.f32 %v3365, %v3481
        %v3606 = vadd.f32 %v3366, %v3486
        %v3607 = vadd.f32 %v3367, %v3489
        %v3608 = vadd.f32 %v3368, %v3494
        %v3609 = vadd.f32 %v3369, %v3497
        %v3610 = vadd.f32 %v3370, %v3502
        %v3611 = vadd.f32 %v3371, %v3505
        %v3612 = vadd.f32 %v3372, %v3510
        %v3613 = vadd.f32 %v3373, %v3513
        %v3614 = vadd.f32 %v3374, %v3518
        %v3615 = vadd.f32 %v3375, %v3521
        %v3616 = vadd.f32 %v3376, %v3526
        %v3617 = vadd.f32 %v3377, %v3529
        %v3618 = vadd.f32 %v3378, %v3534
        %v3619 = vadd.f32 %v3379, %v3537
        %v3620 = vadd.f32 %v3380, %v3542
        %v3621 = vadd.f32 %v3381, %v3545
        %v3622 = vadd.f32 %v3382, %v3550
        %v3623 = vadd.f32 %v3383, %v3553
        %v3624 = vadd.f32 %v3384, %v3558
        %v3625 = vadd.f32 %v3385, %v3561
        %v3626 = vadd.f32 %v3386, %v3566
        %v3627 = vadd.f32 %v3387, %v3569
        %v3628 = vadd.f32 %v3388, %v3574
        %v3629 = vadd.f32 %v3389, %v3577
        %v3630 = vadd.f32 %v3390, %v3582
        %v3631 = vadd.f32 %v3391, %v3585
        %v3632 = vadd.f32 %v3392, %v3590
        %v3633 = vadd.f32 %v3393, %v3593
        %v3634 = vadd.f32 %v3394, %v3598
        %v3635 = vadd.f32 %v3395, %v3601
        %s3636 = scalar_lea.vmem %s3, 192
        %v3637 = vld [vmem:[%s3636] sm:$0xf]
        %v3638 = vld [vmem:[%s3636 + $0x4] sm:$0xf]
        %v3639 = vld [vmem:[%s3636 + $0x8] sm:$0xf]
        %v3640 = vld [vmem:[%s3636 + $0xc] sm:$0xf]
        %v3641 = vld [vmem:[%s3636 + $0x10] sm:$0xf]
        %v3642 = vld [vmem:[%s3636 + $0x14] sm:$0xf]
        %v3643 = vld [vmem:[%s3636 + $0x18] sm:$0xf]
        %v3644 = vld [vmem:[%s3636 + $0x1c] sm:$0xf]
        %v3647 = vunpack.c.l.b16 %v1451
        %v3648 = vunpack.c.l.b16 %v1452
        %v3649 = vpack.c.b16 %v3648, %v3647
        %v3658 = vunpack.c.l.b16 %v3637
        %v3659 = vunpack.c.l.b16 %v3638
        %v3660 = vunpack.c.l.b16 %v3639
        %v3661 = vunpack.c.l.b16 %v3640
        %v3662 = vunpack.c.l.b16 %v3641
        %v3663 = vunpack.c.l.b16 %v3642
        %v3664 = vunpack.c.l.b16 %v3643
        %v3665 = vunpack.c.l.b16 %v3644
        %v3666 = vpack.c.b16 %v3659, %v3658
        %v3667 = vpack.c.b16 %v3661, %v3660
        %v3668 = vpack.c.b16 %v3663, %v3662
        %v3669 = vpack.c.b16 %v3665, %v3664
        %v3675 = vsel %vm1930, %v3649, 0
        %3677 = vmatprep.subr.bf16.mxu0 0
        %3678 = vmatpush1.bf16.msra.mxu0 %v3666
        %3679 = vmatprep.subr.bf16.mxu0 0
        %3680 = vmatpush1.bf16.msra.mxu0 %v3667
        %3681 = vmatprep.subr.bf16.mxu0 0
        %3682 = vmatpush1.bf16.msra.mxu0 %v3668
        %3683 = vmatprep.subr.bf16.mxu0 0
        %3684 = vmatpush1.bf16.msra.mxu0 %v3669
        %3685 = vmatprep.subr.bf16.mxu0 0
        %3686 = vmatpush1.bf16.msra.mxu0 0
        %3687 = vmatprep.subr.bf16.mxu0 0
        %3688 = vmatpush1.bf16.msra.mxu0 0
        %3689 = vmatprep.subr.bf16.mxu0 0
        %3690 = vmatpush1.bf16.msra.mxu0 0
        %3691 = vmatprep.subr.bf16.mxu0 0
        %3692 = vmatpush1.bf16.msra.mxu0 0
        %3693 = vmatprep.subr.bf16.mxu0 0
        %3694 = vmatpush1.bf16.msra.mxu0 0
        %3695 = vmatprep.subr.bf16.mxu0 0
        %3696 = vmatpush1.bf16.msra.mxu0 0
        %3697 = vmatprep.subr.bf16.mxu0 0
        %3698 = vmatpush1.bf16.msra.mxu0 0
        %3699 = vmatprep.subr.bf16.mxu0 0
        %3700 = vmatpush1.bf16.msra.mxu0 0
        %3701 = vmatprep.subr.bf16.mxu0 0
        %3702 = vmatpush1.bf16.msra.mxu0 0
        %3703 = vmatprep.subr.bf16.mxu0 0
        %3704 = vmatpush1.bf16.msra.mxu0 0
        %3705 = vmatprep.subr.bf16.mxu0 0
        %3706 = vmatpush1.bf16.msra.mxu0 0
        %3707 = vmatprep.subr.bf16.mxu0 0
        %3708 = vmatpush1.bf16.msra.mxu0 0
        %3709 = vmatprep.mubr.bf16.mxu0 0
        %3710 = vmatmul.mubr.bf16.gmra.mrb[0].mxu0 %v2251
        %v3711 = vpop.f32.mrb[0].mxu0
        %v3712 = vadd.f32 0.0, %v3711
        %v3713 = vpop.f32.mrb[0].mxu0
        %v3714 = vpop.f32.mrb[0].mxu0
        %v3715 = vadd.f32 0.0, %v3714
        %v3716 = vpop.f32.mrb[0].mxu0
        %3717 = vmatprep.mubr.bf16.mxu0 0
        %3718 = vmatmul.mubr.bf16.gmra.mrb[0].mxu0 %v2254
        %v3719 = vpop.f32.mrb[0].mxu0
        %v3720 = vadd.f32 0.0, %v3719
        %v3721 = vpop.f32.mrb[0].mxu0
        %v3722 = vpop.f32.mrb[0].mxu0
        %v3723 = vadd.f32 0.0, %v3722
        %v3724 = vpop.f32.mrb[0].mxu0
        %3725 = vmatprep.mubr.bf16.mxu0 0
        %3726 = vmatmul.mubr.bf16.gmra.mrb[0].mxu0 %v2257
        %v3727 = vpop.f32.mrb[0].mxu0
        %v3728 = vadd.f32 0.0, %v3727
        %v3729 = vpop.f32.mrb[0].mxu0
        %v3730 = vpop.f32.mrb[0].mxu0
        %v3731 = vadd.f32 0.0, %v3730
        %v3732 = vpop.f32.mrb[0].mxu0
        %3733 = vmatprep.mubr.bf16.mxu0 0
        %3734 = vmatmul.mubr.bf16.gmra.mrb[0].mxu0 %v2260
        %v3735 = vpop.f32.mrb[0].mxu0
        %v3736 = vadd.f32 0.0, %v3735
        %v3737 = vpop.f32.mrb[0].mxu0
        %v3738 = vpop.f32.mrb[0].mxu0
        %v3739 = vadd.f32 0.0, %v3738
        %v3740 = vpop.f32.mrb[0].mxu0
        %3741 = vmatprep.mubr.bf16.mxu0 0
        %3742 = vmatmul.mubr.bf16.gmra.mrb[0].mxu0 %v2263
        %v3743 = vpop.f32.mrb[0].mxu0
        %v3744 = vadd.f32 0.0, %v3743
        %v3745 = vpop.f32.mrb[0].mxu0
        %v3746 = vpop.f32.mrb[0].mxu0
        %v3747 = vadd.f32 0.0, %v3746
        %v3748 = vpop.f32.mrb[0].mxu0
        %3749 = vmatprep.mubr.bf16.mxu0 0
        %3750 = vmatmul.mubr.bf16.gmra.mrb[0].mxu0 %v2266
        %v3751 = vpop.f32.mrb[0].mxu0
        %v3752 = vadd.f32 0.0, %v3751
        %v3753 = vpop.f32.mrb[0].mxu0
        %v3754 = vpop.f32.mrb[0].mxu0
        %v3755 = vadd.f32 0.0, %v3754
        %v3756 = vpop.f32.mrb[0].mxu0
        %3757 = vmatprep.mubr.bf16.mxu0 0
        %3758 = vmatmul.mubr.bf16.gmra.mrb[0].mxu0 %v2269
        %v3759 = vpop.f32.mrb[0].mxu0
        %v3760 = vadd.f32 0.0, %v3759
        %v3761 = vpop.f32.mrb[0].mxu0
        %v3762 = vpop.f32.mrb[0].mxu0
        %v3763 = vadd.f32 0.0, %v3762
        %v3764 = vpop.f32.mrb[0].mxu0
        %3765 = vmatprep.mubr.bf16.mxu0 0
        %3766 = vmatmul.mubr.bf16.gmra.mrb[0].mxu0 %v2272
        %v3767 = vpop.f32.mrb[0].mxu0
        %v3768 = vadd.f32 0.0, %v3767
        %v3769 = vpop.f32.mrb[0].mxu0
        %v3770 = vpop.f32.mrb[0].mxu0
        %v3771 = vadd.f32 0.0, %v3770
        %v3772 = vpop.f32.mrb[0].mxu0
        %3773 = vmatprep.mubr.bf16.mxu0 0
        %3774 = vmatmul.mubr.bf16.gmra.mrb[0].mxu0 %v2275
        %v3775 = vpop.f32.mrb[0].mxu0
        %v3776 = vadd.f32 0.0, %v3775
        %v3777 = vpop.f32.mrb[0].mxu0
        %v3778 = vpop.f32.mrb[0].mxu0
        %v3779 = vadd.f32 0.0, %v3778
        %v3780 = vpop.f32.mrb[0].mxu0
        %3781 = vmatprep.mubr.bf16.mxu0 0
        %3782 = vmatmul.mubr.bf16.gmra.mrb[0].mxu0 %v2278
        %v3783 = vpop.f32.mrb[0].mxu0
        %v3784 = vadd.f32 0.0, %v3783
        %v3785 = vpop.f32.mrb[0].mxu0
        %v3786 = vpop.f32.mrb[0].mxu0
        %v3787 = vadd.f32 0.0, %v3786
        %v3788 = vpop.f32.mrb[0].mxu0
        %3789 = vmatprep.mubr.bf16.mxu0 0
        %3790 = vmatmul.mubr.bf16.gmra.mrb[0].mxu0 %v2281
        %v3791 = vpop.f32.mrb[0].mxu0
        %v3792 = vadd.f32 0.0, %v3791
        %v3793 = vpop.f32.mrb[0].mxu0
        %v3794 = vpop.f32.mrb[0].mxu0
        %v3795 = vadd.f32 0.0, %v3794
        %v3796 = vpop.f32.mrb[0].mxu0
        %3797 = vmatprep.mubr.bf16.mxu0 0
        %3798 = vmatmul.mubr.bf16.gmra.mrb[0].mxu0 %v2284
        %v3799 = vpop.f32.mrb[0].mxu0
        %v3800 = vadd.f32 0.0, %v3799
        %v3801 = vpop.f32.mrb[0].mxu0
        %v3802 = vpop.f32.mrb[0].mxu0
        %v3803 = vadd.f32 0.0, %v3802
        %v3804 = vpop.f32.mrb[0].mxu0
        %3805 = vmatprep.mubr.bf16.mxu0 0
        %3806 = vmatmul.mubr.bf16.gmra.mrb[0].mxu0 %v2287
        %v3807 = vpop.f32.mrb[0].mxu0
        %v3808 = vadd.f32 0.0, %v3807
        %v3809 = vpop.f32.mrb[0].mxu0
        %v3810 = vpop.f32.mrb[0].mxu0
        %v3811 = vadd.f32 0.0, %v3810
        %v3812 = vpop.f32.mrb[0].mxu0
        %3813 = vmatprep.mubr.bf16.mxu0 0
        %3814 = vmatmul.mubr.bf16.gmra.mrb[0].mxu0 %v2290
        %v3815 = vpop.f32.mrb[0].mxu0
        %v3816 = vadd.f32 0.0, %v3815
        %v3817 = vpop.f32.mrb[0].mxu0
        %v3818 = vpop.f32.mrb[0].mxu0
        %v3819 = vadd.f32 0.0, %v3818
        %v3820 = vpop.f32.mrb[0].mxu0
        %3821 = vmatprep.mubr.bf16.mxu0 0
        %3822 = vmatmul.mubr.bf16.gmra.mrb[0].mxu0 %v2945
        %v3823 = vpop.f32.mrb[0].mxu0
        %v3824 = vadd.f32 0.0, %v3823
        %v3825 = vpop.f32.mrb[0].mxu0
        %v3826 = vpop.f32.mrb[0].mxu0
        %v3827 = vadd.f32 0.0, %v3826
        %v3828 = vpop.f32.mrb[0].mxu0
        %3829 = vmatprep.mubr.bf16.mxu0 0
        %3830 = vmatmul.mubr.bf16.gmra.mrb[0].mxu0 %v3675
        %v3831 = vpop.f32.mrb[0].mxu0
        %v3832 = vadd.f32 0.0, %v3831
        %v3833 = vpop.f32.mrb[0].mxu0
        %v3834 = vpop.f32.mrb[0].mxu0
        %v3835 = vadd.f32 0.0, %v3834
        %v3836 = vpop.f32.mrb[0].mxu0
        %3837 = vdwg.mxu0
        %v3838 = vadd.f32 %v3604, %v3712
        %v3839 = vadd.f32 %v3605, %v3715
        %v3840 = vadd.f32 %v3606, %v3720
        %v3841 = vadd.f32 %v3607, %v3723
        %v3842 = vadd.f32 %v3608, %v3728
        %v3843 = vadd.f32 %v3609, %v3731
        %v3844 = vadd.f32 %v3610, %v3736
        %v3845 = vadd.f32 %v3611, %v3739
        %v3846 = vadd.f32 %v3612, %v3744
        %v3847 = vadd.f32 %v3613, %v3747
        %v3848 = vadd.f32 %v3614, %v3752
        %v3849 = vadd.f32 %v3615, %v3755
        %v3850 = vadd.f32 %v3616, %v3760
        %v3851 = vadd.f32 %v3617, %v3763
        %v3852 = vadd.f32 %v3618, %v3768
        %v3853 = vadd.f32 %v3619, %v3771
        %v3854 = vadd.f32 %v3620, %v3776
        %v3855 = vadd.f32 %v3621, %v3779
        %v3856 = vadd.f32 %v3622, %v3784
        %v3857 = vadd.f32 %v3623, %v3787
        %v3858 = vadd.f32 %v3624, %v3792
        %v3859 = vadd.f32 %v3625, %v3795
        %v3860 = vadd.f32 %v3626, %v3800
        %v3861 = vadd.f32 %v3627, %v3803
        %v3862 = vadd.f32 %v3628, %v3808
        %v3863 = vadd.f32 %v3629, %v3811
        %v3864 = vadd.f32 %v3630, %v3816
        %v3865 = vadd.f32 %v3631, %v3819
        %v3866 = vadd.f32 %v3632, %v3824
        %v3867 = vadd.f32 %v3633, %v3827
        %v3868 = vadd.f32 %v3634, %v3832
        %v3869 = vadd.f32 %v3635, %v3835
        %v3871 = vshrl.u32 %v1451, 16
        %v3873 = vrot.slane %v3871, 4
        %v3874 = vshll.u32 %v1451, 16
        %v3876 = vrot.slane %v3874, 5
        %v3877 = vor.u32 %v3873, %v3876
        %v3878 = vrot.slane %v3877, 4
        %v3880 = vshll.u32 %v1452, 16
        %v3882 = vrot.slane %v3880, 5
        %v3883 = vsel %vm1464, %v3878, %v3882
        %v3884 = vshrl.u32 %v1452, 16
        %v3886 = vrot.slane %v3884, 4
        %v3887 = vor.u32 %v3886, %v3882
        %v3888 = vrot.slane %v3887, 4
        %v3890 = vshll.u32 %v1453, 16
        %v3892 = vrot.slane %v3890, 5
        %v3893 = vsel %vm1464, %v3888, %v3892
        %s3894 = scalar_lea.vmem %s3, 224
        %v3895 = vld [vmem:[%s3894] sm:$0xf]
        %v3896 = vld [vmem:[%s3894 + $0x4] sm:$0xf]
        %v3897 = vld [vmem:[%s3894 + $0x8] sm:$0xf]
        %v3898 = vld [vmem:[%s3894 + $0xc] sm:$0xf]
        %v3899 = vld [vmem:[%s3894 + $0x10] sm:$0xf]
        %v3900 = vld [vmem:[%s3894 + $0x14] sm:$0xf]
        %v3901 = vld [vmem:[%s3894 + $0x18] sm:$0xf]
        %v3902 = vld [vmem:[%s3894 + $0x1c] sm:$0xf]
        %v3903 = vunpack.c.l.b16 %v3883
        %v3904 = vunpack.c.l.b16 %v3893
        %v3905 = vpack.c.b16 %v3904, %v3903
        %v3914 = vunpack.c.l.b16 %v3895
        %v3915 = vunpack.c.l.b16 %v3896
        %v3916 = vunpack.c.l.b16 %v3897
        %v3917 = vunpack.c.l.b16 %v3898
        %v3918 = vunpack.c.l.b16 %v3899
        %v3919 = vunpack.c.l.b16 %v3900
        %v3920 = vunpack.c.l.b16 %v3901
        %v3921 = vunpack.c.l.b16 %v3902
        %v3922 = vpack.c.b16 %v3915, %v3914
        %v3923 = vpack.c.b16 %v3917, %v3916
        %v3924 = vpack.c.b16 %v3919, %v3918
        %v3925 = vpack.c.b16 %v3921, %v3920
        %v3931 = vsel %vm1930, %v3905, 0
        %3933 = vmatprep.subr.bf16.mxu0 0
        %3934 = vmatpush1.bf16.msra.mxu0 %v3922
        %3935 = vmatprep.subr.bf16.mxu0 0
        %3936 = vmatpush1.bf16.msra.mxu0 %v3923
        %3937 = vmatprep.subr.bf16.mxu0 0
        %3938 = vmatpush1.bf16.msra.mxu0 %v3924
        %3939 = vmatprep.subr.bf16.mxu0 0
        %3940 = vmatpush1.bf16.msra.mxu0 %v3925
        %3941 = vmatprep.subr.bf16.mxu0 0
        %3942 = vmatpush1.bf16.msra.mxu0 0
        %3943 = vmatprep.subr.bf16.mxu0 0
        %3944 = vmatpush1.bf16.msra.mxu0 0
        %3945 = vmatprep.subr.bf16.mxu0 0
        %3946 = vmatpush1.bf16.msra.mxu0 0
        %3947 = vmatprep.subr.bf16.mxu0 0
        %3948 = vmatpush1.bf16.msra.mxu0 0
        %3949 = vmatprep.subr.bf16.mxu0 0
        %3950 = vmatpush1.bf16.msra.mxu0 0
        %3951 = vmatprep.subr.bf16.mxu0 0
        %3952 = vmatpush1.bf16.msra.mxu0 0
        %3953 = vmatprep.subr.bf16.mxu0 0
        %3954 = vmatpush1.bf16.msra.mxu0 0
        %3955 = vmatprep.subr.bf16.mxu0 0
        %3956 = vmatpush1.bf16.msra.mxu0 0
        %3957 = vmatprep.subr.bf16.mxu0 0
        %3958 = vmatpush1.bf16.msra.mxu0 0
        %3959 = vmatprep.subr.bf16.mxu0 0
        %3960 = vmatpush1.bf16.msra.mxu0 0
        %3961 = vmatprep.subr.bf16.mxu0 0
        %3962 = vmatpush1.bf16.msra.mxu0 0
        %3963 = vmatprep.subr.bf16.mxu0 0
        %3964 = vmatpush1.bf16.msra.mxu0 0
        %3965 = vmatprep.mubr.bf16.mxu0 0
        %3966 = vmatmul.mubr.bf16.gmra.mrb[0].mxu0 %v1938
        %v3967 = vpop.f32.mrb[0].mxu0
        %v3968 = vadd.f32 0.0, %v3967
        %v3969 = vpop.f32.mrb[0].mxu0
        %v3970 = vpop.f32.mrb[0].mxu0
        %v3971 = vadd.f32 0.0, %v3970
        %v3972 = vpop.f32.mrb[0].mxu0
        %3973 = vmatprep.mubr.bf16.mxu0 0
        %3974 = vmatmul.mubr.bf16.gmra.mrb[0].mxu0 %v1941
        %v3975 = vpop.f32.mrb[0].mxu0
        %v3976 = vadd.f32 0.0, %v3975
        %v3977 = vpop.f32.mrb[0].mxu0
        %v3978 = vpop.f32.mrb[0].mxu0
        %v3979 = vadd.f32 0.0, %v3978
        %v3980 = vpop.f32.mrb[0].mxu0
        %3981 = vmatprep.mubr.bf16.mxu0 0
        %3982 = vmatmul.mubr.bf16.gmra.mrb[0].mxu0 %v1944
        %v3983 = vpop.f32.mrb[0].mxu0
        %v3984 = vadd.f32 0.0, %v3983
        %v3985 = vpop.f32.mrb[0].mxu0
        %v3986 = vpop.f32.mrb[0].mxu0
        %v3987 = vadd.f32 0.0, %v3986
        %v3988 = vpop.f32.mrb[0].mxu0
        %3989 = vmatprep.mubr.bf16.mxu0 0
        %3990 = vmatmul.mubr.bf16.gmra.mrb[0].mxu0 %v1947
        %v3991 = vpop.f32.mrb[0].mxu0
        %v3992 = vadd.f32 0.0, %v3991
        %v3993 = vpop.f32.mrb[0].mxu0
        %v3994 = vpop.f32.mrb[0].mxu0
        %v3995 = vadd.f32 0.0, %v3994
        %v3996 = vpop.f32.mrb[0].mxu0
        %3997 = vmatprep.mubr.bf16.mxu0 0
        %3998 = vmatmul.mubr.bf16.gmra.mrb[0].mxu0 %v1950
        %v3999 = vpop.f32.mrb[0].mxu0
        %v4000 = vadd.f32 0.0, %v3999
        %v4001 = vpop.f32.mrb[0].mxu0
        %v4002 = vpop.f32.mrb[0].mxu0
        %v4003 = vadd.f32 0.0, %v4002
        %v4004 = vpop.f32.mrb[0].mxu0
        %4005 = vmatprep.mubr.bf16.mxu0 0
        %4006 = vmatmul.mubr.bf16.gmra.mrb[0].mxu0 %v1953
        %v4007 = vpop.f32.mrb[0].mxu0
        %v4008 = vadd.f32 0.0, %v4007
        %v4009 = vpop.f32.mrb[0].mxu0
        %v4010 = vpop.f32.mrb[0].mxu0
        %v4011 = vadd.f32 0.0, %v4010
        %v4012 = vpop.f32.mrb[0].mxu0
        %4013 = vmatprep.mubr.bf16.mxu0 0
        %4014 = vmatmul.mubr.bf16.gmra.mrb[0].mxu0 %v1956
        %v4015 = vpop.f32.mrb[0].mxu0
        %v4016 = vadd.f32 0.0, %v4015
        %v4017 = vpop.f32.mrb[0].mxu0
        %v4018 = vpop.f32.mrb[0].mxu0
        %v4019 = vadd.f32 0.0, %v4018
        %v4020 = vpop.f32.mrb[0].mxu0
        %4021 = vmatprep.mubr.bf16.mxu0 0
        %4022 = vmatmul.mubr.bf16.gmra.mrb[0].mxu0 %v1959
        %v4023 = vpop.f32.mrb[0].mxu0
        %v4024 = vadd.f32 0.0, %v4023
        %v4025 = vpop.f32.mrb[0].mxu0
        %v4026 = vpop.f32.mrb[0].mxu0
        %v4027 = vadd.f32 0.0, %v4026
        %v4028 = vpop.f32.mrb[0].mxu0
        %4029 = vmatprep.mubr.bf16.mxu0 0
        %4030 = vmatmul.mubr.bf16.gmra.mrb[0].mxu0 %v1962
        %v4031 = vpop.f32.mrb[0].mxu0
        %v4032 = vadd.f32 0.0, %v4031
        %v4033 = vpop.f32.mrb[0].mxu0
        %v4034 = vpop.f32.mrb[0].mxu0
        %v4035 = vadd.f32 0.0, %v4034
        %v4036 = vpop.f32.mrb[0].mxu0
        %4037 = vmatprep.mubr.bf16.mxu0 0
        %4038 = vmatmul.mubr.bf16.gmra.mrb[0].mxu0 %v1965
        %v4039 = vpop.f32.mrb[0].mxu0
        %v4040 = vadd.f32 0.0, %v4039
        %v4041 = vpop.f32.mrb[0].mxu0
        %v4042 = vpop.f32.mrb[0].mxu0
        %v4043 = vadd.f32 0.0, %v4042
        %v4044 = vpop.f32.mrb[0].mxu0
        %4045 = vmatprep.mubr.bf16.mxu0 0
        %4046 = vmatmul.mubr.bf16.gmra.mrb[0].mxu0 %v1968
        %v4047 = vpop.f32.mrb[0].mxu0
        %v4048 = vadd.f32 0.0, %v4047
        %v4049 = vpop.f32.mrb[0].mxu0
        %v4050 = vpop.f32.mrb[0].mxu0
        %v4051 = vadd.f32 0.0, %v4050
        %v4052 = vpop.f32.mrb[0].mxu0
        %4053 = vmatprep.mubr.bf16.mxu0 0
        %4054 = vmatmul.mubr.bf16.gmra.mrb[0].mxu0 %v1971
        %v4055 = vpop.f32.mrb[0].mxu0
        %v4056 = vadd.f32 0.0, %v4055
        %v4057 = vpop.f32.mrb[0].mxu0
        %v4058 = vpop.f32.mrb[0].mxu0
        %v4059 = vadd.f32 0.0, %v4058
        %v4060 = vpop.f32.mrb[0].mxu0
        %4061 = vmatprep.mubr.bf16.mxu0 0
        %4062 = vmatmul.mubr.bf16.gmra.mrb[0].mxu0 %v1974
        %v4063 = vpop.f32.mrb[0].mxu0
        %v4064 = vadd.f32 0.0, %v4063
        %v4065 = vpop.f32.mrb[0].mxu0
        %v4066 = vpop.f32.mrb[0].mxu0
        %v4067 = vadd.f32 0.0, %v4066
        %v4068 = vpop.f32.mrb[0].mxu0
        %4069 = vmatprep.mubr.bf16.mxu0 0
        %4070 = vmatmul.mubr.bf16.gmra.mrb[0].mxu0 %v1977
        %v4071 = vpop.f32.mrb[0].mxu0
        %v4072 = vadd.f32 0.0, %v4071
        %v4073 = vpop.f32.mrb[0].mxu0
        %v4074 = vpop.f32.mrb[0].mxu0
        %v4075 = vadd.f32 0.0, %v4074
        %v4076 = vpop.f32.mrb[0].mxu0
        %4077 = vmatprep.mubr.bf16.mxu0 0
        %4078 = vmatmul.mubr.bf16.gmra.mrb[0].mxu0 %v3201
        %v4079 = vpop.f32.mrb[0].mxu0
        %v4080 = vadd.f32 0.0, %v4079
        %v4081 = vpop.f32.mrb[0].mxu0
        %v4082 = vpop.f32.mrb[0].mxu0
        %v4083 = vadd.f32 0.0, %v4082
        %v4084 = vpop.f32.mrb[0].mxu0
        %4085 = vmatprep.mubr.bf16.mxu0 0
        %4086 = vmatmul.mubr.bf16.gmra.mrb[0].mxu0 %v3931
        %v4087 = vpop.f32.mrb[0].mxu0
        %v4088 = vadd.f32 0.0, %v4087
        %v4089 = vpop.f32.mrb[0].mxu0
        %v4090 = vpop.f32.mrb[0].mxu0
        %v4091 = vadd.f32 0.0, %v4090
        %v4092 = vpop.f32.mrb[0].mxu0
        %4093 = vdwg.mxu0
        %v4094 = vadd.f32 %v3838, %v3968
        %v4095 = vadd.f32 %v3839, %v3971
        %v4096 = vadd.f32 %v3840, %v3976
        %v4097 = vadd.f32 %v3841, %v3979
        %v4098 = vadd.f32 %v3842, %v3984
        %v4099 = vadd.f32 %v3843, %v3987
        %v4100 = vadd.f32 %v3844, %v3992
        %v4101 = vadd.f32 %v3845, %v3995
        %v4102 = vadd.f32 %v3846, %v4000
        %v4103 = vadd.f32 %v3847, %v4003
        %v4104 = vadd.f32 %v3848, %v4008
        %v4105 = vadd.f32 %v3849, %v4011
        %v4106 = vadd.f32 %v3850, %v4016
        %v4107 = vadd.f32 %v3851, %v4019
        %v4108 = vadd.f32 %v3852, %v4024
        %v4109 = vadd.f32 %v3853, %v4027
        %v4110 = vadd.f32 %v3854, %v4032
        %v4111 = vadd.f32 %v3855, %v4035
        %v4112 = vadd.f32 %v3856, %v4040
        %v4113 = vadd.f32 %v3857, %v4043
        %v4114 = vadd.f32 %v3858, %v4048
        %v4115 = vadd.f32 %v3859, %v4051
        %v4116 = vadd.f32 %v3860, %v4056
        %v4117 = vadd.f32 %v3861, %v4059
        %v4118 = vadd.f32 %v3862, %v4064
        %v4119 = vadd.f32 %v3863, %v4067
        %v4120 = vadd.f32 %v3864, %v4072
        %v4121 = vadd.f32 %v3865, %v4075
        %v4122 = vadd.f32 %v3866, %v4080
        %v4123 = vadd.f32 %v3867, %v4083
        %v4124 = vadd.f32 %v3868, %v4088
        %v4125 = vadd.f32 %v3869, %v4091
        %v4127 = vrot.slane %v1451, 5
        %v4128 = vrot.slane %v4127, 4
        %v4129 = vrot.slane %v1452, 5
        %v4130 = vsel %vm2471, %v4128, %v4129
        %v4131 = vrot.slane %v4129, 4
        %v4132 = vrot.slane %v1453, 5
        %v4133 = vsel %vm2471, %v4131, %v4132
        %s4134 = scalar_lea.vmem %s3, 256
        %v4135 = vld [vmem:[%s4134] sm:$0xf]
        %v4136 = vld [vmem:[%s4134 + $0x4] sm:$0xf]
        %v4137 = vld [vmem:[%s4134 + $0x8] sm:$0xf]
        %v4138 = vld [vmem:[%s4134 + $0xc] sm:$0xf]
        %v4139 = vld [vmem:[%s4134 + $0x10] sm:$0xf]
        %v4140 = vld [vmem:[%s4134 + $0x14] sm:$0xf]
        %v4141 = vld [vmem:[%s4134 + $0x18] sm:$0xf]
        %v4142 = vld [vmem:[%s4134 + $0x1c] sm:$0xf]
        %v4143 = vunpack.c.l.b16 %v4130
        %v4144 = vunpack.c.l.b16 %v4133
        %v4145 = vpack.c.b16 %v4144, %v4143
        %v4154 = vunpack.c.l.b16 %v4135
        %v4155 = vunpack.c.l.b16 %v4136
        %v4156 = vunpack.c.l.b16 %v4137
        %v4157 = vunpack.c.l.b16 %v4138
        %v4158 = vunpack.c.l.b16 %v4139
        %v4159 = vunpack.c.l.b16 %v4140
        %v4160 = vunpack.c.l.b16 %v4141
        %v4161 = vunpack.c.l.b16 %v4142
        %v4162 = vpack.c.b16 %v4155, %v4154
        %v4163 = vpack.c.b16 %v4157, %v4156
        %v4164 = vpack.c.b16 %v4159, %v4158
        %v4165 = vpack.c.b16 %v4161, %v4160
        %v4171 = vsel %vm1930, %v4145, 0
        %4173 = vmatprep.subr.bf16.mxu0 0
        %4174 = vmatpush1.bf16.msra.mxu0 %v4162
        %4175 = vmatprep.subr.bf16.mxu0 0
        %4176 = vmatpush1.bf16.msra.mxu0 %v4163
        %4177 = vmatprep.subr.bf16.mxu0 0
        %4178 = vmatpush1.bf16.msra.mxu0 %v4164
        %4179 = vmatprep.subr.bf16.mxu0 0
        %4180 = vmatpush1.bf16.msra.mxu0 %v4165
        %4181 = vmatprep.subr.bf16.mxu0 0
        %4182 = vmatpush1.bf16.msra.mxu0 0
        %4183 = vmatprep.subr.bf16.mxu0 0
        %4184 = vmatpush1.bf16.msra.mxu0 0
        %4185 = vmatprep.subr.bf16.mxu0 0
        %4186 = vmatpush1.bf16.msra.mxu0 0
        %4187 = vmatprep.subr.bf16.mxu0 0
        %4188 = vmatpush1.bf16.msra.mxu0 0
        %4189 = vmatprep.subr.bf16.mxu0 0
        %4190 = vmatpush1.bf16.msra.mxu0 0
        %4191 = vmatprep.subr.bf16.mxu0 0
        %4192 = vmatpush1.bf16.msra.mxu0 0
        %4193 = vmatprep.subr.bf16.mxu0 0
        %4194 = vmatpush1.bf16.msra.mxu0 0
        %4195 = vmatprep.subr.bf16.mxu0 0
        %4196 = vmatpush1.bf16.msra.mxu0 0
        %4197 = vmatprep.subr.bf16.mxu0 0
        %4198 = vmatpush1.bf16.msra.mxu0 0
        %4199 = vmatprep.subr.bf16.mxu0 0
        %4200 = vmatpush1.bf16.msra.mxu0 0
        %4201 = vmatprep.subr.bf16.mxu0 0
        %4202 = vmatpush1.bf16.msra.mxu0 0
        %4203 = vmatprep.subr.bf16.mxu0 0
        %4204 = vmatpush1.bf16.msra.mxu0 0
        %4205 = vmatprep.mubr.bf16.mxu0 0
        %4206 = vmatmul.mubr.bf16.gmra.mrb[0].mxu0 %v2672
        %v4207 = vpop.f32.mrb[0].mxu0
        %v4208 = vadd.f32 0.0, %v4207
        %v4209 = vpop.f32.mrb[0].mxu0
        %v4210 = vpop.f32.mrb[0].mxu0
        %v4211 = vadd.f32 0.0, %v4210
        %v4212 = vpop.f32.mrb[0].mxu0
        %4213 = vmatprep.mubr.bf16.mxu0 0
        %4214 = vmatmul.mubr.bf16.gmra.mrb[0].mxu0 %v2675
        %v4215 = vpop.f32.mrb[0].mxu0
        %v4216 = vadd.f32 0.0, %v4215
        %v4217 = vpop.f32.mrb[0].mxu0
        %v4218 = vpop.f32.mrb[0].mxu0
        %v4219 = vadd.f32 0.0, %v4218
        %v4220 = vpop.f32.mrb[0].mxu0
        %4221 = vmatprep.mubr.bf16.mxu0 0
        %4222 = vmatmul.mubr.bf16.gmra.mrb[0].mxu0 %v2678
        %v4223 = vpop.f32.mrb[0].mxu0
        %v4224 = vadd.f32 0.0, %v4223
        %v4225 = vpop.f32.mrb[0].mxu0
        %v4226 = vpop.f32.mrb[0].mxu0
        %v4227 = vadd.f32 0.0, %v4226
        %v4228 = vpop.f32.mrb[0].mxu0
        %4229 = vmatprep.mubr.bf16.mxu0 0
        %4230 = vmatmul.mubr.bf16.gmra.mrb[0].mxu0 %v2681
        %v4231 = vpop.f32.mrb[0].mxu0
        %v4232 = vadd.f32 0.0, %v4231
        %v4233 = vpop.f32.mrb[0].mxu0
        %v4234 = vpop.f32.mrb[0].mxu0
        %v4235 = vadd.f32 0.0, %v4234
        %v4236 = vpop.f32.mrb[0].mxu0
        %4237 = vmatprep.mubr.bf16.mxu0 0
        %4238 = vmatmul.mubr.bf16.gmra.mrb[0].mxu0 %v2684
        %v4239 = vpop.f32.mrb[0].mxu0
        %v4240 = vadd.f32 0.0, %v4239
        %v4241 = vpop.f32.mrb[0].mxu0
        %v4242 = vpop.f32.mrb[0].mxu0
        %v4243 = vadd.f32 0.0, %v4242
        %v4244 = vpop.f32.mrb[0].mxu0
        %4245 = vmatprep.mubr.bf16.mxu0 0
        %4246 = vmatmul.mubr.bf16.gmra.mrb[0].mxu0 %v2687
        %v4247 = vpop.f32.mrb[0].mxu0
        %v4248 = vadd.f32 0.0, %v4247
        %v4249 = vpop.f32.mrb[0].mxu0
        %v4250 = vpop.f32.mrb[0].mxu0
        %v4251 = vadd.f32 0.0, %v4250
        %v4252 = vpop.f32.mrb[0].mxu0
        %4253 = vmatprep.mubr.bf16.mxu0 0
        %4254 = vmatmul.mubr.bf16.gmra.mrb[0].mxu0 %v2690
        %v4255 = vpop.f32.mrb[0].mxu0
        %v4256 = vadd.f32 0.0, %v4255
        %v4257 = vpop.f32.mrb[0].mxu0
        %v4258 = vpop.f32.mrb[0].mxu0
        %v4259 = vadd.f32 0.0, %v4258
        %v4260 = vpop.f32.mrb[0].mxu0
        %4261 = vmatprep.mubr.bf16.mxu0 0
        %4262 = vmatmul.mubr.bf16.gmra.mrb[0].mxu0 %v2693
        %v4263 = vpop.f32.mrb[0].mxu0
        %v4264 = vadd.f32 0.0, %v4263
        %v4265 = vpop.f32.mrb[0].mxu0
        %v4266 = vpop.f32.mrb[0].mxu0
        %v4267 = vadd.f32 0.0, %v4266
        %v4268 = vpop.f32.mrb[0].mxu0
        %4269 = vmatprep.mubr.bf16.mxu0 0
        %4270 = vmatmul.mubr.bf16.gmra.mrb[0].mxu0 %v2696
        %v4271 = vpop.f32.mrb[0].mxu0
        %v4272 = vadd.f32 0.0, %v4271
        %v4273 = vpop.f32.mrb[0].mxu0
        %v4274 = vpop.f32.mrb[0].mxu0
        %v4275 = vadd.f32 0.0, %v4274
        %v4276 = vpop.f32.mrb[0].mxu0
        %4277 = vmatprep.mubr.bf16.mxu0 0
        %4278 = vmatmul.mubr.bf16.gmra.mrb[0].mxu0 %v2699
        %v4279 = vpop.f32.mrb[0].mxu0
        %v4280 = vadd.f32 0.0, %v4279
        %v4281 = vpop.f32.mrb[0].mxu0
        %v4282 = vpop.f32.mrb[0].mxu0
        %v4283 = vadd.f32 0.0, %v4282
        %v4284 = vpop.f32.mrb[0].mxu0
        %4285 = vmatprep.mubr.bf16.mxu0 0
        %4286 = vmatmul.mubr.bf16.gmra.mrb[0].mxu0 %v2702
        %v4287 = vpop.f32.mrb[0].mxu0
        %v4288 = vadd.f32 0.0, %v4287
        %v4289 = vpop.f32.mrb[0].mxu0
        %v4290 = vpop.f32.mrb[0].mxu0
        %v4291 = vadd.f32 0.0, %v4290
        %v4292 = vpop.f32.mrb[0].mxu0
        %4293 = vmatprep.mubr.bf16.mxu0 0
        %4294 = vmatmul.mubr.bf16.gmra.mrb[0].mxu0 %v2705
        %v4295 = vpop.f32.mrb[0].mxu0
        %v4296 = vadd.f32 0.0, %v4295
        %v4297 = vpop.f32.mrb[0].mxu0
        %v4298 = vpop.f32.mrb[0].mxu0
        %v4299 = vadd.f32 0.0, %v4298
        %v4300 = vpop.f32.mrb[0].mxu0
        %4301 = vmatprep.mubr.bf16.mxu0 0
        %4302 = vmatmul.mubr.bf16.gmra.mrb[0].mxu0 %v2708
        %v4303 = vpop.f32.mrb[0].mxu0
        %v4304 = vadd.f32 0.0, %v4303
        %v4305 = vpop.f32.mrb[0].mxu0
        %v4306 = vpop.f32.mrb[0].mxu0
        %v4307 = vadd.f32 0.0, %v4306
        %v4308 = vpop.f32.mrb[0].mxu0
        %4309 = vmatprep.mubr.bf16.mxu0 0
        %4310 = vmatmul.mubr.bf16.gmra.mrb[0].mxu0 %v2711
        %v4311 = vpop.f32.mrb[0].mxu0
        %v4312 = vadd.f32 0.0, %v4311
        %v4313 = vpop.f32.mrb[0].mxu0
        %v4314 = vpop.f32.mrb[0].mxu0
        %v4315 = vadd.f32 0.0, %v4314
        %v4316 = vpop.f32.mrb[0].mxu0
        %4317 = vmatprep.mubr.bf16.mxu0 0
        %4318 = vmatmul.mubr.bf16.gmra.mrb[0].mxu0 %v3441
        %v4319 = vpop.f32.mrb[0].mxu0
        %v4320 = vadd.f32 0.0, %v4319
        %v4321 = vpop.f32.mrb[0].mxu0
        %v4322 = vpop.f32.mrb[0].mxu0
        %v4323 = vadd.f32 0.0, %v4322
        %v4324 = vpop.f32.mrb[0].mxu0
        %4325 = vmatprep.mubr.bf16.mxu0 0
        %4326 = vmatmul.mubr.bf16.gmra.mrb[0].mxu0 %v4171
        %v4327 = vpop.f32.mrb[0].mxu0
        %v4328 = vadd.f32 0.0, %v4327
        %v4329 = vpop.f32.mrb[0].mxu0
        %v4330 = vpop.f32.mrb[0].mxu0
        %v4331 = vadd.f32 0.0, %v4330
        %v4332 = vpop.f32.mrb[0].mxu0
        %4333 = vdwg.mxu0
        %v4334 = vadd.f32 %v4094, %v4208
        %v4335 = vadd.f32 %v4095, %v4211
        %v4336 = vadd.f32 %v4096, %v4216
        %v4337 = vadd.f32 %v4097, %v4219
        %v4338 = vadd.f32 %v4098, %v4224
        %v4339 = vadd.f32 %v4099, %v4227
        %v4340 = vadd.f32 %v4100, %v4232
        %v4341 = vadd.f32 %v4101, %v4235
        %v4342 = vadd.f32 %v4102, %v4240
        %v4343 = vadd.f32 %v4103, %v4243
        %v4344 = vadd.f32 %v4104, %v4248
        %v4345 = vadd.f32 %v4105, %v4251
        %v4346 = vadd.f32 %v4106, %v4256
        %v4347 = vadd.f32 %v4107, %v4259
        %v4348 = vadd.f32 %v4108, %v4264
        %v4349 = vadd.f32 %v4109, %v4267
        %v4350 = vadd.f32 %v4110, %v4272
        %v4351 = vadd.f32 %v4111, %v4275
        %v4352 = vadd.f32 %v4112, %v4280
        %v4353 = vadd.f32 %v4113, %v4283
        %v4354 = vadd.f32 %v4114, %v4288
        %v4355 = vadd.f32 %v4115, %v4291
        %v4356 = vadd.f32 %v4116, %v4296
        %v4357 = vadd.f32 %v4117, %v4299
        %v4358 = vadd.f32 %v4118, %v4304
        %v4359 = vadd.f32 %v4119, %v4307
        %v4360 = vadd.f32 %v4120, %v4312
        %v4361 = vadd.f32 %v4121, %v4315
        %v4362 = vadd.f32 %v4122, %v4320
        %v4363 = vadd.f32 %v4123, %v4323
        %v4364 = vadd.f32 %v4124, %v4328
        %v4365 = vadd.f32 %v4125, %v4331
        %v4366 = vld [vmem:[%s4] sm:$0x1]
        %v4368 = vlaneseq
        %v4369 = vshrl.u32 %v4368, 7
        %v4370 = vsub.s32 0, %v4369
        %v4371 = vrot.slane %v4366, %v4370
        %v4373 = vadd.f32 %v4334, %v4371
        %v4374 = vadd.f32 %v4335, %v4371
        %v4375 = vadd.f32 %v4336, %v4371
        %v4376 = vadd.f32 %v4337, %v4371
        %v4377 = vadd.f32 %v4338, %v4371
        %v4378 = vadd.f32 %v4339, %v4371
        %v4379 = vadd.f32 %v4340, %v4371
        %v4380 = vadd.f32 %v4341, %v4371
        %v4381 = vadd.f32 %v4342, %v4371
        %v4382 = vadd.f32 %v4343, %v4371
        %v4383 = vadd.f32 %v4344, %v4371
        %v4384 = vadd.f32 %v4345, %v4371
        %v4385 = vadd.f32 %v4346, %v4371
        %v4386 = vadd.f32 %v4347, %v4371
        %v4387 = vadd.f32 %v4348, %v4371
        %v4388 = vadd.f32 %v4349, %v4371
        %v4389 = vadd.f32 %v4350, %v4371
        %v4390 = vadd.f32 %v4351, %v4371
        %v4391 = vadd.f32 %v4352, %v4371
        %v4392 = vadd.f32 %v4353, %v4371
        %v4393 = vadd.f32 %v4354, %v4371
        %v4394 = vadd.f32 %v4355, %v4371
        %v4395 = vadd.f32 %v4356, %v4371
        %v4396 = vadd.f32 %v4357, %v4371
        %v4397 = vadd.f32 %v4358, %v4371
        %v4398 = vadd.f32 %v4359, %v4371
        %v4399 = vadd.f32 %v4360, %v4371
        %v4400 = vadd.f32 %v4361, %v4371
        %v4401 = vadd.f32 %v4362, %v4371
        %v4402 = vadd.f32 %v4363, %v4371
        %v4403 = vadd.f32 %v4364, %v4371
        %v4404 = vadd.f32 %v4365, %v4371
        %v4405 = vmax.f32 %v4373, 0.0
        %v4406 = vmax.f32 %v4374, 0.0
        %v4407 = vmax.f32 %v4375, 0.0
        %v4408 = vmax.f32 %v4376, 0.0
        %v4409 = vmax.f32 %v4377, 0.0
        %v4410 = vmax.f32 %v4378, 0.0
        %v4411 = vmax.f32 %v4379, 0.0
        %v4412 = vmax.f32 %v4380, 0.0
        %v4413 = vmax.f32 %v4381, 0.0
        %v4414 = vmax.f32 %v4382, 0.0
        %v4415 = vmax.f32 %v4383, 0.0
        %v4416 = vmax.f32 %v4384, 0.0
        %v4417 = vmax.f32 %v4385, 0.0
        %v4418 = vmax.f32 %v4386, 0.0
        %v4419 = vmax.f32 %v4387, 0.0
        %v4420 = vmax.f32 %v4388, 0.0
        %v4421 = vmax.f32 %v4389, 0.0
        %v4422 = vmax.f32 %v4390, 0.0
        %v4423 = vmax.f32 %v4391, 0.0
        %v4424 = vmax.f32 %v4392, 0.0
        %v4425 = vmax.f32 %v4393, 0.0
        %v4426 = vmax.f32 %v4394, 0.0
        %v4427 = vmax.f32 %v4395, 0.0
        %v4428 = vmax.f32 %v4396, 0.0
        %v4429 = vmax.f32 %v4397, 0.0
        %v4430 = vmax.f32 %v4398, 0.0
        %v4431 = vmax.f32 %v4399, 0.0
        %v4432 = vmax.f32 %v4400, 0.0
        %v4433 = vmax.f32 %v4401, 0.0
        %v4434 = vmax.f32 %v4402, 0.0
        %v4435 = vmax.f32 %v4403, 0.0
        %v4436 = vmax.f32 %v4404, 0.0
        %v4437 = vld [vmem:[%s9] sm:$0xff]
        %v4438 = vld [vmem:[%s9 + $0x8] sm:$0xff]
        %v4439 = vld [vmem:[%s9 + $0x10] sm:$0xff]
        %v4440 = vld [vmem:[%s9 + $0x18] sm:$0xff]
        %v4441 = vld [vmem:[%s9 + $0x20] sm:$0xff]
        %v4442 = vld [vmem:[%s9 + $0x28] sm:$0xff]
        %v4443 = vld [vmem:[%s9 + $0x30] sm:$0xff]
        %v4444 = vld [vmem:[%s9 + $0x38] sm:$0xff]
        %v4445 = vld [vmem:[%s9 + $0x40] sm:$0xff]
        %v4446 = vld [vmem:[%s9 + $0x48] sm:$0xff]
        %v4447 = vld [vmem:[%s9 + $0x50] sm:$0xff]
        %v4448 = vld [vmem:[%s9 + $0x58] sm:$0xff]
        %v4449 = vld [vmem:[%s9 + $0x60] sm:$0xff]
        %v4450 = vld [vmem:[%s9 + $0x68] sm:$0xff]
        %v4451 = vld [vmem:[%s9 + $0x70] sm:$0xff]
        %v4452 = vld [vmem:[%s9 + $0x78] sm:$0xff]
        %4453 = vmatprep.subr.mxu0 0.0
        %4454 = vmatpush1.msra.mxu0 %v4405
        %4455 = vmatprep.subr.mxu0 0.0
        %4456 = vmatpush1.msra.mxu0 %v4406
        %4457 = vmatprep.subr.mxu0 0.0
        %4458 = vmatpush1.msra.mxu0 %v4407
        %4459 = vmatprep.subr.mxu0 0.0
        %4460 = vmatpush1.msra.mxu0 %v4408
        %4461 = vmatprep.subr.mxu0 0.0
        %4462 = vmatpush1.msra.mxu0 %v4409
        %4463 = vmatprep.subr.mxu0 0.0
        %4464 = vmatpush1.msra.mxu0 %v4410
        %4465 = vmatprep.subr.mxu0 0.0
        %4466 = vmatpush1.msra.mxu0 %v4411
        %4467 = vmatprep.subr.mxu0 0.0
        %4468 = vmatpush1.msra.mxu0 %v4412
        %4469 = vmatprep.subr.mxu0 0.0
        %4470 = vmatpush1.msra.mxu0 %v4413
        %4471 = vmatprep.subr.mxu0 0.0
        %4472 = vmatpush1.msra.mxu0 %v4414
        %4473 = vmatprep.subr.mxu0 0.0
        %4474 = vmatpush1.msra.mxu0 %v4415
        %4475 = vmatprep.subr.mxu0 0.0
        %4476 = vmatpush1.msra.mxu0 %v4416
        %4477 = vmatprep.subr.mxu0 0.0
        %4478 = vmatpush1.msra.mxu0 %v4417
        %4479 = vmatprep.subr.mxu0 0.0
        %4480 = vmatpush1.msra.mxu0 %v4418
        %4481 = vmatprep.subr.mxu0 0.0
        %4482 = vmatpush1.msra.mxu0 %v4419
        %4483 = vmatprep.subr.mxu0 0.0
        %4484 = vmatpush1.msra.mxu0 %v4420
        %4485 = vmatprep.subr.mxu0 0.0
        %4486 = vmatpush1.msra.mxu0 %v4421
        %4487 = vmatprep.subr.mxu0 0.0
        %4488 = vmatpush1.msra.mxu0 %v4422
        %4489 = vmatprep.subr.mxu0 0.0
        %4490 = vmatpush1.msra.mxu0 %v4423
        %4491 = vmatprep.subr.mxu0 0.0
        %4492 = vmatpush1.msra.mxu0 %v4424
        %4493 = vmatprep.subr.mxu0 0.0
        %4494 = vmatpush1.msra.mxu0 %v4425
        %4495 = vmatprep.subr.mxu0 0.0
        %4496 = vmatpush1.msra.mxu0 %v4426
        %4497 = vmatprep.subr.mxu0 0.0
        %4498 = vmatpush1.msra.mxu0 %v4427
        %4499 = vmatprep.subr.mxu0 0.0
        %4500 = vmatpush1.msra.mxu0 %v4428
        %4501 = vmatprep.subr.mxu0 0.0
        %4502 = vmatpush1.msra.mxu0 %v4429
        %4503 = vmatprep.subr.mxu0 0.0
        %4504 = vmatpush1.msra.mxu0 %v4430
        %4505 = vmatprep.subr.mxu0 0.0
        %4506 = vmatpush1.msra.mxu0 %v4431
        %4507 = vmatprep.subr.mxu0 0.0
        %4508 = vmatpush1.msra.mxu0 %v4432
        %4509 = vmatprep.subr.mxu0 0.0
        %4510 = vmatpush1.msra.mxu0 %v4433
        %4511 = vmatprep.subr.mxu0 0.0
        %4512 = vmatpush1.msra.mxu0 %v4434
        %4513 = vmatprep.subr.mxu0 0.0
        %4514 = vmatpush1.msra.mxu0 %v4435
        %4515 = vmatprep.subr.mxu0 0.0
        %4516 = vmatpush1.msra.mxu0 %v4436
        %4517 = vmatprep.mubr.f32.mxu0 %v4438
        %4518 = vmatmul.mubr.f32.gmra.mrb[0].mxu0 %v4437
        %v4519 = vpop.f32.mrb[0].mxu0
        %v4520 = vadd.f32 0.0, %v4519
        %v4521 = vpop.f32.mrb[0].mxu0
        %4522 = vmatprep.mubr.f32.mxu0 %v4440
        %4523 = vmatmul.mubr.f32.gmra.mrb[0].mxu0 %v4439
        %v4524 = vpop.f32.mrb[0].mxu0
        %v4525 = vadd.f32 0.0, %v4524
        %v4526 = vpop.f32.mrb[0].mxu0
        %4527 = vmatprep.mubr.f32.mxu0 %v4442
        %4528 = vmatmul.mubr.f32.gmra.mrb[0].mxu0 %v4441
        %v4529 = vpop.f32.mrb[0].mxu0
        %v4530 = vadd.f32 0.0, %v4529
        %v4531 = vpop.f32.mrb[0].mxu0
        %4532 = vmatprep.mubr.f32.mxu0 %v4444
        %4533 = vmatmul.mubr.f32.gmra.mrb[0].mxu0 %v4443
        %v4534 = vpop.f32.mrb[0].mxu0
        %v4535 = vadd.f32 0.0, %v4534
        %v4536 = vpop.f32.mrb[0].mxu0
        %4537 = vmatprep.mubr.f32.mxu0 %v4446
        %4538 = vmatmul.mubr.f32.gmra.mrb[0].mxu0 %v4445
        %v4539 = vpop.f32.mrb[0].mxu0
        %v4540 = vadd.f32 0.0, %v4539
        %v4541 = vpop.f32.mrb[0].mxu0
        %4542 = vmatprep.mubr.f32.mxu0 %v4448
        %4543 = vmatmul.mubr.f32.gmra.mrb[0].mxu0 %v4447
        %v4544 = vpop.f32.mrb[0].mxu0
        %v4545 = vadd.f32 0.0, %v4544
        %v4546 = vpop.f32.mrb[0].mxu0
        %4547 = vmatprep.mubr.f32.mxu0 %v4450
        %4548 = vmatmul.mubr.f32.gmra.mrb[0].mxu0 %v4449
        %v4549 = vpop.f32.mrb[0].mxu0
        %v4550 = vadd.f32 0.0, %v4549
        %v4551 = vpop.f32.mrb[0].mxu0
        %4552 = vmatprep.mubr.f32.mxu0 %v4452
        %4553 = vmatmul.mubr.f32.gmra.mrb[0].mxu0 %v4451
        %v4554 = vpop.f32.mrb[0].mxu0
        %v4555 = vadd.f32 0.0, %v4554
        %v4556 = vpop.f32.mrb[0].mxu0
        %4557 = vdwg.mxu0
        %s4558 = scalar_lea.vmem %s9, 128
        %v4559 = vld [vmem:[%s4558] sm:$0xff]
        %v4560 = vld [vmem:[%s4558 + $0x8] sm:$0xff]
        %v4561 = vld [vmem:[%s4558 + $0x10] sm:$0xff]
        %v4562 = vld [vmem:[%s4558 + $0x18] sm:$0xff]
        %v4563 = vld [vmem:[%s4558 + $0x20] sm:$0xff]
        %v4564 = vld [vmem:[%s4558 + $0x28] sm:$0xff]
        %v4565 = vld [vmem:[%s4558 + $0x30] sm:$0xff]
        %v4566 = vld [vmem:[%s4558 + $0x38] sm:$0xff]
        %v4567 = vld [vmem:[%s4558 + $0x40] sm:$0xff]
        %v4568 = vld [vmem:[%s4558 + $0x48] sm:$0xff]
        %v4569 = vld [vmem:[%s4558 + $0x50] sm:$0xff]
        %v4570 = vld [vmem:[%s4558 + $0x58] sm:$0xff]
        %v4571 = vld [vmem:[%s4558 + $0x60] sm:$0xff]
        %v4572 = vld [vmem:[%s4558 + $0x68] sm:$0xff]
        %v4573 = vld [vmem:[%s4558 + $0x70] sm:$0xff]
        %v4574 = vld [vmem:[%s4558 + $0x78] sm:$0xff]
        %4575 = vmatprep.subr.mxu0 0.0
        %4576 = vmatpush1.msra.mxu0 %v4405
        %4577 = vmatprep.subr.mxu0 0.0
        %4578 = vmatpush1.msra.mxu0 %v4406
        %4579 = vmatprep.subr.mxu0 0.0
        %4580 = vmatpush1.msra.mxu0 %v4407
        %4581 = vmatprep.subr.mxu0 0.0
        %4582 = vmatpush1.msra.mxu0 %v4408
        %4583 = vmatprep.subr.mxu0 0.0
        %4584 = vmatpush1.msra.mxu0 %v4409
        %4585 = vmatprep.subr.mxu0 0.0
        %4586 = vmatpush1.msra.mxu0 %v4410
        %4587 = vmatprep.subr.mxu0 0.0
        %4588 = vmatpush1.msra.mxu0 %v4411
        %4589 = vmatprep.subr.mxu0 0.0
        %4590 = vmatpush1.msra.mxu0 %v4412
        %4591 = vmatprep.subr.mxu0 0.0
        %4592 = vmatpush1.msra.mxu0 %v4413
        %4593 = vmatprep.subr.mxu0 0.0
        %4594 = vmatpush1.msra.mxu0 %v4414
        %4595 = vmatprep.subr.mxu0 0.0
        %4596 = vmatpush1.msra.mxu0 %v4415
        %4597 = vmatprep.subr.mxu0 0.0
        %4598 = vmatpush1.msra.mxu0 %v4416
        %4599 = vmatprep.subr.mxu0 0.0
        %4600 = vmatpush1.msra.mxu0 %v4417
        %4601 = vmatprep.subr.mxu0 0.0
        %4602 = vmatpush1.msra.mxu0 %v4418
        %4603 = vmatprep.subr.mxu0 0.0
        %4604 = vmatpush1.msra.mxu0 %v4419
        %4605 = vmatprep.subr.mxu0 0.0
        %4606 = vmatpush1.msra.mxu0 %v4420
        %4607 = vmatprep.subr.mxu0 0.0
        %4608 = vmatpush1.msra.mxu0 %v4421
        %4609 = vmatprep.subr.mxu0 0.0
        %4610 = vmatpush1.msra.mxu0 %v4422
        %4611 = vmatprep.subr.mxu0 0.0
        %4612 = vmatpush1.msra.mxu0 %v4423
        %4613 = vmatprep.subr.mxu0 0.0
        %4614 = vmatpush1.msra.mxu0 %v4424
        %4615 = vmatprep.subr.mxu0 0.0
        %4616 = vmatpush1.msra.mxu0 %v4425
        %4617 = vmatprep.subr.mxu0 0.0
        %4618 = vmatpush1.msra.mxu0 %v4426
        %4619 = vmatprep.subr.mxu0 0.0
        %4620 = vmatpush1.msra.mxu0 %v4427
        %4621 = vmatprep.subr.mxu0 0.0
        %4622 = vmatpush1.msra.mxu0 %v4428
        %4623 = vmatprep.subr.mxu0 0.0
        %4624 = vmatpush1.msra.mxu0 %v4429
        %4625 = vmatprep.subr.mxu0 0.0
        %4626 = vmatpush1.msra.mxu0 %v4430
        %4627 = vmatprep.subr.mxu0 0.0
        %4628 = vmatpush1.msra.mxu0 %v4431
        %4629 = vmatprep.subr.mxu0 0.0
        %4630 = vmatpush1.msra.mxu0 %v4432
        %4631 = vmatprep.subr.mxu0 0.0
        %4632 = vmatpush1.msra.mxu0 %v4433
        %4633 = vmatprep.subr.mxu0 0.0
        %4634 = vmatpush1.msra.mxu0 %v4434
        %4635 = vmatprep.subr.mxu0 0.0
        %4636 = vmatpush1.msra.mxu0 %v4435
        %4637 = vmatprep.subr.mxu0 0.0
        %4638 = vmatpush1.msra.mxu0 %v4436
        %4639 = vmatprep.mubr.f32.mxu0 %v4560
        %4640 = vmatmul.mubr.f32.gmra.mrb[0].mxu0 %v4559
        %v4641 = vpop.f32.mrb[0].mxu0
        %v4642 = vadd.f32 0.0, %v4641
        %v4643 = vpop.f32.mrb[0].mxu0
        %4644 = vmatprep.mubr.f32.mxu0 %v4562
        %4645 = vmatmul.mubr.f32.gmra.mrb[0].mxu0 %v4561
        %v4646 = vpop.f32.mrb[0].mxu0
        %v4647 = vadd.f32 0.0, %v4646
        %v4648 = vpop.f32.mrb[0].mxu0
        %4649 = vmatprep.mubr.f32.mxu0 %v4564
        %4650 = vmatmul.mubr.f32.gmra.mrb[0].mxu0 %v4563
        %v4651 = vpop.f32.mrb[0].mxu0
        %v4652 = vadd.f32 0.0, %v4651
        %v4653 = vpop.f32.mrb[0].mxu0
        %4654 = vmatprep.mubr.f32.mxu0 %v4566
        %4655 = vmatmul.mubr.f32.gmra.mrb[0].mxu0 %v4565
        %v4656 = vpop.f32.mrb[0].mxu0
        %v4657 = vadd.f32 0.0, %v4656
        %v4658 = vpop.f32.mrb[0].mxu0
        %4659 = vmatprep.mubr.f32.mxu0 %v4568
        %4660 = vmatmul.mubr.f32.gmra.mrb[0].mxu0 %v4567
        %v4661 = vpop.f32.mrb[0].mxu0
        %v4662 = vadd.f32 0.0, %v4661
        %v4663 = vpop.f32.mrb[0].mxu0
        %4664 = vmatprep.mubr.f32.mxu0 %v4570
        %4665 = vmatmul.mubr.f32.gmra.mrb[0].mxu0 %v4569
        %v4666 = vpop.f32.mrb[0].mxu0
        %v4667 = vadd.f32 0.0, %v4666
        %v4668 = vpop.f32.mrb[0].mxu0
        %4669 = vmatprep.mubr.f32.mxu0 %v4572
        %4670 = vmatmul.mubr.f32.gmra.mrb[0].mxu0 %v4571
        %v4671 = vpop.f32.mrb[0].mxu0
        %v4672 = vadd.f32 0.0, %v4671
        %v4673 = vpop.f32.mrb[0].mxu0
        %4674 = vmatprep.mubr.f32.mxu0 %v4574
        %4675 = vmatmul.mubr.f32.gmra.mrb[0].mxu0 %v4573
        %v4676 = vpop.f32.mrb[0].mxu0
        %v4677 = vadd.f32 0.0, %v4676
        %v4678 = vpop.f32.mrb[0].mxu0
        %4679 = vdwg.mxu0
        %v4680 = vmax.f32 %v4520, %v4642
        %v4681 = vmax.f32 %v4525, %v4647
        %v4682 = vmax.f32 %v4530, %v4652
        %v4683 = vmax.f32 %v4535, %v4657
        %v4684 = vmax.f32 %v4540, %v4662
        %v4685 = vmax.f32 %v4545, %v4667
        %v4686 = vmax.f32 %v4550, %v4672
        %v4687 = vmax.f32 %v4555, %v4677
        %s4688 = scalar_lea.vmem %s9, 256
        %v4689 = vld [vmem:[%s4688] sm:$0xff]
        %v4690 = vld [vmem:[%s4688 + $0x8] sm:$0xff]
        %v4691 = vld [vmem:[%s4688 + $0x10] sm:$0xff]
        %v4692 = vld [vmem:[%s4688 + $0x18] sm:$0xff]
        %v4693 = vld [vmem:[%s4688 + $0x20] sm:$0xff]
        %v4694 = vld [vmem:[%s4688 + $0x28] sm:$0xff]
        %v4695 = vld [vmem:[%s4688 + $0x30] sm:$0xff]
        %v4696 = vld [vmem:[%s4688 + $0x38] sm:$0xff]
        %v4697 = vld [vmem:[%s4688 + $0x40] sm:$0xff]
        %v4698 = vld [vmem:[%s4688 + $0x48] sm:$0xff]
        %v4699 = vld [vmem:[%s4688 + $0x50] sm:$0xff]
        %v4700 = vld [vmem:[%s4688 + $0x58] sm:$0xff]
        %v4701 = vld [vmem:[%s4688 + $0x60] sm:$0xff]
        %v4702 = vld [vmem:[%s4688 + $0x68] sm:$0xff]
        %v4703 = vld [vmem:[%s4688 + $0x70] sm:$0xff]
        %v4704 = vld [vmem:[%s4688 + $0x78] sm:$0xff]
        %4705 = vmatprep.subr.mxu0 0.0
        %4706 = vmatpush1.msra.mxu0 %v4405
        %4707 = vmatprep.subr.mxu0 0.0
        %4708 = vmatpush1.msra.mxu0 %v4406
        %4709 = vmatprep.subr.mxu0 0.0
        %4710 = vmatpush1.msra.mxu0 %v4407
        %4711 = vmatprep.subr.mxu0 0.0
        %4712 = vmatpush1.msra.mxu0 %v4408
        %4713 = vmatprep.subr.mxu0 0.0
        %4714 = vmatpush1.msra.mxu0 %v4409
        %4715 = vmatprep.subr.mxu0 0.0
        %4716 = vmatpush1.msra.mxu0 %v4410
        %4717 = vmatprep.subr.mxu0 0.0
        %4718 = vmatpush1.msra.mxu0 %v4411
        %4719 = vmatprep.subr.mxu0 0.0
        %4720 = vmatpush1.msra.mxu0 %v4412
        %4721 = vmatprep.subr.mxu0 0.0
        %4722 = vmatpush1.msra.mxu0 %v4413
        %4723 = vmatprep.subr.mxu0 0.0
        %4724 = vmatpush1.msra.mxu0 %v4414
        %4725 = vmatprep.subr.mxu0 0.0
        %4726 = vmatpush1.msra.mxu0 %v4415
        %4727 = vmatprep.subr.mxu0 0.0
        %4728 = vmatpush1.msra.mxu0 %v4416
        %4729 = vmatprep.subr.mxu0 0.0
        %4730 = vmatpush1.msra.mxu0 %v4417
        %4731 = vmatprep.subr.mxu0 0.0
        %4732 = vmatpush1.msra.mxu0 %v4418
        %4733 = vmatprep.subr.mxu0 0.0
        %4734 = vmatpush1.msra.mxu0 %v4419
        %4735 = vmatprep.subr.mxu0 0.0
        %4736 = vmatpush1.msra.mxu0 %v4420
        %4737 = vmatprep.subr.mxu0 0.0
        %4738 = vmatpush1.msra.mxu0 %v4421
        %4739 = vmatprep.subr.mxu0 0.0
        %4740 = vmatpush1.msra.mxu0 %v4422
        %4741 = vmatprep.subr.mxu0 0.0
        %4742 = vmatpush1.msra.mxu0 %v4423
        %4743 = vmatprep.subr.mxu0 0.0
        %4744 = vmatpush1.msra.mxu0 %v4424
        %4745 = vmatprep.subr.mxu0 0.0
        %4746 = vmatpush1.msra.mxu0 %v4425
        %4747 = vmatprep.subr.mxu0 0.0
        %4748 = vmatpush1.msra.mxu0 %v4426
        %4749 = vmatprep.subr.mxu0 0.0
        %4750 = vmatpush1.msra.mxu0 %v4427
        %4751 = vmatprep.subr.mxu0 0.0
        %4752 = vmatpush1.msra.mxu0 %v4428
        %4753 = vmatprep.subr.mxu0 0.0
        %4754 = vmatpush1.msra.mxu0 %v4429
        %4755 = vmatprep.subr.mxu0 0.0
        %4756 = vmatpush1.msra.mxu0 %v4430
        %4757 = vmatprep.subr.mxu0 0.0
        %4758 = vmatpush1.msra.mxu0 %v4431
        %4759 = vmatprep.subr.mxu0 0.0
        %4760 = vmatpush1.msra.mxu0 %v4432
        %4761 = vmatprep.subr.mxu0 0.0
        %4762 = vmatpush1.msra.mxu0 %v4433
        %4763 = vmatprep.subr.mxu0 0.0
        %4764 = vmatpush1.msra.mxu0 %v4434
        %4765 = vmatprep.subr.mxu0 0.0
        %4766 = vmatpush1.msra.mxu0 %v4435
        %4767 = vmatprep.subr.mxu0 0.0
        %4768 = vmatpush1.msra.mxu0 %v4436
        %4769 = vmatprep.mubr.f32.mxu0 %v4690
        %4770 = vmatmul.mubr.f32.gmra.mrb[0].mxu0 %v4689
        %v4771 = vpop.f32.mrb[0].mxu0
        %v4772 = vadd.f32 0.0, %v4771
        %v4773 = vpop.f32.mrb[0].mxu0
        %4774 = vmatprep.mubr.f32.mxu0 %v4692
        %4775 = vmatmul.mubr.f32.gmra.mrb[0].mxu0 %v4691
        %v4776 = vpop.f32.mrb[0].mxu0
        %v4777 = vadd.f32 0.0, %v4776
        %v4778 = vpop.f32.mrb[0].mxu0
        %4779 = vmatprep.mubr.f32.mxu0 %v4694
        %4780 = vmatmul.mubr.f32.gmra.mrb[0].mxu0 %v4693
        %v4781 = vpop.f32.mrb[0].mxu0
        %v4782 = vadd.f32 0.0, %v4781
        %v4783 = vpop.f32.mrb[0].mxu0
        %4784 = vmatprep.mubr.f32.mxu0 %v4696
        %4785 = vmatmul.mubr.f32.gmra.mrb[0].mxu0 %v4695
        %v4786 = vpop.f32.mrb[0].mxu0
        %v4787 = vadd.f32 0.0, %v4786
        %v4788 = vpop.f32.mrb[0].mxu0
        %4789 = vmatprep.mubr.f32.mxu0 %v4698
        %4790 = vmatmul.mubr.f32.gmra.mrb[0].mxu0 %v4697
        %v4791 = vpop.f32.mrb[0].mxu0
        %v4792 = vadd.f32 0.0, %v4791
        %v4793 = vpop.f32.mrb[0].mxu0
        %4794 = vmatprep.mubr.f32.mxu0 %v4700
        %4795 = vmatmul.mubr.f32.gmra.mrb[0].mxu0 %v4699
        %v4796 = vpop.f32.mrb[0].mxu0
        %v4797 = vadd.f32 0.0, %v4796
        %v4798 = vpop.f32.mrb[0].mxu0
        %4799 = vmatprep.mubr.f32.mxu0 %v4702
        %4800 = vmatmul.mubr.f32.gmra.mrb[0].mxu0 %v4701
        %v4801 = vpop.f32.mrb[0].mxu0
        %v4802 = vadd.f32 0.0, %v4801
        %v4803 = vpop.f32.mrb[0].mxu0
        %4804 = vmatprep.mubr.f32.mxu0 %v4704
        %4805 = vmatmul.mubr.f32.gmra.mrb[0].mxu0 %v4703
        %v4806 = vpop.f32.mrb[0].mxu0
        %v4807 = vadd.f32 0.0, %v4806
        %v4808 = vpop.f32.mrb[0].mxu0
        %4809 = vdwg.mxu0
        %v4810 = vmax.f32 %v4680, %v4772
        %v4811 = vmax.f32 %v4681, %v4777
        %v4812 = vmax.f32 %v4682, %v4782
        %v4813 = vmax.f32 %v4683, %v4787
        %v4814 = vmax.f32 %v4684, %v4792
        %v4815 = vmax.f32 %v4685, %v4797
        %v4816 = vmax.f32 %v4686, %v4802
        %v4817 = vmax.f32 %v4687, %v4807
        %s4818 = scalar_lea.vmem %s9, 384
        %v4819 = vld [vmem:[%s4818] sm:$0xff]
        %v4820 = vld [vmem:[%s4818 + $0x8] sm:$0xff]
        %v4821 = vld [vmem:[%s4818 + $0x10] sm:$0xff]
        %v4822 = vld [vmem:[%s4818 + $0x18] sm:$0xff]
        %v4823 = vld [vmem:[%s4818 + $0x20] sm:$0xff]
        %v4824 = vld [vmem:[%s4818 + $0x28] sm:$0xff]
        %v4825 = vld [vmem:[%s4818 + $0x30] sm:$0xff]
        %v4826 = vld [vmem:[%s4818 + $0x38] sm:$0xff]
        %v4827 = vld [vmem:[%s4818 + $0x40] sm:$0xff]
        %v4828 = vld [vmem:[%s4818 + $0x48] sm:$0xff]
        %v4829 = vld [vmem:[%s4818 + $0x50] sm:$0xff]
        %v4830 = vld [vmem:[%s4818 + $0x58] sm:$0xff]
        %v4831 = vld [vmem:[%s4818 + $0x60] sm:$0xff]
        %v4832 = vld [vmem:[%s4818 + $0x68] sm:$0xff]
        %v4833 = vld [vmem:[%s4818 + $0x70] sm:$0xff]
        %v4834 = vld [vmem:[%s4818 + $0x78] sm:$0xff]
        %4835 = vmatprep.subr.mxu0 0.0
        %4836 = vmatpush1.msra.mxu0 %v4405
        %4837 = vmatprep.subr.mxu0 0.0
        %4838 = vmatpush1.msra.mxu0 %v4406
        %4839 = vmatprep.subr.mxu0 0.0
        %4840 = vmatpush1.msra.mxu0 %v4407
        %4841 = vmatprep.subr.mxu0 0.0
        %4842 = vmatpush1.msra.mxu0 %v4408
        %4843 = vmatprep.subr.mxu0 0.0
        %4844 = vmatpush1.msra.mxu0 %v4409
        %4845 = vmatprep.subr.mxu0 0.0
        %4846 = vmatpush1.msra.mxu0 %v4410
        %4847 = vmatprep.subr.mxu0 0.0
        %4848 = vmatpush1.msra.mxu0 %v4411
        %4849 = vmatprep.subr.mxu0 0.0
        %4850 = vmatpush1.msra.mxu0 %v4412
        %4851 = vmatprep.subr.mxu0 0.0
        %4852 = vmatpush1.msra.mxu0 %v4413
        %4853 = vmatprep.subr.mxu0 0.0
        %4854 = vmatpush1.msra.mxu0 %v4414
        %4855 = vmatprep.subr.mxu0 0.0
        %4856 = vmatpush1.msra.mxu0 %v4415
        %4857 = vmatprep.subr.mxu0 0.0
        %4858 = vmatpush1.msra.mxu0 %v4416
        %4859 = vmatprep.subr.mxu0 0.0
        %4860 = vmatpush1.msra.mxu0 %v4417
        %4861 = vmatprep.subr.mxu0 0.0
        %4862 = vmatpush1.msra.mxu0 %v4418
        %4863 = vmatprep.subr.mxu0 0.0
        %4864 = vmatpush1.msra.mxu0 %v4419
        %4865 = vmatprep.subr.mxu0 0.0
        %4866 = vmatpush1.msra.mxu0 %v4420
        %4867 = vmatprep.subr.mxu0 0.0
        %4868 = vmatpush1.msra.mxu0 %v4421
        %4869 = vmatprep.subr.mxu0 0.0
        %4870 = vmatpush1.msra.mxu0 %v4422
        %4871 = vmatprep.subr.mxu0 0.0
        %4872 = vmatpush1.msra.mxu0 %v4423
        %4873 = vmatprep.subr.mxu0 0.0
        %4874 = vmatpush1.msra.mxu0 %v4424
        %4875 = vmatprep.subr.mxu0 0.0
        %4876 = vmatpush1.msra.mxu0 %v4425
        %4877 = vmatprep.subr.mxu0 0.0
        %4878 = vmatpush1.msra.mxu0 %v4426
        %4879 = vmatprep.subr.mxu0 0.0
        %4880 = vmatpush1.msra.mxu0 %v4427
        %4881 = vmatprep.subr.mxu0 0.0
        %4882 = vmatpush1.msra.mxu0 %v4428
        %4883 = vmatprep.subr.mxu0 0.0
        %4884 = vmatpush1.msra.mxu0 %v4429
        %4885 = vmatprep.subr.mxu0 0.0
        %4886 = vmatpush1.msra.mxu0 %v4430
        %4887 = vmatprep.subr.mxu0 0.0
        %4888 = vmatpush1.msra.mxu0 %v4431
        %4889 = vmatprep.subr.mxu0 0.0
        %4890 = vmatpush1.msra.mxu0 %v4432
        %4891 = vmatprep.subr.mxu0 0.0
        %4892 = vmatpush1.msra.mxu0 %v4433
        %4893 = vmatprep.subr.mxu0 0.0
        %4894 = vmatpush1.msra.mxu0 %v4434
        %4895 = vmatprep.subr.mxu0 0.0
        %4896 = vmatpush1.msra.mxu0 %v4435
        %4897 = vmatprep.subr.mxu0 0.0
        %4898 = vmatpush1.msra.mxu0 %v4436
        %4899 = vmatprep.mubr.f32.mxu0 %v4820
        %4900 = vmatmul.mubr.f32.gmra.mrb[0].mxu0 %v4819
        %v4901 = vpop.f32.mrb[0].mxu0
        %v4902 = vadd.f32 0.0, %v4901
        %v4903 = vpop.f32.mrb[0].mxu0
        %4904 = vmatprep.mubr.f32.mxu0 %v4822
        %4905 = vmatmul.mubr.f32.gmra.mrb[0].mxu0 %v4821
        %v4906 = vpop.f32.mrb[0].mxu0
        %v4907 = vadd.f32 0.0, %v4906
        %v4908 = vpop.f32.mrb[0].mxu0
        %4909 = vmatprep.mubr.f32.mxu0 %v4824
        %4910 = vmatmul.mubr.f32.gmra.mrb[0].mxu0 %v4823
        %v4911 = vpop.f32.mrb[0].mxu0
        %v4912 = vadd.f32 0.0, %v4911
        %v4913 = vpop.f32.mrb[0].mxu0
        %4914 = vmatprep.mubr.f32.mxu0 %v4826
        %4915 = vmatmul.mubr.f32.gmra.mrb[0].mxu0 %v4825
        %v4916 = vpop.f32.mrb[0].mxu0
        %v4917 = vadd.f32 0.0, %v4916
        %v4918 = vpop.f32.mrb[0].mxu0
        %4919 = vmatprep.mubr.f32.mxu0 %v4828
        %4920 = vmatmul.mubr.f32.gmra.mrb[0].mxu0 %v4827
        %v4921 = vpop.f32.mrb[0].mxu0
        %v4922 = vadd.f32 0.0, %v4921
        %v4923 = vpop.f32.mrb[0].mxu0
        %4924 = vmatprep.mubr.f32.mxu0 %v4830
        %4925 = vmatmul.mubr.f32.gmra.mrb[0].mxu0 %v4829
        %v4926 = vpop.f32.mrb[0].mxu0
        %v4927 = vadd.f32 0.0, %v4926
        %v4928 = vpop.f32.mrb[0].mxu0
        %4929 = vmatprep.mubr.f32.mxu0 %v4832
        %4930 = vmatmul.mubr.f32.gmra.mrb[0].mxu0 %v4831
        %v4931 = vpop.f32.mrb[0].mxu0
        %v4932 = vadd.f32 0.0, %v4931
        %v4933 = vpop.f32.mrb[0].mxu0
        %4934 = vmatprep.mubr.f32.mxu0 %v4834
        %4935 = vmatmul.mubr.f32.gmra.mrb[0].mxu0 %v4833
        %v4936 = vpop.f32.mrb[0].mxu0
        %v4937 = vadd.f32 0.0, %v4936
        %v4938 = vpop.f32.mrb[0].mxu0
        %4939 = vdwg.mxu0
        %v4940 = vmax.f32 %v4810, %v4902
        %v4941 = vmax.f32 %v4811, %v4907
        %v4942 = vmax.f32 %v4812, %v4912
        %v4943 = vmax.f32 %v4813, %v4917
        %v4944 = vmax.f32 %v4814, %v4922
        %v4945 = vmax.f32 %v4815, %v4927
        %v4946 = vmax.f32 %v4816, %v4932
        %v4947 = vmax.f32 %v4817, %v4937
        %4948 = vst.msk [vmem:[%s410] sm:$0xff] %vm1930, %v4940
        %4949 = vst.msk [vmem:[%s410 + $0x8] sm:$0xff] %vm1930, %v4941
        %4950 = vst.msk [vmem:[%s410 + $0x10] sm:$0xff] %vm1930, %v4942
        %4951 = vst.msk [vmem:[%s410 + $0x18] sm:$0xff] %vm1930, %v4943
        %4952 = vst.msk [vmem:[%s410 + $0x20] sm:$0xff] %vm1930, %v4944
        %4953 = vst.msk [vmem:[%s410 + $0x28] sm:$0xff] %vm1930, %v4945
        %4954 = vst.msk [vmem:[%s410 + $0x30] sm:$0xff] %vm1930, %v4946
        %4955 = vst.msk [vmem:[%s410 + $0x38] sm:$0xff] %vm1930, %v4947
        %4956 = vst.msk [vmem:[#allocation3] sm:$0xf] %vm807, 0
        %4957 = vst.msk [vmem:[#allocation3 + $0x4] sm:$0x1] %vm810, 0
        %4958 = vst.msk [vmem:[#allocation3 + $0x8] sm:$0xf] %vm807, 0
        %4959 = vst.msk [vmem:[#allocation3 + $0xc] sm:$0x1] %vm810, 0
        %4960 = vst.msk [vmem:[#allocation3 + $0x10] sm:$0xf] %vm807, 0
        %4961 = vst.msk [vmem:[#allocation3 + $0x14] sm:$0x1] %vm810, 0
        %4962 = vst.msk [vmem:[#allocation3 + $0x18] sm:$0xf] %vm807, 0
        %4963 = vst.msk [vmem:[#allocation3 + $0x1c] sm:$0x1] %vm810, 0
        %4964 = vst.msk [vmem:[#allocation3 + $0x20] sm:$0xf] %vm807, 0
        %4965 = vst.msk [vmem:[#allocation3 + $0x24] sm:$0x1] %vm810, 0
        %4966 = vst.msk [vmem:[#allocation3 + $0x28] sm:$0xf] %vm807, 0
        %4967 = vst.msk [vmem:[#allocation3 + $0x2c] sm:$0x1] %vm810, 0
        %4968 = vst.msk [vmem:[#allocation3 + $0x30] sm:$0xf] %vm807, 0
        %4969 = vst.msk [vmem:[#allocation3 + $0x34] sm:$0x1] %vm810, 0
        %4970 = vst.msk [vmem:[#allocation3 + $0x38] sm:$0xf] %vm807, 0
        %4971 = vst.msk [vmem:[#allocation3 + $0x3c] sm:$0x1] %vm810, 0
        %4972 = vst.msk [vmem:[#allocation3 + $0x40] sm:$0xf] %vm807, 0
        %4973 = vst.msk [vmem:[#allocation3 + $0x44] sm:$0x1] %vm810, 0
        %4974 = vst.msk [vmem:[#allocation3 + $0x48] sm:$0xf] %vm807, 0
        %4975 = vst.msk [vmem:[#allocation3 + $0x4c] sm:$0x1] %vm810, 0
        %v4976 = vpack.c.bf16 %v4940, %v4940
        %v4977 = vpack.c.bf16 %v4941, %v4941
        %v4978 = vpack.c.bf16 %v4942, %v4942
        %v4979 = vpack.c.bf16 %v4943, %v4943
        %v4980 = vpack.c.bf16 %v4944, %v4944
        %v4981 = vpack.c.bf16 %v4945, %v4945
        %v4982 = vpack.c.bf16 %v4946, %v4946
        %v4983 = vpack.c.bf16 %v4947, %v4947
        %v4992 = vunpack.c.l.b16 %v4976
        %v4993 = vunpack.c.l.b16 %v4977
        %v4994 = vunpack.c.l.b16 %v4978
        %v4995 = vunpack.c.l.b16 %v4979
        %v4996 = vunpack.c.l.b16 %v4980
        %v4997 = vunpack.c.l.b16 %v4981
        %v4998 = vunpack.c.l.b16 %v4982
        %v4999 = vunpack.c.l.b16 %v4983
        %v5000 = vpack.c.b16 %v4992, %v4992
        %v5001 = vpack.c.b16 %v4993, %v4993
        %v5002 = vpack.c.b16 %v4994, %v4994
        %v5003 = vpack.c.b16 %v4995, %v4995
        %v5004 = vpack.c.b16 %v4996, %v4996
        %v5005 = vpack.c.b16 %v4997, %v4997
        %v5006 = vpack.c.b16 %v4998, %v4998
        %v5007 = vpack.c.b16 %v4999, %v4999
        %v5009 = vshrl.u32 %v5000, 16
        %v5011 = vrot.slane %v5009, 7
        %v5012 = vshll.u32 %v5000, 16
        %v5014 = vor.u32 %v5011, %v5012
        %v5015 = vrot.slane %v5011, 4
        %v5017 = vshrl.u32 %v5001, 16
        %v5019 = vrot.slane %v5017, 7
        %v5020 = vshll.u32 %v5001, 16
        %v5022 = vor.u32 %v5019, %v5020
        %v5023 = vrot.slane %v5019, 4
        %v5025 = vshrl.u32 %v5002, 16
        %v5027 = vrot.slane %v5025, 7
        %v5028 = vshll.u32 %v5002, 16
        %v5030 = vor.u32 %v5027, %v5028
        %v5031 = vrot.slane %v5027, 4
        %v5033 = vshrl.u32 %v5003, 16
        %v5035 = vrot.slane %v5033, 7
        %v5036 = vshll.u32 %v5003, 16
        %v5038 = vor.u32 %v5035, %v5036
        %v5039 = vrot.slane %v5035, 4
        %v5041 = vshrl.u32 %v5004, 16
        %v5043 = vrot.slane %v5041, 7
        %v5044 = vshll.u32 %v5004, 16
        %v5046 = vor.u32 %v5043, %v5044
        %v5047 = vrot.slane %v5043, 4
        %v5049 = vshrl.u32 %v5005, 16
        %v5051 = vrot.slane %v5049, 7
        %v5052 = vshll.u32 %v5005, 16
        %v5054 = vor.u32 %v5051, %v5052
        %v5055 = vrot.slane %v5051, 4
        %v5057 = vshrl.u32 %v5006, 16
        %v5059 = vrot.slane %v5057, 7
        %v5060 = vshll.u32 %v5006, 16
        %v5062 = vor.u32 %v5059, %v5060
        %v5063 = vrot.slane %v5059, 4
        %v5065 = vshrl.u32 %v5007, 16
        %v5067 = vrot.slane %v5065, 7
        %v5068 = vshll.u32 %v5007, 16
        %v5070 = vor.u32 %v5067, %v5068
        %v5071 = vrot.slane %v5067, 4
        %s5088 = scalar_lea.vmem [#allocation3], 8
        %v5089 = vld [vmem:[%s5088] sm:$0xf]
        %v5090 = vsel %vm1285, %v5014, %v5089
        %5091 = vst [vmem:[%s5088] sm:$0xf] %v5090
        %v5092 = vld [vmem:[%s5088 + $0x4] sm:$0x1]
        %v5093 = vsel %vm1291, %v5015, %v5092
        %5094 = vst [vmem:[%s5088 + $0x4] sm:$0x1] %v5093
        %v5095 = vld [vmem:[%s5088 + $0x8] sm:$0xf]
        %v5096 = vsel %vm1285, %v5022, %v5095
        %5097 = vst [vmem:[%s5088 + $0x8] sm:$0xf] %v5096
        %v5098 = vld [vmem:[%s5088 + $0xc] sm:$0x1]
        %v5099 = vsel %vm1291, %v5023, %v5098
        %5100 = vst [vmem:[%s5088 + $0xc] sm:$0x1] %v5099
        %v5101 = vld [vmem:[%s5088 + $0x10] sm:$0xf]
        %v5102 = vsel %vm1285, %v5030, %v5101
        %5103 = vst [vmem:[%s5088 + $0x10] sm:$0xf] %v5102
        %v5104 = vld [vmem:[%s5088 + $0x14] sm:$0x1]
        %v5105 = vsel %vm1291, %v5031, %v5104
        %5106 = vst [vmem:[%s5088 + $0x14] sm:$0x1] %v5105
        %v5107 = vld [vmem:[%s5088 + $0x18] sm:$0xf]
        %v5108 = vsel %vm1285, %v5038, %v5107
        %5109 = vst [vmem:[%s5088 + $0x18] sm:$0xf] %v5108
        %v5110 = vld [vmem:[%s5088 + $0x1c] sm:$0x1]
        %v5111 = vsel %vm1291, %v5039, %v5110
        %5112 = vst [vmem:[%s5088 + $0x1c] sm:$0x1] %v5111
        %v5113 = vld [vmem:[%s5088 + $0x20] sm:$0xf]
        %v5114 = vsel %vm1285, %v5046, %v5113
        %5115 = vst [vmem:[%s5088 + $0x20] sm:$0xf] %v5114
        %v5116 = vld [vmem:[%s5088 + $0x24] sm:$0x1]
        %v5117 = vsel %vm1291, %v5047, %v5116
        %5118 = vst [vmem:[%s5088 + $0x24] sm:$0x1] %v5117
        %v5119 = vld [vmem:[%s5088 + $0x28] sm:$0xf]
        %v5120 = vsel %vm1285, %v5054, %v5119
        %5121 = vst [vmem:[%s5088 + $0x28] sm:$0xf] %v5120
        %v5122 = vld [vmem:[%s5088 + $0x2c] sm:$0x1]
        %v5123 = vsel %vm1291, %v5055, %v5122
        %5124 = vst [vmem:[%s5088 + $0x2c] sm:$0x1] %v5123
        %v5125 = vld [vmem:[%s5088 + $0x30] sm:$0xf]
        %v5126 = vsel %vm1285, %v5062, %v5125
        %5127 = vst [vmem:[%s5088 + $0x30] sm:$0xf] %v5126
        %v5128 = vld [vmem:[%s5088 + $0x34] sm:$0x1]
        %v5129 = vsel %vm1291, %v5063, %v5128
        %5130 = vst [vmem:[%s5088 + $0x34] sm:$0x1] %v5129
        %v5131 = vld [vmem:[%s5088 + $0x38] sm:$0xf]
        %v5132 = vsel %vm1285, %v5070, %v5131
        %5133 = vst [vmem:[%s5088 + $0x38] sm:$0xf] %v5132
        %v5134 = vld [vmem:[%s5088 + $0x3c] sm:$0x1]
        %v5135 = vsel %vm1291, %v5071, %v5134
        %5136 = vst [vmem:[%s5088 + $0x3c] sm:$0x1] %v5135
        %v5137 = vld [vmem:[#allocation3] sm:$0xf]
        %v5138 = vld [vmem:[#allocation3 + $0x4] sm:$0x1]
        %v5139 = vld [vmem:[#allocation3 + $0x8] sm:$0xf]
        %v5140 = vld [vmem:[#allocation3 + $0xc] sm:$0x1]
        %v5141 = vld [vmem:[#allocation3 + $0x10] sm:$0xf]
        %v5142 = vld [vmem:[#allocation3 + $0x14] sm:$0x1]
        %v5143 = vld [vmem:[#allocation3 + $0x18] sm:$0xf]
        %v5144 = vld [vmem:[#allocation3 + $0x1c] sm:$0x1]
        %v5145 = vld [vmem:[#allocation3 + $0x20] sm:$0xf]
        %v5146 = vld [vmem:[#allocation3 + $0x24] sm:$0x1]
        %v5147 = vld [vmem:[#allocation3 + $0x28] sm:$0xf]
        %v5148 = vld [vmem:[#allocation3 + $0x2c] sm:$0x1]
        %v5149 = vld [vmem:[#allocation3 + $0x30] sm:$0xf]
        %v5150 = vld [vmem:[#allocation3 + $0x34] sm:$0x1]
        %v5151 = vld [vmem:[#allocation3 + $0x38] sm:$0xf]
        %v5152 = vld [vmem:[#allocation3 + $0x3c] sm:$0x1]
        %v5153 = vld [vmem:[#allocation3 + $0x40] sm:$0xf]
        %v5154 = vld [vmem:[#allocation3 + $0x44] sm:$0x1]
        %v5155 = vld [vmem:[#allocation3 + $0x48] sm:$0xf]
        %v5156 = vld [vmem:[#allocation3 + $0x4c] sm:$0x1]
        %v5157 = vld [vmem:[%s5] sm:$0xf]
        %v5158 = vld [vmem:[%s5 + $0x4] sm:$0xf]
        %v5159 = vld [vmem:[%s5 + $0x8] sm:$0xf]
        %v5160 = vld [vmem:[%s5 + $0xc] sm:$0xf]
        %v5161 = vld [vmem:[%s5 + $0x10] sm:$0xf]
        %v5162 = vld [vmem:[%s5 + $0x14] sm:$0xf]
        %v5163 = vld [vmem:[%s5 + $0x18] sm:$0xf]
        %v5164 = vld [vmem:[%s5 + $0x1c] sm:$0xf]
        %v5166 = vshrl.u32 %v5137, 16
        %v5168 = vrot.slane %v5166, 4
        %v5169 = vshll.u32 %v5137, 16
        %v5171 = vrot.slane %v5169, 5
        %v5172 = vor.u32 %v5168, %v5171
        %v5173 = vrot.slane %v5172, 4
        %v5175 = vshll.u32 %v5138, 16
        %v5177 = vrot.slane %v5175, 5
        %v5178 = vsel %vm1464, %v5173, %v5177
        %v5180 = vshrl.u32 %v5139, 16
        %v5182 = vrot.slane %v5180, 4
        %v5183 = vshll.u32 %v5139, 16
        %v5185 = vrot.slane %v5183, 5
        %v5186 = vor.u32 %v5182, %v5185
        %v5187 = vrot.slane %v5186, 4
        %v5189 = vshll.u32 %v5140, 16
        %v5191 = vrot.slane %v5189, 5
        %v5192 = vsel %vm1464, %v5187, %v5191
        %v5194 = vshrl.u32 %v5141, 16
        %v5196 = vrot.slane %v5194, 4
        %v5197 = vshll.u32 %v5141, 16
        %v5199 = vrot.slane %v5197, 5
        %v5200 = vor.u32 %v5196, %v5199
        %v5201 = vrot.slane %v5200, 4
        %v5203 = vshll.u32 %v5142, 16
        %v5205 = vrot.slane %v5203, 5
        %v5206 = vsel %vm1464, %v5201, %v5205
        %v5208 = vshrl.u32 %v5143, 16
        %v5210 = vrot.slane %v5208, 4
        %v5211 = vshll.u32 %v5143, 16
        %v5213 = vrot.slane %v5211, 5
        %v5214 = vor.u32 %v5210, %v5213
        %v5215 = vrot.slane %v5214, 4
        %v5217 = vshll.u32 %v5144, 16
        %v5219 = vrot.slane %v5217, 5
        %v5220 = vsel %vm1464, %v5215, %v5219
        %v5222 = vshrl.u32 %v5145, 16
        %v5224 = vrot.slane %v5222, 4
        %v5225 = vshll.u32 %v5145, 16
        %v5227 = vrot.slane %v5225, 5
        %v5228 = vor.u32 %v5224, %v5227
        %v5229 = vrot.slane %v5228, 4
        %v5231 = vshll.u32 %v5146, 16
        %v5233 = vrot.slane %v5231, 5
        %v5234 = vsel %vm1464, %v5229, %v5233
        %v5236 = vshrl.u32 %v5147, 16
        %v5238 = vrot.slane %v5236, 4
        %v5239 = vshll.u32 %v5147, 16
        %v5241 = vrot.slane %v5239, 5
        %v5242 = vor.u32 %v5238, %v5241
        %v5243 = vrot.slane %v5242, 4
        %v5245 = vshll.u32 %v5148, 16
        %v5247 = vrot.slane %v5245, 5
        %v5248 = vsel %vm1464, %v5243, %v5247
        %v5250 = vshrl.u32 %v5149, 16
        %v5252 = vrot.slane %v5250, 4
        %v5253 = vshll.u32 %v5149, 16
        %v5255 = vrot.slane %v5253, 5
        %v5256 = vor.u32 %v5252, %v5255
        %v5257 = vrot.slane %v5256, 4
        %v5259 = vshll.u32 %v5150, 16
        %v5261 = vrot.slane %v5259, 5
        %v5262 = vsel %vm1464, %v5257, %v5261
        %v5264 = vshrl.u32 %v5151, 16
        %v5266 = vrot.slane %v5264, 4
        %v5267 = vshll.u32 %v5151, 16
        %v5269 = vrot.slane %v5267, 5
        %v5270 = vor.u32 %v5266, %v5269
        %v5271 = vrot.slane %v5270, 4
        %v5273 = vshll.u32 %v5152, 16
        %v5275 = vrot.slane %v5273, 5
        %v5276 = vsel %vm1464, %v5271, %v5275
        %s5277 = scalar_lea.vmem %s5, 32
        %v5278 = vld [vmem:[%s5277] sm:$0xf]
        %v5279 = vld [vmem:[%s5277 + $0x4] sm:$0xf]
        %v5280 = vld [vmem:[%s5277 + $0x8] sm:$0xf]
        %v5281 = vld [vmem:[%s5277 + $0xc] sm:$0xf]
        %v5282 = vld [vmem:[%s5277 + $0x10] sm:$0xf]
        %v5283 = vld [vmem:[%s5277 + $0x14] sm:$0xf]
        %v5284 = vld [vmem:[%s5277 + $0x18] sm:$0xf]
        %v5285 = vld [vmem:[%s5277 + $0x1c] sm:$0xf]
        %v5286 = vunpack.c.l.b16 %v5178
        %v5287 = vunpack.c.l.b16 %v5192
        %v5288 = vunpack.c.l.b16 %v5206
        %v5289 = vunpack.c.l.b16 %v5220
        %v5290 = vunpack.c.l.b16 %v5234
        %v5291 = vunpack.c.l.b16 %v5248
        %v5292 = vunpack.c.l.b16 %v5262
        %v5293 = vunpack.c.l.b16 %v5276
        %v5294 = vpack.c.b16 %v5287, %v5286
        %v5295 = vpack.c.b16 %v5289, %v5288
        %v5296 = vpack.c.b16 %v5291, %v5290
        %v5297 = vpack.c.b16 %v5293, %v5292
        %v5306 = vunpack.c.l.b16 %v5278
        %v5307 = vunpack.c.l.b16 %v5279
        %v5308 = vunpack.c.l.b16 %v5280
        %v5309 = vunpack.c.l.b16 %v5281
        %v5310 = vunpack.c.l.b16 %v5282
        %v5311 = vunpack.c.l.b16 %v5283
        %v5312 = vunpack.c.l.b16 %v5284
        %v5313 = vunpack.c.l.b16 %v5285
        %v5314 = vpack.c.b16 %v5307, %v5306
        %v5315 = vpack.c.b16 %v5309, %v5308
        %v5316 = vpack.c.b16 %v5311, %v5310
        %v5317 = vpack.c.b16 %v5313, %v5312
        %v5323 = vsel %vm1930, %v5294, 0
        %v5326 = vsel %vm1930, %v5295, 0
        %v5329 = vsel %vm1930, %v5296, 0
        %v5332 = vsel %vm1930, %v5297, 0
        %5334 = vmatprep.subr.bf16.mxu0 0
        %5335 = vmatpush1.bf16.msra.mxu0 %v5314
        %5336 = vmatprep.subr.bf16.mxu0 0
        %5337 = vmatpush1.bf16.msra.mxu0 %v5315
        %5338 = vmatprep.subr.bf16.mxu0 0
        %5339 = vmatpush1.bf16.msra.mxu0 %v5316
        %5340 = vmatprep.subr.bf16.mxu0 0
        %5341 = vmatpush1.bf16.msra.mxu0 %v5317
        %5342 = vmatprep.subr.bf16.mxu0 0
        %5343 = vmatpush1.bf16.msra.mxu0 0
        %5344 = vmatprep.subr.bf16.mxu0 0
        %5345 = vmatpush1.bf16.msra.mxu0 0
        %5346 = vmatprep.subr.bf16.mxu0 0
        %5347 = vmatpush1.bf16.msra.mxu0 0
        %5348 = vmatprep.subr.bf16.mxu0 0
        %5349 = vmatpush1.bf16.msra.mxu0 0
        %5350 = vmatprep.subr.bf16.mxu0 0
        %5351 = vmatpush1.bf16.msra.mxu0 0
        %5352 = vmatprep.subr.bf16.mxu0 0
        %5353 = vmatpush1.bf16.msra.mxu0 0
        %5354 = vmatprep.subr.bf16.mxu0 0
        %5355 = vmatpush1.bf16.msra.mxu0 0
        %5356 = vmatprep.subr.bf16.mxu0 0
        %5357 = vmatpush1.bf16.msra.mxu0 0
        %5358 = vmatprep.subr.bf16.mxu0 0
        %5359 = vmatpush1.bf16.msra.mxu0 0
        %5360 = vmatprep.subr.bf16.mxu0 0
        %5361 = vmatpush1.bf16.msra.mxu0 0
        %5362 = vmatprep.subr.bf16.mxu0 0
        %5363 = vmatpush1.bf16.msra.mxu0 0
        %5364 = vmatprep.subr.bf16.mxu0 0
        %5365 = vmatpush1.bf16.msra.mxu0 0
        %5366 = vmatprep.mubr.bf16.mxu0 0
        %5367 = vmatmul.mubr.bf16.gmra.mrb[0].mxu0 %v5323
        %v5368 = vpop.f32.mrb[0].mxu0
        %v5369 = vadd.f32 0.0, %v5368
        %v5370 = vpop.f32.mrb[0].mxu0
        %v5371 = vpop.f32.mrb[0].mxu0
        %v5372 = vadd.f32 0.0, %v5371
        %v5373 = vpop.f32.mrb[0].mxu0
        %5374 = vmatprep.mubr.bf16.mxu0 0
        %5375 = vmatmul.mubr.bf16.gmra.mrb[0].mxu0 %v5326
        %v5376 = vpop.f32.mrb[0].mxu0
        %v5377 = vadd.f32 0.0, %v5376
        %v5378 = vpop.f32.mrb[0].mxu0
        %v5379 = vpop.f32.mrb[0].mxu0
        %v5380 = vadd.f32 0.0, %v5379
        %v5381 = vpop.f32.mrb[0].mxu0
        %5382 = vmatprep.mubr.bf16.mxu0 0
        %5383 = vmatmul.mubr.bf16.gmra.mrb[0].mxu0 %v5329
        %v5384 = vpop.f32.mrb[0].mxu0
        %v5385 = vadd.f32 0.0, %v5384
        %v5386 = vpop.f32.mrb[0].mxu0
        %v5387 = vpop.f32.mrb[0].mxu0
        %v5388 = vadd.f32 0.0, %v5387
        %v5389 = vpop.f32.mrb[0].mxu0
        %5390 = vmatprep.mubr.bf16.mxu0 0
        %5391 = vmatmul.mubr.bf16.gmra.mrb[0].mxu0 %v5332
        %v5392 = vpop.f32.mrb[0].mxu0
        %v5393 = vadd.f32 0.0, %v5392
        %v5394 = vpop.f32.mrb[0].mxu0
        %v5395 = vpop.f32.mrb[0].mxu0
        %v5396 = vadd.f32 0.0, %v5395
        %v5397 = vpop.f32.mrb[0].mxu0
        %5398 = vdwg.mxu0
        %v5407 = vunpack.c.l.b16 %v5137
        %v5408 = vunpack.c.l.b16 %v5139
        %v5409 = vunpack.c.l.b16 %v5141
        %v5410 = vunpack.c.l.b16 %v5143
        %v5411 = vunpack.c.l.b16 %v5145
        %v5412 = vunpack.c.l.b16 %v5147
        %v5413 = vunpack.c.l.b16 %v5149
        %v5414 = vunpack.c.l.b16 %v5151
        %v5415 = vpack.c.b16 %v5408, %v5407
        %v5416 = vpack.c.b16 %v5410, %v5409
        %v5417 = vpack.c.b16 %v5412, %v5411
        %v5418 = vpack.c.b16 %v5414, %v5413
        %v5427 = vunpack.c.l.b16 %v5157
        %v5428 = vunpack.c.l.b16 %v5158
        %v5429 = vunpack.c.l.b16 %v5159
        %v5430 = vunpack.c.l.b16 %v5160
        %v5431 = vunpack.c.l.b16 %v5161
        %v5432 = vunpack.c.l.b16 %v5162
        %v5433 = vunpack.c.l.b16 %v5163
        %v5434 = vunpack.c.l.b16 %v5164
        %v5435 = vpack.c.b16 %v5428, %v5427
        %v5436 = vpack.c.b16 %v5430, %v5429
        %v5437 = vpack.c.b16 %v5432, %v5431
        %v5438 = vpack.c.b16 %v5434, %v5433
        %v5444 = vsel %vm1930, %v5415, 0
        %v5447 = vsel %vm1930, %v5416, 0
        %v5450 = vsel %vm1930, %v5417, 0
        %v5453 = vsel %vm1930, %v5418, 0
        %5455 = vmatprep.subr.bf16.mxu0 0
        %5456 = vmatpush1.bf16.msra.mxu0 %v5435
        %5457 = vmatprep.subr.bf16.mxu0 0
        %5458 = vmatpush1.bf16.msra.mxu0 %v5436
        %5459 = vmatprep.subr.bf16.mxu0 0
        %5460 = vmatpush1.bf16.msra.mxu0 %v5437
        %5461 = vmatprep.subr.bf16.mxu0 0
        %5462 = vmatpush1.bf16.msra.mxu0 %v5438
        %5463 = vmatprep.subr.bf16.mxu0 0
        %5464 = vmatpush1.bf16.msra.mxu0 0
        %5465 = vmatprep.subr.bf16.mxu0 0
        %5466 = vmatpush1.bf16.msra.mxu0 0
        %5467 = vmatprep.subr.bf16.mxu0 0
        %5468 = vmatpush1.bf16.msra.mxu0 0
        %5469 = vmatprep.subr.bf16.mxu0 0
        %5470 = vmatpush1.bf16.msra.mxu0 0
        %5471 = vmatprep.subr.bf16.mxu0 0
        %5472 = vmatpush1.bf16.msra.mxu0 0
        %5473 = vmatprep.subr.bf16.mxu0 0
        %5474 = vmatpush1.bf16.msra.mxu0 0
        %5475 = vmatprep.subr.bf16.mxu0 0
        %5476 = vmatpush1.bf16.msra.mxu0 0
        %5477 = vmatprep.subr.bf16.mxu0 0
        %5478 = vmatpush1.bf16.msra.mxu0 0
        %5479 = vmatprep.subr.bf16.mxu0 0
        %5480 = vmatpush1.bf16.msra.mxu0 0
        %5481 = vmatprep.subr.bf16.mxu0 0
        %5482 = vmatpush1.bf16.msra.mxu0 0
        %5483 = vmatprep.subr.bf16.mxu0 0
        %5484 = vmatpush1.bf16.msra.mxu0 0
        %5485 = vmatprep.subr.bf16.mxu0 0
        %5486 = vmatpush1.bf16.msra.mxu0 0
        %5487 = vmatprep.mubr.bf16.mxu0 0
        %5488 = vmatmul.mubr.bf16.gmra.mrb[0].mxu0 %v5444
        %v5489 = vpop.f32.mrb[0].mxu0
        %v5490 = vadd.f32 %v5369, %v5489
        %v5491 = vpop.f32.mrb[0].mxu0
        %v5492 = vpop.f32.mrb[0].mxu0
        %v5493 = vadd.f32 %v5372, %v5492
        %v5494 = vpop.f32.mrb[0].mxu0
        %5495 = vmatprep.mubr.bf16.mxu0 0
        %5496 = vmatmul.mubr.bf16.gmra.mrb[0].mxu0 %v5447
        %v5497 = vpop.f32.mrb[0].mxu0
        %v5498 = vadd.f32 %v5377, %v5497
        %v5499 = vpop.f32.mrb[0].mxu0
        %v5500 = vpop.f32.mrb[0].mxu0
        %v5501 = vadd.f32 %v5380, %v5500
        %v5502 = vpop.f32.mrb[0].mxu0
        %5503 = vmatprep.mubr.bf16.mxu0 0
        %5504 = vmatmul.mubr.bf16.gmra.mrb[0].mxu0 %v5450
        %v5505 = vpop.f32.mrb[0].mxu0
        %v5506 = vadd.f32 %v5385, %v5505
        %v5507 = vpop.f32.mrb[0].mxu0
        %v5508 = vpop.f32.mrb[0].mxu0
        %v5509 = vadd.f32 %v5388, %v5508
        %v5510 = vpop.f32.mrb[0].mxu0
        %5511 = vmatprep.mubr.bf16.mxu0 0
        %5512 = vmatmul.mubr.bf16.gmra.mrb[0].mxu0 %v5453
        %v5513 = vpop.f32.mrb[0].mxu0
        %v5514 = vadd.f32 %v5393, %v5513
        %v5515 = vpop.f32.mrb[0].mxu0
        %v5516 = vpop.f32.mrb[0].mxu0
        %v5517 = vadd.f32 %v5396, %v5516
        %v5518 = vpop.f32.mrb[0].mxu0
        %5519 = vdwg.mxu0
        %v5528 = vrot.slane %v5137, 5
        %v5529 = vrot.slane %v5528, 4
        %v5530 = vrot.slane %v5138, 5
        %v5531 = vsel %vm2471, %v5529, %v5530
        %v5532 = vrot.slane %v5139, 5
        %v5533 = vrot.slane %v5532, 4
        %v5534 = vrot.slane %v5140, 5
        %v5535 = vsel %vm2471, %v5533, %v5534
        %v5536 = vrot.slane %v5141, 5
        %v5537 = vrot.slane %v5536, 4
        %v5538 = vrot.slane %v5142, 5
        %v5539 = vsel %vm2471, %v5537, %v5538
        %v5540 = vrot.slane %v5143, 5
        %v5541 = vrot.slane %v5540, 4
        %v5542 = vrot.slane %v5144, 5
        %v5543 = vsel %vm2471, %v5541, %v5542
        %v5544 = vrot.slane %v5145, 5
        %v5545 = vrot.slane %v5544, 4
        %v5546 = vrot.slane %v5146, 5
        %v5547 = vsel %vm2471, %v5545, %v5546
        %v5548 = vrot.slane %v5147, 5
        %v5549 = vrot.slane %v5548, 4
        %v5550 = vrot.slane %v5148, 5
        %v5551 = vsel %vm2471, %v5549, %v5550
        %v5552 = vrot.slane %v5149, 5
        %v5553 = vrot.slane %v5552, 4
        %v5554 = vrot.slane %v5150, 5
        %v5555 = vsel %vm2471, %v5553, %v5554
        %v5556 = vrot.slane %v5151, 5
        %v5557 = vrot.slane %v5556, 4
        %v5558 = vrot.slane %v5152, 5
        %v5559 = vsel %vm2471, %v5557, %v5558
        %s5560 = scalar_lea.vmem %s5, 64
        %v5561 = vld [vmem:[%s5560] sm:$0xf]
        %v5562 = vld [vmem:[%s5560 + $0x4] sm:$0xf]
        %v5563 = vld [vmem:[%s5560 + $0x8] sm:$0xf]
        %v5564 = vld [vmem:[%s5560 + $0xc] sm:$0xf]
        %v5565 = vld [vmem:[%s5560 + $0x10] sm:$0xf]
        %v5566 = vld [vmem:[%s5560 + $0x14] sm:$0xf]
        %v5567 = vld [vmem:[%s5560 + $0x18] sm:$0xf]
        %v5568 = vld [vmem:[%s5560 + $0x1c] sm:$0xf]
        %v5569 = vunpack.c.l.b16 %v5531
        %v5570 = vunpack.c.l.b16 %v5535
        %v5571 = vunpack.c.l.b16 %v5539
        %v5572 = vunpack.c.l.b16 %v5543
        %v5573 = vunpack.c.l.b16 %v5547
        %v5574 = vunpack.c.l.b16 %v5551
        %v5575 = vunpack.c.l.b16 %v5555
        %v5576 = vunpack.c.l.b16 %v5559
        %v5577 = vpack.c.b16 %v5570, %v5569
        %v5578 = vpack.c.b16 %v5572, %v5571
        %v5579 = vpack.c.b16 %v5574, %v5573
        %v5580 = vpack.c.b16 %v5576, %v5575
        %v5589 = vunpack.c.l.b16 %v5561
        %v5590 = vunpack.c.l.b16 %v5562
        %v5591 = vunpack.c.l.b16 %v5563
        %v5592 = vunpack.c.l.b16 %v5564
        %v5593 = vunpack.c.l.b16 %v5565
        %v5594 = vunpack.c.l.b16 %v5566
        %v5595 = vunpack.c.l.b16 %v5567
        %v5596 = vunpack.c.l.b16 %v5568
        %v5597 = vpack.c.b16 %v5590, %v5589
        %v5598 = vpack.c.b16 %v5592, %v5591
        %v5599 = vpack.c.b16 %v5594, %v5593
        %v5600 = vpack.c.b16 %v5596, %v5595
        %v5606 = vsel %vm1930, %v5577, 0
        %v5609 = vsel %vm1930, %v5578, 0
        %v5612 = vsel %vm1930, %v5579, 0
        %v5615 = vsel %vm1930, %v5580, 0
        %5617 = vmatprep.subr.bf16.mxu0 0
        %5618 = vmatpush1.bf16.msra.mxu0 %v5597
        %5619 = vmatprep.subr.bf16.mxu0 0
        %5620 = vmatpush1.bf16.msra.mxu0 %v5598
        %5621 = vmatprep.subr.bf16.mxu0 0
        %5622 = vmatpush1.bf16.msra.mxu0 %v5599
        %5623 = vmatprep.subr.bf16.mxu0 0
        %5624 = vmatpush1.bf16.msra.mxu0 %v5600
        %5625 = vmatprep.subr.bf16.mxu0 0
        %5626 = vmatpush1.bf16.msra.mxu0 0
        %5627 = vmatprep.subr.bf16.mxu0 0
        %5628 = vmatpush1.bf16.msra.mxu0 0
        %5629 = vmatprep.subr.bf16.mxu0 0
        %5630 = vmatpush1.bf16.msra.mxu0 0
        %5631 = vmatprep.subr.bf16.mxu0 0
        %5632 = vmatpush1.bf16.msra.mxu0 0
        %5633 = vmatprep.subr.bf16.mxu0 0
        %5634 = vmatpush1.bf16.msra.mxu0 0
        %5635 = vmatprep.subr.bf16.mxu0 0
        %5636 = vmatpush1.bf16.msra.mxu0 0
        %5637 = vmatprep.subr.bf16.mxu0 0
        %5638 = vmatpush1.bf16.msra.mxu0 0
        %5639 = vmatprep.subr.bf16.mxu0 0
        %5640 = vmatpush1.bf16.msra.mxu0 0
        %5641 = vmatprep.subr.bf16.mxu0 0
        %5642 = vmatpush1.bf16.msra.mxu0 0
        %5643 = vmatprep.subr.bf16.mxu0 0
        %5644 = vmatpush1.bf16.msra.mxu0 0
        %5645 = vmatprep.subr.bf16.mxu0 0
        %5646 = vmatpush1.bf16.msra.mxu0 0
        %5647 = vmatprep.subr.bf16.mxu0 0
        %5648 = vmatpush1.bf16.msra.mxu0 0
        %5649 = vmatprep.mubr.bf16.mxu0 0
        %5650 = vmatmul.mubr.bf16.gmra.mrb[0].mxu0 %v5606
        %v5651 = vpop.f32.mrb[0].mxu0
        %v5652 = vadd.f32 0.0, %v5651
        %v5653 = vpop.f32.mrb[0].mxu0
        %v5654 = vpop.f32.mrb[0].mxu0
        %v5655 = vadd.f32 0.0, %v5654
        %v5656 = vpop.f32.mrb[0].mxu0
        %5657 = vmatprep.mubr.bf16.mxu0 0
        %5658 = vmatmul.mubr.bf16.gmra.mrb[0].mxu0 %v5609
        %v5659 = vpop.f32.mrb[0].mxu0
        %v5660 = vadd.f32 0.0, %v5659
        %v5661 = vpop.f32.mrb[0].mxu0
        %v5662 = vpop.f32.mrb[0].mxu0
        %v5663 = vadd.f32 0.0, %v5662
        %v5664 = vpop.f32.mrb[0].mxu0
        %5665 = vmatprep.mubr.bf16.mxu0 0
        %5666 = vmatmul.mubr.bf16.gmra.mrb[0].mxu0 %v5612
        %v5667 = vpop.f32.mrb[0].mxu0
        %v5668 = vadd.f32 0.0, %v5667
        %v5669 = vpop.f32.mrb[0].mxu0
        %v5670 = vpop.f32.mrb[0].mxu0
        %v5671 = vadd.f32 0.0, %v5670
        %v5672 = vpop.f32.mrb[0].mxu0
        %5673 = vmatprep.mubr.bf16.mxu0 0
        %5674 = vmatmul.mubr.bf16.gmra.mrb[0].mxu0 %v5615
        %v5675 = vpop.f32.mrb[0].mxu0
        %v5676 = vadd.f32 0.0, %v5675
        %v5677 = vpop.f32.mrb[0].mxu0
        %v5678 = vpop.f32.mrb[0].mxu0
        %v5679 = vadd.f32 0.0, %v5678
        %v5680 = vpop.f32.mrb[0].mxu0
        %5681 = vdwg.mxu0
        %v5682 = vadd.f32 %v5490, %v5652
        %v5683 = vadd.f32 %v5493, %v5655
        %v5684 = vadd.f32 %v5498, %v5660
        %v5685 = vadd.f32 %v5501, %v5663
        %v5686 = vadd.f32 %v5506, %v5668
        %v5687 = vadd.f32 %v5509, %v5671
        %v5688 = vadd.f32 %v5514, %v5676
        %v5689 = vadd.f32 %v5517, %v5679
        %s5690 = scalar_lea.vmem %s5, 96
        %v5691 = vld [vmem:[%s5690] sm:$0xf]
        %v5692 = vld [vmem:[%s5690 + $0x4] sm:$0xf]
        %v5693 = vld [vmem:[%s5690 + $0x8] sm:$0xf]
        %v5694 = vld [vmem:[%s5690 + $0xc] sm:$0xf]
        %v5695 = vld [vmem:[%s5690 + $0x10] sm:$0xf]
        %v5696 = vld [vmem:[%s5690 + $0x14] sm:$0xf]
        %v5697 = vld [vmem:[%s5690 + $0x18] sm:$0xf]
        %v5698 = vld [vmem:[%s5690 + $0x1c] sm:$0xf]
        %v5700 = vunpack.c.l.b16 %v5153
        %v5701 = vpack.c.b16 %v5409, %v5408
        %v5702 = vpack.c.b16 %v5411, %v5410
        %v5703 = vpack.c.b16 %v5413, %v5412
        %v5704 = vpack.c.b16 %v5700, %v5414
        %v5713 = vunpack.c.l.b16 %v5691
        %v5714 = vunpack.c.l.b16 %v5692
        %v5715 = vunpack.c.l.b16 %v5693
        %v5716 = vunpack.c.l.b16 %v5694
        %v5717 = vunpack.c.l.b16 %v5695
        %v5718 = vunpack.c.l.b16 %v5696
        %v5719 = vunpack.c.l.b16 %v5697
        %v5720 = vunpack.c.l.b16 %v5698
        %v5721 = vpack.c.b16 %v5714, %v5713
        %v5722 = vpack.c.b16 %v5716, %v5715
        %v5723 = vpack.c.b16 %v5718, %v5717
        %v5724 = vpack.c.b16 %v5720, %v5719
        %v5730 = vsel %vm1930, %v5701, 0
        %v5733 = vsel %vm1930, %v5702, 0
        %v5736 = vsel %vm1930, %v5703, 0
        %v5739 = vsel %vm1930, %v5704, 0
        %5741 = vmatprep.subr.bf16.mxu0 0
        %5742 = vmatpush1.bf16.msra.mxu0 %v5721
        %5743 = vmatprep.subr.bf16.mxu0 0
        %5744 = vmatpush1.bf16.msra.mxu0 %v5722
        %5745 = vmatprep.subr.bf16.mxu0 0
        %5746 = vmatpush1.bf16.msra.mxu0 %v5723
        %5747 = vmatprep.subr.bf16.mxu0 0
        %5748 = vmatpush1.bf16.msra.mxu0 %v5724
        %5749 = vmatprep.subr.bf16.mxu0 0
        %5750 = vmatpush1.bf16.msra.mxu0 0
        %5751 = vmatprep.subr.bf16.mxu0 0
        %5752 = vmatpush1.bf16.msra.mxu0 0
        %5753 = vmatprep.subr.bf16.mxu0 0
        %5754 = vmatpush1.bf16.msra.mxu0 0
        %5755 = vmatprep.subr.bf16.mxu0 0
        %5756 = vmatpush1.bf16.msra.mxu0 0
        %5757 = vmatprep.subr.bf16.mxu0 0
        %5758 = vmatpush1.bf16.msra.mxu0 0
        %5759 = vmatprep.subr.bf16.mxu0 0
        %5760 = vmatpush1.bf16.msra.mxu0 0
        %5761 = vmatprep.subr.bf16.mxu0 0
        %5762 = vmatpush1.bf16.msra.mxu0 0
        %5763 = vmatprep.subr.bf16.mxu0 0
        %5764 = vmatpush1.bf16.msra.mxu0 0
        %5765 = vmatprep.subr.bf16.mxu0 0
        %5766 = vmatpush1.bf16.msra.mxu0 0
        %5767 = vmatprep.subr.bf16.mxu0 0
        %5768 = vmatpush1.bf16.msra.mxu0 0
        %5769 = vmatprep.subr.bf16.mxu0 0
        %5770 = vmatpush1.bf16.msra.mxu0 0
        %5771 = vmatprep.subr.bf16.mxu0 0
        %5772 = vmatpush1.bf16.msra.mxu0 0
        %5773 = vmatprep.mubr.bf16.mxu0 0
        %5774 = vmatmul.mubr.bf16.gmra.mrb[0].mxu0 %v5730
        %v5775 = vpop.f32.mrb[0].mxu0
        %v5776 = vadd.f32 0.0, %v5775
        %v5777 = vpop.f32.mrb[0].mxu0
        %v5778 = vpop.f32.mrb[0].mxu0
        %v5779 = vadd.f32 0.0, %v5778
        %v5780 = vpop.f32.mrb[0].mxu0
        %5781 = vmatprep.mubr.bf16.mxu0 0
        %5782 = vmatmul.mubr.bf16.gmra.mrb[0].mxu0 %v5733
        %v5783 = vpop.f32.mrb[0].mxu0
        %v5784 = vadd.f32 0.0, %v5783
        %v5785 = vpop.f32.mrb[0].mxu0
        %v5786 = vpop.f32.mrb[0].mxu0
        %v5787 = vadd.f32 0.0, %v5786
        %v5788 = vpop.f32.mrb[0].mxu0
        %5789 = vmatprep.mubr.bf16.mxu0 0
        %5790 = vmatmul.mubr.bf16.gmra.mrb[0].mxu0 %v5736
        %v5791 = vpop.f32.mrb[0].mxu0
        %v5792 = vadd.f32 0.0, %v5791
        %v5793 = vpop.f32.mrb[0].mxu0
        %v5794 = vpop.f32.mrb[0].mxu0
        %v5795 = vadd.f32 0.0, %v5794
        %v5796 = vpop.f32.mrb[0].mxu0
        %5797 = vmatprep.mubr.bf16.mxu0 0
        %5798 = vmatmul.mubr.bf16.gmra.mrb[0].mxu0 %v5739
        %v5799 = vpop.f32.mrb[0].mxu0
        %v5800 = vadd.f32 0.0, %v5799
        %v5801 = vpop.f32.mrb[0].mxu0
        %v5802 = vpop.f32.mrb[0].mxu0
        %v5803 = vadd.f32 0.0, %v5802
        %v5804 = vpop.f32.mrb[0].mxu0
        %5805 = vdwg.mxu0
        %v5806 = vadd.f32 %v5682, %v5776
        %v5807 = vadd.f32 %v5683, %v5779
        %v5808 = vadd.f32 %v5684, %v5784
        %v5809 = vadd.f32 %v5685, %v5787
        %v5810 = vadd.f32 %v5686, %v5792
        %v5811 = vadd.f32 %v5687, %v5795
        %v5812 = vadd.f32 %v5688, %v5800
        %v5813 = vadd.f32 %v5689, %v5803
        %v5815 = vshrl.u32 %v5153, 16
        %v5817 = vrot.slane %v5815, 4
        %v5818 = vshll.u32 %v5153, 16
        %v5820 = vrot.slane %v5818, 5
        %v5821 = vor.u32 %v5817, %v5820
        %v5822 = vrot.slane %v5821, 4
        %v5824 = vshll.u32 %v5154, 16
        %v5826 = vrot.slane %v5824, 5
        %v5827 = vsel %vm1464, %v5822, %v5826
        %s5828 = scalar_lea.vmem %s5, 128
        %v5829 = vld [vmem:[%s5828] sm:$0xf]
        %v5830 = vld [vmem:[%s5828 + $0x4] sm:$0xf]
        %v5831 = vld [vmem:[%s5828 + $0x8] sm:$0xf]
        %v5832 = vld [vmem:[%s5828 + $0xc] sm:$0xf]
        %v5833 = vld [vmem:[%s5828 + $0x10] sm:$0xf]
        %v5834 = vld [vmem:[%s5828 + $0x14] sm:$0xf]
        %v5835 = vld [vmem:[%s5828 + $0x18] sm:$0xf]
        %v5836 = vld [vmem:[%s5828 + $0x1c] sm:$0xf]
        %v5837 = vunpack.c.l.b16 %v5827
        %v5838 = vpack.c.b16 %v5288, %v5287
        %v5839 = vpack.c.b16 %v5290, %v5289
        %v5840 = vpack.c.b16 %v5292, %v5291
        %v5841 = vpack.c.b16 %v5837, %v5293
        %v5850 = vunpack.c.l.b16 %v5829
        %v5851 = vunpack.c.l.b16 %v5830
        %v5852 = vunpack.c.l.b16 %v5831
        %v5853 = vunpack.c.l.b16 %v5832
        %v5854 = vunpack.c.l.b16 %v5833
        %v5855 = vunpack.c.l.b16 %v5834
        %v5856 = vunpack.c.l.b16 %v5835
        %v5857 = vunpack.c.l.b16 %v5836
        %v5858 = vpack.c.b16 %v5851, %v5850
        %v5859 = vpack.c.b16 %v5853, %v5852
        %v5860 = vpack.c.b16 %v5855, %v5854
        %v5861 = vpack.c.b16 %v5857, %v5856
        %v5867 = vsel %vm1930, %v5838, 0
        %v5870 = vsel %vm1930, %v5839, 0
        %v5873 = vsel %vm1930, %v5840, 0
        %v5876 = vsel %vm1930, %v5841, 0
        %5878 = vmatprep.subr.bf16.mxu0 0
        %5879 = vmatpush1.bf16.msra.mxu0 %v5858
        %5880 = vmatprep.subr.bf16.mxu0 0
        %5881 = vmatpush1.bf16.msra.mxu0 %v5859
        %5882 = vmatprep.subr.bf16.mxu0 0
        %5883 = vmatpush1.bf16.msra.mxu0 %v5860
        %5884 = vmatprep.subr.bf16.mxu0 0
        %5885 = vmatpush1.bf16.msra.mxu0 %v5861
        %5886 = vmatprep.subr.bf16.mxu0 0
        %5887 = vmatpush1.bf16.msra.mxu0 0
        %5888 = vmatprep.subr.bf16.mxu0 0
        %5889 = vmatpush1.bf16.msra.mxu0 0
        %5890 = vmatprep.subr.bf16.mxu0 0
        %5891 = vmatpush1.bf16.msra.mxu0 0
        %5892 = vmatprep.subr.bf16.mxu0 0
        %5893 = vmatpush1.bf16.msra.mxu0 0
        %5894 = vmatprep.subr.bf16.mxu0 0
        %5895 = vmatpush1.bf16.msra.mxu0 0
        %5896 = vmatprep.subr.bf16.mxu0 0
        %5897 = vmatpush1.bf16.msra.mxu0 0
        %5898 = vmatprep.subr.bf16.mxu0 0
        %5899 = vmatpush1.bf16.msra.mxu0 0
        %5900 = vmatprep.subr.bf16.mxu0 0
        %5901 = vmatpush1.bf16.msra.mxu0 0
        %5902 = vmatprep.subr.bf16.mxu0 0
        %5903 = vmatpush1.bf16.msra.mxu0 0
        %5904 = vmatprep.subr.bf16.mxu0 0
        %5905 = vmatpush1.bf16.msra.mxu0 0
        %5906 = vmatprep.subr.bf16.mxu0 0
        %5907 = vmatpush1.bf16.msra.mxu0 0
        %5908 = vmatprep.subr.bf16.mxu0 0
        %5909 = vmatpush1.bf16.msra.mxu0 0
        %5910 = vmatprep.mubr.bf16.mxu0 0
        %5911 = vmatmul.mubr.bf16.gmra.mrb[0].mxu0 %v5867
        %v5912 = vpop.f32.mrb[0].mxu0
        %v5913 = vadd.f32 0.0, %v5912
        %v5914 = vpop.f32.mrb[0].mxu0
        %v5915 = vpop.f32.mrb[0].mxu0
        %v5916 = vadd.f32 0.0, %v5915
        %v5917 = vpop.f32.mrb[0].mxu0
        %5918 = vmatprep.mubr.bf16.mxu0 0
        %5919 = vmatmul.mubr.bf16.gmra.mrb[0].mxu0 %v5870
        %v5920 = vpop.f32.mrb[0].mxu0
        %v5921 = vadd.f32 0.0, %v5920
        %v5922 = vpop.f32.mrb[0].mxu0
        %v5923 = vpop.f32.mrb[0].mxu0
        %v5924 = vadd.f32 0.0, %v5923
        %v5925 = vpop.f32.mrb[0].mxu0
        %5926 = vmatprep.mubr.bf16.mxu0 0
        %5927 = vmatmul.mubr.bf16.gmra.mrb[0].mxu0 %v5873
        %v5928 = vpop.f32.mrb[0].mxu0
        %v5929 = vadd.f32 0.0, %v5928
        %v5930 = vpop.f32.mrb[0].mxu0
        %v5931 = vpop.f32.mrb[0].mxu0
        %v5932 = vadd.f32 0.0, %v5931
        %v5933 = vpop.f32.mrb[0].mxu0
        %5934 = vmatprep.mubr.bf16.mxu0 0
        %5935 = vmatmul.mubr.bf16.gmra.mrb[0].mxu0 %v5876
        %v5936 = vpop.f32.mrb[0].mxu0
        %v5937 = vadd.f32 0.0, %v5936
        %v5938 = vpop.f32.mrb[0].mxu0
        %v5939 = vpop.f32.mrb[0].mxu0
        %v5940 = vadd.f32 0.0, %v5939
        %v5941 = vpop.f32.mrb[0].mxu0
        %5942 = vdwg.mxu0
        %v5943 = vadd.f32 %v5806, %v5913
        %v5944 = vadd.f32 %v5807, %v5916
        %v5945 = vadd.f32 %v5808, %v5921
        %v5946 = vadd.f32 %v5809, %v5924
        %v5947 = vadd.f32 %v5810, %v5929
        %v5948 = vadd.f32 %v5811, %v5932
        %v5949 = vadd.f32 %v5812, %v5937
        %v5950 = vadd.f32 %v5813, %v5940
        %v5952 = vrot.slane %v5153, 5
        %v5953 = vrot.slane %v5952, 4
        %v5954 = vrot.slane %v5154, 5
        %v5955 = vsel %vm2471, %v5953, %v5954
        %s5956 = scalar_lea.vmem %s5, 160
        %v5957 = vld [vmem:[%s5956] sm:$0xf]
        %v5958 = vld [vmem:[%s5956 + $0x4] sm:$0xf]
        %v5959 = vld [vmem:[%s5956 + $0x8] sm:$0xf]
        %v5960 = vld [vmem:[%s5956 + $0xc] sm:$0xf]
        %v5961 = vld [vmem:[%s5956 + $0x10] sm:$0xf]
        %v5962 = vld [vmem:[%s5956 + $0x14] sm:$0xf]
        %v5963 = vld [vmem:[%s5956 + $0x18] sm:$0xf]
        %v5964 = vld [vmem:[%s5956 + $0x1c] sm:$0xf]
        %v5965 = vunpack.c.l.b16 %v5955
        %v5966 = vpack.c.b16 %v5571, %v5570
        %v5967 = vpack.c.b16 %v5573, %v5572
        %v5968 = vpack.c.b16 %v5575, %v5574
        %v5969 = vpack.c.b16 %v5965, %v5576
        %v5978 = vunpack.c.l.b16 %v5957
        %v5979 = vunpack.c.l.b16 %v5958
        %v5980 = vunpack.c.l.b16 %v5959
        %v5981 = vunpack.c.l.b16 %v5960
        %v5982 = vunpack.c.l.b16 %v5961
        %v5983 = vunpack.c.l.b16 %v5962
        %v5984 = vunpack.c.l.b16 %v5963
        %v5985 = vunpack.c.l.b16 %v5964
        %v5986 = vpack.c.b16 %v5979, %v5978
        %v5987 = vpack.c.b16 %v5981, %v5980
        %v5988 = vpack.c.b16 %v5983, %v5982
        %v5989 = vpack.c.b16 %v5985, %v5984
        %v5995 = vsel %vm1930, %v5966, 0
        %v5998 = vsel %vm1930, %v5967, 0
        %v6001 = vsel %vm1930, %v5968, 0
        %v6004 = vsel %vm1930, %v5969, 0
        %6006 = vmatprep.subr.bf16.mxu0 0
        %6007 = vmatpush1.bf16.msra.mxu0 %v5986
        %6008 = vmatprep.subr.bf16.mxu0 0
        %6009 = vmatpush1.bf16.msra.mxu0 %v5987
        %6010 = vmatprep.subr.bf16.mxu0 0
        %6011 = vmatpush1.bf16.msra.mxu0 %v5988
        %6012 = vmatprep.subr.bf16.mxu0 0
        %6013 = vmatpush1.bf16.msra.mxu0 %v5989
        %6014 = vmatprep.subr.bf16.mxu0 0
        %6015 = vmatpush1.bf16.msra.mxu0 0
        %6016 = vmatprep.subr.bf16.mxu0 0
        %6017 = vmatpush1.bf16.msra.mxu0 0
        %6018 = vmatprep.subr.bf16.mxu0 0
        %6019 = vmatpush1.bf16.msra.mxu0 0
        %6020 = vmatprep.subr.bf16.mxu0 0
        %6021 = vmatpush1.bf16.msra.mxu0 0
        %6022 = vmatprep.subr.bf16.mxu0 0
        %6023 = vmatpush1.bf16.msra.mxu0 0
        %6024 = vmatprep.subr.bf16.mxu0 0
        %6025 = vmatpush1.bf16.msra.mxu0 0
        %6026 = vmatprep.subr.bf16.mxu0 0
        %6027 = vmatpush1.bf16.msra.mxu0 0
        %6028 = vmatprep.subr.bf16.mxu0 0
        %6029 = vmatpush1.bf16.msra.mxu0 0
        %6030 = vmatprep.subr.bf16.mxu0 0
        %6031 = vmatpush1.bf16.msra.mxu0 0
        %6032 = vmatprep.subr.bf16.mxu0 0
        %6033 = vmatpush1.bf16.msra.mxu0 0
        %6034 = vmatprep.subr.bf16.mxu0 0
        %6035 = vmatpush1.bf16.msra.mxu0 0
        %6036 = vmatprep.subr.bf16.mxu0 0
        %6037 = vmatpush1.bf16.msra.mxu0 0
        %6038 = vmatprep.mubr.bf16.mxu0 0
        %6039 = vmatmul.mubr.bf16.gmra.mrb[0].mxu0 %v5995
        %v6040 = vpop.f32.mrb[0].mxu0
        %v6041 = vadd.f32 0.0, %v6040
        %v6042 = vpop.f32.mrb[0].mxu0
        %v6043 = vpop.f32.mrb[0].mxu0
        %v6044 = vadd.f32 0.0, %v6043
        %v6045 = vpop.f32.mrb[0].mxu0
        %6046 = vmatprep.mubr.bf16.mxu0 0
        %6047 = vmatmul.mubr.bf16.gmra.mrb[0].mxu0 %v5998
        %v6048 = vpop.f32.mrb[0].mxu0
        %v6049 = vadd.f32 0.0, %v6048
        %v6050 = vpop.f32.mrb[0].mxu0
        %v6051 = vpop.f32.mrb[0].mxu0
        %v6052 = vadd.f32 0.0, %v6051
        %v6053 = vpop.f32.mrb[0].mxu0
        %6054 = vmatprep.mubr.bf16.mxu0 0
        %6055 = vmatmul.mubr.bf16.gmra.mrb[0].mxu0 %v6001
        %v6056 = vpop.f32.mrb[0].mxu0
        %v6057 = vadd.f32 0.0, %v6056
        %v6058 = vpop.f32.mrb[0].mxu0
        %v6059 = vpop.f32.mrb[0].mxu0
        %v6060 = vadd.f32 0.0, %v6059
        %v6061 = vpop.f32.mrb[0].mxu0
        %6062 = vmatprep.mubr.bf16.mxu0 0
        %6063 = vmatmul.mubr.bf16.gmra.mrb[0].mxu0 %v6004
        %v6064 = vpop.f32.mrb[0].mxu0
        %v6065 = vadd.f32 0.0, %v6064
        %v6066 = vpop.f32.mrb[0].mxu0
        %v6067 = vpop.f32.mrb[0].mxu0
        %v6068 = vadd.f32 0.0, %v6067
        %v6069 = vpop.f32.mrb[0].mxu0
        %6070 = vdwg.mxu0
        %v6071 = vadd.f32 %v5943, %v6041
        %v6072 = vadd.f32 %v5944, %v6044
        %v6073 = vadd.f32 %v5945, %v6049
        %v6074 = vadd.f32 %v5946, %v6052
        %v6075 = vadd.f32 %v5947, %v6057
        %v6076 = vadd.f32 %v5948, %v6060
        %v6077 = vadd.f32 %v5949, %v6065
        %v6078 = vadd.f32 %v5950, %v6068
        %s6079 = scalar_lea.vmem %s5, 192
        %v6080 = vld [vmem:[%s6079] sm:$0xf]
        %v6081 = vld [vmem:[%s6079 + $0x4] sm:$0xf]
        %v6082 = vld [vmem:[%s6079 + $0x8] sm:$0xf]
        %v6083 = vld [vmem:[%s6079 + $0xc] sm:$0xf]
        %v6084 = vld [vmem:[%s6079 + $0x10] sm:$0xf]
        %v6085 = vld [vmem:[%s6079 + $0x14] sm:$0xf]
        %v6086 = vld [vmem:[%s6079 + $0x18] sm:$0xf]
        %v6087 = vld [vmem:[%s6079 + $0x1c] sm:$0xf]
        %v6089 = vunpack.c.l.b16 %v5155
        %v6090 = vpack.c.b16 %v6089, %v5700
        %v6099 = vunpack.c.l.b16 %v6080
        %v6100 = vunpack.c.l.b16 %v6081
        %v6101 = vunpack.c.l.b16 %v6082
        %v6102 = vunpack.c.l.b16 %v6083
        %v6103 = vunpack.c.l.b16 %v6084
        %v6104 = vunpack.c.l.b16 %v6085
        %v6105 = vunpack.c.l.b16 %v6086
        %v6106 = vunpack.c.l.b16 %v6087
        %v6107 = vpack.c.b16 %v6100, %v6099
        %v6108 = vpack.c.b16 %v6102, %v6101
        %v6109 = vpack.c.b16 %v6104, %v6103
        %v6110 = vpack.c.b16 %v6106, %v6105
        %v6116 = vsel %vm1930, %v6090, 0
        %6118 = vmatprep.subr.bf16.mxu0 0
        %6119 = vmatpush1.bf16.msra.mxu0 %v6107
        %6120 = vmatprep.subr.bf16.mxu0 0
        %6121 = vmatpush1.bf16.msra.mxu0 %v6108
        %6122 = vmatprep.subr.bf16.mxu0 0
        %6123 = vmatpush1.bf16.msra.mxu0 %v6109
        %6124 = vmatprep.subr.bf16.mxu0 0
        %6125 = vmatpush1.bf16.msra.mxu0 %v6110
        %6126 = vmatprep.subr.bf16.mxu0 0
        %6127 = vmatpush1.bf16.msra.mxu0 0
        %6128 = vmatprep.subr.bf16.mxu0 0
        %6129 = vmatpush1.bf16.msra.mxu0 0
        %6130 = vmatprep.subr.bf16.mxu0 0
        %6131 = vmatpush1.bf16.msra.mxu0 0
        %6132 = vmatprep.subr.bf16.mxu0 0
        %6133 = vmatpush1.bf16.msra.mxu0 0
        %6134 = vmatprep.subr.bf16.mxu0 0
        %6135 = vmatpush1.bf16.msra.mxu0 0
        %6136 = vmatprep.subr.bf16.mxu0 0
        %6137 = vmatpush1.bf16.msra.mxu0 0
        %6138 = vmatprep.subr.bf16.mxu0 0
        %6139 = vmatpush1.bf16.msra.mxu0 0
        %6140 = vmatprep.subr.bf16.mxu0 0
        %6141 = vmatpush1.bf16.msra.mxu0 0
        %6142 = vmatprep.subr.bf16.mxu0 0
        %6143 = vmatpush1.bf16.msra.mxu0 0
        %6144 = vmatprep.subr.bf16.mxu0 0
        %6145 = vmatpush1.bf16.msra.mxu0 0
        %6146 = vmatprep.subr.bf16.mxu0 0
        %6147 = vmatpush1.bf16.msra.mxu0 0
        %6148 = vmatprep.subr.bf16.mxu0 0
        %6149 = vmatpush1.bf16.msra.mxu0 0
        %6150 = vmatprep.mubr.bf16.mxu0 0
        %6151 = vmatmul.mubr.bf16.gmra.mrb[0].mxu0 %v5447
        %v6152 = vpop.f32.mrb[0].mxu0
        %v6153 = vadd.f32 0.0, %v6152
        %v6154 = vpop.f32.mrb[0].mxu0
        %v6155 = vpop.f32.mrb[0].mxu0
        %v6156 = vadd.f32 0.0, %v6155
        %v6157 = vpop.f32.mrb[0].mxu0
        %6158 = vmatprep.mubr.bf16.mxu0 0
        %6159 = vmatmul.mubr.bf16.gmra.mrb[0].mxu0 %v5450
        %v6160 = vpop.f32.mrb[0].mxu0
        %v6161 = vadd.f32 0.0, %v6160
        %v6162 = vpop.f32.mrb[0].mxu0
        %v6163 = vpop.f32.mrb[0].mxu0
        %v6164 = vadd.f32 0.0, %v6163
        %v6165 = vpop.f32.mrb[0].mxu0
        %6166 = vmatprep.mubr.bf16.mxu0 0
        %6167 = vmatmul.mubr.bf16.gmra.mrb[0].mxu0 %v5453
        %v6168 = vpop.f32.mrb[0].mxu0
        %v6169 = vadd.f32 0.0, %v6168
        %v6170 = vpop.f32.mrb[0].mxu0
        %v6171 = vpop.f32.mrb[0].mxu0
        %v6172 = vadd.f32 0.0, %v6171
        %v6173 = vpop.f32.mrb[0].mxu0
        %6174 = vmatprep.mubr.bf16.mxu0 0
        %6175 = vmatmul.mubr.bf16.gmra.mrb[0].mxu0 %v6116
        %v6176 = vpop.f32.mrb[0].mxu0
        %v6177 = vadd.f32 0.0, %v6176
        %v6178 = vpop.f32.mrb[0].mxu0
        %v6179 = vpop.f32.mrb[0].mxu0
        %v6180 = vadd.f32 0.0, %v6179
        %v6181 = vpop.f32.mrb[0].mxu0
        %6182 = vdwg.mxu0
        %v6183 = vadd.f32 %v6071, %v6153
        %v6184 = vadd.f32 %v6072, %v6156
        %v6185 = vadd.f32 %v6073, %v6161
        %v6186 = vadd.f32 %v6074, %v6164
        %v6187 = vadd.f32 %v6075, %v6169
        %v6188 = vadd.f32 %v6076, %v6172
        %v6189 = vadd.f32 %v6077, %v6177
        %v6190 = vadd.f32 %v6078, %v6180
        %v6192 = vshrl.u32 %v5155, 16
        %v6194 = vrot.slane %v6192, 4
        %v6195 = vshll.u32 %v5155, 16
        %v6197 = vrot.slane %v6195, 5
        %v6198 = vor.u32 %v6194, %v6197
        %v6199 = vrot.slane %v6198, 4
        %v6201 = vshll.u32 %v5156, 16
        %v6203 = vrot.slane %v6201, 5
        %v6204 = vsel %vm1464, %v6199, %v6203
        %s6205 = scalar_lea.vmem %s5, 224
        %v6206 = vld [vmem:[%s6205] sm:$0xf]
        %v6207 = vld [vmem:[%s6205 + $0x4] sm:$0xf]
        %v6208 = vld [vmem:[%s6205 + $0x8] sm:$0xf]
        %v6209 = vld [vmem:[%s6205 + $0xc] sm:$0xf]
        %v6210 = vld [vmem:[%s6205 + $0x10] sm:$0xf]
        %v6211 = vld [vmem:[%s6205 + $0x14] sm:$0xf]
        %v6212 = vld [vmem:[%s6205 + $0x18] sm:$0xf]
        %v6213 = vld [vmem:[%s6205 + $0x1c] sm:$0xf]
        %v6214 = vunpack.c.l.b16 %v6204
        %v6215 = vpack.c.b16 %v6214, %v5837
        %v6224 = vunpack.c.l.b16 %v6206
        %v6225 = vunpack.c.l.b16 %v6207
        %v6226 = vunpack.c.l.b16 %v6208
        %v6227 = vunpack.c.l.b16 %v6209
        %v6228 = vunpack.c.l.b16 %v6210
        %v6229 = vunpack.c.l.b16 %v6211
        %v6230 = vunpack.c.l.b16 %v6212
        %v6231 = vunpack.c.l.b16 %v6213
        %v6232 = vpack.c.b16 %v6225, %v6224
        %v6233 = vpack.c.b16 %v6227, %v6226
        %v6234 = vpack.c.b16 %v6229, %v6228
        %v6235 = vpack.c.b16 %v6231, %v6230
        %v6241 = vsel %vm1930, %v6215, 0
        %6243 = vmatprep.subr.bf16.mxu0 0
        %6244 = vmatpush1.bf16.msra.mxu0 %v6232
        %6245 = vmatprep.subr.bf16.mxu0 0
        %6246 = vmatpush1.bf16.msra.mxu0 %v6233
        %6247 = vmatprep.subr.bf16.mxu0 0
        %6248 = vmatpush1.bf16.msra.mxu0 %v6234
        %6249 = vmatprep.subr.bf16.mxu0 0
        %6250 = vmatpush1.bf16.msra.mxu0 %v6235
        %6251 = vmatprep.subr.bf16.mxu0 0
        %6252 = vmatpush1.bf16.msra.mxu0 0
        %6253 = vmatprep.subr.bf16.mxu0 0
        %6254 = vmatpush1.bf16.msra.mxu0 0
        %6255 = vmatprep.subr.bf16.mxu0 0
        %6256 = vmatpush1.bf16.msra.mxu0 0
        %6257 = vmatprep.subr.bf16.mxu0 0
        %6258 = vmatpush1.bf16.msra.mxu0 0
        %6259 = vmatprep.subr.bf16.mxu0 0
        %6260 = vmatpush1.bf16.msra.mxu0 0
        %6261 = vmatprep.subr.bf16.mxu0 0
        %6262 = vmatpush1.bf16.msra.mxu0 0
        %6263 = vmatprep.subr.bf16.mxu0 0
        %6264 = vmatpush1.bf16.msra.mxu0 0
        %6265 = vmatprep.subr.bf16.mxu0 0
        %6266 = vmatpush1.bf16.msra.mxu0 0
        %6267 = vmatprep.subr.bf16.mxu0 0
        %6268 = vmatpush1.bf16.msra.mxu0 0
        %6269 = vmatprep.subr.bf16.mxu0 0
        %6270 = vmatpush1.bf16.msra.mxu0 0
        %6271 = vmatprep.subr.bf16.mxu0 0
        %6272 = vmatpush1.bf16.msra.mxu0 0
        %6273 = vmatprep.subr.bf16.mxu0 0
        %6274 = vmatpush1.bf16.msra.mxu0 0
        %6275 = vmatprep.mubr.bf16.mxu0 0
        %6276 = vmatmul.mubr.bf16.gmra.mrb[0].mxu0 %v5326
        %v6277 = vpop.f32.mrb[0].mxu0
        %v6278 = vadd.f32 0.0, %v6277
        %v6279 = vpop.f32.mrb[0].mxu0
        %v6280 = vpop.f32.mrb[0].mxu0
        %v6281 = vadd.f32 0.0, %v6280
        %v6282 = vpop.f32.mrb[0].mxu0
        %6283 = vmatprep.mubr.bf16.mxu0 0
        %6284 = vmatmul.mubr.bf16.gmra.mrb[0].mxu0 %v5329
        %v6285 = vpop.f32.mrb[0].mxu0
        %v6286 = vadd.f32 0.0, %v6285
        %v6287 = vpop.f32.mrb[0].mxu0
        %v6288 = vpop.f32.mrb[0].mxu0
        %v6289 = vadd.f32 0.0, %v6288
        %v6290 = vpop.f32.mrb[0].mxu0
        %6291 = vmatprep.mubr.bf16.mxu0 0
        %6292 = vmatmul.mubr.bf16.gmra.mrb[0].mxu0 %v5332
        %v6293 = vpop.f32.mrb[0].mxu0
        %v6294 = vadd.f32 0.0, %v6293
        %v6295 = vpop.f32.mrb[0].mxu0
        %v6296 = vpop.f32.mrb[0].mxu0
        %v6297 = vadd.f32 0.0, %v6296
        %v6298 = vpop.f32.mrb[0].mxu0
        %6299 = vmatprep.mubr.bf16.mxu0 0
        %6300 = vmatmul.mubr.bf16.gmra.mrb[0].mxu0 %v6241
        %v6301 = vpop.f32.mrb[0].mxu0
        %v6302 = vadd.f32 0.0, %v6301
        %v6303 = vpop.f32.mrb[0].mxu0
        %v6304 = vpop.f32.mrb[0].mxu0
        %v6305 = vadd.f32 0.0, %v6304
        %v6306 = vpop.f32.mrb[0].mxu0
        %6307 = vdwg.mxu0
        %v6308 = vadd.f32 %v6183, %v6278
        %v6309 = vadd.f32 %v6184, %v6281
        %v6310 = vadd.f32 %v6185, %v6286
        %v6311 = vadd.f32 %v6186, %v6289
        %v6312 = vadd.f32 %v6187, %v6294
        %v6313 = vadd.f32 %v6188, %v6297
        %v6314 = vadd.f32 %v6189, %v6302
        %v6315 = vadd.f32 %v6190, %v6305
        %v6317 = vrot.slane %v5155, 5
        %v6318 = vrot.slane %v6317, 4
        %v6319 = vrot.slane %v5156, 5
        %v6320 = vsel %vm2471, %v6318, %v6319
        %s6321 = scalar_lea.vmem %s5, 256
        %v6322 = vld [vmem:[%s6321] sm:$0xf]
        %v6323 = vld [vmem:[%s6321 + $0x4] sm:$0xf]
        %v6324 = vld [vmem:[%s6321 + $0x8] sm:$0xf]
        %v6325 = vld [vmem:[%s6321 + $0xc] sm:$0xf]
        %v6326 = vld [vmem:[%s6321 + $0x10] sm:$0xf]
        %v6327 = vld [vmem:[%s6321 + $0x14] sm:$0xf]
        %v6328 = vld [vmem:[%s6321 + $0x18] sm:$0xf]
        %v6329 = vld [vmem:[%s6321 + $0x1c] sm:$0xf]
        %v6330 = vunpack.c.l.b16 %v6320
        %v6331 = vpack.c.b16 %v6330, %v5965
        %v6340 = vunpack.c.l.b16 %v6322
        %v6341 = vunpack.c.l.b16 %v6323
        %v6342 = vunpack.c.l.b16 %v6324
        %v6343 = vunpack.c.l.b16 %v6325
        %v6344 = vunpack.c.l.b16 %v6326
        %v6345 = vunpack.c.l.b16 %v6327
        %v6346 = vunpack.c.l.b16 %v6328
        %v6347 = vunpack.c.l.b16 %v6329
        %v6348 = vpack.c.b16 %v6341, %v6340
        %v6349 = vpack.c.b16 %v6343, %v6342
        %v6350 = vpack.c.b16 %v6345, %v6344
        %v6351 = vpack.c.b16 %v6347, %v6346
        %v6357 = vsel %vm1930, %v6331, 0
        %6359 = vmatprep.subr.bf16.mxu0 0
        %6360 = vmatpush1.bf16.msra.mxu0 %v6348
        %6361 = vmatprep.subr.bf16.mxu0 0
        %6362 = vmatpush1.bf16.msra.mxu0 %v6349
        %6363 = vmatprep.subr.bf16.mxu0 0
        %6364 = vmatpush1.bf16.msra.mxu0 %v6350
        %6365 = vmatprep.subr.bf16.mxu0 0
        %6366 = vmatpush1.bf16.msra.mxu0 %v6351
        %6367 = vmatprep.subr.bf16.mxu0 0
        %6368 = vmatpush1.bf16.msra.mxu0 0
        %6369 = vmatprep.subr.bf16.mxu0 0
        %6370 = vmatpush1.bf16.msra.mxu0 0
        %6371 = vmatprep.subr.bf16.mxu0 0
        %6372 = vmatpush1.bf16.msra.mxu0 0
        %6373 = vmatprep.subr.bf16.mxu0 0
        %6374 = vmatpush1.bf16.msra.mxu0 0
        %6375 = vmatprep.subr.bf16.mxu0 0
        %6376 = vmatpush1.bf16.msra.mxu0 0
        %6377 = vmatprep.subr.bf16.mxu0 0
        %6378 = vmatpush1.bf16.msra.mxu0 0
        %6379 = vmatprep.subr.bf16.mxu0 0
        %6380 = vmatpush1.bf16.msra.mxu0 0
        %6381 = vmatprep.subr.bf16.mxu0 0
        %6382 = vmatpush1.bf16.msra.mxu0 0
        %6383 = vmatprep.subr.bf16.mxu0 0
        %6384 = vmatpush1.bf16.msra.mxu0 0
        %6385 = vmatprep.subr.bf16.mxu0 0
        %6386 = vmatpush1.bf16.msra.mxu0 0
        %6387 = vmatprep.subr.bf16.mxu0 0
        %6388 = vmatpush1.bf16.msra.mxu0 0
        %6389 = vmatprep.subr.bf16.mxu0 0
        %6390 = vmatpush1.bf16.msra.mxu0 0
        %6391 = vmatprep.mubr.bf16.mxu0 0
        %6392 = vmatmul.mubr.bf16.gmra.mrb[0].mxu0 %v5609
        %v6393 = vpop.f32.mrb[0].mxu0
        %v6394 = vadd.f32 0.0, %v6393
        %v6395 = vpop.f32.mrb[0].mxu0
        %v6396 = vpop.f32.mrb[0].mxu0
        %v6397 = vadd.f32 0.0, %v6396
        %v6398 = vpop.f32.mrb[0].mxu0
        %6399 = vmatprep.mubr.bf16.mxu0 0
        %6400 = vmatmul.mubr.bf16.gmra.mrb[0].mxu0 %v5612
        %v6401 = vpop.f32.mrb[0].mxu0
        %v6402 = vadd.f32 0.0, %v6401
        %v6403 = vpop.f32.mrb[0].mxu0
        %v6404 = vpop.f32.mrb[0].mxu0
        %v6405 = vadd.f32 0.0, %v6404
        %v6406 = vpop.f32.mrb[0].mxu0
        %6407 = vmatprep.mubr.bf16.mxu0 0
        %6408 = vmatmul.mubr.bf16.gmra.mrb[0].mxu0 %v5615
        %v6409 = vpop.f32.mrb[0].mxu0
        %v6410 = vadd.f32 0.0, %v6409
        %v6411 = vpop.f32.mrb[0].mxu0
        %v6412 = vpop.f32.mrb[0].mxu0
        %v6413 = vadd.f32 0.0, %v6412
        %v6414 = vpop.f32.mrb[0].mxu0
        %6415 = vmatprep.mubr.bf16.mxu0 0
        %6416 = vmatmul.mubr.bf16.gmra.mrb[0].mxu0 %v6357
        %v6417 = vpop.f32.mrb[0].mxu0
        %v6418 = vadd.f32 0.0, %v6417
        %v6419 = vpop.f32.mrb[0].mxu0
        %v6420 = vpop.f32.mrb[0].mxu0
        %v6421 = vadd.f32 0.0, %v6420
        %v6422 = vpop.f32.mrb[0].mxu0
        %6423 = vdwg.mxu0
        %v6424 = vadd.f32 %v6308, %v6394
        %v6425 = vadd.f32 %v6309, %v6397
        %v6426 = vadd.f32 %v6310, %v6402
        %v6427 = vadd.f32 %v6311, %v6405
        %v6428 = vadd.f32 %v6312, %v6410
        %v6429 = vadd.f32 %v6313, %v6413
        %v6430 = vadd.f32 %v6314, %v6418
        %v6431 = vadd.f32 %v6315, %v6421
        %v6432 = vld [vmem:[%s6] sm:$0x1]
        %v6434 = vlaneseq
        %v6435 = vshrl.u32 %v6434, 7
        %v6436 = vsub.s32 0, %v6435
        %v6437 = vrot.slane %v6432, %v6436
        %v6439 = vadd.f32 %v6424, %v6437
        %v6440 = vadd.f32 %v6425, %v6437
        %v6441 = vadd.f32 %v6426, %v6437
        %v6442 = vadd.f32 %v6427, %v6437
        %v6443 = vadd.f32 %v6428, %v6437
        %v6444 = vadd.f32 %v6429, %v6437
        %v6445 = vadd.f32 %v6430, %v6437
        %v6446 = vadd.f32 %v6431, %v6437
        %v6447 = vmax.f32 %v6439, 0.0
        %v6448 = vmax.f32 %v6440, 0.0
        %v6449 = vmax.f32 %v6441, 0.0
        %v6450 = vmax.f32 %v6442, 0.0
        %v6451 = vmax.f32 %v6443, 0.0
        %v6452 = vmax.f32 %v6444, 0.0
        %v6453 = vmax.f32 %v6445, 0.0
        %v6454 = vmax.f32 %v6446, 0.0
        %6455 = vst [vmem:[#allocation4] sm:$0xf] 0
        %6456 = vst [vmem:[#allocation4 + $0x4] sm:$0x1] 0
        %6457 = vst [vmem:[#allocation4 + $0x8] sm:$0xf] 0
        %6458 = vst [vmem:[#allocation4 + $0xc] sm:$0x1] 0
        %6459 = vst [vmem:[#allocation4 + $0x10] sm:$0xf] 0
        %6460 = vst [vmem:[#allocation4 + $0x14] sm:$0x1] 0
        %6461 = vst [vmem:[#allocation4 + $0x18] sm:$0xf] 0
        %6462 = vst [vmem:[#allocation4 + $0x1c] sm:$0x1] 0
        %6463 = vst [vmem:[#allocation4 + $0x20] sm:$0xf] 0
        %6464 = vst [vmem:[#allocation4 + $0x24] sm:$0x1] 0
        %6465 = vst [vmem:[#allocation4 + $0x28] sm:$0xf] 0
        %6466 = vst [vmem:[#allocation4 + $0x2c] sm:$0x1] 0
        %6467 = vst [vmem:[#allocation4 + $0x30] sm:$0xf] 0
        %6468 = vst [vmem:[#allocation4 + $0x34] sm:$0x1] 0
        %6469 = vst [vmem:[#allocation4 + $0x38] sm:$0xf] 0
        %6470 = vst [vmem:[#allocation4 + $0x3c] sm:$0x1] 0
        %6471 = vst [vmem:[#allocation4 + $0x40] sm:$0xf] 0
        %6472 = vst [vmem:[#allocation4 + $0x44] sm:$0x1] 0
        %6473 = vst [vmem:[#allocation4 + $0x48] sm:$0xf] 0
        %6474 = vst [vmem:[#allocation4 + $0x4c] sm:$0x1] 0
        %v6475 = vpack.c.bf16 %v6447, %v6447
        %v6476 = vpack.c.bf16 %v6448, %v6448
        %v6477 = vpack.c.bf16 %v6449, %v6449
        %v6478 = vpack.c.bf16 %v6450, %v6450
        %v6479 = vpack.c.bf16 %v6451, %v6451
        %v6480 = vpack.c.bf16 %v6452, %v6452
        %v6481 = vpack.c.bf16 %v6453, %v6453
        %v6482 = vpack.c.bf16 %v6454, %v6454
        %v6491 = vunpack.c.l.b16 %v6475
        %v6492 = vunpack.c.l.b16 %v6476
        %v6493 = vunpack.c.l.b16 %v6477
        %v6494 = vunpack.c.l.b16 %v6478
        %v6495 = vunpack.c.l.b16 %v6479
        %v6496 = vunpack.c.l.b16 %v6480
        %v6497 = vunpack.c.l.b16 %v6481
        %v6498 = vunpack.c.l.b16 %v6482
        %v6499 = vpack.c.b16 %v6491, %v6491
        %v6500 = vpack.c.b16 %v6492, %v6492
        %v6501 = vpack.c.b16 %v6493, %v6493
        %v6502 = vpack.c.b16 %v6494, %v6494
        %v6503 = vpack.c.b16 %v6495, %v6495
        %v6504 = vpack.c.b16 %v6496, %v6496
        %v6505 = vpack.c.b16 %v6497, %v6497
        %v6506 = vpack.c.b16 %v6498, %v6498
        %v6508 = vshrl.u32 %v6499, 16
        %v6510 = vrot.slane %v6508, 7
        %v6511 = vshll.u32 %v6499, 16
        %v6513 = vor.u32 %v6510, %v6511
        %v6514 = vrot.slane %v6510, 4
        %v6516 = vshrl.u32 %v6500, 16
        %v6518 = vrot.slane %v6516, 7
        %v6519 = vshll.u32 %v6500, 16
        %v6521 = vor.u32 %v6518, %v6519
        %v6522 = vrot.slane %v6518, 4
        %v6524 = vshrl.u32 %v6501, 16
        %v6526 = vrot.slane %v6524, 7
        %v6527 = vshll.u32 %v6501, 16
        %v6529 = vor.u32 %v6526, %v6527
        %v6530 = vrot.slane %v6526, 4
        %v6532 = vshrl.u32 %v6502, 16
        %v6534 = vrot.slane %v6532, 7
        %v6535 = vshll.u32 %v6502, 16
        %v6537 = vor.u32 %v6534, %v6535
        %v6538 = vrot.slane %v6534, 4
        %v6540 = vshrl.u32 %v6503, 16
        %v6542 = vrot.slane %v6540, 7
        %v6543 = vshll.u32 %v6503, 16
        %v6545 = vor.u32 %v6542, %v6543
        %v6546 = vrot.slane %v6542, 4
        %v6548 = vshrl.u32 %v6504, 16
        %v6550 = vrot.slane %v6548, 7
        %v6551 = vshll.u32 %v6504, 16
        %v6553 = vor.u32 %v6550, %v6551
        %v6554 = vrot.slane %v6550, 4
        %v6556 = vshrl.u32 %v6505, 16
        %v6558 = vrot.slane %v6556, 7
        %v6559 = vshll.u32 %v6505, 16
        %v6561 = vor.u32 %v6558, %v6559
        %v6562 = vrot.slane %v6558, 4
        %v6564 = vshrl.u32 %v6506, 16
        %v6566 = vrot.slane %v6564, 7
        %v6567 = vshll.u32 %v6506, 16
        %v6569 = vor.u32 %v6566, %v6567
        %v6570 = vrot.slane %v6566, 4
        %s6587 = scalar_lea.vmem [#allocation4], 8
        %vm6588 = vcmask 1043456
        %vm6589 = vmand %vm6588, %vm1284
        %v6590 = vld [vmem:[%s6587] sm:$0xf]
        %v6591 = vsel %vm6589, %v6513, %v6590
        %6592 = vst [vmem:[%s6587] sm:$0xf] %v6591
        %vm6593 = vcmask 1040384
        %vm6594 = vmand %vm6593, %vm959
        %v6595 = vld [vmem:[%s6587 + $0x4] sm:$0x1]
        %v6596 = vsel %vm6594, %v6514, %v6595
        %6597 = vst [vmem:[%s6587 + $0x4] sm:$0x1] %v6596
        %v6598 = vld [vmem:[%s6587 + $0x8] sm:$0xf]
        %v6599 = vsel %vm6589, %v6521, %v6598
        %6600 = vst [vmem:[%s6587 + $0x8] sm:$0xf] %v6599
        %v6601 = vld [vmem:[%s6587 + $0xc] sm:$0x1]
        %v6602 = vsel %vm6594, %v6522, %v6601
        %6603 = vst [vmem:[%s6587 + $0xc] sm:$0x1] %v6602
        %v6604 = vld [vmem:[%s6587 + $0x10] sm:$0xf]
        %v6605 = vsel %vm6589, %v6529, %v6604
        %6606 = vst [vmem:[%s6587 + $0x10] sm:$0xf] %v6605
        %v6607 = vld [vmem:[%s6587 + $0x14] sm:$0x1]
        %v6608 = vsel %vm6594, %v6530, %v6607
        %6609 = vst [vmem:[%s6587 + $0x14] sm:$0x1] %v6608
        %v6610 = vld [vmem:[%s6587 + $0x18] sm:$0xf]
        %v6611 = vsel %vm6589, %v6537, %v6610
        %6612 = vst [vmem:[%s6587 + $0x18] sm:$0xf] %v6611
        %v6613 = vld [vmem:[%s6587 + $0x1c] sm:$0x1]
        %v6614 = vsel %vm6594, %v6538, %v6613
        %6615 = vst [vmem:[%s6587 + $0x1c] sm:$0x1] %v6614
        %v6616 = vld [vmem:[%s6587 + $0x20] sm:$0xf]
        %v6617 = vsel %vm6589, %v6545, %v6616
        %6618 = vst [vmem:[%s6587 + $0x20] sm:$0xf] %v6617
        %v6619 = vld [vmem:[%s6587 + $0x24] sm:$0x1]
        %v6620 = vsel %vm6594, %v6546, %v6619
        %6621 = vst [vmem:[%s6587 + $0x24] sm:$0x1] %v6620
        %v6622 = vld [vmem:[%s6587 + $0x28] sm:$0xf]
        %v6623 = vsel %vm6589, %v6553, %v6622
        %6624 = vst [vmem:[%s6587 + $0x28] sm:$0xf] %v6623
        %v6625 = vld [vmem:[%s6587 + $0x2c] sm:$0x1]
        %v6626 = vsel %vm6594, %v6554, %v6625
        %6627 = vst [vmem:[%s6587 + $0x2c] sm:$0x1] %v6626
        %v6628 = vld [vmem:[%s6587 + $0x30] sm:$0xf]
        %v6629 = vsel %vm6589, %v6561, %v6628
        %6630 = vst [vmem:[%s6587 + $0x30] sm:$0xf] %v6629
        %v6631 = vld [vmem:[%s6587 + $0x34] sm:$0x1]
        %v6632 = vsel %vm6594, %v6562, %v6631
        %6633 = vst [vmem:[%s6587 + $0x34] sm:$0x1] %v6632
        %v6634 = vld [vmem:[%s6587 + $0x38] sm:$0xf]
        %v6635 = vsel %vm6589, %v6569, %v6634
        %6636 = vst [vmem:[%s6587 + $0x38] sm:$0xf] %v6635
        %v6637 = vld [vmem:[%s6587 + $0x3c] sm:$0x1]
        %v6638 = vsel %vm6594, %v6570, %v6637
        %6639 = vst [vmem:[%s6587 + $0x3c] sm:$0x1] %v6638
        %v6640 = vld [vmem:[#allocation4] sm:$0xf]
        %v6641 = vld [vmem:[#allocation4 + $0x4] sm:$0x1]
        %v6642 = vld [vmem:[#allocation4 + $0x8] sm:$0xf]
        %v6643 = vld [vmem:[#allocation4 + $0xc] sm:$0x1]
        %v6644 = vld [vmem:[#allocation4 + $0x10] sm:$0xf]
        %v6645 = vld [vmem:[#allocation4 + $0x14] sm:$0x1]
        %v6646 = vld [vmem:[#allocation4 + $0x18] sm:$0xf]
        %v6647 = vld [vmem:[#allocation4 + $0x1c] sm:$0x1]
        %v6648 = vld [vmem:[#allocation4 + $0x20] sm:$0xf]
        %v6649 = vld [vmem:[#allocation4 + $0x24] sm:$0x1]
        %v6650 = vld [vmem:[#allocation4 + $0x28] sm:$0xf]
        %v6651 = vld [vmem:[#allocation4 + $0x2c] sm:$0x1]
        %v6652 = vld [vmem:[#allocation4 + $0x30] sm:$0xf]
        %v6653 = vld [vmem:[#allocation4 + $0x34] sm:$0x1]
        %v6654 = vld [vmem:[#allocation4 + $0x38] sm:$0xf]
        %v6655 = vld [vmem:[#allocation4 + $0x3c] sm:$0x1]
        %v6656 = vld [vmem:[#allocation4 + $0x40] sm:$0xf]
        %v6657 = vld [vmem:[#allocation4 + $0x44] sm:$0x1]
        %v6658 = vld [vmem:[#allocation4 + $0x48] sm:$0xf]
        %v6659 = vld [vmem:[#allocation4 + $0x4c] sm:$0x1]
        %v6660 = vld [vmem:[%s7] sm:$0xf]
        %v6661 = vld [vmem:[%s7 + $0x4] sm:$0xf]
        %v6662 = vld [vmem:[%s7 + $0x8] sm:$0xf]
        %v6663 = vld [vmem:[%s7 + $0xc] sm:$0xf]
        %v6664 = vld [vmem:[%s7 + $0x10] sm:$0xf]
        %v6665 = vld [vmem:[%s7 + $0x14] sm:$0xf]
        %v6666 = vld [vmem:[%s7 + $0x18] sm:$0xf]
        %v6667 = vld [vmem:[%s7 + $0x1c] sm:$0xf]
        %v6668 = vld [vmem:[%s7 + $0x20] sm:$0xf]
        %v6669 = vld [vmem:[%s7 + $0x24] sm:$0xf]
        %v6670 = vld [vmem:[%s7 + $0x28] sm:$0xf]
        %v6671 = vld [vmem:[%s7 + $0x2c] sm:$0xf]
        %v6672 = vld [vmem:[%s7 + $0x30] sm:$0xf]
        %v6673 = vld [vmem:[%s7 + $0x34] sm:$0xf]
        %v6674 = vld [vmem:[%s7 + $0x38] sm:$0xf]
        %v6675 = vld [vmem:[%s7 + $0x3c] sm:$0xf]
        %v6677 = vshrl.u32 %v6640, 16
        %v6679 = vrot.slane %v6677, 4
        %v6680 = vshll.u32 %v6640, 16
        %v6682 = vrot.slane %v6680, 5
        %v6683 = vor.u32 %v6679, %v6682
        %v6684 = vrot.slane %v6683, 4
        %v6686 = vshll.u32 %v6641, 16
        %v6688 = vrot.slane %v6686, 5
        %v6689 = vsel %vm1464, %v6684, %v6688
        %v6691 = vshrl.u32 %v6642, 16
        %v6693 = vrot.slane %v6691, 4
        %v6694 = vshll.u32 %v6642, 16
        %v6696 = vrot.slane %v6694, 5
        %v6697 = vor.u32 %v6693, %v6696
        %v6698 = vrot.slane %v6697, 4
        %v6700 = vshll.u32 %v6643, 16
        %v6702 = vrot.slane %v6700, 5
        %v6703 = vsel %vm1464, %v6698, %v6702
        %v6705 = vshrl.u32 %v6644, 16
        %v6707 = vrot.slane %v6705, 4
        %v6708 = vshll.u32 %v6644, 16
        %v6710 = vrot.slane %v6708, 5
        %v6711 = vor.u32 %v6707, %v6710
        %v6712 = vrot.slane %v6711, 4
        %v6714 = vshll.u32 %v6645, 16
        %v6716 = vrot.slane %v6714, 5
        %v6717 = vsel %vm1464, %v6712, %v6716
        %v6719 = vshrl.u32 %v6646, 16
        %v6721 = vrot.slane %v6719, 4
        %v6722 = vshll.u32 %v6646, 16
        %v6724 = vrot.slane %v6722, 5
        %v6725 = vor.u32 %v6721, %v6724
        %v6726 = vrot.slane %v6725, 4
        %v6728 = vshll.u32 %v6647, 16
        %v6730 = vrot.slane %v6728, 5
        %v6731 = vsel %vm1464, %v6726, %v6730
        %v6733 = vshrl.u32 %v6648, 16
        %v6735 = vrot.slane %v6733, 4
        %v6736 = vshll.u32 %v6648, 16
        %v6738 = vrot.slane %v6736, 5
        %v6739 = vor.u32 %v6735, %v6738
        %v6740 = vrot.slane %v6739, 4
        %v6742 = vshll.u32 %v6649, 16
        %v6744 = vrot.slane %v6742, 5
        %v6745 = vsel %vm1464, %v6740, %v6744
        %v6747 = vshrl.u32 %v6650, 16
        %v6749 = vrot.slane %v6747, 4
        %v6750 = vshll.u32 %v6650, 16
        %v6752 = vrot.slane %v6750, 5
        %v6753 = vor.u32 %v6749, %v6752
        %v6754 = vrot.slane %v6753, 4
        %v6756 = vshll.u32 %v6651, 16
        %v6758 = vrot.slane %v6756, 5
        %v6759 = vsel %vm1464, %v6754, %v6758
        %v6761 = vshrl.u32 %v6652, 16
        %v6763 = vrot.slane %v6761, 4
        %v6764 = vshll.u32 %v6652, 16
        %v6766 = vrot.slane %v6764, 5
        %v6767 = vor.u32 %v6763, %v6766
        %v6768 = vrot.slane %v6767, 4
        %v6770 = vshll.u32 %v6653, 16
        %v6772 = vrot.slane %v6770, 5
        %v6773 = vsel %vm1464, %v6768, %v6772
        %v6775 = vshrl.u32 %v6654, 16
        %v6777 = vrot.slane %v6775, 4
        %v6778 = vshll.u32 %v6654, 16
        %v6780 = vrot.slane %v6778, 5
        %v6781 = vor.u32 %v6777, %v6780
        %v6782 = vrot.slane %v6781, 4
        %v6784 = vshll.u32 %v6655, 16
        %v6786 = vrot.slane %v6784, 5
        %v6787 = vsel %vm1464, %v6782, %v6786
        %s6788 = scalar_lea.vmem %s7, 64
        %v6789 = vld [vmem:[%s6788] sm:$0xf]
        %v6790 = vld [vmem:[%s6788 + $0x4] sm:$0xf]
        %v6791 = vld [vmem:[%s6788 + $0x8] sm:$0xf]
        %v6792 = vld [vmem:[%s6788 + $0xc] sm:$0xf]
        %v6793 = vld [vmem:[%s6788 + $0x10] sm:$0xf]
        %v6794 = vld [vmem:[%s6788 + $0x14] sm:$0xf]
        %v6795 = vld [vmem:[%s6788 + $0x18] sm:$0xf]
        %v6796 = vld [vmem:[%s6788 + $0x1c] sm:$0xf]
        %v6797 = vld [vmem:[%s6788 + $0x20] sm:$0xf]
        %v6798 = vld [vmem:[%s6788 + $0x24] sm:$0xf]
        %v6799 = vld [vmem:[%s6788 + $0x28] sm:$0xf]
        %v6800 = vld [vmem:[%s6788 + $0x2c] sm:$0xf]
        %v6801 = vld [vmem:[%s6788 + $0x30] sm:$0xf]
        %v6802 = vld [vmem:[%s6788 + $0x34] sm:$0xf]
        %v6803 = vld [vmem:[%s6788 + $0x38] sm:$0xf]
        %v6804 = vld [vmem:[%s6788 + $0x3c] sm:$0xf]
        %v6805 = vunpack.c.l.b16 %v6689
        %v6806 = vunpack.c.l.b16 %v6703
        %v6807 = vunpack.c.l.b16 %v6717
        %v6808 = vunpack.c.l.b16 %v6731
        %v6809 = vunpack.c.l.b16 %v6745
        %v6810 = vunpack.c.l.b16 %v6759
        %v6811 = vunpack.c.l.b16 %v6773
        %v6812 = vunpack.c.l.b16 %v6787
        %v6813 = vpack.c.b16 %v6806, %v6805
        %v6814 = vpack.c.b16 %v6808, %v6807
        %v6815 = vpack.c.b16 %v6810, %v6809
        %v6816 = vpack.c.b16 %v6812, %v6811
        %v6837 = vunpack.c.l.b16 %v6789
        %v6838 = vunpack.c.l.b16 %v6790
        %v6839 = vunpack.c.l.b16 %v6791
        %v6840 = vunpack.c.l.b16 %v6792
        %v6841 = vunpack.c.l.b16 %v6793
        %v6842 = vunpack.c.l.b16 %v6794
        %v6843 = vunpack.c.l.b16 %v6795
        %v6844 = vunpack.c.l.b16 %v6796
        %v6845 = vunpack.c.l.b16 %v6797
        %v6846 = vunpack.c.l.b16 %v6798
        %v6847 = vunpack.c.l.b16 %v6799
        %v6848 = vunpack.c.l.b16 %v6800
        %v6849 = vunpack.c.l.b16 %v6801
        %v6850 = vunpack.c.l.b16 %v6802
        %v6851 = vunpack.c.l.b16 %v6803
        %v6852 = vunpack.c.l.b16 %v6804
        %v6853 = vpack.c.b16 %v6838, %v6837
        %v6854 = vpack.c.b16 %v6840, %v6839
        %v6855 = vpack.c.b16 %v6842, %v6841
        %v6856 = vpack.c.b16 %v6844, %v6843
        %v6857 = vpack.c.b16 %v6846, %v6845
        %v6858 = vpack.c.b16 %v6848, %v6847
        %v6859 = vpack.c.b16 %v6850, %v6849
        %v6860 = vpack.c.b16 %v6852, %v6851
        %6869 = vmatprep.subr.bf16.mxu0 0
        %6870 = vmatpush1.bf16.msra.mxu0 %v6853
        %6871 = vmatprep.subr.bf16.mxu0 0
        %6872 = vmatpush1.bf16.msra.mxu0 %v6854
        %6873 = vmatprep.subr.bf16.mxu0 0
        %6874 = vmatpush1.bf16.msra.mxu0 %v6855
        %6875 = vmatprep.subr.bf16.mxu0 0
        %6876 = vmatpush1.bf16.msra.mxu0 %v6856
        %6877 = vmatprep.subr.bf16.mxu0 0
        %6878 = vmatpush1.bf16.msra.mxu0 %v6857
        %6879 = vmatprep.subr.bf16.mxu0 0
        %6880 = vmatpush1.bf16.msra.mxu0 %v6858
        %6881 = vmatprep.subr.bf16.mxu0 0
        %6882 = vmatpush1.bf16.msra.mxu0 %v6859
        %6883 = vmatprep.subr.bf16.mxu0 0
        %6884 = vmatpush1.bf16.msra.mxu0 %v6860
        %6885 = vmatprep.subr.bf16.mxu0 0
        %6886 = vmatpush1.bf16.msra.mxu0 0
        %6887 = vmatprep.subr.bf16.mxu0 0
        %6888 = vmatpush1.bf16.msra.mxu0 0
        %6889 = vmatprep.subr.bf16.mxu0 0
        %6890 = vmatpush1.bf16.msra.mxu0 0
        %6891 = vmatprep.subr.bf16.mxu0 0
        %6892 = vmatpush1.bf16.msra.mxu0 0
        %6893 = vmatprep.subr.bf16.mxu0 0
        %6894 = vmatpush1.bf16.msra.mxu0 0
        %6895 = vmatprep.subr.bf16.mxu0 0
        %6896 = vmatpush1.bf16.msra.mxu0 0
        %6897 = vmatprep.subr.bf16.mxu0 0
        %6898 = vmatpush1.bf16.msra.mxu0 0
        %6899 = vmatprep.subr.bf16.mxu0 0
        %6900 = vmatpush1.bf16.msra.mxu0 0
        %6901 = vmatprep.mubr.bf16.mxu0 0
        %6902 = vmatmul.mubr.bf16.gmra.mrb[0].mxu0 %v6813
        %v6903 = vpop.f32.mrb[0].mxu0
        %v6904 = vadd.f32 0.0, %v6903
        %v6905 = vpop.f32.mrb[0].mxu0
        %v6906 = vpop.f32.mrb[0].mxu0
        %v6907 = vadd.f32 0.0, %v6906
        %v6908 = vpop.f32.mrb[0].mxu0
        %6909 = vmatprep.mubr.bf16.mxu0 0
        %6910 = vmatmul.mubr.bf16.gmra.mrb[0].mxu0 %v6814
        %v6911 = vpop.f32.mrb[0].mxu0
        %v6912 = vadd.f32 0.0, %v6911
        %v6913 = vpop.f32.mrb[0].mxu0
        %v6914 = vpop.f32.mrb[0].mxu0
        %v6915 = vadd.f32 0.0, %v6914
        %v6916 = vpop.f32.mrb[0].mxu0
        %6917 = vmatprep.mubr.bf16.mxu0 0
        %6918 = vmatmul.mubr.bf16.gmra.mrb[0].mxu0 %v6815
        %v6919 = vpop.f32.mrb[0].mxu0
        %v6920 = vadd.f32 0.0, %v6919
        %v6921 = vpop.f32.mrb[0].mxu0
        %v6922 = vpop.f32.mrb[0].mxu0
        %v6923 = vadd.f32 0.0, %v6922
        %v6924 = vpop.f32.mrb[0].mxu0
        %6925 = vmatprep.mubr.bf16.mxu0 0
        %6926 = vmatmul.mubr.bf16.gmra.mrb[0].mxu0 %v6816
        %v6927 = vpop.f32.mrb[0].mxu0
        %v6928 = vadd.f32 0.0, %v6927
        %v6929 = vpop.f32.mrb[0].mxu0
        %v6930 = vpop.f32.mrb[0].mxu0
        %v6931 = vadd.f32 0.0, %v6930
        %v6932 = vpop.f32.mrb[0].mxu0
        %6933 = vdwg.mxu0
        %v6942 = vunpack.c.l.b16 %v6640
        %v6943 = vunpack.c.l.b16 %v6642
        %v6944 = vunpack.c.l.b16 %v6644
        %v6945 = vunpack.c.l.b16 %v6646
        %v6946 = vunpack.c.l.b16 %v6648
        %v6947 = vunpack.c.l.b16 %v6650
        %v6948 = vunpack.c.l.b16 %v6652
        %v6949 = vunpack.c.l.b16 %v6654
        %v6950 = vpack.c.b16 %v6943, %v6942
        %v6951 = vpack.c.b16 %v6945, %v6944
        %v6952 = vpack.c.b16 %v6947, %v6946
        %v6953 = vpack.c.b16 %v6949, %v6948
        %v6974 = vunpack.c.l.b16 %v6660
        %v6975 = vunpack.c.l.b16 %v6661
        %v6976 = vunpack.c.l.b16 %v6662
        %v6977 = vunpack.c.l.b16 %v6663
        %v6978 = vunpack.c.l.b16 %v6664
        %v6979 = vunpack.c.l.b16 %v6665
        %v6980 = vunpack.c.l.b16 %v6666
        %v6981 = vunpack.c.l.b16 %v6667
        %v6982 = vunpack.c.l.b16 %v6668
        %v6983 = vunpack.c.l.b16 %v6669
        %v6984 = vunpack.c.l.b16 %v6670
        %v6985 = vunpack.c.l.b16 %v6671
        %v6986 = vunpack.c.l.b16 %v6672
        %v6987 = vunpack.c.l.b16 %v6673
        %v6988 = vunpack.c.l.b16 %v6674
        %v6989 = vunpack.c.l.b16 %v6675
        %v6990 = vpack.c.b16 %v6975, %v6974
        %v6991 = vpack.c.b16 %v6977, %v6976
        %v6992 = vpack.c.b16 %v6979, %v6978
        %v6993 = vpack.c.b16 %v6981, %v6980
        %v6994 = vpack.c.b16 %v6983, %v6982
        %v6995 = vpack.c.b16 %v6985, %v6984
        %v6996 = vpack.c.b16 %v6987, %v6986
        %v6997 = vpack.c.b16 %v6989, %v6988
        %7006 = vmatprep.subr.bf16.mxu0 0
        %7007 = vmatpush1.bf16.msra.mxu0 %v6990
        %7008 = vmatprep.subr.bf16.mxu0 0
        %7009 = vmatpush1.bf16.msra.mxu0 %v6991
        %7010 = vmatprep.subr.bf16.mxu0 0
        %7011 = vmatpush1.bf16.msra.mxu0 %v6992
        %7012 = vmatprep.subr.bf16.mxu0 0
        %7013 = vmatpush1.bf16.msra.mxu0 %v6993
        %7014 = vmatprep.subr.bf16.mxu0 0
        %7015 = vmatpush1.bf16.msra.mxu0 %v6994
        %7016 = vmatprep.subr.bf16.mxu0 0
        %7017 = vmatpush1.bf16.msra.mxu0 %v6995
        %7018 = vmatprep.subr.bf16.mxu0 0
        %7019 = vmatpush1.bf16.msra.mxu0 %v6996
        %7020 = vmatprep.subr.bf16.mxu0 0
        %7021 = vmatpush1.bf16.msra.mxu0 %v6997
        %7022 = vmatprep.subr.bf16.mxu0 0
        %7023 = vmatpush1.bf16.msra.mxu0 0
        %7024 = vmatprep.subr.bf16.mxu0 0
        %7025 = vmatpush1.bf16.msra.mxu0 0
        %7026 = vmatprep.subr.bf16.mxu0 0
        %7027 = vmatpush1.bf16.msra.mxu0 0
        %7028 = vmatprep.subr.bf16.mxu0 0
        %7029 = vmatpush1.bf16.msra.mxu0 0
        %7030 = vmatprep.subr.bf16.mxu0 0
        %7031 = vmatpush1.bf16.msra.mxu0 0
        %7032 = vmatprep.subr.bf16.mxu0 0
        %7033 = vmatpush1.bf16.msra.mxu0 0
        %7034 = vmatprep.subr.bf16.mxu0 0
        %7035 = vmatpush1.bf16.msra.mxu0 0
        %7036 = vmatprep.subr.bf16.mxu0 0
        %7037 = vmatpush1.bf16.msra.mxu0 0
        %7038 = vmatprep.mubr.bf16.mxu0 0
        %7039 = vmatmul.mubr.bf16.gmra.mrb[0].mxu0 %v6950
        %v7040 = vpop.f32.mrb[0].mxu0
        %v7041 = vadd.f32 %v6904, %v7040
        %v7042 = vpop.f32.mrb[0].mxu0
        %v7043 = vpop.f32.mrb[0].mxu0
        %v7044 = vadd.f32 %v6907, %v7043
        %v7045 = vpop.f32.mrb[0].mxu0
        %7046 = vmatprep.mubr.bf16.mxu0 0
        %7047 = vmatmul.mubr.bf16.gmra.mrb[0].mxu0 %v6951
        %v7048 = vpop.f32.mrb[0].mxu0
        %v7049 = vadd.f32 %v6912, %v7048
        %v7050 = vpop.f32.mrb[0].mxu0
        %v7051 = vpop.f32.mrb[0].mxu0
        %v7052 = vadd.f32 %v6915, %v7051
        %v7053 = vpop.f32.mrb[0].mxu0
        %7054 = vmatprep.mubr.bf16.mxu0 0
        %7055 = vmatmul.mubr.bf16.gmra.mrb[0].mxu0 %v6952
        %v7056 = vpop.f32.mrb[0].mxu0
        %v7057 = vadd.f32 %v6920, %v7056
        %v7058 = vpop.f32.mrb[0].mxu0
        %v7059 = vpop.f32.mrb[0].mxu0
        %v7060 = vadd.f32 %v6923, %v7059
        %v7061 = vpop.f32.mrb[0].mxu0
        %7062 = vmatprep.mubr.bf16.mxu0 0
        %7063 = vmatmul.mubr.bf16.gmra.mrb[0].mxu0 %v6953
        %v7064 = vpop.f32.mrb[0].mxu0
        %v7065 = vadd.f32 %v6928, %v7064
        %v7066 = vpop.f32.mrb[0].mxu0
        %v7067 = vpop.f32.mrb[0].mxu0
        %v7068 = vadd.f32 %v6931, %v7067
        %v7069 = vpop.f32.mrb[0].mxu0
        %7070 = vdwg.mxu0
        %v7079 = vrot.slane %v6640, 5
        %v7080 = vrot.slane %v7079, 4
        %v7081 = vrot.slane %v6641, 5
        %v7082 = vsel %vm2471, %v7080, %v7081
        %v7083 = vrot.slane %v6642, 5
        %v7084 = vrot.slane %v7083, 4
        %v7085 = vrot.slane %v6643, 5
        %v7086 = vsel %vm2471, %v7084, %v7085
        %v7087 = vrot.slane %v6644, 5
        %v7088 = vrot.slane %v7087, 4
        %v7089 = vrot.slane %v6645, 5
        %v7090 = vsel %vm2471, %v7088, %v7089
        %v7091 = vrot.slane %v6646, 5
        %v7092 = vrot.slane %v7091, 4
        %v7093 = vrot.slane %v6647, 5
        %v7094 = vsel %vm2471, %v7092, %v7093
        %v7095 = vrot.slane %v6648, 5
        %v7096 = vrot.slane %v7095, 4
        %v7097 = vrot.slane %v6649, 5
        %v7098 = vsel %vm2471, %v7096, %v7097
        %v7099 = vrot.slane %v6650, 5
        %v7100 = vrot.slane %v7099, 4
        %v7101 = vrot.slane %v6651, 5
        %v7102 = vsel %vm2471, %v7100, %v7101
        %v7103 = vrot.slane %v6652, 5
        %v7104 = vrot.slane %v7103, 4
        %v7105 = vrot.slane %v6653, 5
        %v7106 = vsel %vm2471, %v7104, %v7105
        %v7107 = vrot.slane %v6654, 5
        %v7108 = vrot.slane %v7107, 4
        %v7109 = vrot.slane %v6655, 5
        %v7110 = vsel %vm2471, %v7108, %v7109
        %s7111 = scalar_lea.vmem %s7, 128
        %v7112 = vld [vmem:[%s7111] sm:$0xf]
        %v7113 = vld [vmem:[%s7111 + $0x4] sm:$0xf]
        %v7114 = vld [vmem:[%s7111 + $0x8] sm:$0xf]
        %v7115 = vld [vmem:[%s7111 + $0xc] sm:$0xf]
        %v7116 = vld [vmem:[%s7111 + $0x10] sm:$0xf]
        %v7117 = vld [vmem:[%s7111 + $0x14] sm:$0xf]
        %v7118 = vld [vmem:[%s7111 + $0x18] sm:$0xf]
        %v7119 = vld [vmem:[%s7111 + $0x1c] sm:$0xf]
        %v7120 = vld [vmem:[%s7111 + $0x20] sm:$0xf]
        %v7121 = vld [vmem:[%s7111 + $0x24] sm:$0xf]
        %v7122 = vld [vmem:[%s7111 + $0x28] sm:$0xf]
        %v7123 = vld [vmem:[%s7111 + $0x2c] sm:$0xf]
        %v7124 = vld [vmem:[%s7111 + $0x30] sm:$0xf]
        %v7125 = vld [vmem:[%s7111 + $0x34] sm:$0xf]
        %v7126 = vld [vmem:[%s7111 + $0x38] sm:$0xf]
        %v7127 = vld [vmem:[%s7111 + $0x3c] sm:$0xf]
        %v7128 = vunpack.c.l.b16 %v7082
        %v7129 = vunpack.c.l.b16 %v7086
        %v7130 = vunpack.c.l.b16 %v7090
        %v7131 = vunpack.c.l.b16 %v7094
        %v7132 = vunpack.c.l.b16 %v7098
        %v7133 = vunpack.c.l.b16 %v7102
        %v7134 = vunpack.c.l.b16 %v7106
        %v7135 = vunpack.c.l.b16 %v7110
        %v7136 = vpack.c.b16 %v7129, %v7128
        %v7137 = vpack.c.b16 %v7131, %v7130
        %v7138 = vpack.c.b16 %v7133, %v7132
        %v7139 = vpack.c.b16 %v7135, %v7134
        %v7160 = vunpack.c.l.b16 %v7112
        %v7161 = vunpack.c.l.b16 %v7113
        %v7162 = vunpack.c.l.b16 %v7114
        %v7163 = vunpack.c.l.b16 %v7115
        %v7164 = vunpack.c.l.b16 %v7116
        %v7165 = vunpack.c.l.b16 %v7117
        %v7166 = vunpack.c.l.b16 %v7118
        %v7167 = vunpack.c.l.b16 %v7119
        %v7168 = vunpack.c.l.b16 %v7120
        %v7169 = vunpack.c.l.b16 %v7121
        %v7170 = vunpack.c.l.b16 %v7122
        %v7171 = vunpack.c.l.b16 %v7123
        %v7172 = vunpack.c.l.b16 %v7124
        %v7173 = vunpack.c.l.b16 %v7125
        %v7174 = vunpack.c.l.b16 %v7126
        %v7175 = vunpack.c.l.b16 %v7127
        %v7176 = vpack.c.b16 %v7161, %v7160
        %v7177 = vpack.c.b16 %v7163, %v7162
        %v7178 = vpack.c.b16 %v7165, %v7164
        %v7179 = vpack.c.b16 %v7167, %v7166
        %v7180 = vpack.c.b16 %v7169, %v7168
        %v7181 = vpack.c.b16 %v7171, %v7170
        %v7182 = vpack.c.b16 %v7173, %v7172
        %v7183 = vpack.c.b16 %v7175, %v7174
        %7192 = vmatprep.subr.bf16.mxu0 0
        %7193 = vmatpush1.bf16.msra.mxu0 %v7176
        %7194 = vmatprep.subr.bf16.mxu0 0
        %7195 = vmatpush1.bf16.msra.mxu0 %v7177
        %7196 = vmatprep.subr.bf16.mxu0 0
        %7197 = vmatpush1.bf16.msra.mxu0 %v7178
        %7198 = vmatprep.subr.bf16.mxu0 0
        %7199 = vmatpush1.bf16.msra.mxu0 %v7179
        %7200 = vmatprep.subr.bf16.mxu0 0
        %7201 = vmatpush1.bf16.msra.mxu0 %v7180
        %7202 = vmatprep.subr.bf16.mxu0 0
        %7203 = vmatpush1.bf16.msra.mxu0 %v7181
        %7204 = vmatprep.subr.bf16.mxu0 0
        %7205 = vmatpush1.bf16.msra.mxu0 %v7182
        %7206 = vmatprep.subr.bf16.mxu0 0
        %7207 = vmatpush1.bf16.msra.mxu0 %v7183
        %7208 = vmatprep.subr.bf16.mxu0 0
        %7209 = vmatpush1.bf16.msra.mxu0 0
        %7210 = vmatprep.subr.bf16.mxu0 0
        %7211 = vmatpush1.bf16.msra.mxu0 0
        %7212 = vmatprep.subr.bf16.mxu0 0
        %7213 = vmatpush1.bf16.msra.mxu0 0
        %7214 = vmatprep.subr.bf16.mxu0 0
        %7215 = vmatpush1.bf16.msra.mxu0 0
        %7216 = vmatprep.subr.bf16.mxu0 0
        %7217 = vmatpush1.bf16.msra.mxu0 0
        %7218 = vmatprep.subr.bf16.mxu0 0
        %7219 = vmatpush1.bf16.msra.mxu0 0
        %7220 = vmatprep.subr.bf16.mxu0 0
        %7221 = vmatpush1.bf16.msra.mxu0 0
        %7222 = vmatprep.subr.bf16.mxu0 0
        %7223 = vmatpush1.bf16.msra.mxu0 0
        %7224 = vmatprep.mubr.bf16.mxu0 0
        %7225 = vmatmul.mubr.bf16.gmra.mrb[0].mxu0 %v7136
        %v7226 = vpop.f32.mrb[0].mxu0
        %v7227 = vadd.f32 0.0, %v7226
        %v7228 = vpop.f32.mrb[0].mxu0
        %v7229 = vpop.f32.mrb[0].mxu0
        %v7230 = vadd.f32 0.0, %v7229
        %v7231 = vpop.f32.mrb[0].mxu0
        %7232 = vmatprep.mubr.bf16.mxu0 0
        %7233 = vmatmul.mubr.bf16.gmra.mrb[0].mxu0 %v7137
        %v7234 = vpop.f32.mrb[0].mxu0
        %v7235 = vadd.f32 0.0, %v7234
        %v7236 = vpop.f32.mrb[0].mxu0
        %v7237 = vpop.f32.mrb[0].mxu0
        %v7238 = vadd.f32 0.0, %v7237
        %v7239 = vpop.f32.mrb[0].mxu0
        %7240 = vmatprep.mubr.bf16.mxu0 0
        %7241 = vmatmul.mubr.bf16.gmra.mrb[0].mxu0 %v7138
        %v7242 = vpop.f32.mrb[0].mxu0
        %v7243 = vadd.f32 0.0, %v7242
        %v7244 = vpop.f32.mrb[0].mxu0
        %v7245 = vpop.f32.mrb[0].mxu0
        %v7246 = vadd.f32 0.0, %v7245
        %v7247 = vpop.f32.mrb[0].mxu0
        %7248 = vmatprep.mubr.bf16.mxu0 0
        %7249 = vmatmul.mubr.bf16.gmra.mrb[0].mxu0 %v7139
        %v7250 = vpop.f32.mrb[0].mxu0
        %v7251 = vadd.f32 0.0, %v7250
        %v7252 = vpop.f32.mrb[0].mxu0
        %v7253 = vpop.f32.mrb[0].mxu0
        %v7254 = vadd.f32 0.0, %v7253
        %v7255 = vpop.f32.mrb[0].mxu0
        %7256 = vdwg.mxu0
        %v7257 = vadd.f32 %v7041, %v7227
        %v7258 = vadd.f32 %v7044, %v7230
        %v7259 = vadd.f32 %v7049, %v7235
        %v7260 = vadd.f32 %v7052, %v7238
        %v7261 = vadd.f32 %v7057, %v7243
        %v7262 = vadd.f32 %v7060, %v7246
        %v7263 = vadd.f32 %v7065, %v7251
        %v7264 = vadd.f32 %v7068, %v7254
        %s7265 = scalar_lea.vmem %s7, 192
        %v7266 = vld [vmem:[%s7265] sm:$0xf]
        %v7267 = vld [vmem:[%s7265 + $0x4] sm:$0xf]
        %v7268 = vld [vmem:[%s7265 + $0x8] sm:$0xf]
        %v7269 = vld [vmem:[%s7265 + $0xc] sm:$0xf]
        %v7270 = vld [vmem:[%s7265 + $0x10] sm:$0xf]
        %v7271 = vld [vmem:[%s7265 + $0x14] sm:$0xf]
        %v7272 = vld [vmem:[%s7265 + $0x18] sm:$0xf]
        %v7273 = vld [vmem:[%s7265 + $0x1c] sm:$0xf]
        %v7274 = vld [vmem:[%s7265 + $0x20] sm:$0xf]
        %v7275 = vld [vmem:[%s7265 + $0x24] sm:$0xf]
        %v7276 = vld [vmem:[%s7265 + $0x28] sm:$0xf]
        %v7277 = vld [vmem:[%s7265 + $0x2c] sm:$0xf]
        %v7278 = vld [vmem:[%s7265 + $0x30] sm:$0xf]
        %v7279 = vld [vmem:[%s7265 + $0x34] sm:$0xf]
        %v7280 = vld [vmem:[%s7265 + $0x38] sm:$0xf]
        %v7281 = vld [vmem:[%s7265 + $0x3c] sm:$0xf]
        %v7283 = vunpack.c.l.b16 %v6656
        %v7284 = vpack.c.b16 %v6944, %v6943
        %v7285 = vpack.c.b16 %v6946, %v6945
        %v7286 = vpack.c.b16 %v6948, %v6947
        %v7287 = vpack.c.b16 %v7283, %v6949
        %v7308 = vunpack.c.l.b16 %v7266
        %v7309 = vunpack.c.l.b16 %v7267
        %v7310 = vunpack.c.l.b16 %v7268
        %v7311 = vunpack.c.l.b16 %v7269
        %v7312 = vunpack.c.l.b16 %v7270
        %v7313 = vunpack.c.l.b16 %v7271
        %v7314 = vunpack.c.l.b16 %v7272
        %v7315 = vunpack.c.l.b16 %v7273
        %v7316 = vunpack.c.l.b16 %v7274
        %v7317 = vunpack.c.l.b16 %v7275
        %v7318 = vunpack.c.l.b16 %v7276
        %v7319 = vunpack.c.l.b16 %v7277
        %v7320 = vunpack.c.l.b16 %v7278
        %v7321 = vunpack.c.l.b16 %v7279
        %v7322 = vunpack.c.l.b16 %v7280
        %v7323 = vunpack.c.l.b16 %v7281
        %v7324 = vpack.c.b16 %v7309, %v7308
        %v7325 = vpack.c.b16 %v7311, %v7310
        %v7326 = vpack.c.b16 %v7313, %v7312
        %v7327 = vpack.c.b16 %v7315, %v7314
        %v7328 = vpack.c.b16 %v7317, %v7316
        %v7329 = vpack.c.b16 %v7319, %v7318
        %v7330 = vpack.c.b16 %v7321, %v7320
        %v7331 = vpack.c.b16 %v7323, %v7322
        %7340 = vmatprep.subr.bf16.mxu0 0
        %7341 = vmatpush1.bf16.msra.mxu0 %v7324
        %7342 = vmatprep.subr.bf16.mxu0 0
        %7343 = vmatpush1.bf16.msra.mxu0 %v7325
        %7344 = vmatprep.subr.bf16.mxu0 0
        %7345 = vmatpush1.bf16.msra.mxu0 %v7326
        %7346 = vmatprep.subr.bf16.mxu0 0
        %7347 = vmatpush1.bf16.msra.mxu0 %v7327
        %7348 = vmatprep.subr.bf16.mxu0 0
        %7349 = vmatpush1.bf16.msra.mxu0 %v7328
        %7350 = vmatprep.subr.bf16.mxu0 0
        %7351 = vmatpush1.bf16.msra.mxu0 %v7329
        %7352 = vmatprep.subr.bf16.mxu0 0
        %7353 = vmatpush1.bf16.msra.mxu0 %v7330
        %7354 = vmatprep.subr.bf16.mxu0 0
        %7355 = vmatpush1.bf16.msra.mxu0 %v7331
        %7356 = vmatprep.subr.bf16.mxu0 0
        %7357 = vmatpush1.bf16.msra.mxu0 0
        %7358 = vmatprep.subr.bf16.mxu0 0
        %7359 = vmatpush1.bf16.msra.mxu0 0
        %7360 = vmatprep.subr.bf16.mxu0 0
        %7361 = vmatpush1.bf16.msra.mxu0 0
        %7362 = vmatprep.subr.bf16.mxu0 0
        %7363 = vmatpush1.bf16.msra.mxu0 0
        %7364 = vmatprep.subr.bf16.mxu0 0
        %7365 = vmatpush1.bf16.msra.mxu0 0
        %7366 = vmatprep.subr.bf16.mxu0 0
        %7367 = vmatpush1.bf16.msra.mxu0 0
        %7368 = vmatprep.subr.bf16.mxu0 0
        %7369 = vmatpush1.bf16.msra.mxu0 0
        %7370 = vmatprep.subr.bf16.mxu0 0
        %7371 = vmatpush1.bf16.msra.mxu0 0
        %7372 = vmatprep.mubr.bf16.mxu0 0
        %7373 = vmatmul.mubr.bf16.gmra.mrb[0].mxu0 %v7284
        %v7374 = vpop.f32.mrb[0].mxu0
        %v7375 = vadd.f32 0.0, %v7374
        %v7376 = vpop.f32.mrb[0].mxu0
        %v7377 = vpop.f32.mrb[0].mxu0
        %v7378 = vadd.f32 0.0, %v7377
        %v7379 = vpop.f32.mrb[0].mxu0
        %7380 = vmatprep.mubr.bf16.mxu0 0
        %7381 = vmatmul.mubr.bf16.gmra.mrb[0].mxu0 %v7285
        %v7382 = vpop.f32.mrb[0].mxu0
        %v7383 = vadd.f32 0.0, %v7382
        %v7384 = vpop.f32.mrb[0].mxu0
        %v7385 = vpop.f32.mrb[0].mxu0
        %v7386 = vadd.f32 0.0, %v7385
        %v7387 = vpop.f32.mrb[0].mxu0
        %7388 = vmatprep.mubr.bf16.mxu0 0
        %7389 = vmatmul.mubr.bf16.gmra.mrb[0].mxu0 %v7286
        %v7390 = vpop.f32.mrb[0].mxu0
        %v7391 = vadd.f32 0.0, %v7390
        %v7392 = vpop.f32.mrb[0].mxu0
        %v7393 = vpop.f32.mrb[0].mxu0
        %v7394 = vadd.f32 0.0, %v7393
        %v7395 = vpop.f32.mrb[0].mxu0
        %7396 = vmatprep.mubr.bf16.mxu0 0
        %7397 = vmatmul.mubr.bf16.gmra.mrb[0].mxu0 %v7287
        %v7398 = vpop.f32.mrb[0].mxu0
        %v7399 = vadd.f32 0.0, %v7398
        %v7400 = vpop.f32.mrb[0].mxu0
        %v7401 = vpop.f32.mrb[0].mxu0
        %v7402 = vadd.f32 0.0, %v7401
        %v7403 = vpop.f32.mrb[0].mxu0
        %7404 = vdwg.mxu0
        %v7405 = vadd.f32 %v7257, %v7375
        %v7406 = vadd.f32 %v7258, %v7378
        %v7407 = vadd.f32 %v7259, %v7383
        %v7408 = vadd.f32 %v7260, %v7386
        %v7409 = vadd.f32 %v7261, %v7391
        %v7410 = vadd.f32 %v7262, %v7394
        %v7411 = vadd.f32 %v7263, %v7399
        %v7412 = vadd.f32 %v7264, %v7402
        %v7414 = vshrl.u32 %v6656, 16
        %v7416 = vrot.slane %v7414, 4
        %v7417 = vshll.u32 %v6656, 16
        %v7419 = vrot.slane %v7417, 5
        %v7420 = vor.u32 %v7416, %v7419
        %v7421 = vrot.slane %v7420, 4
        %v7423 = vshll.u32 %v6657, 16
        %v7425 = vrot.slane %v7423, 5
        %v7426 = vsel %vm1464, %v7421, %v7425
        %s7427 = scalar_lea.vmem %s7, 256
        %v7428 = vld [vmem:[%s7427] sm:$0xf]
        %v7429 = vld [vmem:[%s7427 + $0x4] sm:$0xf]
        %v7430 = vld [vmem:[%s7427 + $0x8] sm:$0xf]
        %v7431 = vld [vmem:[%s7427 + $0xc] sm:$0xf]
        %v7432 = vld [vmem:[%s7427 + $0x10] sm:$0xf]
        %v7433 = vld [vmem:[%s7427 + $0x14] sm:$0xf]
        %v7434 = vld [vmem:[%s7427 + $0x18] sm:$0xf]
        %v7435 = vld [vmem:[%s7427 + $0x1c] sm:$0xf]
        %v7436 = vld [vmem:[%s7427 + $0x20] sm:$0xf]
        %v7437 = vld [vmem:[%s7427 + $0x24] sm:$0xf]
        %v7438 = vld [vmem:[%s7427 + $0x28] sm:$0xf]
        %v7439 = vld [vmem:[%s7427 + $0x2c] sm:$0xf]
        %v7440 = vld [vmem:[%s7427 + $0x30] sm:$0xf]
        %v7441 = vld [vmem:[%s7427 + $0x34] sm:$0xf]
        %v7442 = vld [vmem:[%s7427 + $0x38] sm:$0xf]
        %v7443 = vld [vmem:[%s7427 + $0x3c] sm:$0xf]
        %v7444 = vunpack.c.l.b16 %v7426
        %v7445 = vpack.c.b16 %v6807, %v6806
        %v7446 = vpack.c.b16 %v6809, %v6808
        %v7447 = vpack.c.b16 %v6811, %v6810
        %v7448 = vpack.c.b16 %v7444, %v6812
        %v7469 = vunpack.c.l.b16 %v7428
        %v7470 = vunpack.c.l.b16 %v7429
        %v7471 = vunpack.c.l.b16 %v7430
        %v7472 = vunpack.c.l.b16 %v7431
        %v7473 = vunpack.c.l.b16 %v7432
        %v7474 = vunpack.c.l.b16 %v7433
        %v7475 = vunpack.c.l.b16 %v7434
        %v7476 = vunpack.c.l.b16 %v7435
        %v7477 = vunpack.c.l.b16 %v7436
        %v7478 = vunpack.c.l.b16 %v7437
        %v7479 = vunpack.c.l.b16 %v7438
        %v7480 = vunpack.c.l.b16 %v7439
        %v7481 = vunpack.c.l.b16 %v7440
        %v7482 = vunpack.c.l.b16 %v7441
        %v7483 = vunpack.c.l.b16 %v7442
        %v7484 = vunpack.c.l.b16 %v7443
        %v7485 = vpack.c.b16 %v7470, %v7469
        %v7486 = vpack.c.b16 %v7472, %v7471
        %v7487 = vpack.c.b16 %v7474, %v7473
        %v7488 = vpack.c.b16 %v7476, %v7475
        %v7489 = vpack.c.b16 %v7478, %v7477
        %v7490 = vpack.c.b16 %v7480, %v7479
        %v7491 = vpack.c.b16 %v7482, %v7481
        %v7492 = vpack.c.b16 %v7484, %v7483
        %7501 = vmatprep.subr.bf16.mxu0 0
        %7502 = vmatpush1.bf16.msra.mxu0 %v7485
        %7503 = vmatprep.subr.bf16.mxu0 0
        %7504 = vmatpush1.bf16.msra.mxu0 %v7486
        %7505 = vmatprep.subr.bf16.mxu0 0
        %7506 = vmatpush1.bf16.msra.mxu0 %v7487
        %7507 = vmatprep.subr.bf16.mxu0 0
        %7508 = vmatpush1.bf16.msra.mxu0 %v7488
        %7509 = vmatprep.subr.bf16.mxu0 0
        %7510 = vmatpush1.bf16.msra.mxu0 %v7489
        %7511 = vmatprep.subr.bf16.mxu0 0
        %7512 = vmatpush1.bf16.msra.mxu0 %v7490
        %7513 = vmatprep.subr.bf16.mxu0 0
        %7514 = vmatpush1.bf16.msra.mxu0 %v7491
        %7515 = vmatprep.subr.bf16.mxu0 0
        %7516 = vmatpush1.bf16.msra.mxu0 %v7492
        %7517 = vmatprep.subr.bf16.mxu0 0
        %7518 = vmatpush1.bf16.msra.mxu0 0
        %7519 = vmatprep.subr.bf16.mxu0 0
        %7520 = vmatpush1.bf16.msra.mxu0 0
        %7521 = vmatprep.subr.bf16.mxu0 0
        %7522 = vmatpush1.bf16.msra.mxu0 0
        %7523 = vmatprep.subr.bf16.mxu0 0
        %7524 = vmatpush1.bf16.msra.mxu0 0
        %7525 = vmatprep.subr.bf16.mxu0 0
        %7526 = vmatpush1.bf16.msra.mxu0 0
        %7527 = vmatprep.subr.bf16.mxu0 0
        %7528 = vmatpush1.bf16.msra.mxu0 0
        %7529 = vmatprep.subr.bf16.mxu0 0
        %7530 = vmatpush1.bf16.msra.mxu0 0
        %7531 = vmatprep.subr.bf16.mxu0 0
        %7532 = vmatpush1.bf16.msra.mxu0 0
        %7533 = vmatprep.mubr.bf16.mxu0 0
        %7534 = vmatmul.mubr.bf16.gmra.mrb[0].mxu0 %v7445
        %v7535 = vpop.f32.mrb[0].mxu0
        %v7536 = vadd.f32 0.0, %v7535
        %v7537 = vpop.f32.mrb[0].mxu0
        %v7538 = vpop.f32.mrb[0].mxu0
        %v7539 = vadd.f32 0.0, %v7538
        %v7540 = vpop.f32.mrb[0].mxu0
        %7541 = vmatprep.mubr.bf16.mxu0 0
        %7542 = vmatmul.mubr.bf16.gmra.mrb[0].mxu0 %v7446
        %v7543 = vpop.f32.mrb[0].mxu0
        %v7544 = vadd.f32 0.0, %v7543
        %v7545 = vpop.f32.mrb[0].mxu0
        %v7546 = vpop.f32.mrb[0].mxu0
        %v7547 = vadd.f32 0.0, %v7546
        %v7548 = vpop.f32.mrb[0].mxu0
        %7549 = vmatprep.mubr.bf16.mxu0 0
        %7550 = vmatmul.mubr.bf16.gmra.mrb[0].mxu0 %v7447
        %v7551 = vpop.f32.mrb[0].mxu0
        %v7552 = vadd.f32 0.0, %v7551
        %v7553 = vpop.f32.mrb[0].mxu0
        %v7554 = vpop.f32.mrb[0].mxu0
        %v7555 = vadd.f32 0.0, %v7554
        %v7556 = vpop.f32.mrb[0].mxu0
        %7557 = vmatprep.mubr.bf16.mxu0 0
        %7558 = vmatmul.mubr.bf16.gmra.mrb[0].mxu0 %v7448
        %v7559 = vpop.f32.mrb[0].mxu0
        %v7560 = vadd.f32 0.0, %v7559
        %v7561 = vpop.f32.mrb[0].mxu0
        %v7562 = vpop.f32.mrb[0].mxu0
        %v7563 = vadd.f32 0.0, %v7562
        %v7564 = vpop.f32.mrb[0].mxu0
        %7565 = vdwg.mxu0
        %v7566 = vadd.f32 %v7405, %v7536
        %v7567 = vadd.f32 %v7406, %v7539
        %v7568 = vadd.f32 %v7407, %v7544
        %v7569 = vadd.f32 %v7408, %v7547
        %v7570 = vadd.f32 %v7409, %v7552
        %v7571 = vadd.f32 %v7410, %v7555
        %v7572 = vadd.f32 %v7411, %v7560
        %v7573 = vadd.f32 %v7412, %v7563
        %v7575 = vrot.slane %v6656, 5
        %v7576 = vrot.slane %v7575, 4
        %v7577 = vrot.slane %v6657, 5
        %v7578 = vsel %vm2471, %v7576, %v7577
        %s7579 = scalar_lea.vmem %s7, 320
        %v7580 = vld [vmem:[%s7579] sm:$0xf]
        %v7581 = vld [vmem:[%s7579 + $0x4] sm:$0xf]
        %v7582 = vld [vmem:[%s7579 + $0x8] sm:$0xf]
        %v7583 = vld [vmem:[%s7579 + $0xc] sm:$0xf]
        %v7584 = vld [vmem:[%s7579 + $0x10] sm:$0xf]
        %v7585 = vld [vmem:[%s7579 + $0x14] sm:$0xf]
        %v7586 = vld [vmem:[%s7579 + $0x18] sm:$0xf]
        %v7587 = vld [vmem:[%s7579 + $0x1c] sm:$0xf]
        %v7588 = vld [vmem:[%s7579 + $0x20] sm:$0xf]
        %v7589 = vld [vmem:[%s7579 + $0x24] sm:$0xf]
        %v7590 = vld [vmem:[%s7579 + $0x28] sm:$0xf]
        %v7591 = vld [vmem:[%s7579 + $0x2c] sm:$0xf]
        %v7592 = vld [vmem:[%s7579 + $0x30] sm:$0xf]
        %v7593 = vld [vmem:[%s7579 + $0x34] sm:$0xf]
        %v7594 = vld [vmem:[%s7579 + $0x38] sm:$0xf]
        %v7595 = vld [vmem:[%s7579 + $0x3c] sm:$0xf]
        %v7596 = vunpack.c.l.b16 %v7578
        %v7597 = vpack.c.b16 %v7130, %v7129
        %v7598 = vpack.c.b16 %v7132, %v7131
        %v7599 = vpack.c.b16 %v7134, %v7133
        %v7600 = vpack.c.b16 %v7596, %v7135
        %v7621 = vunpack.c.l.b16 %v7580
        %v7622 = vunpack.c.l.b16 %v7581
        %v7623 = vunpack.c.l.b16 %v7582
        %v7624 = vunpack.c.l.b16 %v7583
        %v7625 = vunpack.c.l.b16 %v7584
        %v7626 = vunpack.c.l.b16 %v7585
        %v7627 = vunpack.c.l.b16 %v7586
        %v7628 = vunpack.c.l.b16 %v7587
        %v7629 = vunpack.c.l.b16 %v7588
        %v7630 = vunpack.c.l.b16 %v7589
        %v7631 = vunpack.c.l.b16 %v7590
        %v7632 = vunpack.c.l.b16 %v7591
        %v7633 = vunpack.c.l.b16 %v7592
        %v7634 = vunpack.c.l.b16 %v7593
        %v7635 = vunpack.c.l.b16 %v7594
        %v7636 = vunpack.c.l.b16 %v7595
        %v7637 = vpack.c.b16 %v7622, %v7621
        %v7638 = vpack.c.b16 %v7624, %v7623
        %v7639 = vpack.c.b16 %v7626, %v7625
        %v7640 = vpack.c.b16 %v7628, %v7627
        %v7641 = vpack.c.b16 %v7630, %v7629
        %v7642 = vpack.c.b16 %v7632, %v7631
        %v7643 = vpack.c.b16 %v7634, %v7633
        %v7644 = vpack.c.b16 %v7636, %v7635
        %7653 = vmatprep.subr.bf16.mxu0 0
        %7654 = vmatpush1.bf16.msra.mxu0 %v7637
        %7655 = vmatprep.subr.bf16.mxu0 0
        %7656 = vmatpush1.bf16.msra.mxu0 %v7638
        %7657 = vmatprep.subr.bf16.mxu0 0
        %7658 = vmatpush1.bf16.msra.mxu0 %v7639
        %7659 = vmatprep.subr.bf16.mxu0 0
        %7660 = vmatpush1.bf16.msra.mxu0 %v7640
        %7661 = vmatprep.subr.bf16.mxu0 0
        %7662 = vmatpush1.bf16.msra.mxu0 %v7641
        %7663 = vmatprep.subr.bf16.mxu0 0
        %7664 = vmatpush1.bf16.msra.mxu0 %v7642
        %7665 = vmatprep.subr.bf16.mxu0 0
        %7666 = vmatpush1.bf16.msra.mxu0 %v7643
        %7667 = vmatprep.subr.bf16.mxu0 0
        %7668 = vmatpush1.bf16.msra.mxu0 %v7644
        %7669 = vmatprep.subr.bf16.mxu0 0
        %7670 = vmatpush1.bf16.msra.mxu0 0
        %7671 = vmatprep.subr.bf16.mxu0 0
        %7672 = vmatpush1.bf16.msra.mxu0 0
        %7673 = vmatprep.subr.bf16.mxu0 0
        %7674 = vmatpush1.bf16.msra.mxu0 0
        %7675 = vmatprep.subr.bf16.mxu0 0
        %7676 = vmatpush1.bf16.msra.mxu0 0
        %7677 = vmatprep.subr.bf16.mxu0 0
        %7678 = vmatpush1.bf16.msra.mxu0 0
        %7679 = vmatprep.subr.bf16.mxu0 0
        %7680 = vmatpush1.bf16.msra.mxu0 0
        %7681 = vmatprep.subr.bf16.mxu0 0
        %7682 = vmatpush1.bf16.msra.mxu0 0
        %7683 = vmatprep.subr.bf16.mxu0 0
        %7684 = vmatpush1.bf16.msra.mxu0 0
        %7685 = vmatprep.mubr.bf16.mxu0 0
        %7686 = vmatmul.mubr.bf16.gmra.mrb[0].mxu0 %v7597
        %v7687 = vpop.f32.mrb[0].mxu0
        %v7688 = vadd.f32 0.0, %v7687
        %v7689 = vpop.f32.mrb[0].mxu0
        %v7690 = vpop.f32.mrb[0].mxu0
        %v7691 = vadd.f32 0.0, %v7690
        %v7692 = vpop.f32.mrb[0].mxu0
        %7693 = vmatprep.mubr.bf16.mxu0 0
        %7694 = vmatmul.mubr.bf16.gmra.mrb[0].mxu0 %v7598
        %v7695 = vpop.f32.mrb[0].mxu0
        %v7696 = vadd.f32 0.0, %v7695
        %v7697 = vpop.f32.mrb[0].mxu0
        %v7698 = vpop.f32.mrb[0].mxu0
        %v7699 = vadd.f32 0.0, %v7698
        %v7700 = vpop.f32.mrb[0].mxu0
        %7701 = vmatprep.mubr.bf16.mxu0 0
        %7702 = vmatmul.mubr.bf16.gmra.mrb[0].mxu0 %v7599
        %v7703 = vpop.f32.mrb[0].mxu0
        %v7704 = vadd.f32 0.0, %v7703
        %v7705 = vpop.f32.mrb[0].mxu0
        %v7706 = vpop.f32.mrb[0].mxu0
        %v7707 = vadd.f32 0.0, %v7706
        %v7708 = vpop.f32.mrb[0].mxu0
        %7709 = vmatprep.mubr.bf16.mxu0 0
        %7710 = vmatmul.mubr.bf16.gmra.mrb[0].mxu0 %v7600
        %v7711 = vpop.f32.mrb[0].mxu0
        %v7712 = vadd.f32 0.0, %v7711
        %v7713 = vpop.f32.mrb[0].mxu0
        %v7714 = vpop.f32.mrb[0].mxu0
        %v7715 = vadd.f32 0.0, %v7714
        %v7716 = vpop.f32.mrb[0].mxu0
        %7717 = vdwg.mxu0
        %v7718 = vadd.f32 %v7566, %v7688
        %v7719 = vadd.f32 %v7567, %v7691
        %v7720 = vadd.f32 %v7568, %v7696
        %v7721 = vadd.f32 %v7569, %v7699
        %v7722 = vadd.f32 %v7570, %v7704
        %v7723 = vadd.f32 %v7571, %v7707
        %v7724 = vadd.f32 %v7572, %v7712
        %v7725 = vadd.f32 %v7573, %v7715
        %s7726 = scalar_lea.vmem %s7, 384
        %v7727 = vld [vmem:[%s7726] sm:$0xf]
        %v7728 = vld [vmem:[%s7726 + $0x4] sm:$0xf]
        %v7729 = vld [vmem:[%s7726 + $0x8] sm:$0xf]
        %v7730 = vld [vmem:[%s7726 + $0xc] sm:$0xf]
        %v7731 = vld [vmem:[%s7726 + $0x10] sm:$0xf]
        %v7732 = vld [vmem:[%s7726 + $0x14] sm:$0xf]
        %v7733 = vld [vmem:[%s7726 + $0x18] sm:$0xf]
        %v7734 = vld [vmem:[%s7726 + $0x1c] sm:$0xf]
        %v7735 = vld [vmem:[%s7726 + $0x20] sm:$0xf]
        %v7736 = vld [vmem:[%s7726 + $0x24] sm:$0xf]
        %v7737 = vld [vmem:[%s7726 + $0x28] sm:$0xf]
        %v7738 = vld [vmem:[%s7726 + $0x2c] sm:$0xf]
        %v7739 = vld [vmem:[%s7726 + $0x30] sm:$0xf]
        %v7740 = vld [vmem:[%s7726 + $0x34] sm:$0xf]
        %v7741 = vld [vmem:[%s7726 + $0x38] sm:$0xf]
        %v7742 = vld [vmem:[%s7726 + $0x3c] sm:$0xf]
        %v7744 = vunpack.c.l.b16 %v6658
        %v7745 = vpack.c.b16 %v7744, %v7283
        %v7763 = vunpack.c.l.b16 %v7727
        %v7764 = vunpack.c.l.b16 %v7728
        %v7765 = vunpack.c.l.b16 %v7729
        %v7766 = vunpack.c.l.b16 %v7730
        %v7767 = vunpack.c.l.b16 %v7731
        %v7768 = vunpack.c.l.b16 %v7732
        %v7769 = vunpack.c.l.b16 %v7733
        %v7770 = vunpack.c.l.b16 %v7734
        %v7771 = vunpack.c.l.b16 %v7735
        %v7772 = vunpack.c.l.b16 %v7736
        %v7773 = vunpack.c.l.b16 %v7737
        %v7774 = vunpack.c.l.b16 %v7738
        %v7775 = vunpack.c.l.b16 %v7739
        %v7776 = vunpack.c.l.b16 %v7740
        %v7777 = vunpack.c.l.b16 %v7741
        %v7778 = vunpack.c.l.b16 %v7742
        %v7779 = vpack.c.b16 %v7764, %v7763
        %v7780 = vpack.c.b16 %v7766, %v7765
        %v7781 = vpack.c.b16 %v7768, %v7767
        %v7782 = vpack.c.b16 %v7770, %v7769
        %v7783 = vpack.c.b16 %v7772, %v7771
        %v7784 = vpack.c.b16 %v7774, %v7773
        %v7785 = vpack.c.b16 %v7776, %v7775
        %v7786 = vpack.c.b16 %v7778, %v7777
        %7795 = vmatprep.subr.bf16.mxu0 0
        %7796 = vmatpush1.bf16.msra.mxu0 %v7779
        %7797 = vmatprep.subr.bf16.mxu0 0
        %7798 = vmatpush1.bf16.msra.mxu0 %v7780
        %7799 = vmatprep.subr.bf16.mxu0 0
        %7800 = vmatpush1.bf16.msra.mxu0 %v7781
        %7801 = vmatprep.subr.bf16.mxu0 0
        %7802 = vmatpush1.bf16.msra.mxu0 %v7782
        %7803 = vmatprep.subr.bf16.mxu0 0
        %7804 = vmatpush1.bf16.msra.mxu0 %v7783
        %7805 = vmatprep.subr.bf16.mxu0 0
        %7806 = vmatpush1.bf16.msra.mxu0 %v7784
        %7807 = vmatprep.subr.bf16.mxu0 0
        %7808 = vmatpush1.bf16.msra.mxu0 %v7785
        %7809 = vmatprep.subr.bf16.mxu0 0
        %7810 = vmatpush1.bf16.msra.mxu0 %v7786
        %7811 = vmatprep.subr.bf16.mxu0 0
        %7812 = vmatpush1.bf16.msra.mxu0 0
        %7813 = vmatprep.subr.bf16.mxu0 0
        %7814 = vmatpush1.bf16.msra.mxu0 0
        %7815 = vmatprep.subr.bf16.mxu0 0
        %7816 = vmatpush1.bf16.msra.mxu0 0
        %7817 = vmatprep.subr.bf16.mxu0 0
        %7818 = vmatpush1.bf16.msra.mxu0 0
        %7819 = vmatprep.subr.bf16.mxu0 0
        %7820 = vmatpush1.bf16.msra.mxu0 0
        %7821 = vmatprep.subr.bf16.mxu0 0
        %7822 = vmatpush1.bf16.msra.mxu0 0
        %7823 = vmatprep.subr.bf16.mxu0 0
        %7824 = vmatpush1.bf16.msra.mxu0 0
        %7825 = vmatprep.subr.bf16.mxu0 0
        %7826 = vmatpush1.bf16.msra.mxu0 0
        %7827 = vmatprep.mubr.bf16.mxu0 0
        %7828 = vmatmul.mubr.bf16.gmra.mrb[0].mxu0 %v6951
        %v7829 = vpop.f32.mrb[0].mxu0
        %v7830 = vadd.f32 0.0, %v7829
        %v7831 = vpop.f32.mrb[0].mxu0
        %v7832 = vpop.f32.mrb[0].mxu0
        %v7833 = vadd.f32 0.0, %v7832
        %v7834 = vpop.f32.mrb[0].mxu0
        %7835 = vmatprep.mubr.bf16.mxu0 0
        %7836 = vmatmul.mubr.bf16.gmra.mrb[0].mxu0 %v6952
        %v7837 = vpop.f32.mrb[0].mxu0
        %v7838 = vadd.f32 0.0, %v7837
        %v7839 = vpop.f32.mrb[0].mxu0
        %v7840 = vpop.f32.mrb[0].mxu0
        %v7841 = vadd.f32 0.0, %v7840
        %v7842 = vpop.f32.mrb[0].mxu0
        %7843 = vmatprep.mubr.bf16.mxu0 0
        %7844 = vmatmul.mubr.bf16.gmra.mrb[0].mxu0 %v6953
        %v7845 = vpop.f32.mrb[0].mxu0
        %v7846 = vadd.f32 0.0, %v7845
        %v7847 = vpop.f32.mrb[0].mxu0
        %v7848 = vpop.f32.mrb[0].mxu0
        %v7849 = vadd.f32 0.0, %v7848
        %v7850 = vpop.f32.mrb[0].mxu0
        %7851 = vmatprep.mubr.bf16.mxu0 0
        %7852 = vmatmul.mubr.bf16.gmra.mrb[0].mxu0 %v7745
        %v7853 = vpop.f32.mrb[0].mxu0
        %v7854 = vadd.f32 0.0, %v7853
        %v7855 = vpop.f32.mrb[0].mxu0
        %v7856 = vpop.f32.mrb[0].mxu0
        %v7857 = vadd.f32 0.0, %v7856
        %v7858 = vpop.f32.mrb[0].mxu0
        %7859 = vdwg.mxu0
        %v7860 = vadd.f32 %v7718, %v7830
        %v7861 = vadd.f32 %v7719, %v7833
        %v7862 = vadd.f32 %v7720, %v7838
        %v7863 = vadd.f32 %v7721, %v7841
        %v7864 = vadd.f32 %v7722, %v7846
        %v7865 = vadd.f32 %v7723, %v7849
        %v7866 = vadd.f32 %v7724, %v7854
        %v7867 = vadd.f32 %v7725, %v7857
        %v7869 = vshrl.u32 %v6658, 16
        %v7871 = vrot.slane %v7869, 4
        %v7872 = vshll.u32 %v6658, 16
        %v7874 = vrot.slane %v7872, 5
        %v7875 = vor.u32 %v7871, %v7874
        %v7876 = vrot.slane %v7875, 4
        %v7878 = vshll.u32 %v6659, 16
        %v7880 = vrot.slane %v7878, 5
        %v7881 = vsel %vm1464, %v7876, %v7880
        %s7882 = scalar_lea.vmem %s7, 448
        %v7883 = vld [vmem:[%s7882] sm:$0xf]
        %v7884 = vld [vmem:[%s7882 + $0x4] sm:$0xf]
        %v7885 = vld [vmem:[%s7882 + $0x8] sm:$0xf]
        %v7886 = vld [vmem:[%s7882 + $0xc] sm:$0xf]
        %v7887 = vld [vmem:[%s7882 + $0x10] sm:$0xf]
        %v7888 = vld [vmem:[%s7882 + $0x14] sm:$0xf]
        %v7889 = vld [vmem:[%s7882 + $0x18] sm:$0xf]
        %v7890 = vld [vmem:[%s7882 + $0x1c] sm:$0xf]
        %v7891 = vld [vmem:[%s7882 + $0x20] sm:$0xf]
        %v7892 = vld [vmem:[%s7882 + $0x24] sm:$0xf]
        %v7893 = vld [vmem:[%s7882 + $0x28] sm:$0xf]
        %v7894 = vld [vmem:[%s7882 + $0x2c] sm:$0xf]
        %v7895 = vld [vmem:[%s7882 + $0x30] sm:$0xf]
        %v7896 = vld [vmem:[%s7882 + $0x34] sm:$0xf]
        %v7897 = vld [vmem:[%s7882 + $0x38] sm:$0xf]
        %v7898 = vld [vmem:[%s7882 + $0x3c] sm:$0xf]
        %v7899 = vunpack.c.l.b16 %v7881
        %v7900 = vpack.c.b16 %v7899, %v7444
        %v7918 = vunpack.c.l.b16 %v7883
        %v7919 = vunpack.c.l.b16 %v7884
        %v7920 = vunpack.c.l.b16 %v7885
        %v7921 = vunpack.c.l.b16 %v7886
        %v7922 = vunpack.c.l.b16 %v7887
        %v7923 = vunpack.c.l.b16 %v7888
        %v7924 = vunpack.c.l.b16 %v7889
        %v7925 = vunpack.c.l.b16 %v7890
        %v7926 = vunpack.c.l.b16 %v7891
        %v7927 = vunpack.c.l.b16 %v7892
        %v7928 = vunpack.c.l.b16 %v7893
        %v7929 = vunpack.c.l.b16 %v7894
        %v7930 = vunpack.c.l.b16 %v7895
        %v7931 = vunpack.c.l.b16 %v7896
        %v7932 = vunpack.c.l.b16 %v7897
        %v7933 = vunpack.c.l.b16 %v7898
        %v7934 = vpack.c.b16 %v7919, %v7918
        %v7935 = vpack.c.b16 %v7921, %v7920
        %v7936 = vpack.c.b16 %v7923, %v7922
        %v7937 = vpack.c.b16 %v7925, %v7924
        %v7938 = vpack.c.b16 %v7927, %v7926
        %v7939 = vpack.c.b16 %v7929, %v7928
        %v7940 = vpack.c.b16 %v7931, %v7930
        %v7941 = vpack.c.b16 %v7933, %v7932
        %7950 = vmatprep.subr.bf16.mxu0 0
        %7951 = vmatpush1.bf16.msra.mxu0 %v7934
        %7952 = vmatprep.subr.bf16.mxu0 0
        %7953 = vmatpush1.bf16.msra.mxu0 %v7935
        %7954 = vmatprep.subr.bf16.mxu0 0
        %7955 = vmatpush1.bf16.msra.mxu0 %v7936
        %7956 = vmatprep.subr.bf16.mxu0 0
        %7957 = vmatpush1.bf16.msra.mxu0 %v7937
        %7958 = vmatprep.subr.bf16.mxu0 0
        %7959 = vmatpush1.bf16.msra.mxu0 %v7938
        %7960 = vmatprep.subr.bf16.mxu0 0
        %7961 = vmatpush1.bf16.msra.mxu0 %v7939
        %7962 = vmatprep.subr.bf16.mxu0 0
        %7963 = vmatpush1.bf16.msra.mxu0 %v7940
        %7964 = vmatprep.subr.bf16.mxu0 0
        %7965 = vmatpush1.bf16.msra.mxu0 %v7941
        %7966 = vmatprep.subr.bf16.mxu0 0
        %7967 = vmatpush1.bf16.msra.mxu0 0
        %7968 = vmatprep.subr.bf16.mxu0 0
        %7969 = vmatpush1.bf16.msra.mxu0 0
        %7970 = vmatprep.subr.bf16.mxu0 0
        %7971 = vmatpush1.bf16.msra.mxu0 0
        %7972 = vmatprep.subr.bf16.mxu0 0
        %7973 = vmatpush1.bf16.msra.mxu0 0
        %7974 = vmatprep.subr.bf16.mxu0 0
        %7975 = vmatpush1.bf16.msra.mxu0 0
        %7976 = vmatprep.subr.bf16.mxu0 0
        %7977 = vmatpush1.bf16.msra.mxu0 0
        %7978 = vmatprep.subr.bf16.mxu0 0
        %7979 = vmatpush1.bf16.msra.mxu0 0
        %7980 = vmatprep.subr.bf16.mxu0 0
        %7981 = vmatpush1.bf16.msra.mxu0 0
        %7982 = vmatprep.mubr.bf16.mxu0 0
        %7983 = vmatmul.mubr.bf16.gmra.mrb[0].mxu0 %v6814
        %v7984 = vpop.f32.mrb[0].mxu0
        %v7985 = vadd.f32 0.0, %v7984
        %v7986 = vpop.f32.mrb[0].mxu0
        %v7987 = vpop.f32.mrb[0].mxu0
        %v7988 = vadd.f32 0.0, %v7987
        %v7989 = vpop.f32.mrb[0].mxu0
        %7990 = vmatprep.mubr.bf16.mxu0 0
        %7991 = vmatmul.mubr.bf16.gmra.mrb[0].mxu0 %v6815
        %v7992 = vpop.f32.mrb[0].mxu0
        %v7993 = vadd.f32 0.0, %v7992
        %v7994 = vpop.f32.mrb[0].mxu0
        %v7995 = vpop.f32.mrb[0].mxu0
        %v7996 = vadd.f32 0.0, %v7995
        %v7997 = vpop.f32.mrb[0].mxu0
        %7998 = vmatprep.mubr.bf16.mxu0 0
        %7999 = vmatmul.mubr.bf16.gmra.mrb[0].mxu0 %v6816
        %v8000 = vpop.f32.mrb[0].mxu0
        %v8001 = vadd.f32 0.0, %v8000
        %v8002 = vpop.f32.mrb[0].mxu0
        %v8003 = vpop.f32.mrb[0].mxu0
        %v8004 = vadd.f32 0.0, %v8003
        %v8005 = vpop.f32.mrb[0].mxu0
        %8006 = vmatprep.mubr.bf16.mxu0 0
        %8007 = vmatmul.mubr.bf16.gmra.mrb[0].mxu0 %v7900
        %v8008 = vpop.f32.mrb[0].mxu0
        %v8009 = vadd.f32 0.0, %v8008
        %v8010 = vpop.f32.mrb[0].mxu0
        %v8011 = vpop.f32.mrb[0].mxu0
        %v8012 = vadd.f32 0.0, %v8011
        %v8013 = vpop.f32.mrb[0].mxu0
        %8014 = vdwg.mxu0
        %v8015 = vadd.f32 %v7860, %v7985
        %v8016 = vadd.f32 %v7861, %v7988
        %v8017 = vadd.f32 %v7862, %v7993
        %v8018 = vadd.f32 %v7863, %v7996
        %v8019 = vadd.f32 %v7864, %v8001
        %v8020 = vadd.f32 %v7865, %v8004
        %v8021 = vadd.f32 %v7866, %v8009
        %v8022 = vadd.f32 %v7867, %v8012
        %v8024 = vrot.slane %v6658, 5
        %v8025 = vrot.slane %v8024, 4
        %v8026 = vrot.slane %v6659, 5
        %v8027 = vsel %vm2471, %v8025, %v8026
        %s8028 = scalar_lea.vmem %s7, 512
        %v8029 = vld [vmem:[%s8028] sm:$0xf]
        %v8030 = vld [vmem:[%s8028 + $0x4] sm:$0xf]
        %v8031 = vld [vmem:[%s8028 + $0x8] sm:$0xf]
        %v8032 = vld [vmem:[%s8028 + $0xc] sm:$0xf]
        %v8033 = vld [vmem:[%s8028 + $0x10] sm:$0xf]
        %v8034 = vld [vmem:[%s8028 + $0x14] sm:$0xf]
        %v8035 = vld [vmem:[%s8028 + $0x18] sm:$0xf]
        %v8036 = vld [vmem:[%s8028 + $0x1c] sm:$0xf]
        %v8037 = vld [vmem:[%s8028 + $0x20] sm:$0xf]
        %v8038 = vld [vmem:[%s8028 + $0x24] sm:$0xf]
        %v8039 = vld [vmem:[%s8028 + $0x28] sm:$0xf]
        %v8040 = vld [vmem:[%s8028 + $0x2c] sm:$0xf]
        %v8041 = vld [vmem:[%s8028 + $0x30] sm:$0xf]
        %v8042 = vld [vmem:[%s8028 + $0x34] sm:$0xf]
        %v8043 = vld [vmem:[%s8028 + $0x38] sm:$0xf]
        %v8044 = vld [vmem:[%s8028 + $0x3c] sm:$0xf]
        %v8045 = vunpack.c.l.b16 %v8027
        %v8046 = vpack.c.b16 %v8045, %v7596
        %v8064 = vunpack.c.l.b16 %v8029
        %v8065 = vunpack.c.l.b16 %v8030
        %v8066 = vunpack.c.l.b16 %v8031
        %v8067 = vunpack.c.l.b16 %v8032
        %v8068 = vunpack.c.l.b16 %v8033
        %v8069 = vunpack.c.l.b16 %v8034
        %v8070 = vunpack.c.l.b16 %v8035
        %v8071 = vunpack.c.l.b16 %v8036
        %v8072 = vunpack.c.l.b16 %v8037
        %v8073 = vunpack.c.l.b16 %v8038
        %v8074 = vunpack.c.l.b16 %v8039
        %v8075 = vunpack.c.l.b16 %v8040
        %v8076 = vunpack.c.l.b16 %v8041
        %v8077 = vunpack.c.l.b16 %v8042
        %v8078 = vunpack.c.l.b16 %v8043
        %v8079 = vunpack.c.l.b16 %v8044
        %v8080 = vpack.c.b16 %v8065, %v8064
        %v8081 = vpack.c.b16 %v8067, %v8066
        %v8082 = vpack.c.b16 %v8069, %v8068
        %v8083 = vpack.c.b16 %v8071, %v8070
        %v8084 = vpack.c.b16 %v8073, %v8072
        %v8085 = vpack.c.b16 %v8075, %v8074
        %v8086 = vpack.c.b16 %v8077, %v8076
        %v8087 = vpack.c.b16 %v8079, %v8078
        %8096 = vmatprep.subr.bf16.mxu0 0
        %8097 = vmatpush1.bf16.msra.mxu0 %v8080
        %8098 = vmatprep.subr.bf16.mxu0 0
        %8099 = vmatpush1.bf16.msra.mxu0 %v8081
        %8100 = vmatprep.subr.bf16.mxu0 0
        %8101 = vmatpush1.bf16.msra.mxu0 %v8082
        %8102 = vmatprep.subr.bf16.mxu0 0
        %8103 = vmatpush1.bf16.msra.mxu0 %v8083
        %8104 = vmatprep.subr.bf16.mxu0 0
        %8105 = vmatpush1.bf16.msra.mxu0 %v8084
        %8106 = vmatprep.subr.bf16.mxu0 0
        %8107 = vmatpush1.bf16.msra.mxu0 %v8085
        %8108 = vmatprep.subr.bf16.mxu0 0
        %8109 = vmatpush1.bf16.msra.mxu0 %v8086
        %8110 = vmatprep.subr.bf16.mxu0 0
        %8111 = vmatpush1.bf16.msra.mxu0 %v8087
        %8112 = vmatprep.subr.bf16.mxu0 0
        %8113 = vmatpush1.bf16.msra.mxu0 0
        %8114 = vmatprep.subr.bf16.mxu0 0
        %8115 = vmatpush1.bf16.msra.mxu0 0
        %8116 = vmatprep.subr.bf16.mxu0 0
        %8117 = vmatpush1.bf16.msra.mxu0 0
        %8118 = vmatprep.subr.bf16.mxu0 0
        %8119 = vmatpush1.bf16.msra.mxu0 0
        %8120 = vmatprep.subr.bf16.mxu0 0
        %8121 = vmatpush1.bf16.msra.mxu0 0
        %8122 = vmatprep.subr.bf16.mxu0 0
        %8123 = vmatpush1.bf16.msra.mxu0 0
        %8124 = vmatprep.subr.bf16.mxu0 0
        %8125 = vmatpush1.bf16.msra.mxu0 0
        %8126 = vmatprep.subr.bf16.mxu0 0
        %8127 = vmatpush1.bf16.msra.mxu0 0
        %8128 = vmatprep.mubr.bf16.mxu0 0
        %8129 = vmatmul.mubr.bf16.gmra.mrb[0].mxu0 %v7137
        %v8130 = vpop.f32.mrb[0].mxu0
        %v8131 = vadd.f32 0.0, %v8130
        %v8132 = vpop.f32.mrb[0].mxu0
        %v8133 = vpop.f32.mrb[0].mxu0
        %v8134 = vadd.f32 0.0, %v8133
        %v8135 = vpop.f32.mrb[0].mxu0
        %8136 = vmatprep.mubr.bf16.mxu0 0
        %8137 = vmatmul.mubr.bf16.gmra.mrb[0].mxu0 %v7138
        %v8138 = vpop.f32.mrb[0].mxu0
        %v8139 = vadd.f32 0.0, %v8138
        %v8140 = vpop.f32.mrb[0].mxu0
        %v8141 = vpop.f32.mrb[0].mxu0
        %v8142 = vadd.f32 0.0, %v8141
        %v8143 = vpop.f32.mrb[0].mxu0
        %8144 = vmatprep.mubr.bf16.mxu0 0
        %8145 = vmatmul.mubr.bf16.gmra.mrb[0].mxu0 %v7139
        %v8146 = vpop.f32.mrb[0].mxu0
        %v8147 = vadd.f32 0.0, %v8146
        %v8148 = vpop.f32.mrb[0].mxu0
        %v8149 = vpop.f32.mrb[0].mxu0
        %v8150 = vadd.f32 0.0, %v8149
        %v8151 = vpop.f32.mrb[0].mxu0
        %8152 = vmatprep.mubr.bf16.mxu0 0
        %8153 = vmatmul.mubr.bf16.gmra.mrb[0].mxu0 %v8046
        %v8154 = vpop.f32.mrb[0].mxu0
        %v8155 = vadd.f32 0.0, %v8154
        %v8156 = vpop.f32.mrb[0].mxu0
        %v8157 = vpop.f32.mrb[0].mxu0
        %v8158 = vadd.f32 0.0, %v8157
        %v8159 = vpop.f32.mrb[0].mxu0
        %8160 = vdwg.mxu0
        %v8161 = vadd.f32 %v8015, %v8131
        %v8162 = vadd.f32 %v8016, %v8134
        %v8163 = vadd.f32 %v8017, %v8139
        %v8164 = vadd.f32 %v8018, %v8142
        %v8165 = vadd.f32 %v8019, %v8147
        %v8166 = vadd.f32 %v8020, %v8150
        %v8167 = vadd.f32 %v8021, %v8155
        %v8168 = vadd.f32 %v8022, %v8158
        %v8169 = vld [vmem:[%s8] sm:$0x1]
        %v8171 = vlaneseq
        %v8172 = vshrl.u32 %v8171, 7
        %v8173 = vsub.s32 0, %v8172
        %v8174 = vrot.slane %v8169, %v8173
        %v8176 = vadd.f32 %v8161, %v8174
        %v8177 = vadd.f32 %v8162, %v8174
        %v8178 = vadd.f32 %v8163, %v8174
        %v8179 = vadd.f32 %v8164, %v8174
        %v8180 = vadd.f32 %v8165, %v8174
        %v8181 = vadd.f32 %v8166, %v8174
        %v8182 = vadd.f32 %v8167, %v8174
        %v8183 = vadd.f32 %v8168, %v8174
        %v8184 = vmax.f32 %v8176, 0.0
        %v8185 = vmax.f32 %v8177, 0.0
        %v8186 = vmax.f32 %v8178, 0.0
        %v8187 = vmax.f32 %v8179, 0.0
        %v8188 = vmax.f32 %v8180, 0.0
        %v8189 = vmax.f32 %v8181, 0.0
        %v8190 = vmax.f32 %v8182, 0.0
        %v8191 = vmax.f32 %v8183, 0.0
        %v8192 = vld [vmem:[%s10] sm:$0xff]
        %v8193 = vld [vmem:[%s10 + $0x8] sm:$0xff]
        %v8195 = vsel %vm1930, %v8192, 0
        %v8198 = vsel %vm1930, %v8193, 0
        %8200 = vmatprep.subr.mxu0 0.0
        %8201 = vmatpush1.msra.mxu0 %v8184
        %8202 = vmatprep.subr.mxu0 0.0
        %8203 = vmatpush1.msra.mxu0 %v8185
        %8204 = vmatprep.subr.mxu0 0.0
        %8205 = vmatpush1.msra.mxu0 %v8186
        %8206 = vmatprep.subr.mxu0 0.0
        %8207 = vmatpush1.msra.mxu0 %v8187
        %8208 = vmatprep.subr.mxu0 0.0
        %8209 = vmatpush1.msra.mxu0 %v8188
        %8210 = vmatprep.subr.mxu0 0.0
        %8211 = vmatpush1.msra.mxu0 %v8189
        %8212 = vmatprep.subr.mxu0 0.0
        %8213 = vmatpush1.msra.mxu0 %v8190
        %8214 = vmatprep.subr.mxu0 0.0
        %8215 = vmatpush1.msra.mxu0 %v8191
        %8216 = vmatprep.subr.mxu0 0.0
        %8217 = vmatpush1.msra.mxu0 0.0
        %8218 = vmatprep.subr.mxu0 0.0
        %8219 = vmatpush1.msra.mxu0 0.0
        %8220 = vmatprep.subr.mxu0 0.0
        %8221 = vmatpush1.msra.mxu0 0.0
        %8222 = vmatprep.subr.mxu0 0.0
        %8223 = vmatpush1.msra.mxu0 0.0
        %8224 = vmatprep.subr.mxu0 0.0
        %8225 = vmatpush1.msra.mxu0 0.0
        %8226 = vmatprep.subr.mxu0 0.0
        %8227 = vmatpush1.msra.mxu0 0.0
        %8228 = vmatprep.subr.mxu0 0.0
        %8229 = vmatpush1.msra.mxu0 0.0
        %8230 = vmatprep.subr.mxu0 0.0
        %8231 = vmatpush1.msra.mxu0 0.0
        %8232 = vmatprep.subr.mxu0 0.0
        %8233 = vmatpush1.msra.mxu0 0.0
        %8234 = vmatprep.subr.mxu0 0.0
        %8235 = vmatpush1.msra.mxu0 0.0
        %8236 = vmatprep.subr.mxu0 0.0
        %8237 = vmatpush1.msra.mxu0 0.0
        %8238 = vmatprep.subr.mxu0 0.0
        %8239 = vmatpush1.msra.mxu0 0.0
        %8240 = vmatprep.subr.mxu0 0.0
        %8241 = vmatpush1.msra.mxu0 0.0
        %8242 = vmatprep.subr.mxu0 0.0
        %8243 = vmatpush1.msra.mxu0 0.0
        %8244 = vmatprep.subr.mxu0 0.0
        %8245 = vmatpush1.msra.mxu0 0.0
        %8246 = vmatprep.subr.mxu0 0.0
        %8247 = vmatpush1.msra.mxu0 0.0
        %8248 = vmatprep.subr.mxu0 0.0
        %8249 = vmatpush1.msra.mxu0 0.0
        %8250 = vmatprep.subr.mxu0 0.0
        %8251 = vmatpush1.msra.mxu0 0.0
        %8252 = vmatprep.subr.mxu0 0.0
        %8253 = vmatpush1.msra.mxu0 0.0
        %8254 = vmatprep.subr.mxu0 0.0
        %8255 = vmatpush1.msra.mxu0 0.0
        %8256 = vmatprep.subr.mxu0 0.0
        %8257 = vmatpush1.msra.mxu0 0.0
        %8258 = vmatprep.subr.mxu0 0.0
        %8259 = vmatpush1.msra.mxu0 0.0
        %8260 = vmatprep.subr.mxu0 0.0
        %8261 = vmatpush1.msra.mxu0 0.0
        %8262 = vmatprep.subr.mxu0 0.0
        %8263 = vmatpush1.msra.mxu0 0.0
        %8264 = vmatprep.mubr.f32.mxu0 0.0
        %8265 = vmatmul.mubr.f32.gmra.mrb[0].mxu0 %v8195
        %v8266 = vpop.f32.mrb[0].mxu0
        %v8267 = vadd.f32 0.0, %v8266
        %v8268 = vpop.f32.mrb[0].mxu0
        %8269 = vmatprep.mubr.f32.mxu0 0.0
        %8270 = vmatmul.mubr.f32.gmra.mrb[0].mxu0 %v8198
        %v8271 = vpop.f32.mrb[0].mxu0
        %v8272 = vadd.f32 0.0, %v8271
        %v8273 = vpop.f32.mrb[0].mxu0
        %8274 = vdwg.mxu0
        %s8275 = scalar_lea.vmem %s10, 16
        %v8276 = vld [vmem:[%s8275] sm:$0xff]
        %v8277 = vld [vmem:[%s8275 + $0x8] sm:$0xff]
        %v8279 = vsel %vm1930, %v8276, 0
        %v8282 = vsel %vm1930, %v8277, 0
        %8284 = vmatprep.subr.mxu0 0.0
        %8285 = vmatpush1.msra.mxu0 %v8184
        %8286 = vmatprep.subr.mxu0 0.0
        %8287 = vmatpush1.msra.mxu0 %v8185
        %8288 = vmatprep.subr.mxu0 0.0
        %8289 = vmatpush1.msra.mxu0 %v8186
        %8290 = vmatprep.subr.mxu0 0.0
        %8291 = vmatpush1.msra.mxu0 %v8187
        %8292 = vmatprep.subr.mxu0 0.0
        %8293 = vmatpush1.msra.mxu0 %v8188
        %8294 = vmatprep.subr.mxu0 0.0
        %8295 = vmatpush1.msra.mxu0 %v8189
        %8296 = vmatprep.subr.mxu0 0.0
        %8297 = vmatpush1.msra.mxu0 %v8190
        %8298 = vmatprep.subr.mxu0 0.0
        %8299 = vmatpush1.msra.mxu0 %v8191
        %8300 = vmatprep.subr.mxu0 0.0
        %8301 = vmatpush1.msra.mxu0 0.0
        %8302 = vmatprep.subr.mxu0 0.0
        %8303 = vmatpush1.msra.mxu0 0.0
        %8304 = vmatprep.subr.mxu0 0.0
        %8305 = vmatpush1.msra.mxu0 0.0
        %8306 = vmatprep.subr.mxu0 0.0
        %8307 = vmatpush1.msra.mxu0 0.0
        %8308 = vmatprep.subr.mxu0 0.0
        %8309 = vmatpush1.msra.mxu0 0.0
        %8310 = vmatprep.subr.mxu0 0.0
        %8311 = vmatpush1.msra.mxu0 0.0
        %8312 = vmatprep.subr.mxu0 0.0
        %8313 = vmatpush1.msra.mxu0 0.0
        %8314 = vmatprep.subr.mxu0 0.0
        %8315 = vmatpush1.msra.mxu0 0.0
        %8316 = vmatprep.subr.mxu0 0.0
        %8317 = vmatpush1.msra.mxu0 0.0
        %8318 = vmatprep.subr.mxu0 0.0
        %8319 = vmatpush1.msra.mxu0 0.0
        %8320 = vmatprep.subr.mxu0 0.0
        %8321 = vmatpush1.msra.mxu0 0.0
        %8322 = vmatprep.subr.mxu0 0.0
        %8323 = vmatpush1.msra.mxu0 0.0
        %8324 = vmatprep.subr.mxu0 0.0
        %8325 = vmatpush1.msra.mxu0 0.0
        %8326 = vmatprep.subr.mxu0 0.0
        %8327 = vmatpush1.msra.mxu0 0.0
        %8328 = vmatprep.subr.mxu0 0.0
        %8329 = vmatpush1.msra.mxu0 0.0
        %8330 = vmatprep.subr.mxu0 0.0
        %8331 = vmatpush1.msra.mxu0 0.0
        %8332 = vmatprep.subr.mxu0 0.0
        %8333 = vmatpush1.msra.mxu0 0.0
        %8334 = vmatprep.subr.mxu0 0.0
        %8335 = vmatpush1.msra.mxu0 0.0
        %8336 = vmatprep.subr.mxu0 0.0
        %8337 = vmatpush1.msra.mxu0 0.0
        %8338 = vmatprep.subr.mxu0 0.0
        %8339 = vmatpush1.msra.mxu0 0.0
        %8340 = vmatprep.subr.mxu0 0.0
        %8341 = vmatpush1.msra.mxu0 0.0
        %8342 = vmatprep.subr.mxu0 0.0
        %8343 = vmatpush1.msra.mxu0 0.0
        %8344 = vmatprep.subr.mxu0 0.0
        %8345 = vmatpush1.msra.mxu0 0.0
        %8346 = vmatprep.subr.mxu0 0.0
        %8347 = vmatpush1.msra.mxu0 0.0
        %8348 = vmatprep.mubr.f32.mxu0 0.0
        %8349 = vmatmul.mubr.f32.gmra.mrb[0].mxu0 %v8279
        %v8350 = vpop.f32.mrb[0].mxu0
        %v8351 = vadd.f32 0.0, %v8350
        %v8352 = vpop.f32.mrb[0].mxu0
        %8353 = vmatprep.mubr.f32.mxu0 0.0
        %8354 = vmatmul.mubr.f32.gmra.mrb[0].mxu0 %v8282
        %v8355 = vpop.f32.mrb[0].mxu0
        %v8356 = vadd.f32 0.0, %v8355
        %v8357 = vpop.f32.mrb[0].mxu0
        %8358 = vdwg.mxu0
        %v8359 = vmax.f32 %v8267, %v8351
        %v8360 = vmax.f32 %v8272, %v8356
        %s8361 = scalar_lea.vmem %s10, 32
        %v8362 = vld [vmem:[%s8361] sm:$0xff]
        %v8363 = vld [vmem:[%s8361 + $0x8] sm:$0xff]
        %v8365 = vsel %vm1930, %v8362, 0
        %v8368 = vsel %vm1930, %v8363, 0
        %8370 = vmatprep.subr.mxu0 0.0
        %8371 = vmatpush1.msra.mxu0 %v8184
        %8372 = vmatprep.subr.mxu0 0.0
        %8373 = vmatpush1.msra.mxu0 %v8185
        %8374 = vmatprep.subr.mxu0 0.0
        %8375 = vmatpush1.msra.mxu0 %v8186
        %8376 = vmatprep.subr.mxu0 0.0
        %8377 = vmatpush1.msra.mxu0 %v8187
        %8378 = vmatprep.subr.mxu0 0.0
        %8379 = vmatpush1.msra.mxu0 %v8188
        %8380 = vmatprep.subr.mxu0 0.0
        %8381 = vmatpush1.msra.mxu0 %v8189
        %8382 = vmatprep.subr.mxu0 0.0
        %8383 = vmatpush1.msra.mxu0 %v8190
        %8384 = vmatprep.subr.mxu0 0.0
        %8385 = vmatpush1.msra.mxu0 %v8191
        %8386 = vmatprep.subr.mxu0 0.0
        %8387 = vmatpush1.msra.mxu0 0.0
        %8388 = vmatprep.subr.mxu0 0.0
        %8389 = vmatpush1.msra.mxu0 0.0
        %8390 = vmatprep.subr.mxu0 0.0
        %8391 = vmatpush1.msra.mxu0 0.0
        %8392 = vmatprep.subr.mxu0 0.0
        %8393 = vmatpush1.msra.mxu0 0.0
        %8394 = vmatprep.subr.mxu0 0.0
        %8395 = vmatpush1.msra.mxu0 0.0
        %8396 = vmatprep.subr.mxu0 0.0
        %8397 = vmatpush1.msra.mxu0 0.0
        %8398 = vmatprep.subr.mxu0 0.0
        %8399 = vmatpush1.msra.mxu0 0.0
        %8400 = vmatprep.subr.mxu0 0.0
        %8401 = vmatpush1.msra.mxu0 0.0
        %8402 = vmatprep.subr.mxu0 0.0
        %8403 = vmatpush1.msra.mxu0 0.0
        %8404 = vmatprep.subr.mxu0 0.0
        %8405 = vmatpush1.msra.mxu0 0.0
        %8406 = vmatprep.subr.mxu0 0.0
        %8407 = vmatpush1.msra.mxu0 0.0
        %8408 = vmatprep.subr.mxu0 0.0
        %8409 = vmatpush1.msra.mxu0 0.0
        %8410 = vmatprep.subr.mxu0 0.0
        %8411 = vmatpush1.msra.mxu0 0.0
        %8412 = vmatprep.subr.mxu0 0.0
        %8413 = vmatpush1.msra.mxu0 0.0
        %8414 = vmatprep.subr.mxu0 0.0
        %8415 = vmatpush1.msra.mxu0 0.0
        %8416 = vmatprep.subr.mxu0 0.0
        %8417 = vmatpush1.msra.mxu0 0.0
        %8418 = vmatprep.subr.mxu0 0.0
        %8419 = vmatpush1.msra.mxu0 0.0
        %8420 = vmatprep.subr.mxu0 0.0
        %8421 = vmatpush1.msra.mxu0 0.0
        %8422 = vmatprep.subr.mxu0 0.0
        %8423 = vmatpush1.msra.mxu0 0.0
        %8424 = vmatprep.subr.mxu0 0.0
        %8425 = vmatpush1.msra.mxu0 0.0
        %8426 = vmatprep.subr.mxu0 0.0
        %8427 = vmatpush1.msra.mxu0 0.0
        %8428 = vmatprep.subr.mxu0 0.0
        %8429 = vmatpush1.msra.mxu0 0.0
        %8430 = vmatprep.subr.mxu0 0.0
        %8431 = vmatpush1.msra.mxu0 0.0
        %8432 = vmatprep.subr.mxu0 0.0
        %8433 = vmatpush1.msra.mxu0 0.0
        %8434 = vmatprep.mubr.f32.mxu0 0.0
        %8435 = vmatmul.mubr.f32.gmra.mrb[0].mxu0 %v8365
        %v8436 = vpop.f32.mrb[0].mxu0
        %v8437 = vadd.f32 0.0, %v8436
        %v8438 = vpop.f32.mrb[0].mxu0
        %8439 = vmatprep.mubr.f32.mxu0 0.0
        %8440 = vmatmul.mubr.f32.gmra.mrb[0].mxu0 %v8368
        %v8441 = vpop.f32.mrb[0].mxu0
        %v8442 = vadd.f32 0.0, %v8441
        %v8443 = vpop.f32.mrb[0].mxu0
        %8444 = vdwg.mxu0
        %v8445 = vmax.f32 %v8359, %v8437
        %v8446 = vmax.f32 %v8360, %v8442
        %s8447 = scalar_lea.vmem %s10, 48
        %v8448 = vld [vmem:[%s8447] sm:$0xff]
        %v8449 = vld [vmem:[%s8447 + $0x8] sm:$0xff]
        %v8451 = vsel %vm1930, %v8448, 0
        %v8454 = vsel %vm1930, %v8449, 0
        %8456 = vmatprep.subr.mxu0 0.0
        %8457 = vmatpush1.msra.mxu0 %v8184
        %8458 = vmatprep.subr.mxu0 0.0
        %8459 = vmatpush1.msra.mxu0 %v8185
        %8460 = vmatprep.subr.mxu0 0.0
        %8461 = vmatpush1.msra.mxu0 %v8186
        %8462 = vmatprep.subr.mxu0 0.0
        %8463 = vmatpush1.msra.mxu0 %v8187
        %8464 = vmatprep.subr.mxu0 0.0
        %8465 = vmatpush1.msra.mxu0 %v8188
        %8466 = vmatprep.subr.mxu0 0.0
        %8467 = vmatpush1.msra.mxu0 %v8189
        %8468 = vmatprep.subr.mxu0 0.0
        %8469 = vmatpush1.msra.mxu0 %v8190
        %8470 = vmatprep.subr.mxu0 0.0
        %8471 = vmatpush1.msra.mxu0 %v8191
        %8472 = vmatprep.subr.mxu0 0.0
        %8473 = vmatpush1.msra.mxu0 0.0
        %8474 = vmatprep.subr.mxu0 0.0
        %8475 = vmatpush1.msra.mxu0 0.0
        %8476 = vmatprep.subr.mxu0 0.0
        %8477 = vmatpush1.msra.mxu0 0.0
        %8478 = vmatprep.subr.mxu0 0.0
        %8479 = vmatpush1.msra.mxu0 0.0
        %8480 = vmatprep.subr.mxu0 0.0
        %8481 = vmatpush1.msra.mxu0 0.0
        %8482 = vmatprep.subr.mxu0 0.0
        %8483 = vmatpush1.msra.mxu0 0.0
        %8484 = vmatprep.subr.mxu0 0.0
        %8485 = vmatpush1.msra.mxu0 0.0
        %8486 = vmatprep.subr.mxu0 0.0
        %8487 = vmatpush1.msra.mxu0 0.0
        %8488 = vmatprep.subr.mxu0 0.0
        %8489 = vmatpush1.msra.mxu0 0.0
        %8490 = vmatprep.subr.mxu0 0.0
        %8491 = vmatpush1.msra.mxu0 0.0
        %8492 = vmatprep.subr.mxu0 0.0
        %8493 = vmatpush1.msra.mxu0 0.0
        %8494 = vmatprep.subr.mxu0 0.0
        %8495 = vmatpush1.msra.mxu0 0.0
        %8496 = vmatprep.subr.mxu0 0.0
        %8497 = vmatpush1.msra.mxu0 0.0
        %8498 = vmatprep.subr.mxu0 0.0
        %8499 = vmatpush1.msra.mxu0 0.0
        %8500 = vmatprep.subr.mxu0 0.0
        %8501 = vmatpush1.msra.mxu0 0.0
        %8502 = vmatprep.subr.mxu0 0.0
        %8503 = vmatpush1.msra.mxu0 0.0
        %8504 = vmatprep.subr.mxu0 0.0
        %8505 = vmatpush1.msra.mxu0 0.0
        %8506 = vmatprep.subr.mxu0 0.0
        %8507 = vmatpush1.msra.mxu0 0.0
        %8508 = vmatprep.subr.mxu0 0.0
        %8509 = vmatpush1.msra.mxu0 0.0
        %8510 = vmatprep.subr.mxu0 0.0
        %8511 = vmatpush1.msra.mxu0 0.0
        %8512 = vmatprep.subr.mxu0 0.0
        %8513 = vmatpush1.msra.mxu0 0.0
        %8514 = vmatprep.subr.mxu0 0.0
        %8515 = vmatpush1.msra.mxu0 0.0
        %8516 = vmatprep.subr.mxu0 0.0
        %8517 = vmatpush1.msra.mxu0 0.0
        %8518 = vmatprep.subr.mxu0 0.0
        %8519 = vmatpush1.msra.mxu0 0.0
        %8520 = vmatprep.mubr.f32.mxu0 0.0
        %8521 = vmatmul.mubr.f32.gmra.mrb[0].mxu0 %v8451
        %v8522 = vpop.f32.mrb[0].mxu0
        %v8523 = vadd.f32 0.0, %v8522
        %v8524 = vpop.f32.mrb[0].mxu0
        %8525 = vmatprep.mubr.f32.mxu0 0.0
        %8526 = vmatmul.mubr.f32.gmra.mrb[0].mxu0 %v8454
        %v8527 = vpop.f32.mrb[0].mxu0
        %v8528 = vadd.f32 0.0, %v8527
        %v8529 = vpop.f32.mrb[0].mxu0
        %8530 = vdwg.mxu0
        %v8531 = vmax.f32 %v8445, %v8523
        %v8532 = vmax.f32 %v8446, %v8528
        %8533 = vst [vmem:[%s417] sm:$0xff] %v8531
        %8534 = vst [vmem:[%s417 + $0x8] sm:$0xff] %v8532
        %s8535 = sand.u32 %s274, 1
        %s8536 = scalar_lea.sflag [#allocation6], %s8535
        %s8537 = sand.u32 %s274, 1
        %s8538 = smul.addr %s8537, 64
        %s8539 = scalar_lea.vmem [#allocation5], %s8538
        %s8540 = sand.u32 %s300, 1
        %s8541 = scalar_lea.sflag [#allocation8], %s8540
        %s8542 = sand.u32 %s300, 1
        %s8543 = smul.addr %s8542, 16
        %s8544 = scalar_lea.vmem [#allocation7], %s8543
        // Predicated region
        $region65: #{style_transfer_forward.1} parent=63 // pred_check
          %p8545 = pneg %p284
        $region66: #{style_transfer_forward.1} parent=63 // pred_check_branch
          %8547 = sbr.rel (%p8545) target = $region68
        $region67: #{style_transfer_forward.1} parent=63 // pred_region
          %s8549 = ssub.s32 1024, 1024
          %8550 = vsyncadd %s8536, %s8549
          %s8551 = smul.addr %s30, 8
          %s8552 = smul.addr %s8551, 128
          %s8553 = scalar_lea.hbm %s11, %s8552
          %s8554 = sshll.u32 %s8539, 4
          %s8555 = int_to_ptr.vmem [resolvable:$true] %s8554
          %8560 = dma.vmem_to_hbm [thread:$0]  %s8555, 1024, %s8553, %s8536, 128, 128, 8
        $region68: #{style_transfer_forward.1} parent=63 // pred_fallthru
          _
        // Predicated region
        $region69: #{style_transfer_forward.1} parent=63 // pred_check
          %p8561 = pneg %p310
        $region70: #{style_transfer_forward.1} parent=63 // pred_check_branch
          %8563 = sbr.rel (%p8561) target = $region72
        $region71: #{style_transfer_forward.1} parent=63 // pred_region
          %s8565 = ssub.s32 256, 256
          %8566 = vsyncadd %s8541, %s8565
          %s8567 = smul.addr %s30, 2
          %s8568 = smul.addr %s8567, 128
          %s8569 = scalar_lea.hbm %s12, %s8568
          %s8570 = sshll.u32 %s8544, 4
          %s8571 = int_to_ptr.vmem [resolvable:$true] %s8570
          %8576 = dma.vmem_to_hbm [thread:$0]  %s8571, 256, %s8569, %s8541, 128, 128, 8
        $region72: #{style_transfer_forward.1} parent=63 // pred_fallthru
          _
      $region64: #{style_transfer_forward.1} parent=5 // pred_fallthru
        _
      %p8577 = scmp.le.s32.totalorder 2, %s25
      // Predicated region
      $region73: #{style_transfer_forward.1} parent=5 // pred_check
        %p8578 = pneg %p8577
      $region74: #{style_transfer_forward.1} parent=5 // pred_check_branch
        %8580 = sbr.rel (%p8578) target = $region76
      $region75: #{style_transfer_forward.1} parent=5 // pred_region
        %s8581 = ssub.s32 %s25, 2
        // Predicated region
        $region77: #{style_transfer_forward.1} parent=75 // pred_check
          %p8582 = pneg %p290
        $region78: #{style_transfer_forward.1} parent=75 // pred_check_branch
          %8584 = sbr.rel (%p8582) target = $region80
        $region79: #{style_transfer_forward.1} parent=75 // pred_region
          %s8585 = sand.u32 %s275, 1
          %s8586 = scalar_lea.sflag [#allocation6], %s8585
          %s8587 = sand.u32 %s275, 1
          %s8588 = smul.addr %s8587, 64
          %s8589 = scalar_lea.vmem [#allocation5], %s8588
          %8590 = dma.done %s8586, 1024
        $region80: #{style_transfer_forward.1} parent=75 // pred_fallthru
          _
        // Predicated region
        $region81: #{style_transfer_forward.1} parent=75 // pred_check
          %p8591 = pneg %p316
        $region82: #{style_transfer_forward.1} parent=75 // pred_check_branch
          %8593 = sbr.rel (%p8591) target = $region84
        $region83: #{style_transfer_forward.1} parent=75 // pred_region
          %s8594 = sand.u32 %s301, 1
          %s8595 = scalar_lea.sflag [#allocation8], %s8594
          %s8596 = sand.u32 %s301, 1
          %s8597 = smul.addr %s8596, 16
          %s8598 = scalar_lea.vmem [#allocation7], %s8597
          %8599 = dma.done %s8595, 256
        $region84: #{style_transfer_forward.1} parent=75 // pred_fallthru
          _
      $region76: #{style_transfer_forward.1} parent=5 // pred_fallthru
        _
    $region6: #{style_transfer_forward.1} parent=1 // loop_footer
      %s29 = sadd.s32 1, %s25
    $region7: #{style_transfer_forward.1} parent=1 // loop_footer_branch
      %24 = sbr.rel target = $region3
    $region8: #{style_transfer_forward.1} parent=1 // loop_exit
      _
    %8600 = vsyncpa [#allocation6], 1
    %s8601 = scalar_lea.sflag [#allocation6], 1
    %8602 = vsyncpa %s8601, 1
    %8603 = vsyncpa [#allocation8], 1
    %s8604 = scalar_lea.sflag [#allocation8], 1
    %8605 = vsyncpa %s8604, 1

</llo_original>
